<compile_context>
chip_gen: v7x
topology: tpu7x:2x2x1
jax: 0.10.0
libtpu: 0.0.40
codegen_flags: <defaults>
</compile_context>

<pallas_src>
import functools
import math

import jax
import jax.numpy as jnp
from jax.experimental import pallas as pl
from jax.experimental.pallas import tpu as pltpu


# Per-layer weight ordering used both by the wrapper and the kernel unpack.
_LAYER_KEYS = ("wq", "bq", "wk", "bk", "wv", "bv", "wo", "bo",
               "ln1_g", "ln1_b", "wi", "bi", "wf", "bf", "ln2_g", "ln2_b")


# ----------------------------- Pallas kernel -----------------------------

def _encoder_chunk_kernel(*refs, nH, dh, n_layers, first, pool):
    """Embedding-LN (first chunk) + n_layers BERT encoder layers + masked-max
    pooling (last chunk) for one batch element per grid step."""
    idx = 0
    x_ref = refs[idx]; idx += 1                      # (1, S, H) bf16
    amask_ref = refs[idx]; idx += 1                  # (1, 1, S) additive {0, -1e4}
    pmask_ref = None
    if pool:
        pmask_ref = refs[idx]; idx += 1              # (1, S, 1) {0, 1}
    if first:
        eg_ref = refs[idx]; eb_ref = refs[idx + 1]; idx += 2
    layer_refs = []
    for _ in range(n_layers):
        layer_refs.append(refs[idx:idx + 16]); idx += 16
    o_ref = refs[idx]

    S, H = x_ref.shape[1], x_ref.shape[2]
    scale = 1.0 / math.sqrt(dh)

    def ln(v, g, b):
        mu = jnp.mean(v, axis=-1, keepdims=True)
        var = jnp.mean((v - mu) ** 2, axis=-1, keepdims=True)
        return (v - mu) * jax.lax.rsqrt(var + 1e-12) * g + b

    x = x_ref[0].astype(jnp.float32)                 # (S, H) f32
    if first:
        x = ln(x, eg_ref[...], eb_ref[...])          # fused embedding LayerNorm

    # Hoisted once per chunk: additive mask broadcast to (S, S).
    amask2 = jnp.broadcast_to(amask_ref[0], (S, S))

    # dot_general dim-numbers (leading head batch dim everywhere).
    dn_proj = (((2,), (1,)), ((0,), (0,)))           # (nH,S,H) x (nH,H,dh)  -> (nH,S,dh)
    dn_qkT = (((2,), (2,)), ((0,), (0,)))            # (nH,S,dh) x (nH,S,dh) -> (nH,S,S)
    dn_pv = (((2,), (1,)), ((0,), (0,)))             # (nH,S,S) x (nH,S,dh)  -> (nH,S,dh)
    dn_out = (((2,), (1,)), ((0,), (0,)))            # (nH,S,dh) x (nH,dh,H) -> (nH,S,H)

    for li in range(n_layers):
        (wq, bq, wk, bk, wv, bv, wo, bo, g1, b1,
         wi, bi, wf, bf, g2, b2) = layer_refs[li]

        xb = x.astype(jnp.bfloat16)
        xh = jnp.broadcast_to(xb, (nH, S, H))        # shared lhs for the head batch

        # --- head-batched Q/K/V projections (head-major weights, no slicing) ---
        q = jax.lax.dot_general(xh, wq[...], dn_proj,
                                preferred_element_type=jnp.float32) + bq[...]
        k = jax.lax.dot_general(xh, wk[...], dn_proj,
                                preferred_element_type=jnp.float32) + bk[...]
        v = jax.lax.dot_general(xh, wv[...], dn_proj,
                                preferred_element_type=jnp.float32) + bv[...]
        q = q * scale                                # f32 scaling (not folded into bf16 weights)

        # --- batched attention scores + softmax ---
        s = jax.lax.dot_general(q.astype(jnp.bfloat16), k.astype(jnp.bfloat16),
                                dn_qkT, preferred_element_type=jnp.float32)
        s = s + amask2                               # single add on (nH, S, S)
        m = jnp.max(s, axis=-1, keepdims=True)
        p = jnp.exp(s - m)
        denom = jnp.sum(p, axis=-1, keepdims=True)   # (nH, S, 1)

        ctx = jax.lax.dot_general(p.astype(jnp.bfloat16), v.astype(jnp.bfloat16),
                                  dn_pv, preferred_element_type=jnp.float32)
        # Normalize after p@v: S*dh multiplies per head instead of S*S.
        ctx = ctx * pl.reciprocal(denom, approx=False)

        # --- output projection: batched per head, then summed over heads ---
        attn_h = jax.lax.dot_general(ctx.astype(jnp.bfloat16), wo[...],
                                     dn_out, preferred_element_type=jnp.float32)
        attn = attn_h[0]
        for h in range(1, nH):                       # cheap leading-dim adds (== concat @ Wo)
            attn = attn + attn_h[h]
        attn = attn + bo[...]
        x1 = ln(x + attn, g1[...], b1[...])

        # --- FFN + GELU + residual + LayerNorm ---
        inter = jnp.dot(x1.astype(jnp.bfloat16), wi[...],
                        preferred_element_type=jnp.float32) + bi[...]
        c = math.sqrt(2.0 / math.pi)
        # TODO(synk): HF BERT default is the exact erf GELU; tanh approx differs ~1e-3.
        inter = 0.5 * inter * (1.0 + jnp.tanh(c * (inter + 0.044715 * inter * inter * inter)))
        ffn = jnp.dot(inter.astype(jnp.bfloat16), wf[...],
                      preferred_element_type=jnp.float32) + bf[...]
        x = ln(x1 + ffn, g2[...], b2[...])

    if pool:
        # TBert head fused into the last chunk: (hidden * mask) then max over seq.
        pm = pmask_ref[0]                            # (S, 1)
        o_ref[0] = jnp.max(x * pm, axis=0, keepdims=True)        # (1, H) f32
    else:
        o_ref[0] = x.astype(o_ref.dtype)             # bf16 hidden carried between chunks


# ----------------------------- Wrapper -----------------------------

def encoder_chunk(x, amask, layers, *, nH, dh, first, emb_ln=None, pool_mask=None):
    """One pallas_call covering `layers` encoder layers (plus embedding-LN on the
    first chunk, plus masked-max pooling on the last chunk).  Grid over batch."""
    B, S, H = x.shape
    I = layers[0]["wi"].shape[1]
    pool = pool_mask is not None
    n_layers = len(layers)

    def build(single_buffer_weights):
        if single_buffer_weights:
            wkw = {"pipeline_mode": pl.Buffered(buffer_count=1)}   # constant index map
        else:
            wkw = {}

        def wspec(arr):
            return pl.BlockSpec(arr.shape, lambda b, _n=arr.ndim: (0,) * _n, **wkw)

        in_specs = [pl.BlockSpec((1, S, H), lambda b: (b, 0, 0)),
                    pl.BlockSpec((1, 1, S), lambda b: (b, 0, 0))]
        args = [x, amask]
        if pool:
            in_specs.append(pl.BlockSpec((1, S, 1), lambda b: (b, 0, 0)))
            args.append(pool_mask)
        if first:
            for w in emb_ln:
                in_specs.append(wspec(w)); args.append(w)
        for layer in layers:
            for name in _LAYER_KEYS:
                w = layer[name]
                in_specs.append(wspec(w)); args.append(w)

        if pool:
            out_shape = jax.ShapeDtypeStruct((B, 1, H), jnp.float32)
            out_specs = pl.BlockSpec((1, 1, H), lambda b: (b, 0, 0))
        else:
            out_shape = jax.ShapeDtypeStruct((B, S, H), jnp.bfloat16)
            out_specs = pl.BlockSpec((1, S, H), lambda b: (b, 0, 0))

        n_data = 2 + (1 if pool else 0)
        wbytes = sum(int(a.size) * a.dtype.itemsize for a in args[n_data:])
        act_bytes = 4 * (nH * S * S + 3 * nH * S * dh + nH * S * H + S * I + 6 * S * H)
        io_bytes = 2 * (S * H * 2 + 3 * S * 4 + (H * 4 if pool else S * H * 2))
        need = wbytes * (1 if single_buffer_weights else 2) + 3 * act_bytes + io_bytes + (4 << 20)
        vmem_limit = int(min(100 << 20, max(32 << 20, need)))

        flops = int(B * n_layers * (6 * S * H * H + 4 * S * S * H
                                    + 2 * S * H * H + 4 * S * H * I))
        trans = int(B * n_layers * (nH * S * S + S * I + 4 * S))
        bytes_acc = int(B * S * H * 2 + (B * H * 4 if pool else B * S * H * 2)
                        + wbytes + B * S * 4 * (2 if pool else 1))

        return pl.pallas_call(
            functools.partial(_encoder_chunk_kernel, nH=nH, dh=dh,
                              n_layers=n_layers, first=first, pool=pool),
            out_shape=out_shape,
            grid=(B,),
            in_specs=in_specs,
            out_specs=out_specs,
            compiler_params=pltpu.CompilerParams(
                dimension_semantics=("parallel",),
                vmem_limit_bytes=vmem_limit),
            cost_estimate=pl.CostEstimate(flops=flops, transcendentals=trans,
                                          bytes_accessed=bytes_acc),
        )(*args)

    try:
        return build(True)
    except Exception:
        # Fallback for JAX builds where pipeline_mode / Buffered(1) is unsupported
        # on pallas_call block specs: default double-buffered weights.
        return build(False)


# ----------------------------- Params -----------------------------

def init_params(key, *, vocab=100, max_pos=16, type_vocab=2,
                H=32, nH=4, inter=64, n_layers=2):
    def nrm(k, shape):
        return 0.02 * jax.random.normal(k, shape, dtype=jnp.float32)

    keys = jax.random.split(key, 3 + n_layers)
    params = {
        "cfg": {"H": H, "nH": nH, "dh": H // nH, "inter": inter},
        "word_emb": nrm(keys[0], (vocab, H)),
        "pos_emb": nrm(keys[1], (max_pos, H)),
        "type_emb": nrm(keys[2], (type_vocab, H)),
        "emb_ln_g": jnp.ones((H,), jnp.float32),
        "emb_ln_b": jnp.zeros((H,), jnp.float32),
        "layers": [],
    }
    for li in range(n_layers):
        lk = jax.random.split(keys[3 + li], 6)
        params["layers"].append({
            "wq": nrm(lk[0], (H, H)), "bq": jnp.zeros((H,), jnp.float32),
            "wk": nrm(lk[1], (H, H)), "bk": jnp.zeros((H,), jnp.float32),
            "wv": nrm(lk[2], (H, H)), "bv": jnp.zeros((H,), jnp.float32),
            "wo": nrm(lk[3], (H, H)), "bo": jnp.zeros((H,), jnp.float32),
            "ln1_g": jnp.ones((H,), jnp.float32), "ln1_b": jnp.zeros((H,), jnp.float32),
            "wi": nrm(lk[4], (H, inter)), "bi": jnp.zeros((inter,), jnp.float32),
            "wf": nrm(lk[5], (inter, H)), "bf": jnp.zeros((H,), jnp.float32),
            "ln2_g": jnp.ones((H,), jnp.float32), "ln2_b": jnp.zeros((H,), jnp.float32),
        })
    return params


def prepare_params(raw):
    """Pack params for the fused kernel: head-major bf16 attention weights
    ((nH,H,dh) / (nH,dh,H)), f32 biases / LN params with broadcast-ready shapes."""
    cfg = raw["cfg"]
    H, nH, dh = cfg["H"], cfg["nH"], cfg["dh"]

    def head_major_w(w):                         # (H, H) -> (nH, H, dh)
        return jnp.transpose(w.reshape(H, nH, dh), (1, 0, 2)).astype(jnp.bfloat16)

    def head_major_b(b):                         # (H,) -> (nH, 1, dh)
        return b.reshape(nH, 1, dh).astype(jnp.float32)

    out = {"cfg": cfg,
           "word_emb": raw["word_emb"], "pos_emb": raw["pos_emb"],
           "type_emb": raw["type_emb"],
           "emb_ln_g": raw["emb_ln_g"].reshape(1, H).astype(jnp.float32),
           "emb_ln_b": raw["emb_ln_b"].reshape(1, H).astype(jnp.float32),
           "layers": []}
    for lyr in raw["layers"]:
        out["layers"].append({
            "wq": head_major_w(lyr["wq"]), "bq": head_major_b(lyr["bq"]),
            "wk": head_major_w(lyr["wk"]), "bk": head_major_b(lyr["bk"]),
            "wv": head_major_w(lyr["wv"]), "bv": head_major_b(lyr["bv"]),
            "wo": lyr["wo"].reshape(nH, dh, H).astype(jnp.bfloat16),
            "bo": lyr["bo"].reshape(1, H).astype(jnp.float32),
            "ln1_g": lyr["ln1_g"].reshape(1, H), "ln1_b": lyr["ln1_b"].reshape(1, H),
            "wi": lyr["wi"].astype(jnp.bfloat16),
            "bi": lyr["bi"].reshape(1, -1).astype(jnp.float32),
            "wf": lyr["wf"].astype(jnp.bfloat16),
            "bf": lyr["bf"].reshape(1, -1).astype(jnp.float32),
            "ln2_g": lyr["ln2_g"].reshape(1, H), "ln2_b": lyr["ln2_b"].reshape(1, H),
        })
    return out


# ----------------------------- Forward -----------------------------

def tbert_forward(params, input_ids, attention_mask, *, layers_per_call=None):
    """TBert.forward: bert(input_ids, attention_mask, attention_mask) ->
    last_hidden_state; multiply by mask.unsqueeze(-1); max over the seq dim."""
    B, S = input_ids.shape
    cfg = params["cfg"]
    H, nH, dh = cfg["H"], cfg["nH"], cfg["dh"]

    # --- embeddings (table gathers stay as XLA gathers) ---
    we = params["word_emb"][input_ids]                          # [B, S, H]
    pe = params["pos_emb"][jnp.arange(S)][None, :, :]           # [1, S, H]
    # NOTE: TBert passes attention_mask as token_type_ids — reproduce that.
    te = params["type_emb"][attention_mask]                     # [B, S, H]
    # Embedding LayerNorm is fused into the first chunk's kernel; hidden is bf16.
    x = (we + pe + te).astype(jnp.bfloat16)

    mask_f = attention_mask.astype(jnp.float32)                 # [B, S]
    amask = ((1.0 - mask_f) * (-10000.0)).reshape(B, 1, S)      # additive, hoisted
    pmask = mask_f.reshape(B, S, 1)                             # pooling mask

    layers = params["layers"]
    n = len(layers)
    lpc = n if layers_per_call is None else max(1, int(layers_per_call))

    pooled = None
    start = 0
    while start < n:
        chunk = layers[start:start + lpc]
        first = (start == 0)
        last = (start + len(chunk) >= n)
        res = encoder_chunk(
            x, amask, chunk, nH=nH, dh=dh, first=first,
            emb_ln=(params["emb_ln_g"], params["emb_ln_b"]) if first else None,
            pool_mask=pmask if last else None)
        if last:
            pooled = res                                        # [B, 1, H] f32
        else:
            x = res                                             # [B, S, H] bf16
        start += len(chunk)

    return pooled.reshape(B, H)                                 # [B, H]


# ----------------------------- main -----------------------------

if __name__ == "__main__":
    B, S = 2, 8
    key = jax.random.PRNGKey(0)
    k_param, k_ids = jax.random.split(key)

    raw = init_params(k_param, vocab=100, max_pos=16, type_vocab=2,
                      H=32, nH=4, inter=64, n_layers=2)
    params = prepare_params(raw)

    input_ids = jax.random.randint(k_ids, (B, S), 0, 100, dtype=jnp.int32)
    # second sequence has padding (trailing zeros in the mask)
    lengths = jnp.array([S, 5], dtype=jnp.int32)
    attention_mask = (jnp.arange(S)[None, :] < lengths[:, None]).astype(jnp.int32)

    out = tbert_forward(params, input_ids, attention_mask)      # [B, H]
    jax.block_until_ready(out)
    assert out.shape == (B, 32) and out.dtype == jnp.float32
    print("KERNEL_OK")
</pallas_src>

<mosaic_0001>
module attributes {stable_mosaic.version = 11 : i64} {
  func.func @_encoder_chunk_kernel(%arg0: i32, %arg1: memref<1x8x32xbf16, #tpu.memory_space<vmem>>, %arg2: memref<1x1x8xf32, #tpu.memory_space<vmem>>, %arg3: memref<1x8x1xf32, #tpu.memory_space<vmem>>, %arg4: memref<1x32xf32, #tpu.memory_space<vmem>>, %arg5: memref<1x32xf32, #tpu.memory_space<vmem>>, %arg6: memref<4x32x8xbf16, #tpu.memory_space<vmem>>, %arg7: memref<4x1x8xf32, #tpu.memory_space<vmem>>, %arg8: memref<4x32x8xbf16, #tpu.memory_space<vmem>>, %arg9: memref<4x1x8xf32, #tpu.memory_space<vmem>>, %arg10: memref<4x32x8xbf16, #tpu.memory_space<vmem>>, %arg11: memref<4x1x8xf32, #tpu.memory_space<vmem>>, %arg12: memref<4x8x32xbf16, #tpu.memory_space<vmem>>, %arg13: memref<1x32xf32, #tpu.memory_space<vmem>>, %arg14: memref<1x32xf32, #tpu.memory_space<vmem>>, %arg15: memref<1x32xf32, #tpu.memory_space<vmem>>, %arg16: memref<32x64xbf16, #tpu.memory_space<vmem>>, %arg17: memref<1x64xf32, #tpu.memory_space<vmem>>, %arg18: memref<64x32xbf16, #tpu.memory_space<vmem>>, %arg19: memref<1x32xf32, #tpu.memory_space<vmem>>, %arg20: memref<1x32xf32, #tpu.memory_space<vmem>>, %arg21: memref<1x32xf32, #tpu.memory_space<vmem>>, %arg22: memref<4x32x8xbf16, #tpu.memory_space<vmem>>, %arg23: memref<4x1x8xf32, #tpu.memory_space<vmem>>, %arg24: memref<4x32x8xbf16, #tpu.memory_space<vmem>>, %arg25: memref<4x1x8xf32, #tpu.memory_space<vmem>>, %arg26: memref<4x32x8xbf16, #tpu.memory_space<vmem>>, %arg27: memref<4x1x8xf32, #tpu.memory_space<vmem>>, %arg28: memref<4x8x32xbf16, #tpu.memory_space<vmem>>, %arg29: memref<1x32xf32, #tpu.memory_space<vmem>>, %arg30: memref<1x32xf32, #tpu.memory_space<vmem>>, %arg31: memref<1x32xf32, #tpu.memory_space<vmem>>, %arg32: memref<32x64xbf16, #tpu.memory_space<vmem>>, %arg33: memref<1x64xf32, #tpu.memory_space<vmem>>, %arg34: memref<64x32xbf16, #tpu.memory_space<vmem>>, %arg35: memref<1x32xf32, #tpu.memory_space<vmem>>, %arg36: memref<1x32xf32, #tpu.memory_space<vmem>>, %arg37: memref<1x32xf32, #tpu.memory_space<vmem>>, %arg38: memref<1x1x32xf32, #tpu.memory_space<vmem>>) attributes {dimension_semantics = [#tpu.dimension_semantics<parallel>], iteration_bounds = array<i64: 2>, scalar_prefetch = 0 : i64, scratch_operands = 0 : i64, tpu.core_type = #tpu.core_type<tc>, window_params = [{transform_indices = @transform_0, window_bounds = array<i64: 1, 8, 32>}, {transform_indices = @transform_1, window_bounds = array<i64: 1, 1, 8>}, {transform_indices = @transform_2, window_bounds = array<i64: 1, 8, 1>}, {pipeline_mode = #tpu.pipeline_mode<synchronous>, transform_indices = @transform_3, window_bounds = array<i64: 1, 32>}, {pipeline_mode = #tpu.pipeline_mode<synchronous>, transform_indices = @transform_4, window_bounds = array<i64: 1, 32>}, {pipeline_mode = #tpu.pipeline_mode<synchronous>, transform_indices = @transform_5, window_bounds = array<i64: 4, 32, 8>}, {pipeline_mode = #tpu.pipeline_mode<synchronous>, transform_indices = @transform_6, window_bounds = array<i64: 4, 1, 8>}, {pipeline_mode = #tpu.pipeline_mode<synchronous>, transform_indices = @transform_7, window_bounds = array<i64: 4, 32, 8>}, {pipeline_mode = #tpu.pipeline_mode<synchronous>, transform_indices = @transform_8, window_bounds = array<i64: 4, 1, 8>}, {pipeline_mode = #tpu.pipeline_mode<synchronous>, transform_indices = @transform_9, window_bounds = array<i64: 4, 32, 8>}, {pipeline_mode = #tpu.pipeline_mode<synchronous>, transform_indices = @transform_10, window_bounds = array<i64: 4, 1, 8>}, {pipeline_mode = #tpu.pipeline_mode<synchronous>, transform_indices = @transform_11, window_bounds = array<i64: 4, 8, 32>}, {pipeline_mode = #tpu.pipeline_mode<synchronous>, transform_indices = @transform_12, window_bounds = array<i64: 1, 32>}, {pipeline_mode = #tpu.pipeline_mode<synchronous>, transform_indices = @transform_13, window_bounds = array<i64: 1, 32>}, {pipeline_mode = #tpu.pipeline_mode<synchronous>, transform_indices = @transform_14, window_bounds = array<i64: 1, 32>}, {pipeline_mode = #tpu.pipeline_mode<synchronous>, transform_indices = @transform_15, window_bounds = array<i64: 32, 64>}, {pipeline_mode = #tpu.pipeline_mode<synchronous>, transform_indices = @transform_16, window_bounds = array<i64: 1, 64>}, {pipeline_mode = #tpu.pipeline_mode<synchronous>, transform_indices = @transform_17, window_bounds = array<i64: 64, 32>}, {pipeline_mode = #tpu.pipeline_mode<synchronous>, transform_indices = @transform_18, window_bounds = array<i64: 1, 32>}, {pipeline_mode = #tpu.pipeline_mode<synchronous>, transform_indices = @transform_19, window_bounds = array<i64: 1, 32>}, {pipeline_mode = #tpu.pipeline_mode<synchronous>, transform_indices = @transform_20, window_bounds = array<i64: 1, 32>}, {pipeline_mode = #tpu.pipeline_mode<synchronous>, transform_indices = @transform_21, window_bounds = array<i64: 4, 32, 8>}, {pipeline_mode = #tpu.pipeline_mode<synchronous>, transform_indices = @transform_22, window_bounds = array<i64: 4, 1, 8>}, {pipeline_mode = #tpu.pipeline_mode<synchronous>, transform_indices = @transform_23, window_bounds = array<i64: 4, 32, 8>}, {pipeline_mode = #tpu.pipeline_mode<synchronous>, transform_indices = @transform_24, window_bounds = array<i64: 4, 1, 8>}, {pipeline_mode = #tpu.pipeline_mode<synchronous>, transform_indices = @transform_25, window_bounds = array<i64: 4, 32, 8>}, {pipeline_mode = #tpu.pipeline_mode<synchronous>, transform_indices = @transform_26, window_bounds = array<i64: 4, 1, 8>}, {pipeline_mode = #tpu.pipeline_mode<synchronous>, transform_indices = @transform_27, window_bounds = array<i64: 4, 8, 32>}, {pipeline_mode = #tpu.pipeline_mode<synchronous>, transform_indices = @transform_28, window_bounds = array<i64: 1, 32>}, {pipeline_mode = #tpu.pipeline_mode<synchronous>, transform_indices = @transform_29, window_bounds = array<i64: 1, 32>}, {pipeline_mode = #tpu.pipeline_mode<synchronous>, transform_indices = @transform_30, window_bounds = array<i64: 1, 32>}, {pipeline_mode = #tpu.pipeline_mode<synchronous>, transform_indices = @transform_31, window_bounds = array<i64: 32, 64>}, {pipeline_mode = #tpu.pipeline_mode<synchronous>, transform_indices = @transform_32, window_bounds = array<i64: 1, 64>}, {pipeline_mode = #tpu.pipeline_mode<synchronous>, transform_indices = @transform_33, window_bounds = array<i64: 64, 32>}, {pipeline_mode = #tpu.pipeline_mode<synchronous>, transform_indices = @transform_34, window_bounds = array<i64: 1, 32>}, {pipeline_mode = #tpu.pipeline_mode<synchronous>, transform_indices = @transform_35, window_bounds = array<i64: 1, 32>}, {pipeline_mode = #tpu.pipeline_mode<synchronous>, transform_indices = @transform_36, window_bounds = array<i64: 1, 32>}, {transform_indices = @transform_37, window_bounds = array<i64: 1, 1, 32>}]} {
    %c0 = arith.constant 0 : index
    %c0_0 = arith.constant 0 : index
    %c0_1 = arith.constant 0 : index
    %0 = vector.load %arg1[%c0, %c0_0, %c0_1] : memref<1x8x32xbf16, #tpu.memory_space<vmem>>, vector<1x8x32xbf16>
    %1 = vector.shape_cast %0 : vector<1x8x32xbf16> to vector<8x32xbf16>
    %2 = arith.extf %1 : vector<8x32xbf16> to vector<8x32xf32>
    %c0_2 = arith.constant 0 : index
    %c0_3 = arith.constant 0 : index
    %3 = vector.load %arg4[%c0_2, %c0_3] : memref<1x32xf32, #tpu.memory_space<vmem>>, vector<1x32xf32>
    %c0_4 = arith.constant 0 : index
    %c0_5 = arith.constant 0 : index
    %4 = vector.load %arg5[%c0_4, %c0_5] : memref<1x32xf32, #tpu.memory_space<vmem>>, vector<1x32xf32>
    %cst = arith.constant dense<0.000000e+00> : vector<8xf32>
    %5 = vector.multi_reduction <add>, %2, %cst [1] : vector<8x32xf32> to vector<8xf32>
    %6 = vector.shape_cast %5 : vector<8xf32> to vector<8x1xf32>
    %cst_6 = arith.constant 3.200000e+01 : f32
    %7 = vector.broadcast %cst_6 : f32 to vector<8x1xf32>
    %8 = arith.divf %6, %7 : vector<8x1xf32>
    %9 = vector.broadcast %8 : vector<8x1xf32> to vector<8x32xf32>
    %10 = arith.subf %2, %9 : vector<8x32xf32>
    %11 = arith.mulf %10, %10 : vector<8x32xf32>
    %cst_7 = arith.constant dense<0.000000e+00> : vector<8xf32>
    %12 = vector.multi_reduction <add>, %11, %cst_7 [1] : vector<8x32xf32> to vector<8xf32>
    %13 = vector.shape_cast %12 : vector<8xf32> to vector<8x1xf32>
    %cst_8 = arith.constant 3.200000e+01 : f32
    %14 = vector.broadcast %cst_8 : f32 to vector<8x1xf32>
    %15 = arith.divf %13, %14 : vector<8x1xf32>
    %16 = vector.broadcast %8 : vector<8x1xf32> to vector<8x32xf32>
    %17 = arith.subf %2, %16 : vector<8x32xf32>
    %cst_9 = arith.constant 9.99999996E-13 : f32
    %18 = vector.broadcast %cst_9 : f32 to vector<8x1xf32>
    %19 = arith.addf %15, %18 : vector<8x1xf32>
    %20 = math.rsqrt %19 : vector<8x1xf32>
    %21 = vector.broadcast %20 : vector<8x1xf32> to vector<8x32xf32>
    %22 = arith.mulf %17, %21 : vector<8x32xf32>
    %23 = vector.broadcast %3 : vector<1x32xf32> to vector<8x32xf32>
    %24 = arith.mulf %22, %23 : vector<8x32xf32>
    %25 = vector.broadcast %4 : vector<1x32xf32> to vector<8x32xf32>
    %26 = arith.addf %24, %25 : vector<8x32xf32>
    %c0_10 = arith.constant 0 : index
    %c0_11 = arith.constant 0 : index
    %c0_12 = arith.constant 0 : index
    %27 = vector.load %arg2[%c0_10, %c0_11, %c0_12] : memref<1x1x8xf32, #tpu.memory_space<vmem>>, vector<1x1x8xf32>
    %28 = vector.shape_cast %27 : vector<1x1x8xf32> to vector<1x8xf32>
    %29 = vector.shape_cast %28 : vector<1x8xf32> to vector<1x8xf32>
    %30 = vector.broadcast %29 : vector<1x8xf32> to vector<8x8xf32>
    %31 = arith.truncf %26 : vector<8x32xf32> to vector<8x32xbf16>
    %32 = vector.shape_cast %31 : vector<8x32xbf16> to vector<1x8x32xbf16>
    %33 = vector.broadcast %32 : vector<1x8x32xbf16> to vector<4x8x32xbf16>
    %c0_13 = arith.constant 0 : index
    %c0_14 = arith.constant 0 : index
    %c0_15 = arith.constant 0 : index
    %34 = vector.load %arg6[%c0_13, %c0_14, %c0_15] : memref<4x32x8xbf16, #tpu.memory_space<vmem>>, vector<4x32x8xbf16>
    %cst_16 = arith.constant dense<0.000000e+00> : vector<4x8x8xf32>
    %35 = tpu.matmul %33, %34, %cst_16 {dimension_numbers = #tpu.dot_dimension_numbers<[2], [1], [1], [2], [0, 0, 0, 1, 1, 2], [0], [0]>} : vector<4x8x32xbf16>, vector<4x32x8xbf16>, vector<4x8x8xf32> -> vector<4x8x8xf32>
    %c0_17 = arith.constant 0 : index
    %c0_18 = arith.constant 0 : index
    %c0_19 = arith.constant 0 : index
    %36 = vector.load %arg7[%c0_17, %c0_18, %c0_19] : memref<4x1x8xf32, #tpu.memory_space<vmem>>, vector<4x1x8xf32>
    %37 = vector.broadcast %36 : vector<4x1x8xf32> to vector<4x8x8xf32>
    %38 = arith.addf %35, %37 : vector<4x8x8xf32>
    %c0_20 = arith.constant 0 : index
    %c0_21 = arith.constant 0 : index
    %c0_22 = arith.constant 0 : index
    %39 = vector.load %arg8[%c0_20, %c0_21, %c0_22] : memref<4x32x8xbf16, #tpu.memory_space<vmem>>, vector<4x32x8xbf16>
    %cst_23 = arith.constant dense<0.000000e+00> : vector<4x8x8xf32>
    %40 = tpu.matmul %33, %39, %cst_23 {dimension_numbers = #tpu.dot_dimension_numbers<[2], [1], [1], [2], [0, 0, 0, 1, 1, 2], [0], [0]>} : vector<4x8x32xbf16>, vector<4x32x8xbf16>, vector<4x8x8xf32> -> vector<4x8x8xf32>
    %c0_24 = arith.constant 0 : index
    %c0_25 = arith.constant 0 : index
    %c0_26 = arith.constant 0 : index
    %41 = vector.load %arg9[%c0_24, %c0_25, %c0_26] : memref<4x1x8xf32, #tpu.memory_space<vmem>>, vector<4x1x8xf32>
    %42 = vector.broadcast %41 : vector<4x1x8xf32> to vector<4x8x8xf32>
    %43 = arith.addf %40, %42 : vector<4x8x8xf32>
    %c0_27 = arith.constant 0 : index
    %c0_28 = arith.constant 0 : index
    %c0_29 = arith.constant 0 : index
    %44 = vector.load %arg10[%c0_27, %c0_28, %c0_29] : memref<4x32x8xbf16, #tpu.memory_space<vmem>>, vector<4x32x8xbf16>
    %cst_30 = arith.constant dense<0.000000e+00> : vector<4x8x8xf32>
    %45 = tpu.matmul %33, %44, %cst_30 {dimension_numbers = #tpu.dot_dimension_numbers<[2], [1], [1], [2], [0, 0, 0, 1, 1, 2], [0], [0]>} : vector<4x8x32xbf16>, vector<4x32x8xbf16>, vector<4x8x8xf32> -> vector<4x8x8xf32>
    %c0_31 = arith.constant 0 : index
    %c0_32 = arith.constant 0 : index
    %c0_33 = arith.constant 0 : index
    %46 = vector.load %arg11[%c0_31, %c0_32, %c0_33] : memref<4x1x8xf32, #tpu.memory_space<vmem>>, vector<4x1x8xf32>
    %47 = vector.broadcast %46 : vector<4x1x8xf32> to vector<4x8x8xf32>
    %48 = arith.addf %45, %47 : vector<4x8x8xf32>
    %cst_34 = arith.constant 0.353553385 : f32
    %49 = vector.broadcast %cst_34 : f32 to vector<4x8x8xf32>
    %50 = arith.mulf %38, %49 : vector<4x8x8xf32>
    %51 = arith.truncf %50 : vector<4x8x8xf32> to vector<4x8x8xbf16>
    %52 = arith.truncf %43 : vector<4x8x8xf32> to vector<4x8x8xbf16>
    %cst_35 = arith.constant dense<0.000000e+00> : vector<4x8x8xf32>
    %53 = tpu.matmul %51, %52, %cst_35 {dimension_numbers = #tpu.dot_dimension_numbers<[2], [2], [1], [1], [0, 0, 0, 1, 1, 1], [0], [0]>} : vector<4x8x8xbf16>, vector<4x8x8xbf16>, vector<4x8x8xf32> -> vector<4x8x8xf32>
    %54 = vector.shape_cast %30 : vector<8x8xf32> to vector<1x8x8xf32>
    %55 = vector.broadcast %54 : vector<1x8x8xf32> to vector<4x8x8xf32>
    %56 = arith.addf %53, %55 : vector<4x8x8xf32>
    %cst_36 = arith.constant dense<0xFF800000> : vector<4x8xf32>
    %57 = vector.multi_reduction <maximumf>, %56, %cst_36 [2] : vector<4x8x8xf32> to vector<4x8xf32>
    %58 = vector.shape_cast %57 : vector<4x8xf32> to vector<4x8x1xf32>
    %59 = vector.broadcast %58 : vector<4x8x1xf32> to vector<4x8x8xf32>
    %60 = arith.subf %56, %59 : vector<4x8x8xf32>
    %61 = math.exp %60 : vector<4x8x8xf32>
    %cst_37 = arith.constant dense<0.000000e+00> : vector<4x8xf32>
    %62 = vector.multi_reduction <add>, %61, %cst_37 [2] : vector<4x8x8xf32> to vector<4x8xf32>
    %63 = vector.shape_cast %62 : vector<4x8xf32> to vector<4x8x1xf32>
    %64 = arith.truncf %61 : vector<4x8x8xf32> to vector<4x8x8xbf16>
    %65 = arith.truncf %48 : vector<4x8x8xf32> to vector<4x8x8xbf16>
    %cst_38 = arith.constant dense<0.000000e+00> : vector<4x8x8xf32>
    %66 = tpu.matmul %64, %65, %cst_38 {dimension_numbers = #tpu.dot_dimension_numbers<[2], [1], [1], [2], [0, 0, 0, 1, 1, 2], [0], [0]>} : vector<4x8x8xbf16>, vector<4x8x8xbf16>, vector<4x8x8xf32> -> vector<4x8x8xf32>
    %67 = tpu.reciprocal %63 : vector<4x8x1xf32> -> vector<4x8x1xf32>
    %68 = vector.broadcast %67 : vector<4x8x1xf32> to vector<4x8x8xf32>
    %69 = arith.mulf %66, %68 : vector<4x8x8xf32>
    %70 = arith.truncf %69 : vector<4x8x8xf32> to vector<4x8x8xbf16>
    %c0_39 = arith.constant 0 : index
    %c0_40 = arith.constant 0 : index
    %c0_41 = arith.constant 0 : index
    %71 = vector.load %arg12[%c0_39, %c0_40, %c0_41] : memref<4x8x32xbf16, #tpu.memory_space<vmem>>, vector<4x8x32xbf16>
    %cst_42 = arith.constant dense<0.000000e+00> : vector<4x8x32xf32>
    %72 = tpu.matmul %70, %71, %cst_42 {dimension_numbers = #tpu.dot_dimension_numbers<[2], [1], [1], [2], [0, 0, 0, 1, 1, 2], [0], [0]>} : vector<4x8x8xbf16>, vector<4x8x32xbf16>, vector<4x8x32xf32> -> vector<4x8x32xf32>
    %73 = vector.extract_strided_slice %72 {offsets = [0, 0, 0], sizes = [1, 8, 32], strides = [1, 1, 1]} : vector<4x8x32xf32> to vector<1x8x32xf32>
    %74 = vector.shape_cast %73 : vector<1x8x32xf32> to vector<8x32xf32>
    %75 = vector.extract_strided_slice %72 {offsets = [1, 0, 0], sizes = [1, 8, 32], strides = [1, 1, 1]} : vector<4x8x32xf32> to vector<1x8x32xf32>
    %76 = vector.shape_cast %75 : vector<1x8x32xf32> to vector<8x32xf32>
    %77 = arith.addf %74, %76 : vector<8x32xf32>
    %78 = vector.extract_strided_slice %72 {offsets = [2, 0, 0], sizes = [1, 8, 32], strides = [1, 1, 1]} : vector<4x8x32xf32> to vector<1x8x32xf32>
    %79 = vector.shape_cast %78 : vector<1x8x32xf32> to vector<8x32xf32>
    %80 = arith.addf %77, %79 : vector<8x32xf32>
    %81 = vector.extract_strided_slice %72 {offsets = [3, 0, 0], sizes = [1, 8, 32], strides = [1, 1, 1]} : vector<4x8x32xf32> to vector<1x8x32xf32>
    %82 = vector.shape_cast %81 : vector<1x8x32xf32> to vector<8x32xf32>
    %83 = arith.addf %80, %82 : vector<8x32xf32>
    %c0_43 = arith.constant 0 : index
    %c0_44 = arith.constant 0 : index
    %84 = vector.load %arg13[%c0_43, %c0_44] : memref<1x32xf32, #tpu.memory_space<vmem>>, vector<1x32xf32>
    %85 = vector.broadcast %84 : vector<1x32xf32> to vector<8x32xf32>
    %86 = arith.addf %83, %85 : vector<8x32xf32>
    %87 = arith.addf %26, %86 : vector<8x32xf32>
    %c0_45 = arith.constant 0 : index
    %c0_46 = arith.constant 0 : index
    %88 = vector.load %arg14[%c0_45, %c0_46] : memref<1x32xf32, #tpu.memory_space<vmem>>, vector<1x32xf32>
    %c0_47 = arith.constant 0 : index
    %c0_48 = arith.constant 0 : index
    %89 = vector.load %arg15[%c0_47, %c0_48] : memref<1x32xf32, #tpu.memory_space<vmem>>, vector<1x32xf32>
    %cst_49 = arith.constant dense<0.000000e+00> : vector<8xf32>
    %90 = vector.multi_reduction <add>, %87, %cst_49 [1] : vector<8x32xf32> to vector<8xf32>
    %91 = vector.shape_cast %90 : vector<8xf32> to vector<8x1xf32>
    %cst_50 = arith.constant 3.200000e+01 : f32
    %92 = vector.broadcast %cst_50 : f32 to vector<8x1xf32>
    %93 = arith.divf %91, %92 : vector<8x1xf32>
    %94 = vector.broadcast %93 : vector<8x1xf32> to vector<8x32xf32>
    %95 = arith.subf %87, %94 : vector<8x32xf32>
    %96 = arith.mulf %95, %95 : vector<8x32xf32>
    %cst_51 = arith.constant dense<0.000000e+00> : vector<8xf32>
    %97 = vector.multi_reduction <add>, %96, %cst_51 [1] : vector<8x32xf32> to vector<8xf32>
    %98 = vector.shape_cast %97 : vector<8xf32> to vector<8x1xf32>
    %cst_52 = arith.constant 3.200000e+01 : f32
    %99 = vector.broadcast %cst_52 : f32 to vector<8x1xf32>
    %100 = arith.divf %98, %99 : vector<8x1xf32>
    %101 = vector.broadcast %93 : vector<8x1xf32> to vector<8x32xf32>
    %102 = arith.subf %87, %101 : vector<8x32xf32>
    %cst_53 = arith.constant 9.99999996E-13 : f32
    %103 = vector.broadcast %cst_53 : f32 to vector<8x1xf32>
    %104 = arith.addf %100, %103 : vector<8x1xf32>
    %105 = math.rsqrt %104 : vector<8x1xf32>
    %106 = vector.broadcast %105 : vector<8x1xf32> to vector<8x32xf32>
    %107 = arith.mulf %102, %106 : vector<8x32xf32>
    %108 = vector.broadcast %88 : vector<1x32xf32> to vector<8x32xf32>
    %109 = arith.mulf %107, %108 : vector<8x32xf32>
    %110 = vector.broadcast %89 : vector<1x32xf32> to vector<8x32xf32>
    %111 = arith.addf %109, %110 : vector<8x32xf32>
    %112 = arith.truncf %111 : vector<8x32xf32> to vector<8x32xbf16>
    %c0_54 = arith.constant 0 : index
    %c0_55 = arith.constant 0 : index
    %113 = vector.load %arg16[%c0_54, %c0_55] : memref<32x64xbf16, #tpu.memory_space<vmem>>, vector<32x64xbf16>
    %cst_56 = arith.constant dense<0.000000e+00> : vector<8x64xf32>
    %114 = tpu.matmul %112, %113, %cst_56 {dimension_numbers = #tpu.dot_dimension_numbers<[1], [0], [0], [1], [0, 0, 1, 1], [], []>} : vector<8x32xbf16>, vector<32x64xbf16>, vector<8x64xf32> -> vector<8x64xf32>
    %c0_57 = arith.constant 0 : index
    %c0_58 = arith.constant 0 : index
    %115 = vector.load %arg17[%c0_57, %c0_58] : memref<1x64xf32, #tpu.memory_space<vmem>>, vector<1x64xf32>
    %116 = vector.broadcast %115 : vector<1x64xf32> to vector<8x64xf32>
    %117 = arith.addf %114, %116 : vector<8x64xf32>
    %cst_59 = arith.constant 5.000000e-01 : f32
    %118 = vector.broadcast %cst_59 : f32 to vector<8x64xf32>
    %119 = arith.mulf %118, %117 : vector<8x64xf32>
    %cst_60 = arith.constant 4.471500e-02 : f32
    %120 = vector.broadcast %cst_60 : f32 to vector<8x64xf32>
    %121 = arith.mulf %120, %117 : vector<8x64xf32>
    %122 = arith.mulf %121, %117 : vector<8x64xf32>
    %123 = arith.mulf %122, %117 : vector<8x64xf32>
    %124 = arith.addf %117, %123 : vector<8x64xf32>
    %cst_61 = arith.constant 0.797884583 : f32
    %125 = vector.broadcast %cst_61 : f32 to vector<8x64xf32>
    %126 = arith.mulf %125, %124 : vector<8x64xf32>
    %127 = math.tanh %126 : vector<8x64xf32>
    %cst_62 = arith.constant 1.000000e+00 : f32
    %128 = vector.broadcast %cst_62 : f32 to vector<8x64xf32>
    %129 = arith.addf %128, %127 : vector<8x64xf32>
    %130 = arith.mulf %119, %129 : vector<8x64xf32>
    %131 = arith.truncf %130 : vector<8x64xf32> to vector<8x64xbf16>
    %c0_63 = arith.constant 0 : index
    %c0_64 = arith.constant 0 : index
    %132 = vector.load %arg18[%c0_63, %c0_64] : memref<64x32xbf16, #tpu.memory_space<vmem>>, vector<64x32xbf16>
    %cst_65 = arith.constant dense<0.000000e+00> : vector<8x32xf32>
    %133 = tpu.matmul %131, %132, %cst_65 {dimension_numbers = #tpu.dot_dimension_numbers<[1], [0], [0], [1], [0, 0, 1, 1], [], []>} : vector<8x64xbf16>, vector<64x32xbf16>, vector<8x32xf32> -> vector<8x32xf32>
    %c0_66 = arith.constant 0 : index
    %c0_67 = arith.constant 0 : index
    %134 = vector.load %arg19[%c0_66, %c0_67] : memref<1x32xf32, #tpu.memory_space<vmem>>, vector<1x32xf32>
    %135 = vector.broadcast %134 : vector<1x32xf32> to vector<8x32xf32>
    %136 = arith.addf %133, %135 : vector<8x32xf32>
    %137 = arith.addf %111, %136 : vector<8x32xf32>
    %c0_68 = arith.constant 0 : index
    %c0_69 = arith.constant 0 : index
    %138 = vector.load %arg20[%c0_68, %c0_69] : memref<1x32xf32, #tpu.memory_space<vmem>>, vector<1x32xf32>
    %c0_70 = arith.constant 0 : index
    %c0_71 = arith.constant 0 : index
    %139 = vector.load %arg21[%c0_70, %c0_71] : memref<1x32xf32, #tpu.memory_space<vmem>>, vector<1x32xf32>
    %cst_72 = arith.constant dense<0.000000e+00> : vector<8xf32>
    %140 = vector.multi_reduction <add>, %137, %cst_72 [1] : vector<8x32xf32> to vector<8xf32>
    %141 = vector.shape_cast %140 : vector<8xf32> to vector<8x1xf32>
    %cst_73 = arith.constant 3.200000e+01 : f32
    %142 = vector.broadcast %cst_73 : f32 to vector<8x1xf32>
    %143 = arith.divf %141, %142 : vector<8x1xf32>
    %144 = vector.broadcast %143 : vector<8x1xf32> to vector<8x32xf32>
    %145 = arith.subf %137, %144 : vector<8x32xf32>
    %146 = arith.mulf %145, %145 : vector<8x32xf32>
    %cst_74 = arith.constant dense<0.000000e+00> : vector<8xf32>
    %147 = vector.multi_reduction <add>, %146, %cst_74 [1] : vector<8x32xf32> to vector<8xf32>
    %148 = vector.shape_cast %147 : vector<8xf32> to vector<8x1xf32>
    %cst_75 = arith.constant 3.200000e+01 : f32
    %149 = vector.broadcast %cst_75 : f32 to vector<8x1xf32>
    %150 = arith.divf %148, %149 : vector<8x1xf32>
    %151 = vector.broadcast %143 : vector<8x1xf32> to vector<8x32xf32>
    %152 = arith.subf %137, %151 : vector<8x32xf32>
    %cst_76 = arith.constant 9.99999996E-13 : f32
    %153 = vector.broadcast %cst_76 : f32 to vector<8x1xf32>
    %154 = arith.addf %150, %153 : vector<8x1xf32>
    %155 = math.rsqrt %154 : vector<8x1xf32>
    %156 = vector.broadcast %155 : vector<8x1xf32> to vector<8x32xf32>
    %157 = arith.mulf %152, %156 : vector<8x32xf32>
    %158 = vector.broadcast %138 : vector<1x32xf32> to vector<8x32xf32>
    %159 = arith.mulf %157, %158 : vector<8x32xf32>
    %160 = vector.broadcast %139 : vector<1x32xf32> to vector<8x32xf32>
    %161 = arith.addf %159, %160 : vector<8x32xf32>
    %162 = arith.truncf %161 : vector<8x32xf32> to vector<8x32xbf16>
    %163 = vector.shape_cast %162 : vector<8x32xbf16> to vector<1x8x32xbf16>
    %164 = vector.broadcast %163 : vector<1x8x32xbf16> to vector<4x8x32xbf16>
    %c0_77 = arith.constant 0 : index
    %c0_78 = arith.constant 0 : index
    %c0_79 = arith.constant 0 : index
    %165 = vector.load %arg22[%c0_77, %c0_78, %c0_79] : memref<4x32x8xbf16, #tpu.memory_space<vmem>>, vector<4x32x8xbf16>
    %cst_80 = arith.constant dense<0.000000e+00> : vector<4x8x8xf32>
    %166 = tpu.matmul %164, %165, %cst_80 {dimension_numbers = #tpu.dot_dimension_numbers<[2], [1], [1], [2], [0, 0, 0, 1, 1, 2], [0], [0]>} : vector<4x8x32xbf16>, vector<4x32x8xbf16>, vector<4x8x8xf32> -> vector<4x8x8xf32>
    %c0_81 = arith.constant 0 : index
    %c0_82 = arith.constant 0 : index
    %c0_83 = arith.constant 0 : index
    %167 = vector.load %arg23[%c0_81, %c0_82, %c0_83] : memref<4x1x8xf32, #tpu.memory_space<vmem>>, vector<4x1x8xf32>
    %168 = vector.broadcast %167 : vector<4x1x8xf32> to vector<4x8x8xf32>
    %169 = arith.addf %166, %168 : vector<4x8x8xf32>
    %c0_84 = arith.constant 0 : index
    %c0_85 = arith.constant 0 : index
    %c0_86 = arith.constant 0 : index
    %170 = vector.load %arg24[%c0_84, %c0_85, %c0_86] : memref<4x32x8xbf16, #tpu.memory_space<vmem>>, vector<4x32x8xbf16>
    %cst_87 = arith.constant dense<0.000000e+00> : vector<4x8x8xf32>
    %171 = tpu.matmul %164, %170, %cst_87 {dimension_numbers = #tpu.dot_dimension_numbers<[2], [1], [1], [2], [0, 0, 0, 1, 1, 2], [0], [0]>} : vector<4x8x32xbf16>, vector<4x32x8xbf16>, vector<4x8x8xf32> -> vector<4x8x8xf32>
    %c0_88 = arith.constant 0 : index
    %c0_89 = arith.constant 0 : index
    %c0_90 = arith.constant 0 : index
    %172 = vector.load %arg25[%c0_88, %c0_89, %c0_90] : memref<4x1x8xf32, #tpu.memory_space<vmem>>, vector<4x1x8xf32>
    %173 = vector.broadcast %172 : vector<4x1x8xf32> to vector<4x8x8xf32>
    %174 = arith.addf %171, %173 : vector<4x8x8xf32>
    %c0_91 = arith.constant 0 : index
    %c0_92 = arith.constant 0 : index
    %c0_93 = arith.constant 0 : index
    %175 = vector.load %arg26[%c0_91, %c0_92, %c0_93] : memref<4x32x8xbf16, #tpu.memory_space<vmem>>, vector<4x32x8xbf16>
    %cst_94 = arith.constant dense<0.000000e+00> : vector<4x8x8xf32>
    %176 = tpu.matmul %164, %175, %cst_94 {dimension_numbers = #tpu.dot_dimension_numbers<[2], [1], [1], [2], [0, 0, 0, 1, 1, 2], [0], [0]>} : vector<4x8x32xbf16>, vector<4x32x8xbf16>, vector<4x8x8xf32> -> vector<4x8x8xf32>
    %c0_95 = arith.constant 0 : index
    %c0_96 = arith.constant 0 : index
    %c0_97 = arith.constant 0 : index
    %177 = vector.load %arg27[%c0_95, %c0_96, %c0_97] : memref<4x1x8xf32, #tpu.memory_space<vmem>>, vector<4x1x8xf32>
    %178 = vector.broadcast %177 : vector<4x1x8xf32> to vector<4x8x8xf32>
    %179 = arith.addf %176, %178 : vector<4x8x8xf32>
    %cst_98 = arith.constant 0.353553385 : f32
    %180 = vector.broadcast %cst_98 : f32 to vector<4x8x8xf32>
    %181 = arith.mulf %169, %180 : vector<4x8x8xf32>
    %182 = arith.truncf %181 : vector<4x8x8xf32> to vector<4x8x8xbf16>
    %183 = arith.truncf %174 : vector<4x8x8xf32> to vector<4x8x8xbf16>
    %cst_99 = arith.constant dense<0.000000e+00> : vector<4x8x8xf32>
    %184 = tpu.matmul %182, %183, %cst_99 {dimension_numbers = #tpu.dot_dimension_numbers<[2], [2], [1], [1], [0, 0, 0, 1, 1, 1], [0], [0]>} : vector<4x8x8xbf16>, vector<4x8x8xbf16>, vector<4x8x8xf32> -> vector<4x8x8xf32>
    %185 = vector.shape_cast %30 : vector<8x8xf32> to vector<1x8x8xf32>
    %186 = vector.broadcast %185 : vector<1x8x8xf32> to vector<4x8x8xf32>
    %187 = arith.addf %184, %186 : vector<4x8x8xf32>
    %cst_100 = arith.constant dense<0xFF800000> : vector<4x8xf32>
    %188 = vector.multi_reduction <maximumf>, %187, %cst_100 [2] : vector<4x8x8xf32> to vector<4x8xf32>
    %189 = vector.shape_cast %188 : vector<4x8xf32> to vector<4x8x1xf32>
    %190 = vector.broadcast %189 : vector<4x8x1xf32> to vector<4x8x8xf32>
    %191 = arith.subf %187, %190 : vector<4x8x8xf32>
    %192 = math.exp %191 : vector<4x8x8xf32>
    %cst_101 = arith.constant dense<0.000000e+00> : vector<4x8xf32>
    %193 = vector.multi_reduction <add>, %192, %cst_101 [2] : vector<4x8x8xf32> to vector<4x8xf32>
    %194 = vector.shape_cast %193 : vector<4x8xf32> to vector<4x8x1xf32>
    %195 = arith.truncf %192 : vector<4x8x8xf32> to vector<4x8x8xbf16>
    %196 = arith.truncf %179 : vector<4x8x8xf32> to vector<4x8x8xbf16>
    %cst_102 = arith.constant dense<0.000000e+00> : vector<4x8x8xf32>
    %197 = tpu.matmul %195, %196, %cst_102 {dimension_numbers = #tpu.dot_dimension_numbers<[2], [1], [1], [2], [0, 0, 0, 1, 1, 2], [0], [0]>} : vector<4x8x8xbf16>, vector<4x8x8xbf16>, vector<4x8x8xf32> -> vector<4x8x8xf32>
    %198 = tpu.reciprocal %194 : vector<4x8x1xf32> -> vector<4x8x1xf32>
    %199 = vector.broadcast %198 : vector<4x8x1xf32> to vector<4x8x8xf32>
    %200 = arith.mulf %197, %199 : vector<4x8x8xf32>
    %201 = arith.truncf %200 : vector<4x8x8xf32> to vector<4x8x8xbf16>
    %c0_103 = arith.constant 0 : index
    %c0_104 = arith.constant 0 : index
    %c0_105 = arith.constant 0 : index
    %202 = vector.load %arg28[%c0_103, %c0_104, %c0_105] : memref<4x8x32xbf16, #tpu.memory_space<vmem>>, vector<4x8x32xbf16>
    %cst_106 = arith.constant dense<0.000000e+00> : vector<4x8x32xf32>
    %203 = tpu.matmul %201, %202, %cst_106 {dimension_numbers = #tpu.dot_dimension_numbers<[2], [1], [1], [2], [0, 0, 0, 1, 1, 2], [0], [0]>} : vector<4x8x8xbf16>, vector<4x8x32xbf16>, vector<4x8x32xf32> -> vector<4x8x32xf32>
    %204 = vector.extract_strided_slice %203 {offsets = [0, 0, 0], sizes = [1, 8, 32], strides = [1, 1, 1]} : vector<4x8x32xf32> to vector<1x8x32xf32>
    %205 = vector.shape_cast %204 : vector<1x8x32xf32> to vector<8x32xf32>
    %206 = vector.extract_strided_slice %203 {offsets = [1, 0, 0], sizes = [1, 8, 32], strides = [1, 1, 1]} : vector<4x8x32xf32> to vector<1x8x32xf32>
    %207 = vector.shape_cast %206 : vector<1x8x32xf32> to vector<8x32xf32>
    %208 = arith.addf %205, %207 : vector<8x32xf32>
    %209 = vector.extract_strided_slice %203 {offsets = [2, 0, 0], sizes = [1, 8, 32], strides = [1, 1, 1]} : vector<4x8x32xf32> to vector<1x8x32xf32>
    %210 = vector.shape_cast %209 : vector<1x8x32xf32> to vector<8x32xf32>
    %211 = arith.addf %208, %210 : vector<8x32xf32>
    %212 = vector.extract_strided_slice %203 {offsets = [3, 0, 0], sizes = [1, 8, 32], strides = [1, 1, 1]} : vector<4x8x32xf32> to vector<1x8x32xf32>
    %213 = vector.shape_cast %212 : vector<1x8x32xf32> to vector<8x32xf32>
    %214 = arith.addf %211, %213 : vector<8x32xf32>
    %c0_107 = arith.constant 0 : index
    %c0_108 = arith.constant 0 : index
    %215 = vector.load %arg29[%c0_107, %c0_108] : memref<1x32xf32, #tpu.memory_space<vmem>>, vector<1x32xf32>
    %216 = vector.broadcast %215 : vector<1x32xf32> to vector<8x32xf32>
    %217 = arith.addf %214, %216 : vector<8x32xf32>
    %218 = arith.addf %161, %217 : vector<8x32xf32>
    %c0_109 = arith.constant 0 : index
    %c0_110 = arith.constant 0 : index
    %219 = vector.load %arg30[%c0_109, %c0_110] : memref<1x32xf32, #tpu.memory_space<vmem>>, vector<1x32xf32>
    %c0_111 = arith.constant 0 : index
    %c0_112 = arith.constant 0 : index
    %220 = vector.load %arg31[%c0_111, %c0_112] : memref<1x32xf32, #tpu.memory_space<vmem>>, vector<1x32xf32>
    %cst_113 = arith.constant dense<0.000000e+00> : vector<8xf32>
    %221 = vector.multi_reduction <add>, %218, %cst_113 [1] : vector<8x32xf32> to vector<8xf32>
    %222 = vector.shape_cast %221 : vector<8xf32> to vector<8x1xf32>
    %cst_114 = arith.constant 3.200000e+01 : f32
    %223 = vector.broadcast %cst_114 : f32 to vector<8x1xf32>
    %224 = arith.divf %222, %223 : vector<8x1xf32>
    %225 = vector.broadcast %224 : vector<8x1xf32> to vector<8x32xf32>
    %226 = arith.subf %218, %225 : vector<8x32xf32>
    %227 = arith.mulf %226, %226 : vector<8x32xf32>
    %cst_115 = arith.constant dense<0.000000e+00> : vector<8xf32>
    %228 = vector.multi_reduction <add>, %227, %cst_115 [1] : vector<8x32xf32> to vector<8xf32>
    %229 = vector.shape_cast %228 : vector<8xf32> to vector<8x1xf32>
    %cst_116 = arith.constant 3.200000e+01 : f32
    %230 = vector.broadcast %cst_116 : f32 to vector<8x1xf32>
    %231 = arith.divf %229, %230 : vector<8x1xf32>
    %232 = vector.broadcast %224 : vector<8x1xf32> to vector<8x32xf32>
    %233 = arith.subf %218, %232 : vector<8x32xf32>
    %cst_117 = arith.constant 9.99999996E-13 : f32
    %234 = vector.broadcast %cst_117 : f32 to vector<8x1xf32>
    %235 = arith.addf %231, %234 : vector<8x1xf32>
    %236 = math.rsqrt %235 : vector<8x1xf32>
    %237 = vector.broadcast %236 : vector<8x1xf32> to vector<8x32xf32>
    %238 = arith.mulf %233, %237 : vector<8x32xf32>
    %239 = vector.broadcast %219 : vector<1x32xf32> to vector<8x32xf32>
    %240 = arith.mulf %238, %239 : vector<8x32xf32>
    %241 = vector.broadcast %220 : vector<1x32xf32> to vector<8x32xf32>
    %242 = arith.addf %240, %241 : vector<8x32xf32>
    %243 = arith.truncf %242 : vector<8x32xf32> to vector<8x32xbf16>
    %c0_118 = arith.constant 0 : index
    %c0_119 = arith.constant 0 : index
    %244 = vector.load %arg32[%c0_118, %c0_119] : memref<32x64xbf16, #tpu.memory_space<vmem>>, vector<32x64xbf16>
    %cst_120 = arith.constant dense<0.000000e+00> : vector<8x64xf32>
    %245 = tpu.matmul %243, %244, %cst_120 {dimension_numbers = #tpu.dot_dimension_numbers<[1], [0], [0], [1], [0, 0, 1, 1], [], []>} : vector<8x32xbf16>, vector<32x64xbf16>, vector<8x64xf32> -> vector<8x64xf32>
    %c0_121 = arith.constant 0 : index
    %c0_122 = arith.constant 0 : index
    %246 = vector.load %arg33[%c0_121, %c0_122] : memref<1x64xf32, #tpu.memory_space<vmem>>, vector<1x64xf32>
    %247 = vector.broadcast %246 : vector<1x64xf32> to vector<8x64xf32>
    %248 = arith.addf %245, %247 : vector<8x64xf32>
    %cst_123 = arith.constant 5.000000e-01 : f32
    %249 = vector.broadcast %cst_123 : f32 to vector<8x64xf32>
    %250 = arith.mulf %249, %248 : vector<8x64xf32>
    %cst_124 = arith.constant 4.471500e-02 : f32
    %251 = vector.broadcast %cst_124 : f32 to vector<8x64xf32>
    %252 = arith.mulf %251, %248 : vector<8x64xf32>
    %253 = arith.mulf %252, %248 : vector<8x64xf32>
    %254 = arith.mulf %253, %248 : vector<8x64xf32>
    %255 = arith.addf %248, %254 : vector<8x64xf32>
    %cst_125 = arith.constant 0.797884583 : f32
    %256 = vector.broadcast %cst_125 : f32 to vector<8x64xf32>
    %257 = arith.mulf %256, %255 : vector<8x64xf32>
    %258 = math.tanh %257 : vector<8x64xf32>
    %cst_126 = arith.constant 1.000000e+00 : f32
    %259 = vector.broadcast %cst_126 : f32 to vector<8x64xf32>
    %260 = arith.addf %259, %258 : vector<8x64xf32>
    %261 = arith.mulf %250, %260 : vector<8x64xf32>
    %262 = arith.truncf %261 : vector<8x64xf32> to vector<8x64xbf16>
    %c0_127 = arith.constant 0 : index
    %c0_128 = arith.constant 0 : index
    %263 = vector.load %arg34[%c0_127, %c0_128] : memref<64x32xbf16, #tpu.memory_space<vmem>>, vector<64x32xbf16>
    %cst_129 = arith.constant dense<0.000000e+00> : vector<8x32xf32>
    %264 = tpu.matmul %262, %263, %cst_129 {dimension_numbers = #tpu.dot_dimension_numbers<[1], [0], [0], [1], [0, 0, 1, 1], [], []>} : vector<8x64xbf16>, vector<64x32xbf16>, vector<8x32xf32> -> vector<8x32xf32>
    %c0_130 = arith.constant 0 : index
    %c0_131 = arith.constant 0 : index
    %265 = vector.load %arg35[%c0_130, %c0_131] : memref<1x32xf32, #tpu.memory_space<vmem>>, vector<1x32xf32>
    %266 = vector.broadcast %265 : vector<1x32xf32> to vector<8x32xf32>
    %267 = arith.addf %264, %266 : vector<8x32xf32>
    %268 = arith.addf %242, %267 : vector<8x32xf32>
    %c0_132 = arith.constant 0 : index
    %c0_133 = arith.constant 0 : index
    %269 = vector.load %arg36[%c0_132, %c0_133] : memref<1x32xf32, #tpu.memory_space<vmem>>, vector<1x32xf32>
    %c0_134 = arith.constant 0 : index
    %c0_135 = arith.constant 0 : index
    %270 = vector.load %arg37[%c0_134, %c0_135] : memref<1x32xf32, #tpu.memory_space<vmem>>, vector<1x32xf32>
    %cst_136 = arith.constant dense<0.000000e+00> : vector<8xf32>
    %271 = vector.multi_reduction <add>, %268, %cst_136 [1] : vector<8x32xf32> to vector<8xf32>
    %272 = vector.shape_cast %271 : vector<8xf32> to vector<8x1xf32>
    %cst_137 = arith.constant 3.200000e+01 : f32
    %273 = vector.broadcast %cst_137 : f32 to vector<8x1xf32>
    %274 = arith.divf %272, %273 : vector<8x1xf32>
    %275 = vector.broadcast %274 : vector<8x1xf32> to vector<8x32xf32>
    %276 = arith.subf %268, %275 : vector<8x32xf32>
    %277 = arith.mulf %276, %276 : vector<8x32xf32>
    %cst_138 = arith.constant dense<0.000000e+00> : vector<8xf32>
    %278 = vector.multi_reduction <add>, %277, %cst_138 [1] : vector<8x32xf32> to vector<8xf32>
    %279 = vector.shape_cast %278 : vector<8xf32> to vector<8x1xf32>
    %cst_139 = arith.constant 3.200000e+01 : f32
    %280 = vector.broadcast %cst_139 : f32 to vector<8x1xf32>
    %281 = arith.divf %279, %280 : vector<8x1xf32>
    %282 = vector.broadcast %274 : vector<8x1xf32> to vector<8x32xf32>
    %283 = arith.subf %268, %282 : vector<8x32xf32>
    %cst_140 = arith.constant 9.99999996E-13 : f32
    %284 = vector.broadcast %cst_140 : f32 to vector<8x1xf32>
    %285 = arith.addf %281, %284 : vector<8x1xf32>
    %286 = math.rsqrt %285 : vector<8x1xf32>
    %287 = vector.broadcast %286 : vector<8x1xf32> to vector<8x32xf32>
    %288 = arith.mulf %283, %287 : vector<8x32xf32>
    %289 = vector.broadcast %269 : vector<1x32xf32> to vector<8x32xf32>
    %290 = arith.mulf %288, %289 : vector<8x32xf32>
    %291 = vector.broadcast %270 : vector<1x32xf32> to vector<8x32xf32>
    %292 = arith.addf %290, %291 : vector<8x32xf32>
    %c0_141 = arith.constant 0 : index
    %c0_142 = arith.constant 0 : index
    %c0_143 = arith.constant 0 : index
    %293 = vector.load %arg3[%c0_141, %c0_142, %c0_143] : memref<1x8x1xf32, #tpu.memory_space<vmem>>, vector<1x8x1xf32>
    %294 = vector.shape_cast %293 : vector<1x8x1xf32> to vector<8x1xf32>
    %295 = vector.broadcast %294 : vector<8x1xf32> to vector<8x32xf32>
    %296 = arith.mulf %292, %295 : vector<8x32xf32>
    %cst_144 = arith.constant dense<0xFF800000> : vector<32xf32>
    %297 = vector.multi_reduction <maximumf>, %296, %cst_144 [0] : vector<8x32xf32> to vector<32xf32>
    %298 = vector.shape_cast %297 : vector<32xf32> to vector<1x32xf32>
    %c0_145 = arith.constant 0 : index
    %c0_146 = arith.constant 0 : index
    %c0_147 = arith.constant 0 : index
    %299 = vector.load %arg38[%c0_145, %c0_146, %c0_147] : memref<1x1x32xf32, #tpu.memory_space<vmem>>, vector<1x1x32xf32>
    %300 = vector.shape_cast %299 : vector<1x1x32xf32> to vector<1x32xf32>
    %301 = vector.shape_cast %298 : vector<1x32xf32> to vector<1x1x32xf32>
    tpu.vector_store %arg38[%c0_145, %c0_146, %c0_147], %301 {strides = array<i32>} : memref<1x1x32xf32, #tpu.memory_space<vmem>>, vector<1x1x32xf32>,
    return
  }
  func.func @transform_0(%arg0: i32) -> (i32, i32, i32) {
    %c0_i32 = arith.constant 0 : i32
    %c0_i32_0 = arith.constant 0 : i32
    %c0_i32_1 = arith.constant 0 : i32
    return %arg0, %c0_i32, %c0_i32_0 : i32, i32, i32
  }
  func.func @transform_1(%arg0: i32) -> (i32, i32, i32) {
    %c0_i32 = arith.constant 0 : i32
    %c0_i32_0 = arith.constant 0 : i32
    %c0_i32_1 = arith.constant 0 : i32
    return %arg0, %c0_i32, %c0_i32_0 : i32, i32, i32
  }
  func.func @transform_2(%arg0: i32) -> (i32, i32, i32) {
    %c0_i32 = arith.constant 0 : i32
    %c0_i32_0 = arith.constant 0 : i32
    %c0_i32_1 = arith.constant 0 : i32
    return %arg0, %c0_i32, %c0_i32_0 : i32, i32, i32
  }
  func.func @transform_3(%arg0: i32) -> (i32, i32) {
    %c0_i32 = arith.constant 0 : i32
    %c0_i32_0 = arith.constant 0 : i32
    %c0_i32_1 = arith.constant 0 : i32
    return %c0_i32, %c0_i32_0 : i32, i32
  }
  func.func @transform_4(%arg0: i32) -> (i32, i32) {
    %c0_i32 = arith.constant 0 : i32
    %c0_i32_0 = arith.constant 0 : i32
    %c0_i32_1 = arith.constant 0 : i32
    return %c0_i32, %c0_i32_0 : i32, i32
  }
  func.func @transform_5(%arg0: i32) -> (i32, i32, i32) {
    %c0_i32 = arith.constant 0 : i32
    %c0_i32_0 = arith.constant 0 : i32
    %c0_i32_1 = arith.constant 0 : i32
    %c0_i32_2 = arith.constant 0 : i32
    return %c0_i32, %c0_i32_0, %c0_i32_1 : i32, i32, i32
  }
  func.func @transform_6(%arg0: i32) -> (i32, i32, i32) {
    %c0_i32 = arith.constant 0 : i32
    %c0_i32_0 = arith.constant 0 : i32
    %c0_i32_1 = arith.constant 0 : i32
    %c0_i32_2 = arith.constant 0 : i32
    return %c0_i32, %c0_i32_0, %c0_i32_1 : i32, i32, i32
  }
  func.func @transform_7(%arg0: i32) -> (i32, i32, i32) {
    %c0_i32 = arith.constant 0 : i32
    %c0_i32_0 = arith.constant 0 : i32
    %c0_i32_1 = arith.constant 0 : i32
    %c0_i32_2 = arith.constant 0 : i32
    return %c0_i32, %c0_i32_0, %c0_i32_1 : i32, i32, i32
  }
  func.func @transform_8(%arg0: i32) -> (i32, i32, i32) {
    %c0_i32 = arith.constant 0 : i32
    %c0_i32_0 = arith.constant 0 : i32
    %c0_i32_1 = arith.constant 0 : i32
    %c0_i32_2 = arith.constant 0 : i32
    return %c0_i32, %c0_i32_0, %c0_i32_1 : i32, i32, i32
  }
  func.func @transform_9(%arg0: i32) -> (i32, i32, i32) {
    %c0_i32 = arith.constant 0 : i32
    %c0_i32_0 = arith.constant 0 : i32
    %c0_i32_1 = arith.constant 0 : i32
    %c0_i32_2 = arith.constant 0 : i32
    return %c0_i32, %c0_i32_0, %c0_i32_1 : i32, i32, i32
  }
  func.func @transform_10(%arg0: i32) -> (i32, i32, i32) {
    %c0_i32 = arith.constant 0 : i32
    %c0_i32_0 = arith.constant 0 : i32
    %c0_i32_1 = arith.constant 0 : i32
    %c0_i32_2 = arith.constant 0 : i32
    return %c0_i32, %c0_i32_0, %c0_i32_1 : i32, i32, i32
  }
  func.func @transform_11(%arg0: i32) -> (i32, i32, i32) {
    %c0_i32 = arith.constant 0 : i32
    %c0_i32_0 = arith.constant 0 : i32
    %c0_i32_1 = arith.constant 0 : i32
    %c0_i32_2 = arith.constant 0 : i32
    return %c0_i32, %c0_i32_0, %c0_i32_1 : i32, i32, i32
  }
  func.func @transform_12(%arg0: i32) -> (i32, i32) {
    %c0_i32 = arith.constant 0 : i32
    %c0_i32_0 = arith.constant 0 : i32
    %c0_i32_1 = arith.constant 0 : i32
    return %c0_i32, %c0_i32_0 : i32, i32
  }
  func.func @transform_13(%arg0: i32) -> (i32, i32) {
    %c0_i32 = arith.constant 0 : i32
    %c0_i32_0 = arith.constant 0 : i32
    %c0_i32_1 = arith.constant 0 : i32
    return %c0_i32, %c0_i32_0 : i32, i32
  }
  func.func @transform_14(%arg0: i32) -> (i32, i32) {
    %c0_i32 = arith.constant 0 : i32
    %c0_i32_0 = arith.constant 0 : i32
    %c0_i32_1 = arith.constant 0 : i32
    return %c0_i32, %c0_i32_0 : i32, i32
  }
  func.func @transform_15(%arg0: i32) -> (i32, i32) {
    %c0_i32 = arith.constant 0 : i32
    %c0_i32_0 = arith.constant 0 : i32
    %c0_i32_1 = arith.constant 0 : i32
    return %c0_i32, %c0_i32_0 : i32, i32
  }
  func.func @transform_16(%arg0: i32) -> (i32, i32) {
    %c0_i32 = arith.constant 0 : i32
    %c0_i32_0 = arith.constant 0 : i32
    %c0_i32_1 = arith.constant 0 : i32
    return %c0_i32, %c0_i32_0 : i32, i32
  }
  func.func @transform_17(%arg0: i32) -> (i32, i32) {
    %c0_i32 = arith.constant 0 : i32
    %c0_i32_0 = arith.constant 0 : i32
    %c0_i32_1 = arith.constant 0 : i32
    return %c0_i32, %c0_i32_0 : i32, i32
  }
  func.func @transform_18(%arg0: i32) -> (i32, i32) {
    %c0_i32 = arith.constant 0 : i32
    %c0_i32_0 = arith.constant 0 : i32
    %c0_i32_1 = arith.constant 0 : i32
    return %c0_i32, %c0_i32_0 : i32, i32
  }
  func.func @transform_19(%arg0: i32) -> (i32, i32) {
    %c0_i32 = arith.constant 0 : i32
    %c0_i32_0 = arith.constant 0 : i32
    %c0_i32_1 = arith.constant 0 : i32
    return %c0_i32, %c0_i32_0 : i32, i32
  }
  func.func @transform_20(%arg0: i32) -> (i32, i32) {
    %c0_i32 = arith.constant 0 : i32
    %c0_i32_0 = arith.constant 0 : i32
    %c0_i32_1 = arith.constant 0 : i32
    return %c0_i32, %c0_i32_0 : i32, i32
  }
  func.func @transform_21(%arg0: i32) -> (i32, i32, i32) {
    %c0_i32 = arith.constant 0 : i32
    %c0_i32_0 = arith.constant 0 : i32
    %c0_i32_1 = arith.constant 0 : i32
    %c0_i32_2 = arith.constant 0 : i32
    return %c0_i32, %c0_i32_0, %c0_i32_1 : i32, i32, i32
  }
  func.func @transform_22(%arg0: i32) -> (i32, i32, i32) {
    %c0_i32 = arith.constant 0 : i32
    %c0_i32_0 = arith.constant 0 : i32
    %c0_i32_1 = arith.constant 0 : i32
    %c0_i32_2 = arith.constant 0 : i32
    return %c0_i32, %c0_i32_0, %c0_i32_1 : i32, i32, i32
  }
  func.func @transform_23(%arg0: i32) -> (i32, i32, i32) {
    %c0_i32 = arith.constant 0 : i32
    %c0_i32_0 = arith.constant 0 : i32
    %c0_i32_1 = arith.constant 0 : i32
    %c0_i32_2 = arith.constant 0 : i32
    return %c0_i32, %c0_i32_0, %c0_i32_1 : i32, i32, i32
  }
  func.func @transform_24(%arg0: i32) -> (i32, i32, i32) {
    %c0_i32 = arith.constant 0 : i32
    %c0_i32_0 = arith.constant 0 : i32
    %c0_i32_1 = arith.constant 0 : i32
    %c0_i32_2 = arith.constant 0 : i32
    return %c0_i32, %c0_i32_0, %c0_i32_1 : i32, i32, i32
  }
  func.func @transform_25(%arg0: i32) -> (i32, i32, i32) {
    %c0_i32 = arith.constant 0 : i32
    %c0_i32_0 = arith.constant 0 : i32
    %c0_i32_1 = arith.constant 0 : i32
    %c0_i32_2 = arith.constant 0 : i32
    return %c0_i32, %c0_i32_0, %c0_i32_1 : i32, i32, i32
  }
  func.func @transform_26(%arg0: i32) -> (i32, i32, i32) {
    %c0_i32 = arith.constant 0 : i32
    %c0_i32_0 = arith.constant 0 : i32
    %c0_i32_1 = arith.constant 0 : i32
    %c0_i32_2 = arith.constant 0 : i32
    return %c0_i32, %c0_i32_0, %c0_i32_1 : i32, i32, i32
  }
  func.func @transform_27(%arg0: i32) -> (i32, i32, i32) {
    %c0_i32 = arith.constant 0 : i32
    %c0_i32_0 = arith.constant 0 : i32
    %c0_i32_1 = arith.constant 0 : i32
    %c0_i32_2 = arith.constant 0 : i32
    return %c0_i32, %c0_i32_0, %c0_i32_1 : i32, i32, i32
  }
  func.func @transform_28(%arg0: i32) -> (i32, i32) {
    %c0_i32 = arith.constant 0 : i32
    %c0_i32_0 = arith.constant 0 : i32
    %c0_i32_1 = arith.constant 0 : i32
    return %c0_i32, %c0_i32_0 : i32, i32
  }
  func.func @transform_29(%arg0: i32) -> (i32, i32) {
    %c0_i32 = arith.constant 0 : i32
    %c0_i32_0 = arith.constant 0 : i32
    %c0_i32_1 = arith.constant 0 : i32
    return %c0_i32, %c0_i32_0 : i32, i32
  }
  func.func @transform_30(%arg0: i32) -> (i32, i32) {
    %c0_i32 = arith.constant 0 : i32
    %c0_i32_0 = arith.constant 0 : i32
    %c0_i32_1 = arith.constant 0 : i32
    return %c0_i32, %c0_i32_0 : i32, i32
  }
  func.func @transform_31(%arg0: i32) -> (i32, i32) {
    %c0_i32 = arith.constant 0 : i32
    %c0_i32_0 = arith.constant 0 : i32
    %c0_i32_1 = arith.constant 0 : i32
    return %c0_i32, %c0_i32_0 : i32, i32
  }
  func.func @transform_32(%arg0: i32) -> (i32, i32) {
    %c0_i32 = arith.constant 0 : i32
    %c0_i32_0 = arith.constant 0 : i32
    %c0_i32_1 = arith.constant 0 : i32
    return %c0_i32, %c0_i32_0 : i32, i32
  }
  func.func @transform_33(%arg0: i32) -> (i32, i32) {
    %c0_i32 = arith.constant 0 : i32
    %c0_i32_0 = arith.constant 0 : i32
    %c0_i32_1 = arith.constant 0 : i32
    return %c0_i32, %c0_i32_0 : i32, i32
  }
  func.func @transform_34(%arg0: i32) -> (i32, i32) {
    %c0_i32 = arith.constant 0 : i32
    %c0_i32_0 = arith.constant 0 : i32
    %c0_i32_1 = arith.constant 0 : i32
    return %c0_i32, %c0_i32_0 : i32, i32
  }
  func.func @transform_35(%arg0: i32) -> (i32, i32) {
    %c0_i32 = arith.constant 0 : i32
    %c0_i32_0 = arith.constant 0 : i32
    %c0_i32_1 = arith.constant 0 : i32
    return %c0_i32, %c0_i32_0 : i32, i32
  }
  func.func @transform_36(%arg0: i32) -> (i32, i32) {
    %c0_i32 = arith.constant 0 : i32
    %c0_i32_0 = arith.constant 0 : i32
    %c0_i32_1 = arith.constant 0 : i32
    return %c0_i32, %c0_i32_0 : i32, i32
  }
  func.func @transform_37(%arg0: i32) -> (i32, i32, i32) {
    %c0_i32 = arith.constant 0 : i32
    %c0_i32_0 = arith.constant 0 : i32
    %c0_i32_1 = arith.constant 0 : i32
    return %arg0, %c0_i32, %c0_i32_0 : i32, i32, i32
  }
}

module attributes {stable_mosaic.version = 11 : i64} {
  func.func @_encoder_chunk_kernel(%arg0: i32, %arg1: memref<1x8x32xbf16, #tpu.memory_space<vmem>>, %arg2: memref<1x1x8xf32, #tpu.memory_space<vmem>>, %arg3: memref<1x8x1xf32, #tpu.memory_space<vmem>>, %arg4: memref<1x32xf32, #tpu.memory_space<vmem>>, %arg5: memref<1x32xf32, #tpu.memory_space<vmem>>, %arg6: memref<4x32x8xbf16, #tpu.memory_space<vmem>>, %arg7: memref<4x1x8xf32, #tpu.memory_space<vmem>>, %arg8: memref<4x32x8xbf16, #tpu.memory_space<vmem>>, %arg9: memref<4x1x8xf32, #tpu.memory_space<vmem>>, %arg10: memref<4x32x8xbf16, #tpu.memory_space<vmem>>, %arg11: memref<4x1x8xf32, #tpu.memory_space<vmem>>, %arg12: memref<4x8x32xbf16, #tpu.memory_space<vmem>>, %arg13: memref<1x32xf32, #tpu.memory_space<vmem>>, %arg14: memref<1x32xf32, #tpu.memory_space<vmem>>, %arg15: memref<1x32xf32, #tpu.memory_space<vmem>>, %arg16: memref<32x64xbf16, #tpu.memory_space<vmem>>, %arg17: memref<1x64xf32, #tpu.memory_space<vmem>>, %arg18: memref<64x32xbf16, #tpu.memory_space<vmem>>, %arg19: memref<1x32xf32, #tpu.memory_space<vmem>>, %arg20: memref<1x32xf32, #tpu.memory_space<vmem>>, %arg21: memref<1x32xf32, #tpu.memory_space<vmem>>, %arg22: memref<4x32x8xbf16, #tpu.memory_space<vmem>>, %arg23: memref<4x1x8xf32, #tpu.memory_space<vmem>>, %arg24: memref<4x32x8xbf16, #tpu.memory_space<vmem>>, %arg25: memref<4x1x8xf32, #tpu.memory_space<vmem>>, %arg26: memref<4x32x8xbf16, #tpu.memory_space<vmem>>, %arg27: memref<4x1x8xf32, #tpu.memory_space<vmem>>, %arg28: memref<4x8x32xbf16, #tpu.memory_space<vmem>>, %arg29: memref<1x32xf32, #tpu.memory_space<vmem>>, %arg30: memref<1x32xf32, #tpu.memory_space<vmem>>, %arg31: memref<1x32xf32, #tpu.memory_space<vmem>>, %arg32: memref<32x64xbf16, #tpu.memory_space<vmem>>, %arg33: memref<1x64xf32, #tpu.memory_space<vmem>>, %arg34: memref<64x32xbf16, #tpu.memory_space<vmem>>, %arg35: memref<1x32xf32, #tpu.memory_space<vmem>>, %arg36: memref<1x32xf32, #tpu.memory_space<vmem>>, %arg37: memref<1x32xf32, #tpu.memory_space<vmem>>, %arg38: memref<1x1x32xf32, #tpu.memory_space<vmem>>) attributes {dimension_semantics = [#tpu.dimension_semantics<parallel>], iteration_bounds = array<i64: 2>, scalar_prefetch = 0 : i64, scratch_operands = 0 : i64, tpu.core_type = #tpu.core_type<tc>, window_params = [{transform_indices = @transform_0, window_bounds = array<i64: 1, 8, 32>}, {transform_indices = @transform_1, window_bounds = array<i64: 1, 1, 8>}, {transform_indices = @transform_2, window_bounds = array<i64: 1, 8, 1>}, {pipeline_mode = #tpu.pipeline_mode<synchronous>, transform_indices = @transform_3, window_bounds = array<i64: 1, 32>}, {pipeline_mode = #tpu.pipeline_mode<synchronous>, transform_indices = @transform_4, window_bounds = array<i64: 1, 32>}, {pipeline_mode = #tpu.pipeline_mode<synchronous>, transform_indices = @transform_5, window_bounds = array<i64: 4, 32, 8>}, {pipeline_mode = #tpu.pipeline_mode<synchronous>, transform_indices = @transform_6, window_bounds = array<i64: 4, 1, 8>}, {pipeline_mode = #tpu.pipeline_mode<synchronous>, transform_indices = @transform_7, window_bounds = array<i64: 4, 32, 8>}, {pipeline_mode = #tpu.pipeline_mode<synchronous>, transform_indices = @transform_8, window_bounds = array<i64: 4, 1, 8>}, {pipeline_mode = #tpu.pipeline_mode<synchronous>, transform_indices = @transform_9, window_bounds = array<i64: 4, 32, 8>}, {pipeline_mode = #tpu.pipeline_mode<synchronous>, transform_indices = @transform_10, window_bounds = array<i64: 4, 1, 8>}, {pipeline_mode = #tpu.pipeline_mode<synchronous>, transform_indices = @transform_11, window_bounds = array<i64: 4, 8, 32>}, {pipeline_mode = #tpu.pipeline_mode<synchronous>, transform_indices = @transform_12, window_bounds = array<i64: 1, 32>}, {pipeline_mode = #tpu.pipeline_mode<synchronous>, transform_indices = @transform_13, window_bounds = array<i64: 1, 32>}, {pipeline_mode = #tpu.pipeline_mode<synchronous>, transform_indices = @transform_14, window_bounds = array<i64: 1, 32>}, {pipeline_mode = #tpu.pipeline_mode<synchronous>, transform_indices = @transform_15, window_bounds = array<i64: 32, 64>}, {pipeline_mode = #tpu.pipeline_mode<synchronous>, transform_indices = @transform_16, window_bounds = array<i64: 1, 64>}, {pipeline_mode = #tpu.pipeline_mode<synchronous>, transform_indices = @transform_17, window_bounds = array<i64: 64, 32>}, {pipeline_mode = #tpu.pipeline_mode<synchronous>, transform_indices = @transform_18, window_bounds = array<i64: 1, 32>}, {pipeline_mode = #tpu.pipeline_mode<synchronous>, transform_indices = @transform_19, window_bounds = array<i64: 1, 32>}, {pipeline_mode = #tpu.pipeline_mode<synchronous>, transform_indices = @transform_20, window_bounds = array<i64: 1, 32>}, {pipeline_mode = #tpu.pipeline_mode<synchronous>, transform_indices = @transform_21, window_bounds = array<i64: 4, 32, 8>}, {pipeline_mode = #tpu.pipeline_mode<synchronous>, transform_indices = @transform_22, window_bounds = array<i64: 4, 1, 8>}, {pipeline_mode = #tpu.pipeline_mode<synchronous>, transform_indices = @transform_23, window_bounds = array<i64: 4, 32, 8>}, {pipeline_mode = #tpu.pipeline_mode<synchronous>, transform_indices = @transform_24, window_bounds = array<i64: 4, 1, 8>}, {pipeline_mode = #tpu.pipeline_mode<synchronous>, transform_indices = @transform_25, window_bounds = array<i64: 4, 32, 8>}, {pipeline_mode = #tpu.pipeline_mode<synchronous>, transform_indices = @transform_26, window_bounds = array<i64: 4, 1, 8>}, {pipeline_mode = #tpu.pipeline_mode<synchronous>, transform_indices = @transform_27, window_bounds = array<i64: 4, 8, 32>}, {pipeline_mode = #tpu.pipeline_mode<synchronous>, transform_indices = @transform_28, window_bounds = array<i64: 1, 32>}, {pipeline_mode = #tpu.pipeline_mode<synchronous>, transform_indices = @transform_29, window_bounds = array<i64: 1, 32>}, {pipeline_mode = #tpu.pipeline_mode<synchronous>, transform_indices = @transform_30, window_bounds = array<i64: 1, 32>}, {pipeline_mode = #tpu.pipeline_mode<synchronous>, transform_indices = @transform_31, window_bounds = array<i64: 32, 64>}, {pipeline_mode = #tpu.pipeline_mode<synchronous>, transform_indices = @transform_32, window_bounds = array<i64: 1, 64>}, {pipeline_mode = #tpu.pipeline_mode<synchronous>, transform_indices = @transform_33, window_bounds = array<i64: 64, 32>}, {pipeline_mode = #tpu.pipeline_mode<synchronous>, transform_indices = @transform_34, window_bounds = array<i64: 1, 32>}, {pipeline_mode = #tpu.pipeline_mode<synchronous>, transform_indices = @transform_35, window_bounds = array<i64: 1, 32>}, {pipeline_mode = #tpu.pipeline_mode<synchronous>, transform_indices = @transform_36, window_bounds = array<i64: 1, 32>}, {transform_indices = @transform_37, window_bounds = array<i64: 1, 1, 32>}]} {
    %c0 = arith.constant 0 : index
    %c0_0 = arith.constant 0 : index
    %c0_1 = arith.constant 0 : index
    %0 = vector.load %arg1[%c0, %c0_0, %c0_1] : memref<1x8x32xbf16, #tpu.memory_space<vmem>>, vector<1x8x32xbf16>
    %1 = vector.shape_cast %0 : vector<1x8x32xbf16> to vector<8x32xbf16>
    %2 = arith.extf %1 : vector<8x32xbf16> to vector<8x32xf32>
    %c0_2 = arith.constant 0 : index
    %c0_3 = arith.constant 0 : index
    %3 = vector.load %arg4[%c0_2, %c0_3] : memref<1x32xf32, #tpu.memory_space<vmem>>, vector<1x32xf32>
    %c0_4 = arith.constant 0 : index
    %c0_5 = arith.constant 0 : index
    %4 = vector.load %arg5[%c0_4, %c0_5] : memref<1x32xf32, #tpu.memory_space<vmem>>, vector<1x32xf32>
    %cst = arith.constant dense<0.000000e+00> : vector<8xf32>
    %5 = vector.multi_reduction <add>, %2, %cst [1] : vector<8x32xf32> to vector<8xf32>
    %6 = vector.shape_cast %5 : vector<8xf32> to vector<8x1xf32>
    %cst_6 = arith.constant 3.200000e+01 : f32
    %7 = vector.broadcast %cst_6 : f32 to vector<8x1xf32>
    %8 = arith.divf %6, %7 : vector<8x1xf32>
    %9 = vector.broadcast %8 : vector<8x1xf32> to vector<8x32xf32>
    %10 = arith.subf %2, %9 : vector<8x32xf32>
    %11 = arith.mulf %10, %10 : vector<8x32xf32>
    %cst_7 = arith.constant dense<0.000000e+00> : vector<8xf32>
    %12 = vector.multi_reduction <add>, %11, %cst_7 [1] : vector<8x32xf32> to vector<8xf32>
    %13 = vector.shape_cast %12 : vector<8xf32> to vector<8x1xf32>
    %cst_8 = arith.constant 3.200000e+01 : f32
    %14 = vector.broadcast %cst_8 : f32 to vector<8x1xf32>
    %15 = arith.divf %13, %14 : vector<8x1xf32>
    %16 = vector.broadcast %8 : vector<8x1xf32> to vector<8x32xf32>
    %17 = arith.subf %2, %16 : vector<8x32xf32>
    %cst_9 = arith.constant 9.99999996E-13 : f32
    %18 = vector.broadcast %cst_9 : f32 to vector<8x1xf32>
    %19 = arith.addf %15, %18 : vector<8x1xf32>
    %20 = math.rsqrt %19 : vector<8x1xf32>
    %21 = vector.broadcast %20 : vector<8x1xf32> to vector<8x32xf32>
    %22 = arith.mulf %17, %21 : vector<8x32xf32>
    %23 = vector.broadcast %3 : vector<1x32xf32> to vector<8x32xf32>
    %24 = arith.mulf %22, %23 : vector<8x32xf32>
    %25 = vector.broadcast %4 : vector<1x32xf32> to vector<8x32xf32>
    %26 = arith.addf %24, %25 : vector<8x32xf32>
    %c0_10 = arith.constant 0 : index
    %c0_11 = arith.constant 0 : index
    %c0_12 = arith.constant 0 : index
    %27 = vector.load %arg2[%c0_10, %c0_11, %c0_12] : memref<1x1x8xf32, #tpu.memory_space<vmem>>, vector<1x1x8xf32>
    %28 = vector.shape_cast %27 : vector<1x1x8xf32> to vector<1x8xf32>
    %29 = vector.shape_cast %28 : vector<1x8xf32> to vector<1x8xf32>
    %30 = vector.broadcast %29 : vector<1x8xf32> to vector<8x8xf32>
    %31 = arith.truncf %26 : vector<8x32xf32> to vector<8x32xbf16>
    %32 = vector.shape_cast %31 : vector<8x32xbf16> to vector<1x8x32xbf16>
    %33 = vector.broadcast %32 : vector<1x8x32xbf16> to vector<4x8x32xbf16>
    %c0_13 = arith.constant 0 : index
    %c0_14 = arith.constant 0 : index
    %c0_15 = arith.constant 0 : index
    %34 = vector.load %arg6[%c0_13, %c0_14, %c0_15] : memref<4x32x8xbf16, #tpu.memory_space<vmem>>, vector<4x32x8xbf16>
    %cst_16 = arith.constant dense<0.000000e+00> : vector<4x8x8xf32>
    %35 = tpu.matmul %33, %34, %cst_16 {dimension_numbers = #tpu.dot_dimension_numbers<[2], [1], [1], [2], [0, 0, 0, 1, 1, 2], [0], [0]>} : vector<4x8x32xbf16>, vector<4x32x8xbf16>, vector<4x8x8xf32> -> vector<4x8x8xf32>
    %c0_17 = arith.constant 0 : index
    %c0_18 = arith.constant 0 : index
    %c0_19 = arith.constant 0 : index
    %36 = vector.load %arg7[%c0_17, %c0_18, %c0_19] : memref<4x1x8xf32, #tpu.memory_space<vmem>>, vector<4x1x8xf32>
    %37 = vector.broadcast %36 : vector<4x1x8xf32> to vector<4x8x8xf32>
    %38 = arith.addf %35, %37 : vector<4x8x8xf32>
    %c0_20 = arith.constant 0 : index
    %c0_21 = arith.constant 0 : index
    %c0_22 = arith.constant 0 : index
    %39 = vector.load %arg8[%c0_20, %c0_21, %c0_22] : memref<4x32x8xbf16, #tpu.memory_space<vmem>>, vector<4x32x8xbf16>
    %cst_23 = arith.constant dense<0.000000e+00> : vector<4x8x8xf32>
    %40 = tpu.matmul %33, %39, %cst_23 {dimension_numbers = #tpu.dot_dimension_numbers<[2], [1], [1], [2], [0, 0, 0, 1, 1, 2], [0], [0]>} : vector<4x8x32xbf16>, vector<4x32x8xbf16>, vector<4x8x8xf32> -> vector<4x8x8xf32>
    %c0_24 = arith.constant 0 : index
    %c0_25 = arith.constant 0 : index
    %c0_26 = arith.constant 0 : index
    %41 = vector.load %arg9[%c0_24, %c0_25, %c0_26] : memref<4x1x8xf32, #tpu.memory_space<vmem>>, vector<4x1x8xf32>
    %42 = vector.broadcast %41 : vector<4x1x8xf32> to vector<4x8x8xf32>
    %43 = arith.addf %40, %42 : vector<4x8x8xf32>
    %c0_27 = arith.constant 0 : index
    %c0_28 = arith.constant 0 : index
    %c0_29 = arith.constant 0 : index
    %44 = vector.load %arg10[%c0_27, %c0_28, %c0_29] : memref<4x32x8xbf16, #tpu.memory_space<vmem>>, vector<4x32x8xbf16>
    %cst_30 = arith.constant dense<0.000000e+00> : vector<4x8x8xf32>
    %45 = tpu.matmul %33, %44, %cst_30 {dimension_numbers = #tpu.dot_dimension_numbers<[2], [1], [1], [2], [0, 0, 0, 1, 1, 2], [0], [0]>} : vector<4x8x32xbf16>, vector<4x32x8xbf16>, vector<4x8x8xf32> -> vector<4x8x8xf32>
    %c0_31 = arith.constant 0 : index
    %c0_32 = arith.constant 0 : index
    %c0_33 = arith.constant 0 : index
    %46 = vector.load %arg11[%c0_31, %c0_32, %c0_33] : memref<4x1x8xf32, #tpu.memory_space<vmem>>, vector<4x1x8xf32>
    %47 = vector.broadcast %46 : vector<4x1x8xf32> to vector<4x8x8xf32>
    %48 = arith.addf %45, %47 : vector<4x8x8xf32>
    %cst_34 = arith.constant 0.353553385 : f32
    %49 = vector.broadcast %cst_34 : f32 to vector<4x8x8xf32>
    %50 = arith.mulf %38, %49 : vector<4x8x8xf32>
    %51 = arith.truncf %50 : vector<4x8x8xf32> to vector<4x8x8xbf16>
    %52 = arith.truncf %43 : vector<4x8x8xf32> to vector<4x8x8xbf16>
    %cst_35 = arith.constant dense<0.000000e+00> : vector<4x8x8xf32>
    %53 = tpu.matmul %51, %52, %cst_35 {dimension_numbers = #tpu.dot_dimension_numbers<[2], [2], [1], [1], [0, 0, 0, 1, 1, 1], [0], [0]>} : vector<4x8x8xbf16>, vector<4x8x8xbf16>, vector<4x8x8xf32> -> vector<4x8x8xf32>
    %54 = vector.shape_cast %30 : vector<8x8xf32> to vector<1x8x8xf32>
    %55 = vector.broadcast %54 : vector<1x8x8xf32> to vector<4x8x8xf32>
    %56 = arith.addf %53, %55 : vector<4x8x8xf32>
    %cst_36 = arith.constant dense<0xFF800000> : vector<4x8xf32>
    %57 = vector.multi_reduction <maximumf>, %56, %cst_36 [2] : vector<4x8x8xf32> to vector<4x8xf32>
    %58 = vector.shape_cast %57 : vector<4x8xf32> to vector<4x8x1xf32>
    %59 = vector.broadcast %58 : vector<4x8x1xf32> to vector<4x8x8xf32>
    %60 = arith.subf %56, %59 : vector<4x8x8xf32>
    %61 = math.exp %60 : vector<4x8x8xf32>
    %cst_37 = arith.constant dense<0.000000e+00> : vector<4x8xf32>
    %62 = vector.multi_reduction <add>, %61, %cst_37 [2] : vector<4x8x8xf32> to vector<4x8xf32>
    %63 = vector.shape_cast %62 : vector<4x8xf32> to vector<4x8x1xf32>
    %64 = arith.truncf %61 : vector<4x8x8xf32> to vector<4x8x8xbf16>
    %65 = arith.truncf %48 : vector<4x8x8xf32> to vector<4x8x8xbf16>
    %cst_38 = arith.constant dense<0.000000e+00> : vector<4x8x8xf32>
    %66 = tpu.matmul %64, %65, %cst_38 {dimension_numbers = #tpu.dot_dimension_numbers<[2], [1], [1], [2], [0, 0, 0, 1, 1, 2], [0], [0]>} : vector<4x8x8xbf16>, vector<4x8x8xbf16>, vector<4x8x8xf32> -> vector<4x8x8xf32>
    %67 = tpu.reciprocal %63 : vector<4x8x1xf32> -> vector<4x8x1xf32>
    %68 = vector.broadcast %67 : vector<4x8x1xf32> to vector<4x8x8xf32>
    %69 = arith.mulf %66, %68 : vector<4x8x8xf32>
    %70 = arith.truncf %69 : vector<4x8x8xf32> to vector<4x8x8xbf16>
    %c0_39 = arith.constant 0 : index
    %c0_40 = arith.constant 0 : index
    %c0_41 = arith.constant 0 : index
    %71 = vector.load %arg12[%c0_39, %c0_40, %c0_41] : memref<4x8x32xbf16, #tpu.memory_space<vmem>>, vector<4x8x32xbf16>
    %cst_42 = arith.constant dense<0.000000e+00> : vector<4x8x32xf32>
    %72 = tpu.matmul %70, %71, %cst_42 {dimension_numbers = #tpu.dot_dimension_numbers<[2], [1], [1], [2], [0, 0, 0, 1, 1, 2], [0], [0]>} : vector<4x8x8xbf16>, vector<4x8x32xbf16>, vector<4x8x32xf32> -> vector<4x8x32xf32>
    %73 = vector.extract_strided_slice %72 {offsets = [0, 0, 0], sizes = [1, 8, 32], strides = [1, 1, 1]} : vector<4x8x32xf32> to vector<1x8x32xf32>
    %74 = vector.shape_cast %73 : vector<1x8x32xf32> to vector<8x32xf32>
    %75 = vector.extract_strided_slice %72 {offsets = [1, 0, 0], sizes = [1, 8, 32], strides = [1, 1, 1]} : vector<4x8x32xf32> to vector<1x8x32xf32>
    %76 = vector.shape_cast %75 : vector<1x8x32xf32> to vector<8x32xf32>
    %77 = arith.addf %74, %76 : vector<8x32xf32>
    %78 = vector.extract_strided_slice %72 {offsets = [2, 0, 0], sizes = [1, 8, 32], strides = [1, 1, 1]} : vector<4x8x32xf32> to vector<1x8x32xf32>
    %79 = vector.shape_cast %78 : vector<1x8x32xf32> to vector<8x32xf32>
    %80 = arith.addf %77, %79 : vector<8x32xf32>
    %81 = vector.extract_strided_slice %72 {offsets = [3, 0, 0], sizes = [1, 8, 32], strides = [1, 1, 1]} : vector<4x8x32xf32> to vector<1x8x32xf32>
    %82 = vector.shape_cast %81 : vector<1x8x32xf32> to vector<8x32xf32>
    %83 = arith.addf %80, %82 : vector<8x32xf32>
    %c0_43 = arith.constant 0 : index
    %c0_44 = arith.constant 0 : index
    %84 = vector.load %arg13[%c0_43, %c0_44] : memref<1x32xf32, #tpu.memory_space<vmem>>, vector<1x32xf32>
    %85 = vector.broadcast %84 : vector<1x32xf32> to vector<8x32xf32>
    %86 = arith.addf %83, %85 : vector<8x32xf32>
    %87 = arith.addf %26, %86 : vector<8x32xf32>
    %c0_45 = arith.constant 0 : index
    %c0_46 = arith.constant 0 : index
    %88 = vector.load %arg14[%c0_45, %c0_46] : memref<1x32xf32, #tpu.memory_space<vmem>>, vector<1x32xf32>
    %c0_47 = arith.constant 0 : index
    %c0_48 = arith.constant 0 : index
    %89 = vector.load %arg15[%c0_47, %c0_48] : memref<1x32xf32, #tpu.memory_space<vmem>>, vector<1x32xf32>
    %cst_49 = arith.constant dense<0.000000e+00> : vector<8xf32>
    %90 = vector.multi_reduction <add>, %87, %cst_49 [1] : vector<8x32xf32> to vector<8xf32>
    %91 = vector.shape_cast %90 : vector<8xf32> to vector<8x1xf32>
    %cst_50 = arith.constant 3.200000e+01 : f32
    %92 = vector.broadcast %cst_50 : f32 to vector<8x1xf32>
    %93 = arith.divf %91, %92 : vector<8x1xf32>
    %94 = vector.broadcast %93 : vector<8x1xf32> to vector<8x32xf32>
    %95 = arith.subf %87, %94 : vector<8x32xf32>
    %96 = arith.mulf %95, %95 : vector<8x32xf32>
    %cst_51 = arith.constant dense<0.000000e+00> : vector<8xf32>
    %97 = vector.multi_reduction <add>, %96, %cst_51 [1] : vector<8x32xf32> to vector<8xf32>
    %98 = vector.shape_cast %97 : vector<8xf32> to vector<8x1xf32>
    %cst_52 = arith.constant 3.200000e+01 : f32
    %99 = vector.broadcast %cst_52 : f32 to vector<8x1xf32>
    %100 = arith.divf %98, %99 : vector<8x1xf32>
    %101 = vector.broadcast %93 : vector<8x1xf32> to vector<8x32xf32>
    %102 = arith.subf %87, %101 : vector<8x32xf32>
    %cst_53 = arith.constant 9.99999996E-13 : f32
    %103 = vector.broadcast %cst_53 : f32 to vector<8x1xf32>
    %104 = arith.addf %100, %103 : vector<8x1xf32>
    %105 = math.rsqrt %104 : vector<8x1xf32>
    %106 = vector.broadcast %105 : vector<8x1xf32> to vector<8x32xf32>
    %107 = arith.mulf %102, %106 : vector<8x32xf32>
    %108 = vector.broadcast %88 : vector<1x32xf32> to vector<8x32xf32>
    %109 = arith.mulf %107, %108 : vector<8x32xf32>
    %110 = vector.broadcast %89 : vector<1x32xf32> to vector<8x32xf32>
    %111 = arith.addf %109, %110 : vector<8x32xf32>
    %112 = arith.truncf %111 : vector<8x32xf32> to vector<8x32xbf16>
    %c0_54 = arith.constant 0 : index
    %c0_55 = arith.constant 0 : index
    %113 = vector.load %arg16[%c0_54, %c0_55] : memref<32x64xbf16, #tpu.memory_space<vmem>>, vector<32x64xbf16>
    %cst_56 = arith.constant dense<0.000000e+00> : vector<8x64xf32>
    %114 = tpu.matmul %112, %113, %cst_56 {dimension_numbers = #tpu.dot_dimension_numbers<[1], [0], [0], [1], [0, 0, 1, 1], [], []>} : vector<8x32xbf16>, vector<32x64xbf16>, vector<8x64xf32> -> vector<8x64xf32>
    %c0_57 = arith.constant 0 : index
    %c0_58 = arith.constant 0 : index
    %115 = vector.load %arg17[%c0_57, %c0_58] : memref<1x64xf32, #tpu.memory_space<vmem>>, vector<1x64xf32>
    %116 = vector.broadcast %115 : vector<1x64xf32> to vector<8x64xf32>
    %117 = arith.addf %114, %116 : vector<8x64xf32>
    %cst_59 = arith.constant 5.000000e-01 : f32
    %118 = vector.broadcast %cst_59 : f32 to vector<8x64xf32>
    %119 = arith.mulf %118, %117 : vector<8x64xf32>
    %cst_60 = arith.constant 4.471500e-02 : f32
    %120 = vector.broadcast %cst_60 : f32 to vector<8x64xf32>
    %121 = arith.mulf %120, %117 : vector<8x64xf32>
    %122 = arith.mulf %121, %117 : vector<8x64xf32>
    %123 = arith.mulf %122, %117 : vector<8x64xf32>
    %124 = arith.addf %117, %123 : vector<8x64xf32>
    %cst_61 = arith.constant 0.797884583 : f32
    %125 = vector.broadcast %cst_61 : f32 to vector<8x64xf32>
    %126 = arith.mulf %125, %124 : vector<8x64xf32>
    %127 = math.tanh %126 : vector<8x64xf32>
    %cst_62 = arith.constant 1.000000e+00 : f32
    %128 = vector.broadcast %cst_62 : f32 to vector<8x64xf32>
    %129 = arith.addf %128, %127 : vector<8x64xf32>
    %130 = arith.mulf %119, %129 : vector<8x64xf32>
    %131 = arith.truncf %130 : vector<8x64xf32> to vector<8x64xbf16>
    %c0_63 = arith.constant 0 : index
    %c0_64 = arith.constant 0 : index
    %132 = vector.load %arg18[%c0_63, %c0_64] : memref<64x32xbf16, #tpu.memory_space<vmem>>, vector<64x32xbf16>
    %cst_65 = arith.constant dense<0.000000e+00> : vector<8x32xf32>
    %133 = tpu.matmul %131, %132, %cst_65 {dimension_numbers = #tpu.dot_dimension_numbers<[1], [0], [0], [1], [0, 0, 1, 1], [], []>} : vector<8x64xbf16>, vector<64x32xbf16>, vector<8x32xf32> -> vector<8x32xf32>
    %c0_66 = arith.constant 0 : index
    %c0_67 = arith.constant 0 : index
    %134 = vector.load %arg19[%c0_66, %c0_67] : memref<1x32xf32, #tpu.memory_space<vmem>>, vector<1x32xf32>
    %135 = vector.broadcast %134 : vector<1x32xf32> to vector<8x32xf32>
    %136 = arith.addf %133, %135 : vector<8x32xf32>
    %137 = arith.addf %111, %136 : vector<8x32xf32>
    %c0_68 = arith.constant 0 : index
    %c0_69 = arith.constant 0 : index
    %138 = vector.load %arg20[%c0_68, %c0_69] : memref<1x32xf32, #tpu.memory_space<vmem>>, vector<1x32xf32>
    %c0_70 = arith.constant 0 : index
    %c0_71 = arith.constant 0 : index
    %139 = vector.load %arg21[%c0_70, %c0_71] : memref<1x32xf32, #tpu.memory_space<vmem>>, vector<1x32xf32>
    %cst_72 = arith.constant dense<0.000000e+00> : vector<8xf32>
    %140 = vector.multi_reduction <add>, %137, %cst_72 [1] : vector<8x32xf32> to vector<8xf32>
    %141 = vector.shape_cast %140 : vector<8xf32> to vector<8x1xf32>
    %cst_73 = arith.constant 3.200000e+01 : f32
    %142 = vector.broadcast %cst_73 : f32 to vector<8x1xf32>
    %143 = arith.divf %141, %142 : vector<8x1xf32>
    %144 = vector.broadcast %143 : vector<8x1xf32> to vector<8x32xf32>
    %145 = arith.subf %137, %144 : vector<8x32xf32>
    %146 = arith.mulf %145, %145 : vector<8x32xf32>
    %cst_74 = arith.constant dense<0.000000e+00> : vector<8xf32>
    %147 = vector.multi_reduction <add>, %146, %cst_74 [1] : vector<8x32xf32> to vector<8xf32>
    %148 = vector.shape_cast %147 : vector<8xf32> to vector<8x1xf32>
    %cst_75 = arith.constant 3.200000e+01 : f32
    %149 = vector.broadcast %cst_75 : f32 to vector<8x1xf32>
    %150 = arith.divf %148, %149 : vector<8x1xf32>
    %151 = vector.broadcast %143 : vector<8x1xf32> to vector<8x32xf32>
    %152 = arith.subf %137, %151 : vector<8x32xf32>
    %cst_76 = arith.constant 9.99999996E-13 : f32
    %153 = vector.broadcast %cst_76 : f32 to vector<8x1xf32>
    %154 = arith.addf %150, %153 : vector<8x1xf32>
    %155 = math.rsqrt %154 : vector<8x1xf32>
    %156 = vector.broadcast %155 : vector<8x1xf32> to vector<8x32xf32>
    %157 = arith.mulf %152, %156 : vector<8x32xf32>
    %158 = vector.broadcast %138 : vector<1x32xf32> to vector<8x32xf32>
    %159 = arith.mulf %157, %158 : vector<8x32xf32>
    %160 = vector.broadcast %139 : vector<1x32xf32> to vector<8x32xf32>
    %161 = arith.addf %159, %160 : vector<8x32xf32>
    %162 = arith.truncf %161 : vector<8x32xf32> to vector<8x32xbf16>
    %163 = vector.shape_cast %162 : vector<8x32xbf16> to vector<1x8x32xbf16>
    %164 = vector.broadcast %163 : vector<1x8x32xbf16> to vector<4x8x32xbf16>
    %c0_77 = arith.constant 0 : index
    %c0_78 = arith.constant 0 : index
    %c0_79 = arith.constant 0 : index
    %165 = vector.load %arg22[%c0_77, %c0_78, %c0_79] : memref<4x32x8xbf16, #tpu.memory_space<vmem>>, vector<4x32x8xbf16>
    %cst_80 = arith.constant dense<0.000000e+00> : vector<4x8x8xf32>
    %166 = tpu.matmul %164, %165, %cst_80 {dimension_numbers = #tpu.dot_dimension_numbers<[2], [1], [1], [2], [0, 0, 0, 1, 1, 2], [0], [0]>} : vector<4x8x32xbf16>, vector<4x32x8xbf16>, vector<4x8x8xf32> -> vector<4x8x8xf32>
    %c0_81 = arith.constant 0 : index
    %c0_82 = arith.constant 0 : index
    %c0_83 = arith.constant 0 : index
    %167 = vector.load %arg23[%c0_81, %c0_82, %c0_83] : memref<4x1x8xf32, #tpu.memory_space<vmem>>, vector<4x1x8xf32>
    %168 = vector.broadcast %167 : vector<4x1x8xf32> to vector<4x8x8xf32>
    %169 = arith.addf %166, %168 : vector<4x8x8xf32>
    %c0_84 = arith.constant 0 : index
    %c0_85 = arith.constant 0 : index
    %c0_86 = arith.constant 0 : index
    %170 = vector.load %arg24[%c0_84, %c0_85, %c0_86] : memref<4x32x8xbf16, #tpu.memory_space<vmem>>, vector<4x32x8xbf16>
    %cst_87 = arith.constant dense<0.000000e+00> : vector<4x8x8xf32>
    %171 = tpu.matmul %164, %170, %cst_87 {dimension_numbers = #tpu.dot_dimension_numbers<[2], [1], [1], [2], [0, 0, 0, 1, 1, 2], [0], [0]>} : vector<4x8x32xbf16>, vector<4x32x8xbf16>, vector<4x8x8xf32> -> vector<4x8x8xf32>
    %c0_88 = arith.constant 0 : index
    %c0_89 = arith.constant 0 : index
    %c0_90 = arith.constant 0 : index
    %172 = vector.load %arg25[%c0_88, %c0_89, %c0_90] : memref<4x1x8xf32, #tpu.memory_space<vmem>>, vector<4x1x8xf32>
    %173 = vector.broadcast %172 : vector<4x1x8xf32> to vector<4x8x8xf32>
    %174 = arith.addf %171, %173 : vector<4x8x8xf32>
    %c0_91 = arith.constant 0 : index
    %c0_92 = arith.constant 0 : index
    %c0_93 = arith.constant 0 : index
    %175 = vector.load %arg26[%c0_91, %c0_92, %c0_93] : memref<4x32x8xbf16, #tpu.memory_space<vmem>>, vector<4x32x8xbf16>
    %cst_94 = arith.constant dense<0.000000e+00> : vector<4x8x8xf32>
    %176 = tpu.matmul %164, %175, %cst_94 {dimension_numbers = #tpu.dot_dimension_numbers<[2], [1], [1], [2], [0, 0, 0, 1, 1, 2], [0], [0]>} : vector<4x8x32xbf16>, vector<4x32x8xbf16>, vector<4x8x8xf32> -> vector<4x8x8xf32>
    %c0_95 = arith.constant 0 : index
    %c0_96 = arith.constant 0 : index
    %c0_97 = arith.constant 0 : index
    %177 = vector.load %arg27[%c0_95, %c0_96, %c0_97] : memref<4x1x8xf32, #tpu.memory_space<vmem>>, vector<4x1x8xf32>
    %178 = vector.broadcast %177 : vector<4x1x8xf32> to vector<4x8x8xf32>
    %179 = arith.addf %176, %178 : vector<4x8x8xf32>
    %cst_98 = arith.constant 0.353553385 : f32
    %180 = vector.broadcast %cst_98 : f32 to vector<4x8x8xf32>
    %181 = arith.mulf %169, %180 : vector<4x8x8xf32>
    %182 = arith.truncf %181 : vector<4x8x8xf32> to vector<4x8x8xbf16>
    %183 = arith.truncf %174 : vector<4x8x8xf32> to vector<4x8x8xbf16>
    %cst_99 = arith.constant dense<0.000000e+00> : vector<4x8x8xf32>
    %184 = tpu.matmul %182, %183, %cst_99 {dimension_numbers = #tpu.dot_dimension_numbers<[2], [2], [1], [1], [0, 0, 0, 1, 1, 1], [0], [0]>} : vector<4x8x8xbf16>, vector<4x8x8xbf16>, vector<4x8x8xf32> -> vector<4x8x8xf32>
    %185 = vector.shape_cast %30 : vector<8x8xf32> to vector<1x8x8xf32>
    %186 = vector.broadcast %185 : vector<1x8x8xf32> to vector<4x8x8xf32>
    %187 = arith.addf %184, %186 : vector<4x8x8xf32>
    %cst_100 = arith.constant dense<0xFF800000> : vector<4x8xf32>
    %188 = vector.multi_reduction <maximumf>, %187, %cst_100 [2] : vector<4x8x8xf32> to vector<4x8xf32>
    %189 = vector.shape_cast %188 : vector<4x8xf32> to vector<4x8x1xf32>
    %190 = vector.broadcast %189 : vector<4x8x1xf32> to vector<4x8x8xf32>
    %191 = arith.subf %187, %190 : vector<4x8x8xf32>
    %192 = math.exp %191 : vector<4x8x8xf32>
    %cst_101 = arith.constant dense<0.000000e+00> : vector<4x8xf32>
    %193 = vector.multi_reduction <add>, %192, %cst_101 [2] : vector<4x8x8xf32> to vector<4x8xf32>
    %194 = vector.shape_cast %193 : vector<4x8xf32> to vector<4x8x1xf32>
    %195 = arith.truncf %192 : vector<4x8x8xf32> to vector<4x8x8xbf16>
    %196 = arith.truncf %179 : vector<4x8x8xf32> to vector<4x8x8xbf16>
    %cst_102 = arith.constant dense<0.000000e+00> : vector<4x8x8xf32>
    %197 = tpu.matmul %195, %196, %cst_102 {dimension_numbers = #tpu.dot_dimension_numbers<[2], [1], [1], [2], [0, 0, 0, 1, 1, 2], [0], [0]>} : vector<4x8x8xbf16>, vector<4x8x8xbf16>, vector<4x8x8xf32> -> vector<4x8x8xf32>
    %198 = tpu.reciprocal %194 : vector<4x8x1xf32> -> vector<4x8x1xf32>
    %199 = vector.broadcast %198 : vector<4x8x1xf32> to vector<4x8x8xf32>
    %200 = arith.mulf %197, %199 : vector<4x8x8xf32>
    %201 = arith.truncf %200 : vector<4x8x8xf32> to vector<4x8x8xbf16>
    %c0_103 = arith.constant 0 : index
    %c0_104 = arith.constant 0 : index
    %c0_105 = arith.constant 0 : index
    %202 = vector.load %arg28[%c0_103, %c0_104, %c0_105] : memref<4x8x32xbf16, #tpu.memory_space<vmem>>, vector<4x8x32xbf16>
    %cst_106 = arith.constant dense<0.000000e+00> : vector<4x8x32xf32>
    %203 = tpu.matmul %201, %202, %cst_106 {dimension_numbers = #tpu.dot_dimension_numbers<[2], [1], [1], [2], [0, 0, 0, 1, 1, 2], [0], [0]>} : vector<4x8x8xbf16>, vector<4x8x32xbf16>, vector<4x8x32xf32> -> vector<4x8x32xf32>
    %204 = vector.extract_strided_slice %203 {offsets = [0, 0, 0], sizes = [1, 8, 32], strides = [1, 1, 1]} : vector<4x8x32xf32> to vector<1x8x32xf32>
    %205 = vector.shape_cast %204 : vector<1x8x32xf32> to vector<8x32xf32>
    %206 = vector.extract_strided_slice %203 {offsets = [1, 0, 0], sizes = [1, 8, 32], strides = [1, 1, 1]} : vector<4x8x32xf32> to vector<1x8x32xf32>
    %207 = vector.shape_cast %206 : vector<1x8x32xf32> to vector<8x32xf32>
    %208 = arith.addf %205, %207 : vector<8x32xf32>
    %209 = vector.extract_strided_slice %203 {offsets = [2, 0, 0], sizes = [1, 8, 32], strides = [1, 1, 1]} : vector<4x8x32xf32> to vector<1x8x32xf32>
    %210 = vector.shape_cast %209 : vector<1x8x32xf32> to vector<8x32xf32>
    %211 = arith.addf %208, %210 : vector<8x32xf32>
    %212 = vector.extract_strided_slice %203 {offsets = [3, 0, 0], sizes = [1, 8, 32], strides = [1, 1, 1]} : vector<4x8x32xf32> to vector<1x8x32xf32>
    %213 = vector.shape_cast %212 : vector<1x8x32xf32> to vector<8x32xf32>
    %214 = arith.addf %211, %213 : vector<8x32xf32>
    %c0_107 = arith.constant 0 : index
    %c0_108 = arith.constant 0 : index
    %215 = vector.load %arg29[%c0_107, %c0_108] : memref<1x32xf32, #tpu.memory_space<vmem>>, vector<1x32xf32>
    %216 = vector.broadcast %215 : vector<1x32xf32> to vector<8x32xf32>
    %217 = arith.addf %214, %216 : vector<8x32xf32>
    %218 = arith.addf %161, %217 : vector<8x32xf32>
    %c0_109 = arith.constant 0 : index
    %c0_110 = arith.constant 0 : index
    %219 = vector.load %arg30[%c0_109, %c0_110] : memref<1x32xf32, #tpu.memory_space<vmem>>, vector<1x32xf32>
    %c0_111 = arith.constant 0 : index
    %c0_112 = arith.constant 0 : index
    %220 = vector.load %arg31[%c0_111, %c0_112] : memref<1x32xf32, #tpu.memory_space<vmem>>, vector<1x32xf32>
    %cst_113 = arith.constant dense<0.000000e+00> : vector<8xf32>
    %221 = vector.multi_reduction <add>, %218, %cst_113 [1] : vector<8x32xf32> to vector<8xf32>
    %222 = vector.shape_cast %221 : vector<8xf32> to vector<8x1xf32>
    %cst_114 = arith.constant 3.200000e+01 : f32
    %223 = vector.broadcast %cst_114 : f32 to vector<8x1xf32>
    %224 = arith.divf %222, %223 : vector<8x1xf32>
    %225 = vector.broadcast %224 : vector<8x1xf32> to vector<8x32xf32>
    %226 = arith.subf %218, %225 : vector<8x32xf32>
    %227 = arith.mulf %226, %226 : vector<8x32xf32>
    %cst_115 = arith.constant dense<0.000000e+00> : vector<8xf32>
    %228 = vector.multi_reduction <add>, %227, %cst_115 [1] : vector<8x32xf32> to vector<8xf32>
    %229 = vector.shape_cast %228 : vector<8xf32> to vector<8x1xf32>
    %cst_116 = arith.constant 3.200000e+01 : f32
    %230 = vector.broadcast %cst_116 : f32 to vector<8x1xf32>
    %231 = arith.divf %229, %230 : vector<8x1xf32>
    %232 = vector.broadcast %224 : vector<8x1xf32> to vector<8x32xf32>
    %233 = arith.subf %218, %232 : vector<8x32xf32>
    %cst_117 = arith.constant 9.99999996E-13 : f32
    %234 = vector.broadcast %cst_117 : f32 to vector<8x1xf32>
    %235 = arith.addf %231, %234 : vector<8x1xf32>
    %236 = math.rsqrt %235 : vector<8x1xf32>
    %237 = vector.broadcast %236 : vector<8x1xf32> to vector<8x32xf32>
    %238 = arith.mulf %233, %237 : vector<8x32xf32>
    %239 = vector.broadcast %219 : vector<1x32xf32> to vector<8x32xf32>
    %240 = arith.mulf %238, %239 : vector<8x32xf32>
    %241 = vector.broadcast %220 : vector<1x32xf32> to vector<8x32xf32>
    %242 = arith.addf %240, %241 : vector<8x32xf32>
    %243 = arith.truncf %242 : vector<8x32xf32> to vector<8x32xbf16>
    %c0_118 = arith.constant 0 : index
    %c0_119 = arith.constant 0 : index
    %244 = vector.load %arg32[%c0_118, %c0_119] : memref<32x64xbf16, #tpu.memory_space<vmem>>, vector<32x64xbf16>
    %cst_120 = arith.constant dense<0.000000e+00> : vector<8x64xf32>
    %245 = tpu.matmul %243, %244, %cst_120 {dimension_numbers = #tpu.dot_dimension_numbers<[1], [0], [0], [1], [0, 0, 1, 1], [], []>} : vector<8x32xbf16>, vector<32x64xbf16>, vector<8x64xf32> -> vector<8x64xf32>
    %c0_121 = arith.constant 0 : index
    %c0_122 = arith.constant 0 : index
    %246 = vector.load %arg33[%c0_121, %c0_122] : memref<1x64xf32, #tpu.memory_space<vmem>>, vector<1x64xf32>
    %247 = vector.broadcast %246 : vector<1x64xf32> to vector<8x64xf32>
    %248 = arith.addf %245, %247 : vector<8x64xf32>
    %cst_123 = arith.constant 5.000000e-01 : f32
    %249 = vector.broadcast %cst_123 : f32 to vector<8x64xf32>
    %250 = arith.mulf %249, %248 : vector<8x64xf32>
    %cst_124 = arith.constant 4.471500e-02 : f32
    %251 = vector.broadcast %cst_124 : f32 to vector<8x64xf32>
    %252 = arith.mulf %251, %248 : vector<8x64xf32>
    %253 = arith.mulf %252, %248 : vector<8x64xf32>
    %254 = arith.mulf %253, %248 : vector<8x64xf32>
    %255 = arith.addf %248, %254 : vector<8x64xf32>
    %cst_125 = arith.constant 0.797884583 : f32
    %256 = vector.broadcast %cst_125 : f32 to vector<8x64xf32>
    %257 = arith.mulf %256, %255 : vector<8x64xf32>
    %258 = math.tanh %257 : vector<8x64xf32>
    %cst_126 = arith.constant 1.000000e+00 : f32
    %259 = vector.broadcast %cst_126 : f32 to vector<8x64xf32>
    %260 = arith.addf %259, %258 : vector<8x64xf32>
    %261 = arith.mulf %250, %260 : vector<8x64xf32>
    %262 = arith.truncf %261 : vector<8x64xf32> to vector<8x64xbf16>
    %c0_127 = arith.constant 0 : index
    %c0_128 = arith.constant 0 : index
    %263 = vector.load %arg34[%c0_127, %c0_128] : memref<64x32xbf16, #tpu.memory_space<vmem>>, vector<64x32xbf16>
    %cst_129 = arith.constant dense<0.000000e+00> : vector<8x32xf32>
    %264 = tpu.matmul %262, %263, %cst_129 {dimension_numbers = #tpu.dot_dimension_numbers<[1], [0], [0], [1], [0, 0, 1, 1], [], []>} : vector<8x64xbf16>, vector<64x32xbf16>, vector<8x32xf32> -> vector<8x32xf32>
    %c0_130 = arith.constant 0 : index
    %c0_131 = arith.constant 0 : index
    %265 = vector.load %arg35[%c0_130, %c0_131] : memref<1x32xf32, #tpu.memory_space<vmem>>, vector<1x32xf32>
    %266 = vector.broadcast %265 : vector<1x32xf32> to vector<8x32xf32>
    %267 = arith.addf %264, %266 : vector<8x32xf32>
    %268 = arith.addf %242, %267 : vector<8x32xf32>
    %c0_132 = arith.constant 0 : index
    %c0_133 = arith.constant 0 : index
    %269 = vector.load %arg36[%c0_132, %c0_133] : memref<1x32xf32, #tpu.memory_space<vmem>>, vector<1x32xf32>
    %c0_134 = arith.constant 0 : index
    %c0_135 = arith.constant 0 : index
    %270 = vector.load %arg37[%c0_134, %c0_135] : memref<1x32xf32, #tpu.memory_space<vmem>>, vector<1x32xf32>
    %cst_136 = arith.constant dense<0.000000e+00> : vector<8xf32>
    %271 = vector.multi_reduction <add>, %268, %cst_136 [1] : vector<8x32xf32> to vector<8xf32>
    %272 = vector.shape_cast %271 : vector<8xf32> to vector<8x1xf32>
    %cst_137 = arith.constant 3.200000e+01 : f32
    %273 = vector.broadcast %cst_137 : f32 to vector<8x1xf32>
    %274 = arith.divf %272, %273 : vector<8x1xf32>
    %275 = vector.broadcast %274 : vector<8x1xf32> to vector<8x32xf32>
    %276 = arith.subf %268, %275 : vector<8x32xf32>
    %277 = arith.mulf %276, %276 : vector<8x32xf32>
    %cst_138 = arith.constant dense<0.000000e+00> : vector<8xf32>
    %278 = vector.multi_reduction <add>, %277, %cst_138 [1] : vector<8x32xf32> to vector<8xf32>
    %279 = vector.shape_cast %278 : vector<8xf32> to vector<8x1xf32>
    %cst_139 = arith.constant 3.200000e+01 : f32
    %280 = vector.broadcast %cst_139 : f32 to vector<8x1xf32>
    %281 = arith.divf %279, %280 : vector<8x1xf32>
    %282 = vector.broadcast %274 : vector<8x1xf32> to vector<8x32xf32>
    %283 = arith.subf %268, %282 : vector<8x32xf32>
    %cst_140 = arith.constant 9.99999996E-13 : f32
    %284 = vector.broadcast %cst_140 : f32 to vector<8x1xf32>
    %285 = arith.addf %281, %284 : vector<8x1xf32>
    %286 = math.rsqrt %285 : vector<8x1xf32>
    %287 = vector.broadcast %286 : vector<8x1xf32> to vector<8x32xf32>
    %288 = arith.mulf %283, %287 : vector<8x32xf32>
    %289 = vector.broadcast %269 : vector<1x32xf32> to vector<8x32xf32>
    %290 = arith.mulf %288, %289 : vector<8x32xf32>
    %291 = vector.broadcast %270 : vector<1x32xf32> to vector<8x32xf32>
    %292 = arith.addf %290, %291 : vector<8x32xf32>
    %c0_141 = arith.constant 0 : index
    %c0_142 = arith.constant 0 : index
    %c0_143 = arith.constant 0 : index
    %293 = vector.load %arg3[%c0_141, %c0_142, %c0_143] : memref<1x8x1xf32, #tpu.memory_space<vmem>>, vector<1x8x1xf32>
    %294 = vector.shape_cast %293 : vector<1x8x1xf32> to vector<8x1xf32>
    %295 = vector.broadcast %294 : vector<8x1xf32> to vector<8x32xf32>
    %296 = arith.mulf %292, %295 : vector<8x32xf32>
    %cst_144 = arith.constant dense<0xFF800000> : vector<32xf32>
    %297 = vector.multi_reduction <maximumf>, %296, %cst_144 [0] : vector<8x32xf32> to vector<32xf32>
    %298 = vector.shape_cast %297 : vector<32xf32> to vector<1x32xf32>
    %c0_145 = arith.constant 0 : index
    %c0_146 = arith.constant 0 : index
    %c0_147 = arith.constant 0 : index
    %299 = vector.load %arg38[%c0_145, %c0_146, %c0_147] : memref<1x1x32xf32, #tpu.memory_space<vmem>>, vector<1x1x32xf32>
    %300 = vector.shape_cast %299 : vector<1x1x32xf32> to vector<1x32xf32>
    %301 = vector.shape_cast %298 : vector<1x32xf32> to vector<1x1x32xf32>
    tpu.vector_store %arg38[%c0_145, %c0_146, %c0_147], %301 {strides = array<i32>} : memref<1x1x32xf32, #tpu.memory_space<vmem>>, vector<1x1x32xf32>,
    return
  }
  func.func @transform_0(%arg0: i32) -> (i32, i32, i32) {
    %c0_i32 = arith.constant 0 : i32
    %c0_i32_0 = arith.constant 0 : i32
    %c0_i32_1 = arith.constant 0 : i32
    return %arg0, %c0_i32, %c0_i32_0 : i32, i32, i32
  }
  func.func @transform_1(%arg0: i32) -> (i32, i32, i32) {
    %c0_i32 = arith.constant 0 : i32
    %c0_i32_0 = arith.constant 0 : i32
    %c0_i32_1 = arith.constant 0 : i32
    return %arg0, %c0_i32, %c0_i32_0 : i32, i32, i32
  }
  func.func @transform_2(%arg0: i32) -> (i32, i32, i32) {
    %c0_i32 = arith.constant 0 : i32
    %c0_i32_0 = arith.constant 0 : i32
    %c0_i32_1 = arith.constant 0 : i32
    return %arg0, %c0_i32, %c0_i32_0 : i32, i32, i32
  }
  func.func @transform_3(%arg0: i32) -> (i32, i32) {
    %c0_i32 = arith.constant 0 : i32
    %c0_i32_0 = arith.constant 0 : i32
    %c0_i32_1 = arith.constant 0 : i32
    return %c0_i32, %c0_i32_0 : i32, i32
  }
  func.func @transform_4(%arg0: i32) -> (i32, i32) {
    %c0_i32 = arith.constant 0 : i32
    %c0_i32_0 = arith.constant 0 : i32
    %c0_i32_1 = arith.constant 0 : i32
    return %c0_i32, %c0_i32_0 : i32, i32
  }
  func.func @transform_5(%arg0: i32) -> (i32, i32, i32) {
    %c0_i32 = arith.constant 0 : i32
    %c0_i32_0 = arith.constant 0 : i32
    %c0_i32_1 = arith.constant 0 : i32
    %c0_i32_2 = arith.constant 0 : i32
    return %c0_i32, %c0_i32_0, %c0_i32_1 : i32, i32, i32
  }
  func.func @transform_6(%arg0: i32) -> (i32, i32, i32) {
    %c0_i32 = arith.constant 0 : i32
    %c0_i32_0 = arith.constant 0 : i32
    %c0_i32_1 = arith.constant 0 : i32
    %c0_i32_2 = arith.constant 0 : i32
    return %c0_i32, %c0_i32_0, %c0_i32_1 : i32, i32, i32
  }
  func.func @transform_7(%arg0: i32) -> (i32, i32, i32) {
    %c0_i32 = arith.constant 0 : i32
    %c0_i32_0 = arith.constant 0 : i32
    %c0_i32_1 = arith.constant 0 : i32
    %c0_i32_2 = arith.constant 0 : i32
    return %c0_i32, %c0_i32_0, %c0_i32_1 : i32, i32, i32
  }
  func.func @transform_8(%arg0: i32) -> (i32, i32, i32) {
    %c0_i32 = arith.constant 0 : i32
    %c0_i32_0 = arith.constant 0 : i32
    %c0_i32_1 = arith.constant 0 : i32
    %c0_i32_2 = arith.constant 0 : i32
    return %c0_i32, %c0_i32_0, %c0_i32_1 : i32, i32, i32
  }
  func.func @transform_9(%arg0: i32) -> (i32, i32, i32) {
    %c0_i32 = arith.constant 0 : i32
    %c0_i32_0 = arith.constant 0 : i32
    %c0_i32_1 = arith.constant 0 : i32
    %c0_i32_2 = arith.constant 0 : i32
    return %c0_i32, %c0_i32_0, %c0_i32_1 : i32, i32, i32
  }
  func.func @transform_10(%arg0: i32) -> (i32, i32, i32) {
    %c0_i32 = arith.constant 0 : i32
    %c0_i32_0 = arith.constant 0 : i32
    %c0_i32_1 = arith.constant 0 : i32
    %c0_i32_2 = arith.constant 0 : i32
    return %c0_i32, %c0_i32_0, %c0_i32_1 : i32, i32, i32
  }
  func.func @transform_11(%arg0: i32) -> (i32, i32, i32) {
    %c0_i32 = arith.constant 0 : i32
    %c0_i32_0 = arith.constant 0 : i32
    %c0_i32_1 = arith.constant 0 : i32
    %c0_i32_2 = arith.constant 0 : i32
    return %c0_i32, %c0_i32_0, %c0_i32_1 : i32, i32, i32
  }
  func.func @transform_12(%arg0: i32) -> (i32, i32) {
    %c0_i32 = arith.constant 0 : i32
    %c0_i32_0 = arith.constant 0 : i32
    %c0_i32_1 = arith.constant 0 : i32
    return %c0_i32, %c0_i32_0 : i32, i32
  }
  func.func @transform_13(%arg0: i32) -> (i32, i32) {
    %c0_i32 = arith.constant 0 : i32
    %c0_i32_0 = arith.constant 0 : i32
    %c0_i32_1 = arith.constant 0 : i32
    return %c0_i32, %c0_i32_0 : i32, i32
  }
  func.func @transform_14(%arg0: i32) -> (i32, i32) {
    %c0_i32 = arith.constant 0 : i32
    %c0_i32_0 = arith.constant 0 : i32
    %c0_i32_1 = arith.constant 0 : i32
    return %c0_i32, %c0_i32_0 : i32, i32
  }
  func.func @transform_15(%arg0: i32) -> (i32, i32) {
    %c0_i32 = arith.constant 0 : i32
    %c0_i32_0 = arith.constant 0 : i32
    %c0_i32_1 = arith.constant 0 : i32
    return %c0_i32, %c0_i32_0 : i32, i32
  }
  func.func @transform_16(%arg0: i32) -> (i32, i32) {
    %c0_i32 = arith.constant 0 : i32
    %c0_i32_0 = arith.constant 0 : i32
    %c0_i32_1 = arith.constant 0 : i32
    return %c0_i32, %c0_i32_0 : i32, i32
  }
  func.func @transform_17(%arg0: i32) -> (i32, i32) {
    %c0_i32 = arith.constant 0 : i32
    %c0_i32_0 = arith.constant 0 : i32
    %c0_i32_1 = arith.constant 0 : i32
    return %c0_i32, %c0_i32_0 : i32, i32
  }
  func.func @transform_18(%arg0: i32) -> (i32, i32) {
    %c0_i32 = arith.constant 0 : i32
    %c0_i32_0 = arith.constant 0 : i32
    %c0_i32_1 = arith.constant 0 : i32
    return %c0_i32, %c0_i32_0 : i32, i32
  }
  func.func @transform_19(%arg0: i32) -> (i32, i32) {
    %c0_i32 = arith.constant 0 : i32
    %c0_i32_0 = arith.constant 0 : i32
    %c0_i32_1 = arith.constant 0 : i32
    return %c0_i32, %c0_i32_0 : i32, i32
  }
  func.func @transform_20(%arg0: i32) -> (i32, i32) {
    %c0_i32 = arith.constant 0 : i32
    %c0_i32_0 = arith.constant 0 : i32
    %c0_i32_1 = arith.constant 0 : i32
    return %c0_i32, %c0_i32_0 : i32, i32
  }
  func.func @transform_21(%arg0: i32) -> (i32, i32, i32) {
    %c0_i32 = arith.constant 0 : i32
    %c0_i32_0 = arith.constant 0 : i32
    %c0_i32_1 = arith.constant 0 : i32
    %c0_i32_2 = arith.constant 0 : i32
    return %c0_i32, %c0_i32_0, %c0_i32_1 : i32, i32, i32
  }
  func.func @transform_22(%arg0: i32) -> (i32, i32, i32) {
    %c0_i32 = arith.constant 0 : i32
    %c0_i32_0 = arith.constant 0 : i32
    %c0_i32_1 = arith.constant 0 : i32
    %c0_i32_2 = arith.constant 0 : i32
    return %c0_i32, %c0_i32_0, %c0_i32_1 : i32, i32, i32
  }
  func.func @transform_23(%arg0: i32) -> (i32, i32, i32) {
    %c0_i32 = arith.constant 0 : i32
    %c0_i32_0 = arith.constant 0 : i32
    %c0_i32_1 = arith.constant 0 : i32
    %c0_i32_2 = arith.constant 0 : i32
    return %c0_i32, %c0_i32_0, %c0_i32_1 : i32, i32, i32
  }
  func.func @transform_24(%arg0: i32) -> (i32, i32, i32) {
    %c0_i32 = arith.constant 0 : i32
    %c0_i32_0 = arith.constant 0 : i32
    %c0_i32_1 = arith.constant 0 : i32
    %c0_i32_2 = arith.constant 0 : i32
    return %c0_i32, %c0_i32_0, %c0_i32_1 : i32, i32, i32
  }
  func.func @transform_25(%arg0: i32) -> (i32, i32, i32) {
    %c0_i32 = arith.constant 0 : i32
    %c0_i32_0 = arith.constant 0 : i32
    %c0_i32_1 = arith.constant 0 : i32
    %c0_i32_2 = arith.constant 0 : i32
    return %c0_i32, %c0_i32_0, %c0_i32_1 : i32, i32, i32
  }
  func.func @transform_26(%arg0: i32) -> (i32, i32, i32) {
    %c0_i32 = arith.constant 0 : i32
    %c0_i32_0 = arith.constant 0 : i32
    %c0_i32_1 = arith.constant 0 : i32
    %c0_i32_2 = arith.constant 0 : i32
    return %c0_i32, %c0_i32_0, %c0_i32_1 : i32, i32, i32
  }
  func.func @transform_27(%arg0: i32) -> (i32, i32, i32) {
    %c0_i32 = arith.constant 0 : i32
    %c0_i32_0 = arith.constant 0 : i32
    %c0_i32_1 = arith.constant 0 : i32
    %c0_i32_2 = arith.constant 0 : i32
    return %c0_i32, %c0_i32_0, %c0_i32_1 : i32, i32, i32
  }
  func.func @transform_28(%arg0: i32) -> (i32, i32) {
    %c0_i32 = arith.constant 0 : i32
    %c0_i32_0 = arith.constant 0 : i32
    %c0_i32_1 = arith.constant 0 : i32
    return %c0_i32, %c0_i32_0 : i32, i32
  }
  func.func @transform_29(%arg0: i32) -> (i32, i32) {
    %c0_i32 = arith.constant 0 : i32
    %c0_i32_0 = arith.constant 0 : i32
    %c0_i32_1 = arith.constant 0 : i32
    return %c0_i32, %c0_i32_0 : i32, i32
  }
  func.func @transform_30(%arg0: i32) -> (i32, i32) {
    %c0_i32 = arith.constant 0 : i32
    %c0_i32_0 = arith.constant 0 : i32
    %c0_i32_1 = arith.constant 0 : i32
    return %c0_i32, %c0_i32_0 : i32, i32
  }
  func.func @transform_31(%arg0: i32) -> (i32, i32) {
    %c0_i32 = arith.constant 0 : i32
    %c0_i32_0 = arith.constant 0 : i32
    %c0_i32_1 = arith.constant 0 : i32
    return %c0_i32, %c0_i32_0 : i32, i32
  }
  func.func @transform_32(%arg0: i32) -> (i32, i32) {
    %c0_i32 = arith.constant 0 : i32
    %c0_i32_0 = arith.constant 0 : i32
    %c0_i32_1 = arith.constant 0 : i32
    return %c0_i32, %c0_i32_0 : i32, i32
  }
  func.func @transform_33(%arg0: i32) -> (i32, i32) {
    %c0_i32 = arith.constant 0 : i32
    %c0_i32_0 = arith.constant 0 : i32
    %c0_i32_1 = arith.constant 0 : i32
    return %c0_i32, %c0_i32_0 : i32, i32
  }
  func.func @transform_34(%arg0: i32) -> (i32, i32) {
    %c0_i32 = arith.constant 0 : i32
    %c0_i32_0 = arith.constant 0 : i32
    %c0_i32_1 = arith.constant 0 : i32
    return %c0_i32, %c0_i32_0 : i32, i32
  }
  func.func @transform_35(%arg0: i32) -> (i32, i32) {
    %c0_i32 = arith.constant 0 : i32
    %c0_i32_0 = arith.constant 0 : i32
    %c0_i32_1 = arith.constant 0 : i32
    return %c0_i32, %c0_i32_0 : i32, i32
  }
  func.func @transform_36(%arg0: i32) -> (i32, i32) {
    %c0_i32 = arith.constant 0 : i32
    %c0_i32_0 = arith.constant 0 : i32
    %c0_i32_1 = arith.constant 0 : i32
    return %c0_i32, %c0_i32_0 : i32, i32
  }
  func.func @transform_37(%arg0: i32) -> (i32, i32, i32) {
    %c0_i32 = arith.constant 0 : i32
    %c0_i32_0 = arith.constant 0 : i32
    %c0_i32_1 = arith.constant 0 : i32
    return %arg0, %c0_i32, %c0_i32_0 : i32, i32, i32
  }
}

</mosaic_0001>

<llo_original>
// kernel: tpu_custom_call.1
$region0: #{tpu_custom_call.1}
  #allocation0 [shape = 'u32[]', space=smem, size = 0x4, offset = 0x4, fixed_abs, tag = 'smem constant byte address 0x4 - core index']
  #allocation1 [shape = 'u32[144,128]{1,0:T(1,128)}', space=vmem, size = 0x12000, scoped, tag = 'internal scratch']
  %s0 = inlined_call_operand.smem [shape: u32[38], index: -1, kind: input, shape index: {}]
  %s1 = sld [smem:[%s0]]
  %s2 = scalar_lea.smem %s0, 1
  %s3 = sld [smem:[%s2]]
  %s4 = scalar_lea.smem %s0, 2
  %s5 = sld [smem:[%s4]]
  %s6 = scalar_lea.smem %s0, 3
  %s7 = sld [smem:[%s6]]
  %s8 = scalar_lea.smem %s0, 4
  %s9 = sld [smem:[%s8]]
  %s10 = scalar_lea.smem %s0, 5
  %s11 = sld [smem:[%s10]]
  %s12 = scalar_lea.smem %s0, 6
  %s13 = sld [smem:[%s12]]
  %s14 = scalar_lea.smem %s0, 7
  %s15 = sld [smem:[%s14]]
  %s16 = scalar_lea.smem %s0, 8
  %s17 = sld [smem:[%s16]]
  %s18 = scalar_lea.smem %s0, 9
  %s19 = sld [smem:[%s18]]
  %s20 = scalar_lea.smem %s0, 10
  %s21 = sld [smem:[%s20]]
  %s22 = scalar_lea.smem %s0, 11
  %s23 = sld [smem:[%s22]]
  %s24 = scalar_lea.smem %s0, 12
  %s25 = sld [smem:[%s24]]
  %s26 = scalar_lea.smem %s0, 13
  %s27 = sld [smem:[%s26]]
  %s28 = scalar_lea.smem %s0, 14
  %s29 = sld [smem:[%s28]]
  %s30 = scalar_lea.smem %s0, 15
  %s31 = sld [smem:[%s30]]
  %s32 = scalar_lea.smem %s0, 16
  %s33 = sld [smem:[%s32]]
  %s34 = scalar_lea.smem %s0, 17
  %s35 = sld [smem:[%s34]]
  %s36 = scalar_lea.smem %s0, 18
  %s37 = sld [smem:[%s36]]
  %s38 = scalar_lea.smem %s0, 19
  %s39 = sld [smem:[%s38]]
  %s40 = scalar_lea.smem %s0, 20
  %s41 = sld [smem:[%s40]]
  %s42 = scalar_lea.smem %s0, 21
  %s43 = sld [smem:[%s42]]
  %s44 = scalar_lea.smem %s0, 22
  %s45 = sld [smem:[%s44]]
  %s46 = scalar_lea.smem %s0, 23
  %s47 = sld [smem:[%s46]]
  %s48 = scalar_lea.smem %s0, 24
  %s49 = sld [smem:[%s48]]
  %s50 = scalar_lea.smem %s0, 25
  %s51 = sld [smem:[%s50]]
  %s52 = scalar_lea.smem %s0, 26
  %s53 = sld [smem:[%s52]]
  %s54 = scalar_lea.smem %s0, 27
  %s55 = sld [smem:[%s54]]
  %s56 = scalar_lea.smem %s0, 28
  %s57 = sld [smem:[%s56]]
  %s58 = scalar_lea.smem %s0, 29
  %s59 = sld [smem:[%s58]]
  %s60 = scalar_lea.smem %s0, 30
  %s61 = sld [smem:[%s60]]
  %s62 = scalar_lea.smem %s0, 31
  %s63 = sld [smem:[%s62]]
  %s64 = scalar_lea.smem %s0, 32
  %s65 = sld [smem:[%s64]]
  %s66 = scalar_lea.smem %s0, 33
  %s67 = sld [smem:[%s66]]
  %s68 = scalar_lea.smem %s0, 34
  %s69 = sld [smem:[%s68]]
  %s70 = scalar_lea.smem %s0, 35
  %s71 = sld [smem:[%s70]]
  %s72 = scalar_lea.smem %s0, 36
  %s73 = sld [smem:[%s72]]
  %s74 = scalar_lea.smem %s0, 37
  %s75 = sld [smem:[%s74]]
  %s76 = sld [smem:[#allocation0]]
  $region181: #{tpu_custom_call.1} parent=0
    _
  %s78 = ssub.s32 1, %s76
  %s79 = scalar_select 0, %s78, %s76
  $region1: #{tpu_custom_call.1} parent=0
    #allocation2 [shape = 'u8[1024]{0}', space=vmem, size = 0x400, scoped, tag = 'output window, operand 0']
    #allocation3 [shape = 's32[2]{0}', space=sflag, size = 0x8, scoped, tag = 'scoped memory for tpu_custom_call.1']
    %80 = vsyncpa [#allocation3], 0
    %s81 = scalar_lea.sflag [#allocation3], 1
    %82 = vsyncpa %s81, 0
    loop: start=0, step=1, limit=4
    $region2: #{tpu_custom_call.1} parent=1 // loop_pre_header
      _
    $region3: #{tpu_custom_call.1} parent=1 // loop_header
      %s84 = sphi 0, %s88
      %p85 = scmp.ge.s32.totalorder %s84, 4
      %s94 = sphi 0, %s96
      %s97 = sphi 0, %s94
      %s98 = sphi 0, %s97
      %s114 = sphi 0, %s98
      %s120 = sphi 0, %s122
      %s123 = sphi 0, %s120
      %s124 = sphi 0, %s123
      %s140 = sphi 0, %s124
      %s146 = sphi 0, %s148
      %s149 = sphi 0, %s146
      %s150 = sphi 0, %s149
      %s166 = sphi 0, %s150
      %s170 = sphi 0, %s170
      %s172 = sphi 0, %s170
      %s173 = sphi 0, %s172
      %s187 = sphi 0, %s173
      %s191 = sphi 0, %s191
      %s193 = sphi 0, %s191
      %s194 = sphi 0, %s193
      %s208 = sphi 0, %s194
      %s212 = sphi 0, %s212
      %s214 = sphi 0, %s212
      %s215 = sphi 0, %s214
      %s229 = sphi 0, %s215
      %s233 = sphi 0, %s233
      %s235 = sphi 0, %s233
      %s236 = sphi 0, %s235
      %s250 = sphi 0, %s236
      %s254 = sphi 0, %s254
      %s256 = sphi 0, %s254
      %s257 = sphi 0, %s256
      %s271 = sphi 0, %s257
      %s275 = sphi 0, %s275
      %s277 = sphi 0, %s275
      %s278 = sphi 0, %s277
      %s292 = sphi 0, %s278
      %s296 = sphi 0, %s296
      %s298 = sphi 0, %s296
      %s299 = sphi 0, %s298
      %s313 = sphi 0, %s299
      %s317 = sphi 0, %s317
      %s319 = sphi 0, %s317
      %s320 = sphi 0, %s319
      %s334 = sphi 0, %s320
      %s338 = sphi 0, %s338
      %s340 = sphi 0, %s338
      %s341 = sphi 0, %s340
      %s355 = sphi 0, %s341
      %s359 = sphi 0, %s359
      %s361 = sphi 0, %s359
      %s362 = sphi 0, %s361
      %s376 = sphi 0, %s362
      %s380 = sphi 0, %s380
      %s382 = sphi 0, %s380
      %s383 = sphi 0, %s382
      %s397 = sphi 0, %s383
      %s401 = sphi 0, %s401
      %s403 = sphi 0, %s401
      %s404 = sphi 0, %s403
      %s418 = sphi 0, %s404
      %s422 = sphi 0, %s422
      %s424 = sphi 0, %s422
      %s425 = sphi 0, %s424
      %s439 = sphi 0, %s425
      %s443 = sphi 0, %s443
      %s445 = sphi 0, %s443
      %s446 = sphi 0, %s445
      %s460 = sphi 0, %s446
      %s464 = sphi 0, %s464
      %s466 = sphi 0, %s464
      %s467 = sphi 0, %s466
      %s481 = sphi 0, %s467
      %s485 = sphi 0, %s485
      %s487 = sphi 0, %s485
      %s488 = sphi 0, %s487
      %s502 = sphi 0, %s488
      %s506 = sphi 0, %s506
      %s508 = sphi 0, %s506
      %s509 = sphi 0, %s508
      %s523 = sphi 0, %s509
      %s527 = sphi 0, %s527
      %s529 = sphi 0, %s527
      %s530 = sphi 0, %s529
      %s544 = sphi 0, %s530
      %s548 = sphi 0, %s548
      %s550 = sphi 0, %s548
      %s551 = sphi 0, %s550
      %s565 = sphi 0, %s551
      %s569 = sphi 0, %s569
      %s571 = sphi 0, %s569
      %s572 = sphi 0, %s571
      %s586 = sphi 0, %s572
      %s590 = sphi 0, %s590
      %s592 = sphi 0, %s590
      %s593 = sphi 0, %s592
      %s607 = sphi 0, %s593
      %s611 = sphi 0, %s611
      %s613 = sphi 0, %s611
      %s614 = sphi 0, %s613
      %s628 = sphi 0, %s614
      %s632 = sphi 0, %s632
      %s634 = sphi 0, %s632
      %s635 = sphi 0, %s634
      %s649 = sphi 0, %s635
      %s653 = sphi 0, %s653
      %s655 = sphi 0, %s653
      %s656 = sphi 0, %s655
      %s670 = sphi 0, %s656
      %s674 = sphi 0, %s674
      %s676 = sphi 0, %s674
      %s677 = sphi 0, %s676
      %s691 = sphi 0, %s677
      %s695 = sphi 0, %s695
      %s697 = sphi 0, %s695
      %s698 = sphi 0, %s697
      %s712 = sphi 0, %s698
      %s716 = sphi 0, %s716
      %s718 = sphi 0, %s716
      %s719 = sphi 0, %s718
      %s733 = sphi 0, %s719
      %s737 = sphi 0, %s737
      %s739 = sphi 0, %s737
      %s740 = sphi 0, %s739
      %s754 = sphi 0, %s740
      %s758 = sphi 0, %s758
      %s760 = sphi 0, %s758
      %s761 = sphi 0, %s760
      %s775 = sphi 0, %s761
      %s779 = sphi 0, %s779
      %s781 = sphi 0, %s779
      %s782 = sphi 0, %s781
      %s796 = sphi 0, %s782
      %s800 = sphi 0, %s800
      %s802 = sphi 0, %s800
      %s803 = sphi 0, %s802
      %s817 = sphi 0, %s803
      %s821 = sphi 0, %s821
      %s823 = sphi 0, %s821
      %s824 = sphi 0, %s823
      %s838 = sphi 0, %s824
      %s842 = sphi 0, %s842
      %s844 = sphi 0, %s842
      %s845 = sphi 0, %s844
      %s859 = sphi 0, %s845
      %s863 = sphi 0, %s863
      %s865 = sphi 0, %s863
      %s866 = sphi 0, %s865
      %s880 = sphi 0, %s866
      %s886 = sphi 0, %s888
      %s889 = sphi 0, %s886
      %s890 = sphi 0, %s889
      %s906 = sphi 0, %s890
    $region4: #{tpu_custom_call.1} parent=1 // loop_header_branch
      %87 = sbr.rel (%p85) target = $region8
    $region5: #{tpu_custom_call.1} parent=1 // loop_body
      %s89 = ssub.s32 %s84, 1
      %s90 = ssub.s32 %s84, 2
      %s91 = sadd.s32 %s84, 1
      %s92 = ssub.s32 %s84, %s91
      %p93 = scmp.eq.s32.totalorder %s92, 0
      %s95 = sadd.s32 %s94, 1
      %s96 = scalar_select %p93, %s94, %s95
      %p99 = pneg %p93
      %p100 = scmp.eq.s32.totalorder %s84, 1
      %p101 = por %p99, %p100
      %p102 = scmp.ne.s32.totalorder %s94, %s97
      %p103 = scmp.eq.s32.totalorder %s84, 0
      %p104 = por %p102, %p103
      %p105 = scmp.ne.s32.totalorder %s94, %s97
      %p106 = scmp.eq.s32.totalorder %s89, 1
      %p107 = por %p105, %p106
      %p108 = scmp.ne.s32.totalorder %s97, %s98
      %p109 = scmp.eq.s32.totalorder %s89, 0
      %p110 = por %p108, %p109
      %p111 = scmp.ne.s32.totalorder %s97, %s98
      %p112 = scmp.eq.s32.totalorder %s90, 1
      %p113 = por %p111, %p112
      %p115 = scmp.ne.s32.totalorder %s98, %s114
      %p116 = scmp.eq.s32.totalorder %s90, 0
      %p117 = por %p115, %p116
      %s118 = ssub.s32 %s84, %s91
      %p119 = scmp.eq.s32.totalorder %s118, 0
      %s121 = sadd.s32 %s120, 1
      %s122 = scalar_select %p119, %s120, %s121
      %p125 = pneg %p119
      %p126 = scmp.eq.s32.totalorder %s84, 1
      %p127 = por %p125, %p126
      %p128 = scmp.ne.s32.totalorder %s120, %s123
      %p129 = scmp.eq.s32.totalorder %s84, 0
      %p130 = por %p128, %p129
      %p131 = scmp.ne.s32.totalorder %s120, %s123
      %p132 = scmp.eq.s32.totalorder %s89, 1
      %p133 = por %p131, %p132
      %p134 = scmp.ne.s32.totalorder %s123, %s124
      %p135 = scmp.eq.s32.totalorder %s89, 0
      %p136 = por %p134, %p135
      %p137 = scmp.ne.s32.totalorder %s123, %s124
      %p138 = scmp.eq.s32.totalorder %s90, 1
      %p139 = por %p137, %p138
      %p141 = scmp.ne.s32.totalorder %s124, %s140
      %p142 = scmp.eq.s32.totalorder %s90, 0
      %p143 = por %p141, %p142
      %s144 = ssub.s32 %s84, %s91
      %p145 = scmp.eq.s32.totalorder %s144, 0
      %s147 = sadd.s32 %s146, 1
      %s148 = scalar_select %p145, %s146, %s147
      %p151 = pneg %p145
      %p152 = scmp.eq.s32.totalorder %s84, 1
      %p153 = por %p151, %p152
      %p154 = scmp.ne.s32.totalorder %s146, %s149
      %p155 = scmp.eq.s32.totalorder %s84, 0
      %p156 = por %p154, %p155
      %p157 = scmp.ne.s32.totalorder %s146, %s149
      %p158 = scmp.eq.s32.totalorder %s89, 1
      %p159 = por %p157, %p158
      %p160 = scmp.ne.s32.totalorder %s149, %s150
      %p161 = scmp.eq.s32.totalorder %s89, 0
      %p162 = por %p160, %p161
      %p163 = scmp.ne.s32.totalorder %s149, %s150
      %p164 = scmp.eq.s32.totalorder %s90, 1
      %p165 = por %p163, %p164
      %p167 = scmp.ne.s32.totalorder %s150, %s166
      %p168 = scmp.eq.s32.totalorder %s90, 0
      %p169 = por %p167, %p168
      %s171 = sadd.s32 %s170, 1
      %p174 = scmp.eq.s32.totalorder %s84, 1
      %p175 = scmp.ne.s32.totalorder %s170, %s172
      %p176 = scmp.eq.s32.totalorder %s84, 0
      %p177 = por %p175, %p176
      %p178 = scmp.ne.s32.totalorder %s170, %s172
      %p179 = scmp.eq.s32.totalorder %s89, 1
      %p180 = por %p178, %p179
      %p181 = scmp.ne.s32.totalorder %s172, %s173
      %p182 = scmp.eq.s32.totalorder %s89, 0
      %p183 = por %p181, %p182
      %p184 = scmp.ne.s32.totalorder %s172, %s173
      %p185 = scmp.eq.s32.totalorder %s90, 1
      %p186 = por %p184, %p185
      %p188 = scmp.ne.s32.totalorder %s173, %s187
      %p189 = scmp.eq.s32.totalorder %s90, 0
      %p190 = por %p188, %p189
      %s192 = sadd.s32 %s191, 1
      %p195 = scmp.eq.s32.totalorder %s84, 1
      %p196 = scmp.ne.s32.totalorder %s191, %s193
      %p197 = scmp.eq.s32.totalorder %s84, 0
      %p198 = por %p196, %p197
      %p199 = scmp.ne.s32.totalorder %s191, %s193
      %p200 = scmp.eq.s32.totalorder %s89, 1
      %p201 = por %p199, %p200
      %p202 = scmp.ne.s32.totalorder %s193, %s194
      %p203 = scmp.eq.s32.totalorder %s89, 0
      %p204 = por %p202, %p203
      %p205 = scmp.ne.s32.totalorder %s193, %s194
      %p206 = scmp.eq.s32.totalorder %s90, 1
      %p207 = por %p205, %p206
      %p209 = scmp.ne.s32.totalorder %s194, %s208
      %p210 = scmp.eq.s32.totalorder %s90, 0
      %p211 = por %p209, %p210
      %s213 = sadd.s32 %s212, 1
      %p216 = scmp.eq.s32.totalorder %s84, 1
      %p217 = scmp.ne.s32.totalorder %s212, %s214
      %p218 = scmp.eq.s32.totalorder %s84, 0
      %p219 = por %p217, %p218
      %p220 = scmp.ne.s32.totalorder %s212, %s214
      %p221 = scmp.eq.s32.totalorder %s89, 1
      %p222 = por %p220, %p221
      %p223 = scmp.ne.s32.totalorder %s214, %s215
      %p224 = scmp.eq.s32.totalorder %s89, 0
      %p225 = por %p223, %p224
      %p226 = scmp.ne.s32.totalorder %s214, %s215
      %p227 = scmp.eq.s32.totalorder %s90, 1
      %p228 = por %p226, %p227
      %p230 = scmp.ne.s32.totalorder %s215, %s229
      %p231 = scmp.eq.s32.totalorder %s90, 0
      %p232 = por %p230, %p231
      %s234 = sadd.s32 %s233, 1
      %p237 = scmp.eq.s32.totalorder %s84, 1
      %p238 = scmp.ne.s32.totalorder %s233, %s235
      %p239 = scmp.eq.s32.totalorder %s84, 0
      %p240 = por %p238, %p239
      %p241 = scmp.ne.s32.totalorder %s233, %s235
      %p242 = scmp.eq.s32.totalorder %s89, 1
      %p243 = por %p241, %p242
      %p244 = scmp.ne.s32.totalorder %s235, %s236
      %p245 = scmp.eq.s32.totalorder %s89, 0
      %p246 = por %p244, %p245
      %p247 = scmp.ne.s32.totalorder %s235, %s236
      %p248 = scmp.eq.s32.totalorder %s90, 1
      %p249 = por %p247, %p248
      %p251 = scmp.ne.s32.totalorder %s236, %s250
      %p252 = scmp.eq.s32.totalorder %s90, 0
      %p253 = por %p251, %p252
      %s255 = sadd.s32 %s254, 1
      %p258 = scmp.eq.s32.totalorder %s84, 1
      %p259 = scmp.ne.s32.totalorder %s254, %s256
      %p260 = scmp.eq.s32.totalorder %s84, 0
      %p261 = por %p259, %p260
      %p262 = scmp.ne.s32.totalorder %s254, %s256
      %p263 = scmp.eq.s32.totalorder %s89, 1
      %p264 = por %p262, %p263
      %p265 = scmp.ne.s32.totalorder %s256, %s257
      %p266 = scmp.eq.s32.totalorder %s89, 0
      %p267 = por %p265, %p266
      %p268 = scmp.ne.s32.totalorder %s256, %s257
      %p269 = scmp.eq.s32.totalorder %s90, 1
      %p270 = por %p268, %p269
      %p272 = scmp.ne.s32.totalorder %s257, %s271
      %p273 = scmp.eq.s32.totalorder %s90, 0
      %p274 = por %p272, %p273
      %s276 = sadd.s32 %s275, 1
      %p279 = scmp.eq.s32.totalorder %s84, 1
      %p280 = scmp.ne.s32.totalorder %s275, %s277
      %p281 = scmp.eq.s32.totalorder %s84, 0
      %p282 = por %p280, %p281
      %p283 = scmp.ne.s32.totalorder %s275, %s277
      %p284 = scmp.eq.s32.totalorder %s89, 1
      %p285 = por %p283, %p284
      %p286 = scmp.ne.s32.totalorder %s277, %s278
      %p287 = scmp.eq.s32.totalorder %s89, 0
      %p288 = por %p286, %p287
      %p289 = scmp.ne.s32.totalorder %s277, %s278
      %p290 = scmp.eq.s32.totalorder %s90, 1
      %p291 = por %p289, %p290
      %p293 = scmp.ne.s32.totalorder %s278, %s292
      %p294 = scmp.eq.s32.totalorder %s90, 0
      %p295 = por %p293, %p294
      %s297 = sadd.s32 %s296, 1
      %p300 = scmp.eq.s32.totalorder %s84, 1
      %p301 = scmp.ne.s32.totalorder %s296, %s298
      %p302 = scmp.eq.s32.totalorder %s84, 0
      %p303 = por %p301, %p302
      %p304 = scmp.ne.s32.totalorder %s296, %s298
      %p305 = scmp.eq.s32.totalorder %s89, 1
      %p306 = por %p304, %p305
      %p307 = scmp.ne.s32.totalorder %s298, %s299
      %p308 = scmp.eq.s32.totalorder %s89, 0
      %p309 = por %p307, %p308
      %p310 = scmp.ne.s32.totalorder %s298, %s299
      %p311 = scmp.eq.s32.totalorder %s90, 1
      %p312 = por %p310, %p311
      %p314 = scmp.ne.s32.totalorder %s299, %s313
      %p315 = scmp.eq.s32.totalorder %s90, 0
      %p316 = por %p314, %p315
      %s318 = sadd.s32 %s317, 1
      %p321 = scmp.eq.s32.totalorder %s84, 1
      %p322 = scmp.ne.s32.totalorder %s317, %s319
      %p323 = scmp.eq.s32.totalorder %s84, 0
      %p324 = por %p322, %p323
      %p325 = scmp.ne.s32.totalorder %s317, %s319
      %p326 = scmp.eq.s32.totalorder %s89, 1
      %p327 = por %p325, %p326
      %p328 = scmp.ne.s32.totalorder %s319, %s320
      %p329 = scmp.eq.s32.totalorder %s89, 0
      %p330 = por %p328, %p329
      %p331 = scmp.ne.s32.totalorder %s319, %s320
      %p332 = scmp.eq.s32.totalorder %s90, 1
      %p333 = por %p331, %p332
      %p335 = scmp.ne.s32.totalorder %s320, %s334
      %p336 = scmp.eq.s32.totalorder %s90, 0
      %p337 = por %p335, %p336
      %s339 = sadd.s32 %s338, 1
      %p342 = scmp.eq.s32.totalorder %s84, 1
      %p343 = scmp.ne.s32.totalorder %s338, %s340
      %p344 = scmp.eq.s32.totalorder %s84, 0
      %p345 = por %p343, %p344
      %p346 = scmp.ne.s32.totalorder %s338, %s340
      %p347 = scmp.eq.s32.totalorder %s89, 1
      %p348 = por %p346, %p347
      %p349 = scmp.ne.s32.totalorder %s340, %s341
      %p350 = scmp.eq.s32.totalorder %s89, 0
      %p351 = por %p349, %p350
      %p352 = scmp.ne.s32.totalorder %s340, %s341
      %p353 = scmp.eq.s32.totalorder %s90, 1
      %p354 = por %p352, %p353
      %p356 = scmp.ne.s32.totalorder %s341, %s355
      %p357 = scmp.eq.s32.totalorder %s90, 0
      %p358 = por %p356, %p357
      %s360 = sadd.s32 %s359, 1
      %p363 = scmp.eq.s32.totalorder %s84, 1
      %p364 = scmp.ne.s32.totalorder %s359, %s361
      %p365 = scmp.eq.s32.totalorder %s84, 0
      %p366 = por %p364, %p365
      %p367 = scmp.ne.s32.totalorder %s359, %s361
      %p368 = scmp.eq.s32.totalorder %s89, 1
      %p369 = por %p367, %p368
      %p370 = scmp.ne.s32.totalorder %s361, %s362
      %p371 = scmp.eq.s32.totalorder %s89, 0
      %p372 = por %p370, %p371
      %p373 = scmp.ne.s32.totalorder %s361, %s362
      %p374 = scmp.eq.s32.totalorder %s90, 1
      %p375 = por %p373, %p374
      %p377 = scmp.ne.s32.totalorder %s362, %s376
      %p378 = scmp.eq.s32.totalorder %s90, 0
      %p379 = por %p377, %p378
      %s381 = sadd.s32 %s380, 1
      %p384 = scmp.eq.s32.totalorder %s84, 1
      %p385 = scmp.ne.s32.totalorder %s380, %s382
      %p386 = scmp.eq.s32.totalorder %s84, 0
      %p387 = por %p385, %p386
      %p388 = scmp.ne.s32.totalorder %s380, %s382
      %p389 = scmp.eq.s32.totalorder %s89, 1
      %p390 = por %p388, %p389
      %p391 = scmp.ne.s32.totalorder %s382, %s383
      %p392 = scmp.eq.s32.totalorder %s89, 0
      %p393 = por %p391, %p392
      %p394 = scmp.ne.s32.totalorder %s382, %s383
      %p395 = scmp.eq.s32.totalorder %s90, 1
      %p396 = por %p394, %p395
      %p398 = scmp.ne.s32.totalorder %s383, %s397
      %p399 = scmp.eq.s32.totalorder %s90, 0
      %p400 = por %p398, %p399
      %s402 = sadd.s32 %s401, 1
      %p405 = scmp.eq.s32.totalorder %s84, 1
      %p406 = scmp.ne.s32.totalorder %s401, %s403
      %p407 = scmp.eq.s32.totalorder %s84, 0
      %p408 = por %p406, %p407
      %p409 = scmp.ne.s32.totalorder %s401, %s403
      %p410 = scmp.eq.s32.totalorder %s89, 1
      %p411 = por %p409, %p410
      %p412 = scmp.ne.s32.totalorder %s403, %s404
      %p413 = scmp.eq.s32.totalorder %s89, 0
      %p414 = por %p412, %p413
      %p415 = scmp.ne.s32.totalorder %s403, %s404
      %p416 = scmp.eq.s32.totalorder %s90, 1
      %p417 = por %p415, %p416
      %p419 = scmp.ne.s32.totalorder %s404, %s418
      %p420 = scmp.eq.s32.totalorder %s90, 0
      %p421 = por %p419, %p420
      %s423 = sadd.s32 %s422, 1
      %p426 = scmp.eq.s32.totalorder %s84, 1
      %p427 = scmp.ne.s32.totalorder %s422, %s424
      %p428 = scmp.eq.s32.totalorder %s84, 0
      %p429 = por %p427, %p428
      %p430 = scmp.ne.s32.totalorder %s422, %s424
      %p431 = scmp.eq.s32.totalorder %s89, 1
      %p432 = por %p430, %p431
      %p433 = scmp.ne.s32.totalorder %s424, %s425
      %p434 = scmp.eq.s32.totalorder %s89, 0
      %p435 = por %p433, %p434
      %p436 = scmp.ne.s32.totalorder %s424, %s425
      %p437 = scmp.eq.s32.totalorder %s90, 1
      %p438 = por %p436, %p437
      %p440 = scmp.ne.s32.totalorder %s425, %s439
      %p441 = scmp.eq.s32.totalorder %s90, 0
      %p442 = por %p440, %p441
      %s444 = sadd.s32 %s443, 1
      %p447 = scmp.eq.s32.totalorder %s84, 1
      %p448 = scmp.ne.s32.totalorder %s443, %s445
      %p449 = scmp.eq.s32.totalorder %s84, 0
      %p450 = por %p448, %p449
      %p451 = scmp.ne.s32.totalorder %s443, %s445
      %p452 = scmp.eq.s32.totalorder %s89, 1
      %p453 = por %p451, %p452
      %p454 = scmp.ne.s32.totalorder %s445, %s446
      %p455 = scmp.eq.s32.totalorder %s89, 0
      %p456 = por %p454, %p455
      %p457 = scmp.ne.s32.totalorder %s445, %s446
      %p458 = scmp.eq.s32.totalorder %s90, 1
      %p459 = por %p457, %p458
      %p461 = scmp.ne.s32.totalorder %s446, %s460
      %p462 = scmp.eq.s32.totalorder %s90, 0
      %p463 = por %p461, %p462
      %s465 = sadd.s32 %s464, 1
      %p468 = scmp.eq.s32.totalorder %s84, 1
      %p469 = scmp.ne.s32.totalorder %s464, %s466
      %p470 = scmp.eq.s32.totalorder %s84, 0
      %p471 = por %p469, %p470
      %p472 = scmp.ne.s32.totalorder %s464, %s466
      %p473 = scmp.eq.s32.totalorder %s89, 1
      %p474 = por %p472, %p473
      %p475 = scmp.ne.s32.totalorder %s466, %s467
      %p476 = scmp.eq.s32.totalorder %s89, 0
      %p477 = por %p475, %p476
      %p478 = scmp.ne.s32.totalorder %s466, %s467
      %p479 = scmp.eq.s32.totalorder %s90, 1
      %p480 = por %p478, %p479
      %p482 = scmp.ne.s32.totalorder %s467, %s481
      %p483 = scmp.eq.s32.totalorder %s90, 0
      %p484 = por %p482, %p483
      %s486 = sadd.s32 %s485, 1
      %p489 = scmp.eq.s32.totalorder %s84, 1
      %p490 = scmp.ne.s32.totalorder %s485, %s487
      %p491 = scmp.eq.s32.totalorder %s84, 0
      %p492 = por %p490, %p491
      %p493 = scmp.ne.s32.totalorder %s485, %s487
      %p494 = scmp.eq.s32.totalorder %s89, 1
      %p495 = por %p493, %p494
      %p496 = scmp.ne.s32.totalorder %s487, %s488
      %p497 = scmp.eq.s32.totalorder %s89, 0
      %p498 = por %p496, %p497
      %p499 = scmp.ne.s32.totalorder %s487, %s488
      %p500 = scmp.eq.s32.totalorder %s90, 1
      %p501 = por %p499, %p500
      %p503 = scmp.ne.s32.totalorder %s488, %s502
      %p504 = scmp.eq.s32.totalorder %s90, 0
      %p505 = por %p503, %p504
      %s507 = sadd.s32 %s506, 1
      %p510 = scmp.eq.s32.totalorder %s84, 1
      %p511 = scmp.ne.s32.totalorder %s506, %s508
      %p512 = scmp.eq.s32.totalorder %s84, 0
      %p513 = por %p511, %p512
      %p514 = scmp.ne.s32.totalorder %s506, %s508
      %p515 = scmp.eq.s32.totalorder %s89, 1
      %p516 = por %p514, %p515
      %p517 = scmp.ne.s32.totalorder %s508, %s509
      %p518 = scmp.eq.s32.totalorder %s89, 0
      %p519 = por %p517, %p518
      %p520 = scmp.ne.s32.totalorder %s508, %s509
      %p521 = scmp.eq.s32.totalorder %s90, 1
      %p522 = por %p520, %p521
      %p524 = scmp.ne.s32.totalorder %s509, %s523
      %p525 = scmp.eq.s32.totalorder %s90, 0
      %p526 = por %p524, %p525
      %s528 = sadd.s32 %s527, 1
      %p531 = scmp.eq.s32.totalorder %s84, 1
      %p532 = scmp.ne.s32.totalorder %s527, %s529
      %p533 = scmp.eq.s32.totalorder %s84, 0
      %p534 = por %p532, %p533
      %p535 = scmp.ne.s32.totalorder %s527, %s529
      %p536 = scmp.eq.s32.totalorder %s89, 1
      %p537 = por %p535, %p536
      %p538 = scmp.ne.s32.totalorder %s529, %s530
      %p539 = scmp.eq.s32.totalorder %s89, 0
      %p540 = por %p538, %p539
      %p541 = scmp.ne.s32.totalorder %s529, %s530
      %p542 = scmp.eq.s32.totalorder %s90, 1
      %p543 = por %p541, %p542
      %p545 = scmp.ne.s32.totalorder %s530, %s544
      %p546 = scmp.eq.s32.totalorder %s90, 0
      %p547 = por %p545, %p546
      %s549 = sadd.s32 %s548, 1
      %p552 = scmp.eq.s32.totalorder %s84, 1
      %p553 = scmp.ne.s32.totalorder %s548, %s550
      %p554 = scmp.eq.s32.totalorder %s84, 0
      %p555 = por %p553, %p554
      %p556 = scmp.ne.s32.totalorder %s548, %s550
      %p557 = scmp.eq.s32.totalorder %s89, 1
      %p558 = por %p556, %p557
      %p559 = scmp.ne.s32.totalorder %s550, %s551
      %p560 = scmp.eq.s32.totalorder %s89, 0
      %p561 = por %p559, %p560
      %p562 = scmp.ne.s32.totalorder %s550, %s551
      %p563 = scmp.eq.s32.totalorder %s90, 1
      %p564 = por %p562, %p563
      %p566 = scmp.ne.s32.totalorder %s551, %s565
      %p567 = scmp.eq.s32.totalorder %s90, 0
      %p568 = por %p566, %p567
      %s570 = sadd.s32 %s569, 1
      %p573 = scmp.eq.s32.totalorder %s84, 1
      %p574 = scmp.ne.s32.totalorder %s569, %s571
      %p575 = scmp.eq.s32.totalorder %s84, 0
      %p576 = por %p574, %p575
      %p577 = scmp.ne.s32.totalorder %s569, %s571
      %p578 = scmp.eq.s32.totalorder %s89, 1
      %p579 = por %p577, %p578
      %p580 = scmp.ne.s32.totalorder %s571, %s572
      %p581 = scmp.eq.s32.totalorder %s89, 0
      %p582 = por %p580, %p581
      %p583 = scmp.ne.s32.totalorder %s571, %s572
      %p584 = scmp.eq.s32.totalorder %s90, 1
      %p585 = por %p583, %p584
      %p587 = scmp.ne.s32.totalorder %s572, %s586
      %p588 = scmp.eq.s32.totalorder %s90, 0
      %p589 = por %p587, %p588
      %s591 = sadd.s32 %s590, 1
      %p594 = scmp.eq.s32.totalorder %s84, 1
      %p595 = scmp.ne.s32.totalorder %s590, %s592
      %p596 = scmp.eq.s32.totalorder %s84, 0
      %p597 = por %p595, %p596
      %p598 = scmp.ne.s32.totalorder %s590, %s592
      %p599 = scmp.eq.s32.totalorder %s89, 1
      %p600 = por %p598, %p599
      %p601 = scmp.ne.s32.totalorder %s592, %s593
      %p602 = scmp.eq.s32.totalorder %s89, 0
      %p603 = por %p601, %p602
      %p604 = scmp.ne.s32.totalorder %s592, %s593
      %p605 = scmp.eq.s32.totalorder %s90, 1
      %p606 = por %p604, %p605
      %p608 = scmp.ne.s32.totalorder %s593, %s607
      %p609 = scmp.eq.s32.totalorder %s90, 0
      %p610 = por %p608, %p609
      %s612 = sadd.s32 %s611, 1
      %p615 = scmp.eq.s32.totalorder %s84, 1
      %p616 = scmp.ne.s32.totalorder %s611, %s613
      %p617 = scmp.eq.s32.totalorder %s84, 0
      %p618 = por %p616, %p617
      %p619 = scmp.ne.s32.totalorder %s611, %s613
      %p620 = scmp.eq.s32.totalorder %s89, 1
      %p621 = por %p619, %p620
      %p622 = scmp.ne.s32.totalorder %s613, %s614
      %p623 = scmp.eq.s32.totalorder %s89, 0
      %p624 = por %p622, %p623
      %p625 = scmp.ne.s32.totalorder %s613, %s614
      %p626 = scmp.eq.s32.totalorder %s90, 1
      %p627 = por %p625, %p626
      %p629 = scmp.ne.s32.totalorder %s614, %s628
      %p630 = scmp.eq.s32.totalorder %s90, 0
      %p631 = por %p629, %p630
      %s633 = sadd.s32 %s632, 1
      %p636 = scmp.eq.s32.totalorder %s84, 1
      %p637 = scmp.ne.s32.totalorder %s632, %s634
      %p638 = scmp.eq.s32.totalorder %s84, 0
      %p639 = por %p637, %p638
      %p640 = scmp.ne.s32.totalorder %s632, %s634
      %p641 = scmp.eq.s32.totalorder %s89, 1
      %p642 = por %p640, %p641
      %p643 = scmp.ne.s32.totalorder %s634, %s635
      %p644 = scmp.eq.s32.totalorder %s89, 0
      %p645 = por %p643, %p644
      %p646 = scmp.ne.s32.totalorder %s634, %s635
      %p647 = scmp.eq.s32.totalorder %s90, 1
      %p648 = por %p646, %p647
      %p650 = scmp.ne.s32.totalorder %s635, %s649
      %p651 = scmp.eq.s32.totalorder %s90, 0
      %p652 = por %p650, %p651
      %s654 = sadd.s32 %s653, 1
      %p657 = scmp.eq.s32.totalorder %s84, 1
      %p658 = scmp.ne.s32.totalorder %s653, %s655
      %p659 = scmp.eq.s32.totalorder %s84, 0
      %p660 = por %p658, %p659
      %p661 = scmp.ne.s32.totalorder %s653, %s655
      %p662 = scmp.eq.s32.totalorder %s89, 1
      %p663 = por %p661, %p662
      %p664 = scmp.ne.s32.totalorder %s655, %s656
      %p665 = scmp.eq.s32.totalorder %s89, 0
      %p666 = por %p664, %p665
      %p667 = scmp.ne.s32.totalorder %s655, %s656
      %p668 = scmp.eq.s32.totalorder %s90, 1
      %p669 = por %p667, %p668
      %p671 = scmp.ne.s32.totalorder %s656, %s670
      %p672 = scmp.eq.s32.totalorder %s90, 0
      %p673 = por %p671, %p672
      %s675 = sadd.s32 %s674, 1
      %p678 = scmp.eq.s32.totalorder %s84, 1
      %p679 = scmp.ne.s32.totalorder %s674, %s676
      %p680 = scmp.eq.s32.totalorder %s84, 0
      %p681 = por %p679, %p680
      %p682 = scmp.ne.s32.totalorder %s674, %s676
      %p683 = scmp.eq.s32.totalorder %s89, 1
      %p684 = por %p682, %p683
      %p685 = scmp.ne.s32.totalorder %s676, %s677
      %p686 = scmp.eq.s32.totalorder %s89, 0
      %p687 = por %p685, %p686
      %p688 = scmp.ne.s32.totalorder %s676, %s677
      %p689 = scmp.eq.s32.totalorder %s90, 1
      %p690 = por %p688, %p689
      %p692 = scmp.ne.s32.totalorder %s677, %s691
      %p693 = scmp.eq.s32.totalorder %s90, 0
      %p694 = por %p692, %p693
      %s696 = sadd.s32 %s695, 1
      %p699 = scmp.eq.s32.totalorder %s84, 1
      %p700 = scmp.ne.s32.totalorder %s695, %s697
      %p701 = scmp.eq.s32.totalorder %s84, 0
      %p702 = por %p700, %p701
      %p703 = scmp.ne.s32.totalorder %s695, %s697
      %p704 = scmp.eq.s32.totalorder %s89, 1
      %p705 = por %p703, %p704
      %p706 = scmp.ne.s32.totalorder %s697, %s698
      %p707 = scmp.eq.s32.totalorder %s89, 0
      %p708 = por %p706, %p707
      %p709 = scmp.ne.s32.totalorder %s697, %s698
      %p710 = scmp.eq.s32.totalorder %s90, 1
      %p711 = por %p709, %p710
      %p713 = scmp.ne.s32.totalorder %s698, %s712
      %p714 = scmp.eq.s32.totalorder %s90, 0
      %p715 = por %p713, %p714
      %s717 = sadd.s32 %s716, 1
      %p720 = scmp.eq.s32.totalorder %s84, 1
      %p721 = scmp.ne.s32.totalorder %s716, %s718
      %p722 = scmp.eq.s32.totalorder %s84, 0
      %p723 = por %p721, %p722
      %p724 = scmp.ne.s32.totalorder %s716, %s718
      %p725 = scmp.eq.s32.totalorder %s89, 1
      %p726 = por %p724, %p725
      %p727 = scmp.ne.s32.totalorder %s718, %s719
      %p728 = scmp.eq.s32.totalorder %s89, 0
      %p729 = por %p727, %p728
      %p730 = scmp.ne.s32.totalorder %s718, %s719
      %p731 = scmp.eq.s32.totalorder %s90, 1
      %p732 = por %p730, %p731
      %p734 = scmp.ne.s32.totalorder %s719, %s733
      %p735 = scmp.eq.s32.totalorder %s90, 0
      %p736 = por %p734, %p735
      %s738 = sadd.s32 %s737, 1
      %p741 = scmp.eq.s32.totalorder %s84, 1
      %p742 = scmp.ne.s32.totalorder %s737, %s739
      %p743 = scmp.eq.s32.totalorder %s84, 0
      %p744 = por %p742, %p743
      %p745 = scmp.ne.s32.totalorder %s737, %s739
      %p746 = scmp.eq.s32.totalorder %s89, 1
      %p747 = por %p745, %p746
      %p748 = scmp.ne.s32.totalorder %s739, %s740
      %p749 = scmp.eq.s32.totalorder %s89, 0
      %p750 = por %p748, %p749
      %p751 = scmp.ne.s32.totalorder %s739, %s740
      %p752 = scmp.eq.s32.totalorder %s90, 1
      %p753 = por %p751, %p752
      %p755 = scmp.ne.s32.totalorder %s740, %s754
      %p756 = scmp.eq.s32.totalorder %s90, 0
      %p757 = por %p755, %p756
      %s759 = sadd.s32 %s758, 1
      %p762 = scmp.eq.s32.totalorder %s84, 1
      %p763 = scmp.ne.s32.totalorder %s758, %s760
      %p764 = scmp.eq.s32.totalorder %s84, 0
      %p765 = por %p763, %p764
      %p766 = scmp.ne.s32.totalorder %s758, %s760
      %p767 = scmp.eq.s32.totalorder %s89, 1
      %p768 = por %p766, %p767
      %p769 = scmp.ne.s32.totalorder %s760, %s761
      %p770 = scmp.eq.s32.totalorder %s89, 0
      %p771 = por %p769, %p770
      %p772 = scmp.ne.s32.totalorder %s760, %s761
      %p773 = scmp.eq.s32.totalorder %s90, 1
      %p774 = por %p772, %p773
      %p776 = scmp.ne.s32.totalorder %s761, %s775
      %p777 = scmp.eq.s32.totalorder %s90, 0
      %p778 = por %p776, %p777
      %s780 = sadd.s32 %s779, 1
      %p783 = scmp.eq.s32.totalorder %s84, 1
      %p784 = scmp.ne.s32.totalorder %s779, %s781
      %p785 = scmp.eq.s32.totalorder %s84, 0
      %p786 = por %p784, %p785
      %p787 = scmp.ne.s32.totalorder %s779, %s781
      %p788 = scmp.eq.s32.totalorder %s89, 1
      %p789 = por %p787, %p788
      %p790 = scmp.ne.s32.totalorder %s781, %s782
      %p791 = scmp.eq.s32.totalorder %s89, 0
      %p792 = por %p790, %p791
      %p793 = scmp.ne.s32.totalorder %s781, %s782
      %p794 = scmp.eq.s32.totalorder %s90, 1
      %p795 = por %p793, %p794
      %p797 = scmp.ne.s32.totalorder %s782, %s796
      %p798 = scmp.eq.s32.totalorder %s90, 0
      %p799 = por %p797, %p798
      %s801 = sadd.s32 %s800, 1
      %p804 = scmp.eq.s32.totalorder %s84, 1
      %p805 = scmp.ne.s32.totalorder %s800, %s802
      %p806 = scmp.eq.s32.totalorder %s84, 0
      %p807 = por %p805, %p806
      %p808 = scmp.ne.s32.totalorder %s800, %s802
      %p809 = scmp.eq.s32.totalorder %s89, 1
      %p810 = por %p808, %p809
      %p811 = scmp.ne.s32.totalorder %s802, %s803
      %p812 = scmp.eq.s32.totalorder %s89, 0
      %p813 = por %p811, %p812
      %p814 = scmp.ne.s32.totalorder %s802, %s803
      %p815 = scmp.eq.s32.totalorder %s90, 1
      %p816 = por %p814, %p815
      %p818 = scmp.ne.s32.totalorder %s803, %s817
      %p819 = scmp.eq.s32.totalorder %s90, 0
      %p820 = por %p818, %p819
      %s822 = sadd.s32 %s821, 1
      %p825 = scmp.eq.s32.totalorder %s84, 1
      %p826 = scmp.ne.s32.totalorder %s821, %s823
      %p827 = scmp.eq.s32.totalorder %s84, 0
      %p828 = por %p826, %p827
      %p829 = scmp.ne.s32.totalorder %s821, %s823
      %p830 = scmp.eq.s32.totalorder %s89, 1
      %p831 = por %p829, %p830
      %p832 = scmp.ne.s32.totalorder %s823, %s824
      %p833 = scmp.eq.s32.totalorder %s89, 0
      %p834 = por %p832, %p833
      %p835 = scmp.ne.s32.totalorder %s823, %s824
      %p836 = scmp.eq.s32.totalorder %s90, 1
      %p837 = por %p835, %p836
      %p839 = scmp.ne.s32.totalorder %s824, %s838
      %p840 = scmp.eq.s32.totalorder %s90, 0
      %p841 = por %p839, %p840
      %s843 = sadd.s32 %s842, 1
      %p846 = scmp.eq.s32.totalorder %s84, 1
      %p847 = scmp.ne.s32.totalorder %s842, %s844
      %p848 = scmp.eq.s32.totalorder %s84, 0
      %p849 = por %p847, %p848
      %p850 = scmp.ne.s32.totalorder %s842, %s844
      %p851 = scmp.eq.s32.totalorder %s89, 1
      %p852 = por %p850, %p851
      %p853 = scmp.ne.s32.totalorder %s844, %s845
      %p854 = scmp.eq.s32.totalorder %s89, 0
      %p855 = por %p853, %p854
      %p856 = scmp.ne.s32.totalorder %s844, %s845
      %p857 = scmp.eq.s32.totalorder %s90, 1
      %p858 = por %p856, %p857
      %p860 = scmp.ne.s32.totalorder %s845, %s859
      %p861 = scmp.eq.s32.totalorder %s90, 0
      %p862 = por %p860, %p861
      %s864 = sadd.s32 %s863, 1
      %p867 = scmp.eq.s32.totalorder %s84, 1
      %p868 = scmp.ne.s32.totalorder %s863, %s865
      %p869 = scmp.eq.s32.totalorder %s84, 0
      %p870 = por %p868, %p869
      %p871 = scmp.ne.s32.totalorder %s863, %s865
      %p872 = scmp.eq.s32.totalorder %s89, 1
      %p873 = por %p871, %p872
      %p874 = scmp.ne.s32.totalorder %s865, %s866
      %p875 = scmp.eq.s32.totalorder %s89, 0
      %p876 = por %p874, %p875
      %p877 = scmp.ne.s32.totalorder %s865, %s866
      %p878 = scmp.eq.s32.totalorder %s90, 1
      %p879 = por %p877, %p878
      %p881 = scmp.ne.s32.totalorder %s866, %s880
      %p882 = scmp.eq.s32.totalorder %s90, 0
      %p883 = por %p881, %p882
      %s884 = ssub.s32 %s84, %s91
      %p885 = scmp.eq.s32.totalorder %s884, 0
      %s887 = sadd.s32 %s886, 1
      %s888 = scalar_select %p885, %s886, %s887
      %p891 = pneg %p885
      %p892 = scmp.eq.s32.totalorder %s84, 1
      %p893 = por %p891, %p892
      %p894 = scmp.ne.s32.totalorder %s886, %s889
      %p895 = scmp.eq.s32.totalorder %s84, 0
      %p896 = por %p894, %p895
      %p897 = scmp.ne.s32.totalorder %s886, %s889
      %p898 = scmp.eq.s32.totalorder %s89, 1
      %p899 = por %p897, %p898
      %p900 = scmp.ne.s32.totalorder %s889, %s890
      %p901 = scmp.eq.s32.totalorder %s89, 0
      %p902 = por %p900, %p901
      %p903 = scmp.ne.s32.totalorder %s889, %s890
      %p904 = scmp.eq.s32.totalorder %s90, 1
      %p905 = por %p903, %p904
      %p907 = scmp.ne.s32.totalorder %s890, %s906
      %p908 = scmp.eq.s32.totalorder %s90, 0
      %p909 = por %p907, %p908
      %p910 = scmp.le.s32.totalorder 1, %s84
      %p911 = scmp.lt.s32.totalorder %s84, 3
      %p912 = pnand %p910, %p911
      %p913 = pneg %p912
      // Predicated region
      $region9: #{tpu_custom_call.1} parent=5 // pred_check
        _
      $region10: #{tpu_custom_call.1} parent=5 // pred_check_branch
        %915 = sbr.rel (%p912) target = $region12
      $region11: #{tpu_custom_call.1} parent=5 // pred_region
        %s916 = ssub.s32 %s84, 1
        // Predicated region
        $region13: #{tpu_custom_call.1} parent=11 // pred_check
          %p917 = pneg %p183
        $region14: #{tpu_custom_call.1} parent=11 // pred_check_branch
          %919 = sbr.rel (%p917) target = $region16
        $region15: #{tpu_custom_call.1} parent=11 // pred_region
          _
        $region16: #{tpu_custom_call.1} parent=11 // pred_fallthru
          _
        // Predicated region
        $region17: #{tpu_custom_call.1} parent=11 // pred_check
          %p920 = pneg %p204
        $region18: #{tpu_custom_call.1} parent=11 // pred_check_branch
          %922 = sbr.rel (%p920) target = $region20
        $region19: #{tpu_custom_call.1} parent=11 // pred_region
          _
        $region20: #{tpu_custom_call.1} parent=11 // pred_fallthru
          _
        // Predicated region
        $region21: #{tpu_custom_call.1} parent=11 // pred_check
          %p923 = pneg %p225
        $region22: #{tpu_custom_call.1} parent=11 // pred_check_branch
          %925 = sbr.rel (%p923) target = $region24
        $region23: #{tpu_custom_call.1} parent=11 // pred_region
          _
        $region24: #{tpu_custom_call.1} parent=11 // pred_fallthru
          _
        // Predicated region
        $region25: #{tpu_custom_call.1} parent=11 // pred_check
          %p926 = pneg %p246
        $region26: #{tpu_custom_call.1} parent=11 // pred_check_branch
          %928 = sbr.rel (%p926) target = $region28
        $region27: #{tpu_custom_call.1} parent=11 // pred_region
          _
        $region28: #{tpu_custom_call.1} parent=11 // pred_fallthru
          _
        // Predicated region
        $region29: #{tpu_custom_call.1} parent=11 // pred_check
          %p929 = pneg %p267
        $region30: #{tpu_custom_call.1} parent=11 // pred_check_branch
          %931 = sbr.rel (%p929) target = $region32
        $region31: #{tpu_custom_call.1} parent=11 // pred_region
          _
        $region32: #{tpu_custom_call.1} parent=11 // pred_fallthru
          _
        // Predicated region
        $region33: #{tpu_custom_call.1} parent=11 // pred_check
          %p932 = pneg %p288
        $region34: #{tpu_custom_call.1} parent=11 // pred_check_branch
          %934 = sbr.rel (%p932) target = $region36
        $region35: #{tpu_custom_call.1} parent=11 // pred_region
          _
        $region36: #{tpu_custom_call.1} parent=11 // pred_fallthru
          _
        // Predicated region
        $region37: #{tpu_custom_call.1} parent=11 // pred_check
          %p935 = pneg %p309
        $region38: #{tpu_custom_call.1} parent=11 // pred_check_branch
          %937 = sbr.rel (%p935) target = $region40
        $region39: #{tpu_custom_call.1} parent=11 // pred_region
          _
        $region40: #{tpu_custom_call.1} parent=11 // pred_fallthru
          _
        // Predicated region
        $region41: #{tpu_custom_call.1} parent=11 // pred_check
          %p938 = pneg %p330
        $region42: #{tpu_custom_call.1} parent=11 // pred_check_branch
          %940 = sbr.rel (%p938) target = $region44
        $region43: #{tpu_custom_call.1} parent=11 // pred_region
          _
        $region44: #{tpu_custom_call.1} parent=11 // pred_fallthru
          _
        // Predicated region
        $region45: #{tpu_custom_call.1} parent=11 // pred_check
          %p941 = pneg %p351
        $region46: #{tpu_custom_call.1} parent=11 // pred_check_branch
          %943 = sbr.rel (%p941) target = $region48
        $region47: #{tpu_custom_call.1} parent=11 // pred_region
          _
        $region48: #{tpu_custom_call.1} parent=11 // pred_fallthru
          _
        // Predicated region
        $region49: #{tpu_custom_call.1} parent=11 // pred_check
          %p944 = pneg %p372
        $region50: #{tpu_custom_call.1} parent=11 // pred_check_branch
          %946 = sbr.rel (%p944) target = $region52
        $region51: #{tpu_custom_call.1} parent=11 // pred_region
          _
        $region52: #{tpu_custom_call.1} parent=11 // pred_fallthru
          _
        // Predicated region
        $region53: #{tpu_custom_call.1} parent=11 // pred_check
          %p947 = pneg %p393
        $region54: #{tpu_custom_call.1} parent=11 // pred_check_branch
          %949 = sbr.rel (%p947) target = $region56
        $region55: #{tpu_custom_call.1} parent=11 // pred_region
          _
        $region56: #{tpu_custom_call.1} parent=11 // pred_fallthru
          _
        // Predicated region
        $region57: #{tpu_custom_call.1} parent=11 // pred_check
          %p950 = pneg %p414
        $region58: #{tpu_custom_call.1} parent=11 // pred_check_branch
          %952 = sbr.rel (%p950) target = $region60
        $region59: #{tpu_custom_call.1} parent=11 // pred_region
          _
        $region60: #{tpu_custom_call.1} parent=11 // pred_fallthru
          _
        // Predicated region
        $region61: #{tpu_custom_call.1} parent=11 // pred_check
          %p953 = pneg %p435
        $region62: #{tpu_custom_call.1} parent=11 // pred_check_branch
          %955 = sbr.rel (%p953) target = $region64
        $region63: #{tpu_custom_call.1} parent=11 // pred_region
          _
        $region64: #{tpu_custom_call.1} parent=11 // pred_fallthru
          _
        // Predicated region
        $region65: #{tpu_custom_call.1} parent=11 // pred_check
          %p956 = pneg %p456
        $region66: #{tpu_custom_call.1} parent=11 // pred_check_branch
          %958 = sbr.rel (%p956) target = $region68
        $region67: #{tpu_custom_call.1} parent=11 // pred_region
          _
        $region68: #{tpu_custom_call.1} parent=11 // pred_fallthru
          _
        // Predicated region
        $region69: #{tpu_custom_call.1} parent=11 // pred_check
          %p959 = pneg %p477
        $region70: #{tpu_custom_call.1} parent=11 // pred_check_branch
          %961 = sbr.rel (%p959) target = $region72
        $region71: #{tpu_custom_call.1} parent=11 // pred_region
          _
        $region72: #{tpu_custom_call.1} parent=11 // pred_fallthru
          _
        // Predicated region
        $region73: #{tpu_custom_call.1} parent=11 // pred_check
          %p962 = pneg %p498
        $region74: #{tpu_custom_call.1} parent=11 // pred_check_branch
          %964 = sbr.rel (%p962) target = $region76
        $region75: #{tpu_custom_call.1} parent=11 // pred_region
          _
        $region76: #{tpu_custom_call.1} parent=11 // pred_fallthru
          _
        // Predicated region
        $region77: #{tpu_custom_call.1} parent=11 // pred_check
          %p965 = pneg %p519
        $region78: #{tpu_custom_call.1} parent=11 // pred_check_branch
          %967 = sbr.rel (%p965) target = $region80
        $region79: #{tpu_custom_call.1} parent=11 // pred_region
          _
        $region80: #{tpu_custom_call.1} parent=11 // pred_fallthru
          _
        // Predicated region
        $region81: #{tpu_custom_call.1} parent=11 // pred_check
          %p968 = pneg %p540
        $region82: #{tpu_custom_call.1} parent=11 // pred_check_branch
          %970 = sbr.rel (%p968) target = $region84
        $region83: #{tpu_custom_call.1} parent=11 // pred_region
          _
        $region84: #{tpu_custom_call.1} parent=11 // pred_fallthru
          _
        // Predicated region
        $region85: #{tpu_custom_call.1} parent=11 // pred_check
          %p971 = pneg %p561
        $region86: #{tpu_custom_call.1} parent=11 // pred_check_branch
          %973 = sbr.rel (%p971) target = $region88
        $region87: #{tpu_custom_call.1} parent=11 // pred_region
          _
        $region88: #{tpu_custom_call.1} parent=11 // pred_fallthru
          _
        // Predicated region
        $region89: #{tpu_custom_call.1} parent=11 // pred_check
          %p974 = pneg %p582
        $region90: #{tpu_custom_call.1} parent=11 // pred_check_branch
          %976 = sbr.rel (%p974) target = $region92
        $region91: #{tpu_custom_call.1} parent=11 // pred_region
          _
        $region92: #{tpu_custom_call.1} parent=11 // pred_fallthru
          _
        // Predicated region
        $region93: #{tpu_custom_call.1} parent=11 // pred_check
          %p977 = pneg %p603
        $region94: #{tpu_custom_call.1} parent=11 // pred_check_branch
          %979 = sbr.rel (%p977) target = $region96
        $region95: #{tpu_custom_call.1} parent=11 // pred_region
          _
        $region96: #{tpu_custom_call.1} parent=11 // pred_fallthru
          _
        // Predicated region
        $region97: #{tpu_custom_call.1} parent=11 // pred_check
          %p980 = pneg %p624
        $region98: #{tpu_custom_call.1} parent=11 // pred_check_branch
          %982 = sbr.rel (%p980) target = $region100
        $region99: #{tpu_custom_call.1} parent=11 // pred_region
          _
        $region100: #{tpu_custom_call.1} parent=11 // pred_fallthru
          _
        // Predicated region
        $region101: #{tpu_custom_call.1} parent=11 // pred_check
          %p983 = pneg %p645
        $region102: #{tpu_custom_call.1} parent=11 // pred_check_branch
          %985 = sbr.rel (%p983) target = $region104
        $region103: #{tpu_custom_call.1} parent=11 // pred_region
          _
        $region104: #{tpu_custom_call.1} parent=11 // pred_fallthru
          _
        // Predicated region
        $region105: #{tpu_custom_call.1} parent=11 // pred_check
          %p986 = pneg %p666
        $region106: #{tpu_custom_call.1} parent=11 // pred_check_branch
          %988 = sbr.rel (%p986) target = $region108
        $region107: #{tpu_custom_call.1} parent=11 // pred_region
          _
        $region108: #{tpu_custom_call.1} parent=11 // pred_fallthru
          _
        // Predicated region
        $region109: #{tpu_custom_call.1} parent=11 // pred_check
          %p989 = pneg %p687
        $region110: #{tpu_custom_call.1} parent=11 // pred_check_branch
          %991 = sbr.rel (%p989) target = $region112
        $region111: #{tpu_custom_call.1} parent=11 // pred_region
          _
        $region112: #{tpu_custom_call.1} parent=11 // pred_fallthru
          _
        // Predicated region
        $region113: #{tpu_custom_call.1} parent=11 // pred_check
          %p992 = pneg %p708
        $region114: #{tpu_custom_call.1} parent=11 // pred_check_branch
          %994 = sbr.rel (%p992) target = $region116
        $region115: #{tpu_custom_call.1} parent=11 // pred_region
          _
        $region116: #{tpu_custom_call.1} parent=11 // pred_fallthru
          _
        // Predicated region
        $region117: #{tpu_custom_call.1} parent=11 // pred_check
          %p995 = pneg %p729
        $region118: #{tpu_custom_call.1} parent=11 // pred_check_branch
          %997 = sbr.rel (%p995) target = $region120
        $region119: #{tpu_custom_call.1} parent=11 // pred_region
          _
        $region120: #{tpu_custom_call.1} parent=11 // pred_fallthru
          _
        // Predicated region
        $region121: #{tpu_custom_call.1} parent=11 // pred_check
          %p998 = pneg %p750
        $region122: #{tpu_custom_call.1} parent=11 // pred_check_branch
          %1000 = sbr.rel (%p998) target = $region124
        $region123: #{tpu_custom_call.1} parent=11 // pred_region
          _
        $region124: #{tpu_custom_call.1} parent=11 // pred_fallthru
          _
        // Predicated region
        $region125: #{tpu_custom_call.1} parent=11 // pred_check
          %p1001 = pneg %p771
        $region126: #{tpu_custom_call.1} parent=11 // pred_check_branch
          %1003 = sbr.rel (%p1001) target = $region128
        $region127: #{tpu_custom_call.1} parent=11 // pred_region
          _
        $region128: #{tpu_custom_call.1} parent=11 // pred_fallthru
          _
        // Predicated region
        $region129: #{tpu_custom_call.1} parent=11 // pred_check
          %p1004 = pneg %p792
        $region130: #{tpu_custom_call.1} parent=11 // pred_check_branch
          %1006 = sbr.rel (%p1004) target = $region132
        $region131: #{tpu_custom_call.1} parent=11 // pred_region
          _
        $region132: #{tpu_custom_call.1} parent=11 // pred_fallthru
          _
        // Predicated region
        $region133: #{tpu_custom_call.1} parent=11 // pred_check
          %p1007 = pneg %p813
        $region134: #{tpu_custom_call.1} parent=11 // pred_check_branch
          %1009 = sbr.rel (%p1007) target = $region136
        $region135: #{tpu_custom_call.1} parent=11 // pred_region
          _
        $region136: #{tpu_custom_call.1} parent=11 // pred_fallthru
          _
        // Predicated region
        $region137: #{tpu_custom_call.1} parent=11 // pred_check
          %p1010 = pneg %p834
        $region138: #{tpu_custom_call.1} parent=11 // pred_check_branch
          %1012 = sbr.rel (%p1010) target = $region140
        $region139: #{tpu_custom_call.1} parent=11 // pred_region
          _
        $region140: #{tpu_custom_call.1} parent=11 // pred_fallthru
          _
        // Predicated region
        $region141: #{tpu_custom_call.1} parent=11 // pred_check
          %p1013 = pneg %p855
        $region142: #{tpu_custom_call.1} parent=11 // pred_check_branch
          %1015 = sbr.rel (%p1013) target = $region144
        $region143: #{tpu_custom_call.1} parent=11 // pred_region
          _
        $region144: #{tpu_custom_call.1} parent=11 // pred_fallthru
          _
        // Predicated region
        $region145: #{tpu_custom_call.1} parent=11 // pred_check
          %p1016 = pneg %p876
        $region146: #{tpu_custom_call.1} parent=11 // pred_check_branch
          %1018 = sbr.rel (%p1016) target = $region148
        $region147: #{tpu_custom_call.1} parent=11 // pred_region
          _
        $region148: #{tpu_custom_call.1} parent=11 // pred_fallthru
          _
      $region12: #{tpu_custom_call.1} parent=5 // pred_fallthru
        _
      %p1019 = scmp.lt.s32.totalorder %s84, 2
      // Predicated region
      $region149: #{tpu_custom_call.1} parent=5 // pred_check
        %p1020 = pneg %p1019
      $region150: #{tpu_custom_call.1} parent=5 // pred_check_branch
        %1022 = sbr.rel (%p1020) target = $region152
      $region151: #{tpu_custom_call.1} parent=5 // pred_region
        // Predicated region
        $region153: #{tpu_custom_call.1} parent=151 // pred_check
          %p1023 = pneg %p104
        $region154: #{tpu_custom_call.1} parent=151 // pred_check_branch
          %1025 = sbr.rel (%p1023) target = $region156
        $region155: #{tpu_custom_call.1} parent=151 // pred_region
          %p1026 = scmp.lt.s32.totalorder %s84, 1
          %s1027 = scalar_select %p1026, %s84, 1
          %s1028 = smul.addr %s1027, 4
          %s1029 = scalar_lea.vmem %s1, %s1028
        $region156: #{tpu_custom_call.1} parent=151 // pred_fallthru
          _
        // Predicated region
        $region157: #{tpu_custom_call.1} parent=151 // pred_check
          %p1030 = pneg %p130
        $region158: #{tpu_custom_call.1} parent=151 // pred_check_branch
          %1032 = sbr.rel (%p1030) target = $region160
        $region159: #{tpu_custom_call.1} parent=151 // pred_region
          %p1033 = scmp.lt.s32.totalorder %s84, 1
          %s1034 = scalar_select %p1033, %s84, 1
          %s1035 = scalar_lea.vmem %s3, %s1034
        $region160: #{tpu_custom_call.1} parent=151 // pred_fallthru
          _
        // Predicated region
        $region161: #{tpu_custom_call.1} parent=151 // pred_check
          %p1036 = pneg %p156
        $region162: #{tpu_custom_call.1} parent=151 // pred_check_branch
          %1038 = sbr.rel (%p1036) target = $region164
        $region163: #{tpu_custom_call.1} parent=151 // pred_region
          %p1039 = scmp.lt.s32.totalorder %s84, 1
          %s1040 = scalar_select %p1039, %s84, 1
          %s1041 = smul.addr %s1040, 8
          %s1042 = scalar_lea.vmem %s5, %s1041
        $region164: #{tpu_custom_call.1} parent=151 // pred_fallthru
          _
      $region152: #{tpu_custom_call.1} parent=5 // pred_fallthru
        _
      %p1043 = scmp.le.s32.totalorder 1, %s84
      %p1044 = scmp.lt.s32.totalorder %s84, 3
      %p1045 = pnand %p1043, %p1044
      %p1046 = pneg %p1045
      // Predicated region
      $region165: #{tpu_custom_call.1} parent=5 // pred_check
        _
      $region166: #{tpu_custom_call.1} parent=5 // pred_check_branch
        %1048 = sbr.rel (%p1045) target = $region168
      $region167: #{tpu_custom_call.1} parent=5 // pred_region
        %s1049 = ssub.s32 %s84, 1
        %p1050 = scmp.lt.s32.totalorder %s89, 1
        %s1051 = scalar_select %p1050, %s89, 1
        %s1052 = smul.addr %s1051, 4
        %s1053 = scalar_lea.vmem %s1, %s1052
        %p1054 = pneg %p110
        %p1055 = pneg %p107
        %p1056 = scmp.lt.s32.totalorder %s89, 1
        %s1057 = scalar_select %p1056, %s89, 1
        %s1058 = scalar_lea.vmem %s3, %s1057
        %p1059 = pneg %p136
        %p1060 = pneg %p133
        %p1061 = scmp.lt.s32.totalorder %s89, 1
        %s1062 = scalar_select %p1061, %s89, 1
        %s1063 = smul.addr %s1062, 8
        %s1064 = scalar_lea.vmem %s5, %s1063
        %p1065 = pneg %p162
        %p1066 = pneg %p159
        %p1067 = pneg %p183
        %p1068 = pneg %p180
        %p1069 = pneg %p204
        %p1070 = pneg %p201
        %p1071 = pneg %p225
        %p1072 = pneg %p222
        %p1073 = pneg %p246
        %p1074 = pneg %p243
        %p1075 = pneg %p267
        %p1076 = pneg %p264
        %p1077 = pneg %p288
        %p1078 = pneg %p285
        %p1079 = pneg %p309
        %p1080 = pneg %p306
        %p1081 = pneg %p330
        %p1082 = pneg %p327
        %p1083 = pneg %p351
        %p1084 = pneg %p348
        %p1085 = pneg %p372
        %p1086 = pneg %p369
        %p1087 = pneg %p393
        %p1088 = pneg %p390
        %p1089 = pneg %p414
        %p1090 = pneg %p411
        %p1091 = pneg %p435
        %p1092 = pneg %p432
        %p1093 = pneg %p456
        %p1094 = pneg %p453
        %p1095 = pneg %p477
        %p1096 = pneg %p474
        %p1097 = pneg %p498
        %p1098 = pneg %p495
        %p1099 = pneg %p519
        %p1100 = pneg %p516
        %p1101 = pneg %p540
        %p1102 = pneg %p537
        %p1103 = pneg %p561
        %p1104 = pneg %p558
        %p1105 = pneg %p582
        %p1106 = pneg %p579
        %p1107 = pneg %p603
        %p1108 = pneg %p600
        %p1109 = pneg %p624
        %p1110 = pneg %p621
        %p1111 = pneg %p645
        %p1112 = pneg %p642
        %p1113 = pneg %p666
        %p1114 = pneg %p663
        %p1115 = pneg %p687
        %p1116 = pneg %p684
        %p1117 = pneg %p708
        %p1118 = pneg %p705
        %p1119 = pneg %p729
        %p1120 = pneg %p726
        %p1121 = pneg %p750
        %p1122 = pneg %p747
        %p1123 = pneg %p771
        %p1124 = pneg %p768
        %p1125 = pneg %p792
        %p1126 = pneg %p789
        %p1127 = pneg %p813
        %p1128 = pneg %p810
        %p1129 = pneg %p834
        %p1130 = pneg %p831
        %p1131 = pneg %p855
        %p1132 = pneg %p852
        %p1133 = pneg %p876
        %p1134 = pneg %p873
        %p1135 = pneg %p902
        %p1136 = pneg %p899
        %s1137 = sand.u32 %s889, 1
        %s1138 = scalar_lea.sflag [#allocation3], %s1137
        %s1139 = sand.u32 %s889, 1
        %s1140 = scalar_lea.vmem [#allocation2], %s1139
        %p1141 = scmp.lt.s32.totalorder %s89, 1
        %s1142 = scalar_select %p1141, %s89, 1
        %s1143 = smul.addr %s1142, 4
        %s1144 = scalar_lea.vmem %s1, %s1143
        %p1145 = scmp.lt.s32.totalorder %s89, 1
        %s1146 = scalar_select %p1145, %s89, 1
        %s1147 = scalar_lea.vmem %s3, %s1146
        %p1148 = scmp.lt.s32.totalorder %s89, 1
        %s1149 = scalar_select %p1148, %s89, 1
        %s1150 = smul.addr %s1149, 8
        %s1151 = scalar_lea.vmem %s5, %s1150
        %v1153 = vld [vmem:[%s1144] sm:$0xf]
        %v1154 = vunpack.c.l.bf16 %v1153
        %v1155 = vld [vmem:[%s7] sm:$0x1]
        %v1156 = vld [vmem:[%s9] sm:$0x1]
        %vm1157 = vcmask 261120
        %v1158 = vsel %vm1157, %v1154, 0.0
        %1159 = vadd.xlane.f32.xlu0 %v1158
        %v1160 = vpop.xlane.xlu0 %1159
        %v1161 = vrcp.pop 32.0
        %v1162 = vmul.f32 %v1160, %v1161
        %v1163 = vsub.f32 %v1154, %v1162
        %v1164 = vmul.f32 %v1163, %v1163
        %v1165 = vsel %vm1157, %v1164, 0.0
        %1166 = vadd.xlane.f32.xlu0 %v1165
        %v1167 = vpop.xlane.xlu0 %1166
        %v1168 = vmul.f32 %v1167, %v1161
        %v1169 = vadd.f32 %v1168, 1e-12
        %v1170 = vrsqrt.pop %v1169
        %v1171 = vmul.f32 %v1163, %v1170
        %v1173 = vlaneseq
        %v1174 = vshrl.u32 %v1173, 7
        %v1175 = vsub.s32 0, %v1174
        %v1176 = vrot.slane %v1155, %v1175
        %v1178 = vmul.f32 %v1171, %v1176
        %v1180 = vlaneseq
        %v1181 = vshrl.u32 %v1180, 7
        %v1182 = vsub.s32 0, %v1181
        %v1183 = vrot.slane %v1156, %v1182
        %v1185 = vadd.f32 %v1178, %v1183
        %v1186 = vld [vmem:[%s1147] sm:$0x1]
        %v1187 = vpack.c.bf16 %v1185, %v1185
        %v1188 = vld [vmem:[%s11] sm:$0xf]
        %v1189 = vld [vmem:[%s11 + $0x4] sm:$0xf]
        %v1190 = vld [vmem:[%s11 + $0x8] sm:$0xf]
        %v1191 = vld [vmem:[%s11 + $0xc] sm:$0xf]
        %v1192 = vld [vmem:[%s11 + $0x10] sm:$0xf]
        %v1193 = vld [vmem:[%s11 + $0x14] sm:$0xf]
        %v1194 = vld [vmem:[%s11 + $0x18] sm:$0xf]
        %v1195 = vld [vmem:[%s11 + $0x1c] sm:$0xf]
        %v1196 = vld [vmem:[%s11 + $0x20] sm:$0xf]
        %v1197 = vld [vmem:[%s11 + $0x24] sm:$0xf]
        %v1198 = vld [vmem:[%s11 + $0x28] sm:$0xf]
        %v1199 = vld [vmem:[%s11 + $0x2c] sm:$0xf]
        %v1200 = vld [vmem:[%s11 + $0x30] sm:$0xf]
        %v1201 = vld [vmem:[%s11 + $0x34] sm:$0xf]
        %v1202 = vld [vmem:[%s11 + $0x38] sm:$0xf]
        %v1203 = vld [vmem:[%s11 + $0x3c] sm:$0xf]
        %v1204 = vld [vmem:[%s13] sm:$0x1]
        %v1205 = vld [vmem:[%s13 + $0x1] sm:$0x1]
        %v1206 = vld [vmem:[%s13 + $0x2] sm:$0x1]
        %v1207 = vld [vmem:[%s13 + $0x3] sm:$0x1]
        %v1212 = vlaneseq
        %v1213 = vshrl.u32 %v1212, 7
        %v1214 = vsub.s32 0, %v1213
        %v1215 = vrot.slane %v1204, %v1214
        %v1216 = vlaneseq
        %v1217 = vshrl.u32 %v1216, 7
        %v1218 = vsub.s32 0, %v1217
        %v1219 = vrot.slane %v1205, %v1218
        %v1220 = vlaneseq
        %v1221 = vshrl.u32 %v1220, 7
        %v1222 = vsub.s32 0, %v1221
        %v1223 = vrot.slane %v1206, %v1222
        %v1224 = vlaneseq
        %v1225 = vshrl.u32 %v1224, 7
        %v1226 = vsub.s32 0, %v1225
        %v1227 = vrot.slane %v1207, %v1226
        %v1236 = vunpack.c.l.b16 %v1188
        %v1237 = vunpack.c.l.b16 %v1189
        %v1238 = vunpack.c.l.b16 %v1190
        %v1239 = vunpack.c.l.b16 %v1191
        %v1240 = vpack.c.b16 %v1237, %v1236
        %v1241 = vpack.c.b16 %v1239, %v1238
        %v1245 = vsel %vm1157, %v1187, 0
        %1247 = vmatprep.subr.bf16.mxu0 0
        %1248 = vmatpush1.bf16.msra.mxu0 %v1240
        %1249 = vmatprep.subr.bf16.mxu0 0
        %1250 = vmatpush1.bf16.msra.mxu0 %v1241
        %1251 = vmatprep.subr.bf16.mxu0 0
        %1252 = vmatpush1.bf16.msra.mxu0 0
        %1253 = vmatprep.subr.bf16.mxu0 0
        %1254 = vmatpush1.bf16.msra.mxu0 0
        %1255 = vmatprep.subr.bf16.mxu0 0
        %1256 = vmatpush1.bf16.msra.mxu0 0
        %1257 = vmatprep.subr.bf16.mxu0 0
        %1258 = vmatpush1.bf16.msra.mxu0 0
        %1259 = vmatprep.subr.bf16.mxu0 0
        %1260 = vmatpush1.bf16.msra.mxu0 0
        %1261 = vmatprep.subr.bf16.mxu0 0
        %1262 = vmatpush1.bf16.msra.mxu0 0
        %1263 = vmatprep.subr.bf16.mxu0 0
        %1264 = vmatpush1.bf16.msra.mxu0 0
        %1265 = vmatprep.subr.bf16.mxu0 0
        %1266 = vmatpush1.bf16.msra.mxu0 0
        %1267 = vmatprep.subr.bf16.mxu0 0
        %1268 = vmatpush1.bf16.msra.mxu0 0
        %1269 = vmatprep.subr.bf16.mxu0 0
        %1270 = vmatpush1.bf16.msra.mxu0 0
        %1271 = vmatprep.subr.bf16.mxu0 0
        %1272 = vmatpush1.bf16.msra.mxu0 0
        %1273 = vmatprep.subr.bf16.mxu0 0
        %1274 = vmatpush1.bf16.msra.mxu0 0
        %1275 = vmatprep.subr.bf16.mxu0 0
        %1276 = vmatpush1.bf16.msra.mxu0 0
        %1277 = vmatprep.subr.bf16.mxu0 0
        %1278 = vmatpush1.bf16.msra.mxu0 0
        %1279 = vmatprep.mubr.bf16.mxu0 0
        %1280 = vmatmul.mubr.bf16.gmra.mrb[0].mxu0 %v1245
        %v1281 = vpop.f32.mrb[0].mxu0
        %v1282 = vadd.f32 %v1215, %v1281
        %v1283 = vpop.f32.mrb[0].mxu0
        %v1284 = vpop.f32.mrb[0].mxu0
        %v1285 = vpop.f32.mrb[0].mxu0
        %1286 = vdwg.mxu0
        %v1291 = vunpack.c.l.b16 %v1192
        %v1292 = vunpack.c.l.b16 %v1193
        %v1293 = vunpack.c.l.b16 %v1194
        %v1294 = vunpack.c.l.b16 %v1195
        %v1295 = vpack.c.b16 %v1292, %v1291
        %v1296 = vpack.c.b16 %v1294, %v1293
        %1299 = vmatprep.subr.bf16.mxu0 0
        %1300 = vmatpush1.bf16.msra.mxu0 %v1295
        %1301 = vmatprep.subr.bf16.mxu0 0
        %1302 = vmatpush1.bf16.msra.mxu0 %v1296
        %1303 = vmatprep.subr.bf16.mxu0 0
        %1304 = vmatpush1.bf16.msra.mxu0 0
        %1305 = vmatprep.subr.bf16.mxu0 0
        %1306 = vmatpush1.bf16.msra.mxu0 0
        %1307 = vmatprep.subr.bf16.mxu0 0
        %1308 = vmatpush1.bf16.msra.mxu0 0
        %1309 = vmatprep.subr.bf16.mxu0 0
        %1310 = vmatpush1.bf16.msra.mxu0 0
        %1311 = vmatprep.subr.bf16.mxu0 0
        %1312 = vmatpush1.bf16.msra.mxu0 0
        %1313 = vmatprep.subr.bf16.mxu0 0
        %1314 = vmatpush1.bf16.msra.mxu0 0
        %1315 = vmatprep.subr.bf16.mxu0 0
        %1316 = vmatpush1.bf16.msra.mxu0 0
        %1317 = vmatprep.subr.bf16.mxu0 0
        %1318 = vmatpush1.bf16.msra.mxu0 0
        %1319 = vmatprep.subr.bf16.mxu0 0
        %1320 = vmatpush1.bf16.msra.mxu0 0
        %1321 = vmatprep.subr.bf16.mxu0 0
        %1322 = vmatpush1.bf16.msra.mxu0 0
        %1323 = vmatprep.subr.bf16.mxu0 0
        %1324 = vmatpush1.bf16.msra.mxu0 0
        %1325 = vmatprep.subr.bf16.mxu0 0
        %1326 = vmatpush1.bf16.msra.mxu0 0
        %1327 = vmatprep.subr.bf16.mxu0 0
        %1328 = vmatpush1.bf16.msra.mxu0 0
        %1329 = vmatprep.subr.bf16.mxu0 0
        %1330 = vmatpush1.bf16.msra.mxu0 0
        %1331 = vmatprep.mubr.bf16.mxu0 0
        %1332 = vmatmul.mubr.bf16.gmra.mrb[0].mxu0 %v1245
        %v1333 = vpop.f32.mrb[0].mxu0
        %v1334 = vadd.f32 %v1219, %v1333
        %v1335 = vpop.f32.mrb[0].mxu0
        %v1336 = vpop.f32.mrb[0].mxu0
        %v1337 = vpop.f32.mrb[0].mxu0
        %1338 = vdwg.mxu0
        %v1343 = vunpack.c.l.b16 %v1196
        %v1344 = vunpack.c.l.b16 %v1197
        %v1345 = vunpack.c.l.b16 %v1198
        %v1346 = vunpack.c.l.b16 %v1199
        %v1347 = vpack.c.b16 %v1344, %v1343
        %v1348 = vpack.c.b16 %v1346, %v1345
        %1351 = vmatprep.subr.bf16.mxu0 0
        %1352 = vmatpush1.bf16.msra.mxu0 %v1347
        %1353 = vmatprep.subr.bf16.mxu0 0
        %1354 = vmatpush1.bf16.msra.mxu0 %v1348
        %1355 = vmatprep.subr.bf16.mxu0 0
        %1356 = vmatpush1.bf16.msra.mxu0 0
        %1357 = vmatprep.subr.bf16.mxu0 0
        %1358 = vmatpush1.bf16.msra.mxu0 0
        %1359 = vmatprep.subr.bf16.mxu0 0
        %1360 = vmatpush1.bf16.msra.mxu0 0
        %1361 = vmatprep.subr.bf16.mxu0 0
        %1362 = vmatpush1.bf16.msra.mxu0 0
        %1363 = vmatprep.subr.bf16.mxu0 0
        %1364 = vmatpush1.bf16.msra.mxu0 0
        %1365 = vmatprep.subr.bf16.mxu0 0
        %1366 = vmatpush1.bf16.msra.mxu0 0
        %1367 = vmatprep.subr.bf16.mxu0 0
        %1368 = vmatpush1.bf16.msra.mxu0 0
        %1369 = vmatprep.subr.bf16.mxu0 0
        %1370 = vmatpush1.bf16.msra.mxu0 0
        %1371 = vmatprep.subr.bf16.mxu0 0
        %1372 = vmatpush1.bf16.msra.mxu0 0
        %1373 = vmatprep.subr.bf16.mxu0 0
        %1374 = vmatpush1.bf16.msra.mxu0 0
        %1375 = vmatprep.subr.bf16.mxu0 0
        %1376 = vmatpush1.bf16.msra.mxu0 0
        %1377 = vmatprep.subr.bf16.mxu0 0
        %1378 = vmatpush1.bf16.msra.mxu0 0
        %1379 = vmatprep.subr.bf16.mxu0 0
        %1380 = vmatpush1.bf16.msra.mxu0 0
        %1381 = vmatprep.subr.bf16.mxu0 0
        %1382 = vmatpush1.bf16.msra.mxu0 0
        %1383 = vmatprep.mubr.bf16.mxu0 0
        %1384 = vmatmul.mubr.bf16.gmra.mrb[0].mxu0 %v1245
        %v1385 = vpop.f32.mrb[0].mxu0
        %v1386 = vadd.f32 %v1223, %v1385
        %v1387 = vpop.f32.mrb[0].mxu0
        %v1388 = vpop.f32.mrb[0].mxu0
        %v1389 = vpop.f32.mrb[0].mxu0
        %1390 = vdwg.mxu0
        %v1395 = vunpack.c.l.b16 %v1200
        %v1396 = vunpack.c.l.b16 %v1201
        %v1397 = vunpack.c.l.b16 %v1202
        %v1398 = vunpack.c.l.b16 %v1203
        %v1399 = vpack.c.b16 %v1396, %v1395
        %v1400 = vpack.c.b16 %v1398, %v1397
        %1403 = vmatprep.subr.bf16.mxu0 0
        %1404 = vmatpush1.bf16.msra.mxu0 %v1399
        %1405 = vmatprep.subr.bf16.mxu0 0
        %1406 = vmatpush1.bf16.msra.mxu0 %v1400
        %1407 = vmatprep.subr.bf16.mxu0 0
        %1408 = vmatpush1.bf16.msra.mxu0 0
        %1409 = vmatprep.subr.bf16.mxu0 0
        %1410 = vmatpush1.bf16.msra.mxu0 0
        %1411 = vmatprep.subr.bf16.mxu0 0
        %1412 = vmatpush1.bf16.msra.mxu0 0
        %1413 = vmatprep.subr.bf16.mxu0 0
        %1414 = vmatpush1.bf16.msra.mxu0 0
        %1415 = vmatprep.subr.bf16.mxu0 0
        %1416 = vmatpush1.bf16.msra.mxu0 0
        %1417 = vmatprep.subr.bf16.mxu0 0
        %1418 = vmatpush1.bf16.msra.mxu0 0
        %1419 = vmatprep.subr.bf16.mxu0 0
        %1420 = vmatpush1.bf16.msra.mxu0 0
        %1421 = vmatprep.subr.bf16.mxu0 0
        %1422 = vmatpush1.bf16.msra.mxu0 0
        %1423 = vmatprep.subr.bf16.mxu0 0
        %1424 = vmatpush1.bf16.msra.mxu0 0
        %1425 = vmatprep.subr.bf16.mxu0 0
        %1426 = vmatpush1.bf16.msra.mxu0 0
        %1427 = vmatprep.subr.bf16.mxu0 0
        %1428 = vmatpush1.bf16.msra.mxu0 0
        %1429 = vmatprep.subr.bf16.mxu0 0
        %1430 = vmatpush1.bf16.msra.mxu0 0
        %1431 = vmatprep.subr.bf16.mxu0 0
        %1432 = vmatpush1.bf16.msra.mxu0 0
        %1433 = vmatprep.subr.bf16.mxu0 0
        %1434 = vmatpush1.bf16.msra.mxu0 0
        %1435 = vmatprep.mubr.bf16.mxu0 0
        %1436 = vmatmul.mubr.bf16.gmra.mrb[0].mxu0 %v1245
        %v1437 = vpop.f32.mrb[0].mxu0
        %v1438 = vadd.f32 %v1227, %v1437
        %v1439 = vpop.f32.mrb[0].mxu0
        %v1440 = vpop.f32.mrb[0].mxu0
        %v1441 = vpop.f32.mrb[0].mxu0
        %1442 = vdwg.mxu0
        %v1443 = vld [vmem:[%s15] sm:$0xf]
        %v1444 = vld [vmem:[%s15 + $0x4] sm:$0xf]
        %v1445 = vld [vmem:[%s15 + $0x8] sm:$0xf]
        %v1446 = vld [vmem:[%s15 + $0xc] sm:$0xf]
        %v1447 = vld [vmem:[%s15 + $0x10] sm:$0xf]
        %v1448 = vld [vmem:[%s15 + $0x14] sm:$0xf]
        %v1449 = vld [vmem:[%s15 + $0x18] sm:$0xf]
        %v1450 = vld [vmem:[%s15 + $0x1c] sm:$0xf]
        %v1451 = vld [vmem:[%s15 + $0x20] sm:$0xf]
        %v1452 = vld [vmem:[%s15 + $0x24] sm:$0xf]
        %v1453 = vld [vmem:[%s15 + $0x28] sm:$0xf]
        %v1454 = vld [vmem:[%s15 + $0x2c] sm:$0xf]
        %v1455 = vld [vmem:[%s15 + $0x30] sm:$0xf]
        %v1456 = vld [vmem:[%s15 + $0x34] sm:$0xf]
        %v1457 = vld [vmem:[%s15 + $0x38] sm:$0xf]
        %v1458 = vld [vmem:[%s15 + $0x3c] sm:$0xf]
        %v1459 = vld [vmem:[%s17] sm:$0x1]
        %v1460 = vld [vmem:[%s17 + $0x1] sm:$0x1]
        %v1461 = vld [vmem:[%s17 + $0x2] sm:$0x1]
        %v1462 = vld [vmem:[%s17 + $0x3] sm:$0x1]
        %v1467 = vlaneseq
        %v1468 = vshrl.u32 %v1467, 7
        %v1469 = vsub.s32 0, %v1468
        %v1470 = vrot.slane %v1459, %v1469
        %v1471 = vlaneseq
        %v1472 = vshrl.u32 %v1471, 7
        %v1473 = vsub.s32 0, %v1472
        %v1474 = vrot.slane %v1460, %v1473
        %v1475 = vlaneseq
        %v1476 = vshrl.u32 %v1475, 7
        %v1477 = vsub.s32 0, %v1476
        %v1478 = vrot.slane %v1461, %v1477
        %v1479 = vlaneseq
        %v1480 = vshrl.u32 %v1479, 7
        %v1481 = vsub.s32 0, %v1480
        %v1482 = vrot.slane %v1462, %v1481
        %v1491 = vunpack.c.l.b16 %v1443
        %v1492 = vunpack.c.l.b16 %v1444
        %v1493 = vunpack.c.l.b16 %v1445
        %v1494 = vunpack.c.l.b16 %v1446
        %v1495 = vpack.c.b16 %v1492, %v1491
        %v1496 = vpack.c.b16 %v1494, %v1493
        %1499 = vmatprep.subr.bf16.mxu0 0
        %1500 = vmatpush1.bf16.msra.mxu0 %v1495
        %1501 = vmatprep.subr.bf16.mxu0 0
        %1502 = vmatpush1.bf16.msra.mxu0 %v1496
        %1503 = vmatprep.subr.bf16.mxu0 0
        %1504 = vmatpush1.bf16.msra.mxu0 0
        %1505 = vmatprep.subr.bf16.mxu0 0
        %1506 = vmatpush1.bf16.msra.mxu0 0
        %1507 = vmatprep.subr.bf16.mxu0 0
        %1508 = vmatpush1.bf16.msra.mxu0 0
        %1509 = vmatprep.subr.bf16.mxu0 0
        %1510 = vmatpush1.bf16.msra.mxu0 0
        %1511 = vmatprep.subr.bf16.mxu0 0
        %1512 = vmatpush1.bf16.msra.mxu0 0
        %1513 = vmatprep.subr.bf16.mxu0 0
        %1514 = vmatpush1.bf16.msra.mxu0 0
        %1515 = vmatprep.subr.bf16.mxu0 0
        %1516 = vmatpush1.bf16.msra.mxu0 0
        %1517 = vmatprep.subr.bf16.mxu0 0
        %1518 = vmatpush1.bf16.msra.mxu0 0
        %1519 = vmatprep.subr.bf16.mxu0 0
        %1520 = vmatpush1.bf16.msra.mxu0 0
        %1521 = vmatprep.subr.bf16.mxu0 0
        %1522 = vmatpush1.bf16.msra.mxu0 0
        %1523 = vmatprep.subr.bf16.mxu0 0
        %1524 = vmatpush1.bf16.msra.mxu0 0
        %1525 = vmatprep.subr.bf16.mxu0 0
        %1526 = vmatpush1.bf16.msra.mxu0 0
        %1527 = vmatprep.subr.bf16.mxu0 0
        %1528 = vmatpush1.bf16.msra.mxu0 0
        %1529 = vmatprep.subr.bf16.mxu0 0
        %1530 = vmatpush1.bf16.msra.mxu0 0
        %1531 = vmatprep.mubr.bf16.mxu0 0
        %1532 = vmatmul.mubr.bf16.gmra.mrb[0].mxu0 %v1245
        %v1533 = vpop.f32.mrb[0].mxu0
        %v1534 = vadd.f32 %v1470, %v1533
        %v1535 = vpop.f32.mrb[0].mxu0
        %v1536 = vpop.f32.mrb[0].mxu0
        %v1537 = vpop.f32.mrb[0].mxu0
        %1538 = vdwg.mxu0
        %v1543 = vunpack.c.l.b16 %v1447
        %v1544 = vunpack.c.l.b16 %v1448
        %v1545 = vunpack.c.l.b16 %v1449
        %v1546 = vunpack.c.l.b16 %v1450
        %v1547 = vpack.c.b16 %v1544, %v1543
        %v1548 = vpack.c.b16 %v1546, %v1545
        %1551 = vmatprep.subr.bf16.mxu0 0
        %1552 = vmatpush1.bf16.msra.mxu0 %v1547
        %1553 = vmatprep.subr.bf16.mxu0 0
        %1554 = vmatpush1.bf16.msra.mxu0 %v1548
        %1555 = vmatprep.subr.bf16.mxu0 0
        %1556 = vmatpush1.bf16.msra.mxu0 0
        %1557 = vmatprep.subr.bf16.mxu0 0
        %1558 = vmatpush1.bf16.msra.mxu0 0
        %1559 = vmatprep.subr.bf16.mxu0 0
        %1560 = vmatpush1.bf16.msra.mxu0 0
        %1561 = vmatprep.subr.bf16.mxu0 0
        %1562 = vmatpush1.bf16.msra.mxu0 0
        %1563 = vmatprep.subr.bf16.mxu0 0
        %1564 = vmatpush1.bf16.msra.mxu0 0
        %1565 = vmatprep.subr.bf16.mxu0 0
        %1566 = vmatpush1.bf16.msra.mxu0 0
        %1567 = vmatprep.subr.bf16.mxu0 0
        %1568 = vmatpush1.bf16.msra.mxu0 0
        %1569 = vmatprep.subr.bf16.mxu0 0
        %1570 = vmatpush1.bf16.msra.mxu0 0
        %1571 = vmatprep.subr.bf16.mxu0 0
        %1572 = vmatpush1.bf16.msra.mxu0 0
        %1573 = vmatprep.subr.bf16.mxu0 0
        %1574 = vmatpush1.bf16.msra.mxu0 0
        %1575 = vmatprep.subr.bf16.mxu0 0
        %1576 = vmatpush1.bf16.msra.mxu0 0
        %1577 = vmatprep.subr.bf16.mxu0 0
        %1578 = vmatpush1.bf16.msra.mxu0 0
        %1579 = vmatprep.subr.bf16.mxu0 0
        %1580 = vmatpush1.bf16.msra.mxu0 0
        %1581 = vmatprep.subr.bf16.mxu0 0
        %1582 = vmatpush1.bf16.msra.mxu0 0
        %1583 = vmatprep.mubr.bf16.mxu0 0
        %1584 = vmatmul.mubr.bf16.gmra.mrb[0].mxu0 %v1245
        %v1585 = vpop.f32.mrb[0].mxu0
        %v1586 = vadd.f32 %v1474, %v1585
        %v1587 = vpop.f32.mrb[0].mxu0
        %v1588 = vpop.f32.mrb[0].mxu0
        %v1589 = vpop.f32.mrb[0].mxu0
        %1590 = vdwg.mxu0
        %v1595 = vunpack.c.l.b16 %v1451
        %v1596 = vunpack.c.l.b16 %v1452
        %v1597 = vunpack.c.l.b16 %v1453
        %v1598 = vunpack.c.l.b16 %v1454
        %v1599 = vpack.c.b16 %v1596, %v1595
        %v1600 = vpack.c.b16 %v1598, %v1597
        %1603 = vmatprep.subr.bf16.mxu0 0
        %1604 = vmatpush1.bf16.msra.mxu0 %v1599
        %1605 = vmatprep.subr.bf16.mxu0 0
        %1606 = vmatpush1.bf16.msra.mxu0 %v1600
        %1607 = vmatprep.subr.bf16.mxu0 0
        %1608 = vmatpush1.bf16.msra.mxu0 0
        %1609 = vmatprep.subr.bf16.mxu0 0
        %1610 = vmatpush1.bf16.msra.mxu0 0
        %1611 = vmatprep.subr.bf16.mxu0 0
        %1612 = vmatpush1.bf16.msra.mxu0 0
        %1613 = vmatprep.subr.bf16.mxu0 0
        %1614 = vmatpush1.bf16.msra.mxu0 0
        %1615 = vmatprep.subr.bf16.mxu0 0
        %1616 = vmatpush1.bf16.msra.mxu0 0
        %1617 = vmatprep.subr.bf16.mxu0 0
        %1618 = vmatpush1.bf16.msra.mxu0 0
        %1619 = vmatprep.subr.bf16.mxu0 0
        %1620 = vmatpush1.bf16.msra.mxu0 0
        %1621 = vmatprep.subr.bf16.mxu0 0
        %1622 = vmatpush1.bf16.msra.mxu0 0
        %1623 = vmatprep.subr.bf16.mxu0 0
        %1624 = vmatpush1.bf16.msra.mxu0 0
        %1625 = vmatprep.subr.bf16.mxu0 0
        %1626 = vmatpush1.bf16.msra.mxu0 0
        %1627 = vmatprep.subr.bf16.mxu0 0
        %1628 = vmatpush1.bf16.msra.mxu0 0
        %1629 = vmatprep.subr.bf16.mxu0 0
        %1630 = vmatpush1.bf16.msra.mxu0 0
        %1631 = vmatprep.subr.bf16.mxu0 0
        %1632 = vmatpush1.bf16.msra.mxu0 0
        %1633 = vmatprep.subr.bf16.mxu0 0
        %1634 = vmatpush1.bf16.msra.mxu0 0
        %1635 = vmatprep.mubr.bf16.mxu0 0
        %1636 = vmatmul.mubr.bf16.gmra.mrb[0].mxu0 %v1245
        %v1637 = vpop.f32.mrb[0].mxu0
        %v1638 = vadd.f32 %v1478, %v1637
        %v1639 = vpop.f32.mrb[0].mxu0
        %v1640 = vpop.f32.mrb[0].mxu0
        %v1641 = vpop.f32.mrb[0].mxu0
        %1642 = vdwg.mxu0
        %v1647 = vunpack.c.l.b16 %v1455
        %v1648 = vunpack.c.l.b16 %v1456
        %v1649 = vunpack.c.l.b16 %v1457
        %v1650 = vunpack.c.l.b16 %v1458
        %v1651 = vpack.c.b16 %v1648, %v1647
        %v1652 = vpack.c.b16 %v1650, %v1649
        %1655 = vmatprep.subr.bf16.mxu0 0
        %1656 = vmatpush1.bf16.msra.mxu0 %v1651
        %1657 = vmatprep.subr.bf16.mxu0 0
        %1658 = vmatpush1.bf16.msra.mxu0 %v1652
        %1659 = vmatprep.subr.bf16.mxu0 0
        %1660 = vmatpush1.bf16.msra.mxu0 0
        %1661 = vmatprep.subr.bf16.mxu0 0
        %1662 = vmatpush1.bf16.msra.mxu0 0
        %1663 = vmatprep.subr.bf16.mxu0 0
        %1664 = vmatpush1.bf16.msra.mxu0 0
        %1665 = vmatprep.subr.bf16.mxu0 0
        %1666 = vmatpush1.bf16.msra.mxu0 0
        %1667 = vmatprep.subr.bf16.mxu0 0
        %1668 = vmatpush1.bf16.msra.mxu0 0
        %1669 = vmatprep.subr.bf16.mxu0 0
        %1670 = vmatpush1.bf16.msra.mxu0 0
        %1671 = vmatprep.subr.bf16.mxu0 0
        %1672 = vmatpush1.bf16.msra.mxu0 0
        %1673 = vmatprep.subr.bf16.mxu0 0
        %1674 = vmatpush1.bf16.msra.mxu0 0
        %1675 = vmatprep.subr.bf16.mxu0 0
        %1676 = vmatpush1.bf16.msra.mxu0 0
        %1677 = vmatprep.subr.bf16.mxu0 0
        %1678 = vmatpush1.bf16.msra.mxu0 0
        %1679 = vmatprep.subr.bf16.mxu0 0
        %1680 = vmatpush1.bf16.msra.mxu0 0
        %1681 = vmatprep.subr.bf16.mxu0 0
        %1682 = vmatpush1.bf16.msra.mxu0 0
        %1683 = vmatprep.subr.bf16.mxu0 0
        %1684 = vmatpush1.bf16.msra.mxu0 0
        %1685 = vmatprep.subr.bf16.mxu0 0
        %1686 = vmatpush1.bf16.msra.mxu0 0
        %1687 = vmatprep.mubr.bf16.mxu0 0
        %1688 = vmatmul.mubr.bf16.gmra.mrb[0].mxu0 %v1245
        %v1689 = vpop.f32.mrb[0].mxu0
        %v1690 = vadd.f32 %v1482, %v1689
        %v1691 = vpop.f32.mrb[0].mxu0
        %v1692 = vpop.f32.mrb[0].mxu0
        %v1693 = vpop.f32.mrb[0].mxu0
        %1694 = vdwg.mxu0
        %v1695 = vld [vmem:[%s19] sm:$0xf]
        %v1696 = vld [vmem:[%s19 + $0x4] sm:$0xf]
        %v1697 = vld [vmem:[%s19 + $0x8] sm:$0xf]
        %v1698 = vld [vmem:[%s19 + $0xc] sm:$0xf]
        %v1699 = vld [vmem:[%s19 + $0x10] sm:$0xf]
        %v1700 = vld [vmem:[%s19 + $0x14] sm:$0xf]
        %v1701 = vld [vmem:[%s19 + $0x18] sm:$0xf]
        %v1702 = vld [vmem:[%s19 + $0x1c] sm:$0xf]
        %v1703 = vld [vmem:[%s19 + $0x20] sm:$0xf]
        %v1704 = vld [vmem:[%s19 + $0x24] sm:$0xf]
        %v1705 = vld [vmem:[%s19 + $0x28] sm:$0xf]
        %v1706 = vld [vmem:[%s19 + $0x2c] sm:$0xf]
        %v1707 = vld [vmem:[%s19 + $0x30] sm:$0xf]
        %v1708 = vld [vmem:[%s19 + $0x34] sm:$0xf]
        %v1709 = vld [vmem:[%s19 + $0x38] sm:$0xf]
        %v1710 = vld [vmem:[%s19 + $0x3c] sm:$0xf]
        %v1711 = vld [vmem:[%s21] sm:$0x1]
        %v1712 = vld [vmem:[%s21 + $0x1] sm:$0x1]
        %v1713 = vld [vmem:[%s21 + $0x2] sm:$0x1]
        %v1714 = vld [vmem:[%s21 + $0x3] sm:$0x1]
        %v1719 = vlaneseq
        %v1720 = vshrl.u32 %v1719, 7
        %v1721 = vsub.s32 0, %v1720
        %v1722 = vrot.slane %v1711, %v1721
        %v1723 = vlaneseq
        %v1724 = vshrl.u32 %v1723, 7
        %v1725 = vsub.s32 0, %v1724
        %v1726 = vrot.slane %v1712, %v1725
        %v1727 = vlaneseq
        %v1728 = vshrl.u32 %v1727, 7
        %v1729 = vsub.s32 0, %v1728
        %v1730 = vrot.slane %v1713, %v1729
        %v1731 = vlaneseq
        %v1732 = vshrl.u32 %v1731, 7
        %v1733 = vsub.s32 0, %v1732
        %v1734 = vrot.slane %v1714, %v1733
        %v1743 = vunpack.c.l.b16 %v1695
        %v1744 = vunpack.c.l.b16 %v1696
        %v1745 = vunpack.c.l.b16 %v1697
        %v1746 = vunpack.c.l.b16 %v1698
        %v1747 = vpack.c.b16 %v1744, %v1743
        %v1748 = vpack.c.b16 %v1746, %v1745
        %1751 = vmatprep.subr.bf16.mxu0 0
        %1752 = vmatpush1.bf16.msra.mxu0 %v1747
        %1753 = vmatprep.subr.bf16.mxu0 0
        %1754 = vmatpush1.bf16.msra.mxu0 %v1748
        %1755 = vmatprep.subr.bf16.mxu0 0
        %1756 = vmatpush1.bf16.msra.mxu0 0
        %1757 = vmatprep.subr.bf16.mxu0 0
        %1758 = vmatpush1.bf16.msra.mxu0 0
        %1759 = vmatprep.subr.bf16.mxu0 0
        %1760 = vmatpush1.bf16.msra.mxu0 0
        %1761 = vmatprep.subr.bf16.mxu0 0
        %1762 = vmatpush1.bf16.msra.mxu0 0
        %1763 = vmatprep.subr.bf16.mxu0 0
        %1764 = vmatpush1.bf16.msra.mxu0 0
        %1765 = vmatprep.subr.bf16.mxu0 0
        %1766 = vmatpush1.bf16.msra.mxu0 0
        %1767 = vmatprep.subr.bf16.mxu0 0
        %1768 = vmatpush1.bf16.msra.mxu0 0
        %1769 = vmatprep.subr.bf16.mxu0 0
        %1770 = vmatpush1.bf16.msra.mxu0 0
        %1771 = vmatprep.subr.bf16.mxu0 0
        %1772 = vmatpush1.bf16.msra.mxu0 0
        %1773 = vmatprep.subr.bf16.mxu0 0
        %1774 = vmatpush1.bf16.msra.mxu0 0
        %1775 = vmatprep.subr.bf16.mxu0 0
        %1776 = vmatpush1.bf16.msra.mxu0 0
        %1777 = vmatprep.subr.bf16.mxu0 0
        %1778 = vmatpush1.bf16.msra.mxu0 0
        %1779 = vmatprep.subr.bf16.mxu0 0
        %1780 = vmatpush1.bf16.msra.mxu0 0
        %1781 = vmatprep.subr.bf16.mxu0 0
        %1782 = vmatpush1.bf16.msra.mxu0 0
        %1783 = vmatprep.mubr.bf16.mxu0 0
        %1784 = vmatmul.mubr.bf16.gmra.mrb[0].mxu0 %v1245
        %v1785 = vpop.f32.mrb[0].mxu0
        %v1786 = vadd.f32 %v1722, %v1785
        %v1787 = vpop.f32.mrb[0].mxu0
        %v1788 = vpop.f32.mrb[0].mxu0
        %v1789 = vpop.f32.mrb[0].mxu0
        %1790 = vdwg.mxu0
        %v1795 = vunpack.c.l.b16 %v1699
        %v1796 = vunpack.c.l.b16 %v1700
        %v1797 = vunpack.c.l.b16 %v1701
        %v1798 = vunpack.c.l.b16 %v1702
        %v1799 = vpack.c.b16 %v1796, %v1795
        %v1800 = vpack.c.b16 %v1798, %v1797
        %1803 = vmatprep.subr.bf16.mxu0 0
        %1804 = vmatpush1.bf16.msra.mxu0 %v1799
        %1805 = vmatprep.subr.bf16.mxu0 0
        %1806 = vmatpush1.bf16.msra.mxu0 %v1800
        %1807 = vmatprep.subr.bf16.mxu0 0
        %1808 = vmatpush1.bf16.msra.mxu0 0
        %1809 = vmatprep.subr.bf16.mxu0 0
        %1810 = vmatpush1.bf16.msra.mxu0 0
        %1811 = vmatprep.subr.bf16.mxu0 0
        %1812 = vmatpush1.bf16.msra.mxu0 0
        %1813 = vmatprep.subr.bf16.mxu0 0
        %1814 = vmatpush1.bf16.msra.mxu0 0
        %1815 = vmatprep.subr.bf16.mxu0 0
        %1816 = vmatpush1.bf16.msra.mxu0 0
        %1817 = vmatprep.subr.bf16.mxu0 0
        %1818 = vmatpush1.bf16.msra.mxu0 0
        %1819 = vmatprep.subr.bf16.mxu0 0
        %1820 = vmatpush1.bf16.msra.mxu0 0
        %1821 = vmatprep.subr.bf16.mxu0 0
        %1822 = vmatpush1.bf16.msra.mxu0 0
        %1823 = vmatprep.subr.bf16.mxu0 0
        %1824 = vmatpush1.bf16.msra.mxu0 0
        %1825 = vmatprep.subr.bf16.mxu0 0
        %1826 = vmatpush1.bf16.msra.mxu0 0
        %1827 = vmatprep.subr.bf16.mxu0 0
        %1828 = vmatpush1.bf16.msra.mxu0 0
        %1829 = vmatprep.subr.bf16.mxu0 0
        %1830 = vmatpush1.bf16.msra.mxu0 0
        %1831 = vmatprep.subr.bf16.mxu0 0
        %1832 = vmatpush1.bf16.msra.mxu0 0
        %1833 = vmatprep.subr.bf16.mxu0 0
        %1834 = vmatpush1.bf16.msra.mxu0 0
        %1835 = vmatprep.mubr.bf16.mxu0 0
        %1836 = vmatmul.mubr.bf16.gmra.mrb[0].mxu0 %v1245
        %v1837 = vpop.f32.mrb[0].mxu0
        %v1838 = vadd.f32 %v1726, %v1837
        %v1839 = vpop.f32.mrb[0].mxu0
        %v1840 = vpop.f32.mrb[0].mxu0
        %v1841 = vpop.f32.mrb[0].mxu0
        %1842 = vdwg.mxu0
        %v1847 = vunpack.c.l.b16 %v1703
        %v1848 = vunpack.c.l.b16 %v1704
        %v1849 = vunpack.c.l.b16 %v1705
        %v1850 = vunpack.c.l.b16 %v1706
        %v1851 = vpack.c.b16 %v1848, %v1847
        %v1852 = vpack.c.b16 %v1850, %v1849
        %1855 = vmatprep.subr.bf16.mxu0 0
        %1856 = vmatpush1.bf16.msra.mxu0 %v1851
        %1857 = vmatprep.subr.bf16.mxu0 0
        %1858 = vmatpush1.bf16.msra.mxu0 %v1852
        %1859 = vmatprep.subr.bf16.mxu0 0
        %1860 = vmatpush1.bf16.msra.mxu0 0
        %1861 = vmatprep.subr.bf16.mxu0 0
        %1862 = vmatpush1.bf16.msra.mxu0 0
        %1863 = vmatprep.subr.bf16.mxu0 0
        %1864 = vmatpush1.bf16.msra.mxu0 0
        %1865 = vmatprep.subr.bf16.mxu0 0
        %1866 = vmatpush1.bf16.msra.mxu0 0
        %1867 = vmatprep.subr.bf16.mxu0 0
        %1868 = vmatpush1.bf16.msra.mxu0 0
        %1869 = vmatprep.subr.bf16.mxu0 0
        %1870 = vmatpush1.bf16.msra.mxu0 0
        %1871 = vmatprep.subr.bf16.mxu0 0
        %1872 = vmatpush1.bf16.msra.mxu0 0
        %1873 = vmatprep.subr.bf16.mxu0 0
        %1874 = vmatpush1.bf16.msra.mxu0 0
        %1875 = vmatprep.subr.bf16.mxu0 0
        %1876 = vmatpush1.bf16.msra.mxu0 0
        %1877 = vmatprep.subr.bf16.mxu0 0
        %1878 = vmatpush1.bf16.msra.mxu0 0
        %1879 = vmatprep.subr.bf16.mxu0 0
        %1880 = vmatpush1.bf16.msra.mxu0 0
        %1881 = vmatprep.subr.bf16.mxu0 0
        %1882 = vmatpush1.bf16.msra.mxu0 0
        %1883 = vmatprep.subr.bf16.mxu0 0
        %1884 = vmatpush1.bf16.msra.mxu0 0
        %1885 = vmatprep.subr.bf16.mxu0 0
        %1886 = vmatpush1.bf16.msra.mxu0 0
        %1887 = vmatprep.mubr.bf16.mxu0 0
        %1888 = vmatmul.mubr.bf16.gmra.mrb[0].mxu0 %v1245
        %v1889 = vpop.f32.mrb[0].mxu0
        %v1890 = vadd.f32 %v1730, %v1889
        %v1891 = vpop.f32.mrb[0].mxu0
        %v1892 = vpop.f32.mrb[0].mxu0
        %v1893 = vpop.f32.mrb[0].mxu0
        %1894 = vdwg.mxu0
        %v1899 = vunpack.c.l.b16 %v1707
        %v1900 = vunpack.c.l.b16 %v1708
        %v1901 = vunpack.c.l.b16 %v1709
        %v1902 = vunpack.c.l.b16 %v1710
        %v1903 = vpack.c.b16 %v1900, %v1899
        %v1904 = vpack.c.b16 %v1902, %v1901
        %1907 = vmatprep.subr.bf16.mxu0 0
        %1908 = vmatpush1.bf16.msra.mxu0 %v1903
        %1909 = vmatprep.subr.bf16.mxu0 0
        %1910 = vmatpush1.bf16.msra.mxu0 %v1904
        %1911 = vmatprep.subr.bf16.mxu0 0
        %1912 = vmatpush1.bf16.msra.mxu0 0
        %1913 = vmatprep.subr.bf16.mxu0 0
        %1914 = vmatpush1.bf16.msra.mxu0 0
        %1915 = vmatprep.subr.bf16.mxu0 0
        %1916 = vmatpush1.bf16.msra.mxu0 0
        %1917 = vmatprep.subr.bf16.mxu0 0
        %1918 = vmatpush1.bf16.msra.mxu0 0
        %1919 = vmatprep.subr.bf16.mxu0 0
        %1920 = vmatpush1.bf16.msra.mxu0 0
        %1921 = vmatprep.subr.bf16.mxu0 0
        %1922 = vmatpush1.bf16.msra.mxu0 0
        %1923 = vmatprep.subr.bf16.mxu0 0
        %1924 = vmatpush1.bf16.msra.mxu0 0
        %1925 = vmatprep.subr.bf16.mxu0 0
        %1926 = vmatpush1.bf16.msra.mxu0 0
        %1927 = vmatprep.subr.bf16.mxu0 0
        %1928 = vmatpush1.bf16.msra.mxu0 0
        %1929 = vmatprep.subr.bf16.mxu0 0
        %1930 = vmatpush1.bf16.msra.mxu0 0
        %1931 = vmatprep.subr.bf16.mxu0 0
        %1932 = vmatpush1.bf16.msra.mxu0 0
        %1933 = vmatprep.subr.bf16.mxu0 0
        %1934 = vmatpush1.bf16.msra.mxu0 0
        %1935 = vmatprep.subr.bf16.mxu0 0
        %1936 = vmatpush1.bf16.msra.mxu0 0
        %1937 = vmatprep.subr.bf16.mxu0 0
        %1938 = vmatpush1.bf16.msra.mxu0 0
        %1939 = vmatprep.mubr.bf16.mxu0 0
        %1940 = vmatmul.mubr.bf16.gmra.mrb[0].mxu0 %v1245
        %v1941 = vpop.f32.mrb[0].mxu0
        %v1942 = vadd.f32 %v1734, %v1941
        %v1943 = vpop.f32.mrb[0].mxu0
        %v1944 = vpop.f32.mrb[0].mxu0
        %v1945 = vpop.f32.mrb[0].mxu0
        %1946 = vdwg.mxu0
        %v1947 = vmul.f32 %v1282, 0.35355338
        %v1948 = vmul.f32 %v1334, 0.35355338
        %v1949 = vmul.f32 %v1386, 0.35355338
        %v1950 = vmul.f32 %v1438, 0.35355338
        %v1951 = vpack.c.bf16 %v1947, %v1947
        %v1952 = vpack.c.bf16 %v1948, %v1948
        %v1953 = vpack.c.bf16 %v1949, %v1949
        %v1954 = vpack.c.bf16 %v1950, %v1950
        %v1955 = vpack.c.bf16 %v1534, %v1534
        %v1956 = vpack.c.bf16 %v1586, %v1586
        %v1957 = vpack.c.bf16 %v1638, %v1638
        %v1958 = vpack.c.bf16 %v1690, %v1690
        %v1960 = vlaneseq
        %v1961 = vshrl.u32 %v1960, 7
        %v1962 = vsub.s32 0, %v1961
        %v1963 = vrot.slane %v1186, %v1962
        %vm1965 = vcmask 64512
        %v1967 = vsel %vm1965, %v1951, 0
        %v1970 = vsel %vm1965, %v1955, 0
        %1972 = vmatprep.subr.bf16.mxu0 0
        %1973 = vmatpush1.bf16.xpose.msra.mxu0 %v1970
        %1974 = vmatprep.subr.bf16.mxu0 0
        %1975 = vmatpush1.bf16.xpose.msra.mxu0 0
        %1976 = vmatprep.subr.bf16.mxu0 0
        %1977 = vmatpush1.bf16.xpose.msra.mxu0 0
        %1978 = vmatprep.subr.bf16.mxu0 0
        %1979 = vmatpush1.bf16.xpose.msra.mxu0 0
        %1980 = vmatprep.subr.bf16.mxu0 0
        %1981 = vmatpush1.bf16.xpose.msra.mxu0 0
        %1982 = vmatprep.subr.bf16.mxu0 0
        %1983 = vmatpush1.bf16.xpose.msra.mxu0 0
        %1984 = vmatprep.subr.bf16.mxu0 0
        %1985 = vmatpush1.bf16.xpose.msra.mxu0 0
        %1986 = vmatprep.subr.bf16.mxu0 0
        %1987 = vmatpush1.bf16.xpose.msra.mxu0 0
        %1988 = vmatprep.subr.bf16.mxu0 0
        %1989 = vmatpush1.bf16.xpose.msra.mxu0 0
        %1990 = vmatprep.subr.bf16.mxu0 0
        %1991 = vmatpush1.bf16.xpose.msra.mxu0 0
        %1992 = vmatprep.subr.bf16.mxu0 0
        %1993 = vmatpush1.bf16.xpose.msra.mxu0 0
        %1994 = vmatprep.subr.bf16.mxu0 0
        %1995 = vmatpush1.bf16.xpose.msra.mxu0 0
        %1996 = vmatprep.subr.bf16.mxu0 0
        %1997 = vmatpush1.bf16.xpose.msra.mxu0 0
        %1998 = vmatprep.subr.bf16.mxu0 0
        %1999 = vmatpush1.bf16.xpose.msra.mxu0 0
        %2000 = vmatprep.subr.bf16.mxu0 0
        %2001 = vmatpush1.bf16.xpose.msra.mxu0 0
        %2002 = vmatprep.subr.bf16.mxu0 0
        %2003 = vmatpush1.bf16.xpose.msra.mxu0 0
        %2004 = vmatprep.mubr.bf16.mxu0 0
        %2005 = vmatmul.mubr.bf16.gmra.mrb[0].mxu0 %v1967
        %v2006 = vpop.f32.mrb[0].mxu0
        %v2007 = vadd.f32 %v1963, %v2006
        %v2008 = vpop.f32.mrb[0].mxu0
        %v2009 = vpop.f32.mrb[0].mxu0
        %v2010 = vpop.f32.mrb[0].mxu0
        %2011 = vdwg.mxu0
        %v2013 = vsel %vm1965, %v1952, 0
        %v2016 = vsel %vm1965, %v1956, 0
        %2018 = vmatprep.subr.bf16.mxu0 0
        %2019 = vmatpush1.bf16.xpose.msra.mxu0 %v2016
        %2020 = vmatprep.subr.bf16.mxu0 0
        %2021 = vmatpush1.bf16.xpose.msra.mxu0 0
        %2022 = vmatprep.subr.bf16.mxu0 0
        %2023 = vmatpush1.bf16.xpose.msra.mxu0 0
        %2024 = vmatprep.subr.bf16.mxu0 0
        %2025 = vmatpush1.bf16.xpose.msra.mxu0 0
        %2026 = vmatprep.subr.bf16.mxu0 0
        %2027 = vmatpush1.bf16.xpose.msra.mxu0 0
        %2028 = vmatprep.subr.bf16.mxu0 0
        %2029 = vmatpush1.bf16.xpose.msra.mxu0 0
        %2030 = vmatprep.subr.bf16.mxu0 0
        %2031 = vmatpush1.bf16.xpose.msra.mxu0 0
        %2032 = vmatprep.subr.bf16.mxu0 0
        %2033 = vmatpush1.bf16.xpose.msra.mxu0 0
        %2034 = vmatprep.subr.bf16.mxu0 0
        %2035 = vmatpush1.bf16.xpose.msra.mxu0 0
        %2036 = vmatprep.subr.bf16.mxu0 0
        %2037 = vmatpush1.bf16.xpose.msra.mxu0 0
        %2038 = vmatprep.subr.bf16.mxu0 0
        %2039 = vmatpush1.bf16.xpose.msra.mxu0 0
        %2040 = vmatprep.subr.bf16.mxu0 0
        %2041 = vmatpush1.bf16.xpose.msra.mxu0 0
        %2042 = vmatprep.subr.bf16.mxu0 0
        %2043 = vmatpush1.bf16.xpose.msra.mxu0 0
        %2044 = vmatprep.subr.bf16.mxu0 0
        %2045 = vmatpush1.bf16.xpose.msra.mxu0 0
        %2046 = vmatprep.subr.bf16.mxu0 0
        %2047 = vmatpush1.bf16.xpose.msra.mxu0 0
        %2048 = vmatprep.subr.bf16.mxu0 0
        %2049 = vmatpush1.bf16.xpose.msra.mxu0 0
        %2050 = vmatprep.mubr.bf16.mxu0 0
        %2051 = vmatmul.mubr.bf16.gmra.mrb[0].mxu0 %v2013
        %v2052 = vpop.f32.mrb[0].mxu0
        %v2053 = vadd.f32 %v1963, %v2052
        %v2054 = vpop.f32.mrb[0].mxu0
        %v2055 = vpop.f32.mrb[0].mxu0
        %v2056 = vpop.f32.mrb[0].mxu0
        %2057 = vdwg.mxu0
        %v2059 = vsel %vm1965, %v1953, 0
        %v2062 = vsel %vm1965, %v1957, 0
        %2064 = vmatprep.subr.bf16.mxu0 0
        %2065 = vmatpush1.bf16.xpose.msra.mxu0 %v2062
        %2066 = vmatprep.subr.bf16.mxu0 0
        %2067 = vmatpush1.bf16.xpose.msra.mxu0 0
        %2068 = vmatprep.subr.bf16.mxu0 0
        %2069 = vmatpush1.bf16.xpose.msra.mxu0 0
        %2070 = vmatprep.subr.bf16.mxu0 0
        %2071 = vmatpush1.bf16.xpose.msra.mxu0 0
        %2072 = vmatprep.subr.bf16.mxu0 0
        %2073 = vmatpush1.bf16.xpose.msra.mxu0 0
        %2074 = vmatprep.subr.bf16.mxu0 0
        %2075 = vmatpush1.bf16.xpose.msra.mxu0 0
        %2076 = vmatprep.subr.bf16.mxu0 0
        %2077 = vmatpush1.bf16.xpose.msra.mxu0 0
        %2078 = vmatprep.subr.bf16.mxu0 0
        %2079 = vmatpush1.bf16.xpose.msra.mxu0 0
        %2080 = vmatprep.subr.bf16.mxu0 0
        %2081 = vmatpush1.bf16.xpose.msra.mxu0 0
        %2082 = vmatprep.subr.bf16.mxu0 0
        %2083 = vmatpush1.bf16.xpose.msra.mxu0 0
        %2084 = vmatprep.subr.bf16.mxu0 0
        %2085 = vmatpush1.bf16.xpose.msra.mxu0 0
        %2086 = vmatprep.subr.bf16.mxu0 0
        %2087 = vmatpush1.bf16.xpose.msra.mxu0 0
        %2088 = vmatprep.subr.bf16.mxu0 0
        %2089 = vmatpush1.bf16.xpose.msra.mxu0 0
        %2090 = vmatprep.subr.bf16.mxu0 0
        %2091 = vmatpush1.bf16.xpose.msra.mxu0 0
        %2092 = vmatprep.subr.bf16.mxu0 0
        %2093 = vmatpush1.bf16.xpose.msra.mxu0 0
        %2094 = vmatprep.subr.bf16.mxu0 0
        %2095 = vmatpush1.bf16.xpose.msra.mxu0 0
        %2096 = vmatprep.mubr.bf16.mxu0 0
        %2097 = vmatmul.mubr.bf16.gmra.mrb[0].mxu0 %v2059
        %v2098 = vpop.f32.mrb[0].mxu0
        %v2099 = vadd.f32 %v1963, %v2098
        %v2100 = vpop.f32.mrb[0].mxu0
        %v2101 = vpop.f32.mrb[0].mxu0
        %v2102 = vpop.f32.mrb[0].mxu0
        %2103 = vdwg.mxu0
        %v2105 = vsel %vm1965, %v1954, 0
        %v2108 = vsel %vm1965, %v1958, 0
        %2110 = vmatprep.subr.bf16.mxu0 0
        %2111 = vmatpush1.bf16.xpose.msra.mxu0 %v2108
        %2112 = vmatprep.subr.bf16.mxu0 0
        %2113 = vmatpush1.bf16.xpose.msra.mxu0 0
        %2114 = vmatprep.subr.bf16.mxu0 0
        %2115 = vmatpush1.bf16.xpose.msra.mxu0 0
        %2116 = vmatprep.subr.bf16.mxu0 0
        %2117 = vmatpush1.bf16.xpose.msra.mxu0 0
        %2118 = vmatprep.subr.bf16.mxu0 0
        %2119 = vmatpush1.bf16.xpose.msra.mxu0 0
        %2120 = vmatprep.subr.bf16.mxu0 0
        %2121 = vmatpush1.bf16.xpose.msra.mxu0 0
        %2122 = vmatprep.subr.bf16.mxu0 0
        %2123 = vmatpush1.bf16.xpose.msra.mxu0 0
        %2124 = vmatprep.subr.bf16.mxu0 0
        %2125 = vmatpush1.bf16.xpose.msra.mxu0 0
        %2126 = vmatprep.subr.bf16.mxu0 0
        %2127 = vmatpush1.bf16.xpose.msra.mxu0 0
        %2128 = vmatprep.subr.bf16.mxu0 0
        %2129 = vmatpush1.bf16.xpose.msra.mxu0 0
        %2130 = vmatprep.subr.bf16.mxu0 0
        %2131 = vmatpush1.bf16.xpose.msra.mxu0 0
        %2132 = vmatprep.subr.bf16.mxu0 0
        %2133 = vmatpush1.bf16.xpose.msra.mxu0 0
        %2134 = vmatprep.subr.bf16.mxu0 0
        %2135 = vmatpush1.bf16.xpose.msra.mxu0 0
        %2136 = vmatprep.subr.bf16.mxu0 0
        %2137 = vmatpush1.bf16.xpose.msra.mxu0 0
        %2138 = vmatprep.subr.bf16.mxu0 0
        %2139 = vmatpush1.bf16.xpose.msra.mxu0 0
        %2140 = vmatprep.subr.bf16.mxu0 0
        %2141 = vmatpush1.bf16.xpose.msra.mxu0 0
        %2142 = vmatprep.mubr.bf16.mxu0 0
        %2143 = vmatmul.mubr.bf16.gmra.mrb[0].mxu0 %v2105
        %v2144 = vpop.f32.mrb[0].mxu0
        %v2145 = vadd.f32 %v1963, %v2144
        %v2146 = vpop.f32.mrb[0].mxu0
        %v2147 = vpop.f32.mrb[0].mxu0
        %v2148 = vpop.f32.mrb[0].mxu0
        %2149 = vdwg.mxu0
        %v2150 = vsel %vm1965, %v2007, -inf
        %2151 = vmax.xlane.f32.xlu0 %v2150
        %v2152 = vpop.xlane.xlu0 %2151
        %v2153 = vsel %vm1965, %v2053, -inf
        %2154 = vmax.xlane.f32.xlu0 %v2153
        %v2155 = vpop.xlane.xlu0 %2154
        %v2156 = vsel %vm1965, %v2099, -inf
        %2157 = vmax.xlane.f32.xlu0 %v2156
        %v2158 = vpop.xlane.xlu0 %2157
        %v2159 = vsel %vm1965, %v2145, -inf
        %2160 = vmax.xlane.f32.xlu0 %v2159
        %v2161 = vpop.xlane.xlu0 %2160
        %v2162 = vsub.f32 %v2007, %v2152
        %v2163 = vsub.f32 %v2053, %v2155
        %v2164 = vsub.f32 %v2099, %v2158
        %v2165 = vsub.f32 %v2145, %v2161
        %v2166 = vmul.f32 %v2162, 1.442695
        %v2167 = vpow.pop %v2166
        %v2168 = vmul.f32 %v2163, 1.442695
        %v2169 = vpow.pop %v2168
        %v2170 = vmul.f32 %v2164, 1.442695
        %v2171 = vpow.pop %v2170
        %v2172 = vmul.f32 %v2165, 1.442695
        %v2173 = vpow.pop %v2172
        %v2174 = vsel %vm1965, %v2167, 0.0
        %2175 = vadd.xlane.f32.xlu0 %v2174
        %v2176 = vpop.xlane.xlu0 %2175
        %v2177 = vsel %vm1965, %v2169, 0.0
        %2178 = vadd.xlane.f32.xlu0 %v2177
        %v2179 = vpop.xlane.xlu0 %2178
        %v2180 = vsel %vm1965, %v2171, 0.0
        %2181 = vadd.xlane.f32.xlu0 %v2180
        %v2182 = vpop.xlane.xlu0 %2181
        %v2183 = vsel %vm1965, %v2173, 0.0
        %2184 = vadd.xlane.f32.xlu0 %v2183
        %v2185 = vpop.xlane.xlu0 %2184
        %v2186 = vpack.c.bf16 %v2167, %v2167
        %v2187 = vpack.c.bf16 %v2169, %v2169
        %v2188 = vpack.c.bf16 %v2171, %v2171
        %v2189 = vpack.c.bf16 %v2173, %v2173
        %v2190 = vpack.c.bf16 %v1786, %v1786
        %v2191 = vpack.c.bf16 %v1838, %v1838
        %v2192 = vpack.c.bf16 %v1890, %v1890
        %v2193 = vpack.c.bf16 %v1942, %v1942
        %v2195 = vsel %vm1965, %v2186, 0
        %vm2197 = vcmask 1043456
        %v2199 = vsel %vm2197, %v2190, 0
        %2201 = vmatprep.subr.bf16.mxu0 0
        %2202 = vmatpush1.bf16.msra.mxu0 %v2199
        %2203 = vmatprep.subr.bf16.mxu0 0
        %2204 = vmatpush1.bf16.msra.mxu0 0
        %2205 = vmatprep.subr.bf16.mxu0 0
        %2206 = vmatpush1.bf16.msra.mxu0 0
        %2207 = vmatprep.subr.bf16.mxu0 0
        %2208 = vmatpush1.bf16.msra.mxu0 0
        %2209 = vmatprep.subr.bf16.mxu0 0
        %2210 = vmatpush1.bf16.msra.mxu0 0
        %2211 = vmatprep.subr.bf16.mxu0 0
        %2212 = vmatpush1.bf16.msra.mxu0 0
        %2213 = vmatprep.subr.bf16.mxu0 0
        %2214 = vmatpush1.bf16.msra.mxu0 0
        %2215 = vmatprep.subr.bf16.mxu0 0
        %2216 = vmatpush1.bf16.msra.mxu0 0
        %2217 = vmatprep.subr.bf16.mxu0 0
        %2218 = vmatpush1.bf16.msra.mxu0 0
        %2219 = vmatprep.subr.bf16.mxu0 0
        %2220 = vmatpush1.bf16.msra.mxu0 0
        %2221 = vmatprep.subr.bf16.mxu0 0
        %2222 = vmatpush1.bf16.msra.mxu0 0
        %2223 = vmatprep.subr.bf16.mxu0 0
        %2224 = vmatpush1.bf16.msra.mxu0 0
        %2225 = vmatprep.subr.bf16.mxu0 0
        %2226 = vmatpush1.bf16.msra.mxu0 0
        %2227 = vmatprep.subr.bf16.mxu0 0
        %2228 = vmatpush1.bf16.msra.mxu0 0
        %2229 = vmatprep.subr.bf16.mxu0 0
        %2230 = vmatpush1.bf16.msra.mxu0 0
        %2231 = vmatprep.subr.bf16.mxu0 0
        %2232 = vmatpush1.bf16.msra.mxu0 0
        %2233 = vmatprep.mubr.bf16.mxu0 0
        %2234 = vmatmul.mubr.bf16.gmra.mrb[0].mxu0 %v2195
        %v2235 = vpop.f32.mrb[0].mxu0
        %v2236 = vadd.f32 0.0, %v2235
        %v2237 = vpop.f32.mrb[0].mxu0
        %v2238 = vpop.f32.mrb[0].mxu0
        %v2239 = vpop.f32.mrb[0].mxu0
        %2240 = vdwg.mxu0
        %v2242 = vsel %vm1965, %v2187, 0
        %v2245 = vsel %vm2197, %v2191, 0
        %2247 = vmatprep.subr.bf16.mxu0 0
        %2248 = vmatpush1.bf16.msra.mxu0 %v2245
        %2249 = vmatprep.subr.bf16.mxu0 0
        %2250 = vmatpush1.bf16.msra.mxu0 0
        %2251 = vmatprep.subr.bf16.mxu0 0
        %2252 = vmatpush1.bf16.msra.mxu0 0
        %2253 = vmatprep.subr.bf16.mxu0 0
        %2254 = vmatpush1.bf16.msra.mxu0 0
        %2255 = vmatprep.subr.bf16.mxu0 0
        %2256 = vmatpush1.bf16.msra.mxu0 0
        %2257 = vmatprep.subr.bf16.mxu0 0
        %2258 = vmatpush1.bf16.msra.mxu0 0
        %2259 = vmatprep.subr.bf16.mxu0 0
        %2260 = vmatpush1.bf16.msra.mxu0 0
        %2261 = vmatprep.subr.bf16.mxu0 0
        %2262 = vmatpush1.bf16.msra.mxu0 0
        %2263 = vmatprep.subr.bf16.mxu0 0
        %2264 = vmatpush1.bf16.msra.mxu0 0
        %2265 = vmatprep.subr.bf16.mxu0 0
        %2266 = vmatpush1.bf16.msra.mxu0 0
        %2267 = vmatprep.subr.bf16.mxu0 0
        %2268 = vmatpush1.bf16.msra.mxu0 0
        %2269 = vmatprep.subr.bf16.mxu0 0
        %2270 = vmatpush1.bf16.msra.mxu0 0
        %2271 = vmatprep.subr.bf16.mxu0 0
        %2272 = vmatpush1.bf16.msra.mxu0 0
        %2273 = vmatprep.subr.bf16.mxu0 0
        %2274 = vmatpush1.bf16.msra.mxu0 0
        %2275 = vmatprep.subr.bf16.mxu0 0
        %2276 = vmatpush1.bf16.msra.mxu0 0
        %2277 = vmatprep.subr.bf16.mxu0 0
        %2278 = vmatpush1.bf16.msra.mxu0 0
        %2279 = vmatprep.mubr.bf16.mxu0 0
        %2280 = vmatmul.mubr.bf16.gmra.mrb[0].mxu0 %v2242
        %v2281 = vpop.f32.mrb[0].mxu0
        %v2282 = vadd.f32 0.0, %v2281
        %v2283 = vpop.f32.mrb[0].mxu0
        %v2284 = vpop.f32.mrb[0].mxu0
        %v2285 = vpop.f32.mrb[0].mxu0
        %2286 = vdwg.mxu0
        %v2288 = vsel %vm1965, %v2188, 0
        %v2291 = vsel %vm2197, %v2192, 0
        %2293 = vmatprep.subr.bf16.mxu0 0
        %2294 = vmatpush1.bf16.msra.mxu0 %v2291
        %2295 = vmatprep.subr.bf16.mxu0 0
        %2296 = vmatpush1.bf16.msra.mxu0 0
        %2297 = vmatprep.subr.bf16.mxu0 0
        %2298 = vmatpush1.bf16.msra.mxu0 0
        %2299 = vmatprep.subr.bf16.mxu0 0
        %2300 = vmatpush1.bf16.msra.mxu0 0
        %2301 = vmatprep.subr.bf16.mxu0 0
        %2302 = vmatpush1.bf16.msra.mxu0 0
        %2303 = vmatprep.subr.bf16.mxu0 0
        %2304 = vmatpush1.bf16.msra.mxu0 0
        %2305 = vmatprep.subr.bf16.mxu0 0
        %2306 = vmatpush1.bf16.msra.mxu0 0
        %2307 = vmatprep.subr.bf16.mxu0 0
        %2308 = vmatpush1.bf16.msra.mxu0 0
        %2309 = vmatprep.subr.bf16.mxu0 0
        %2310 = vmatpush1.bf16.msra.mxu0 0
        %2311 = vmatprep.subr.bf16.mxu0 0
        %2312 = vmatpush1.bf16.msra.mxu0 0
        %2313 = vmatprep.subr.bf16.mxu0 0
        %2314 = vmatpush1.bf16.msra.mxu0 0
        %2315 = vmatprep.subr.bf16.mxu0 0
        %2316 = vmatpush1.bf16.msra.mxu0 0
        %2317 = vmatprep.subr.bf16.mxu0 0
        %2318 = vmatpush1.bf16.msra.mxu0 0
        %2319 = vmatprep.subr.bf16.mxu0 0
        %2320 = vmatpush1.bf16.msra.mxu0 0
        %2321 = vmatprep.subr.bf16.mxu0 0
        %2322 = vmatpush1.bf16.msra.mxu0 0
        %2323 = vmatprep.subr.bf16.mxu0 0
        %2324 = vmatpush1.bf16.msra.mxu0 0
        %2325 = vmatprep.mubr.bf16.mxu0 0
        %2326 = vmatmul.mubr.bf16.gmra.mrb[0].mxu0 %v2288
        %v2327 = vpop.f32.mrb[0].mxu0
        %v2328 = vadd.f32 0.0, %v2327
        %v2329 = vpop.f32.mrb[0].mxu0
        %v2330 = vpop.f32.mrb[0].mxu0
        %v2331 = vpop.f32.mrb[0].mxu0
        %2332 = vdwg.mxu0
        %v2334 = vsel %vm1965, %v2189, 0
        %v2337 = vsel %vm2197, %v2193, 0
        %2339 = vmatprep.subr.bf16.mxu0 0
        %2340 = vmatpush1.bf16.msra.mxu0 %v2337
        %2341 = vmatprep.subr.bf16.mxu0 0
        %2342 = vmatpush1.bf16.msra.mxu0 0
        %2343 = vmatprep.subr.bf16.mxu0 0
        %2344 = vmatpush1.bf16.msra.mxu0 0
        %2345 = vmatprep.subr.bf16.mxu0 0
        %2346 = vmatpush1.bf16.msra.mxu0 0
        %2347 = vmatprep.subr.bf16.mxu0 0
        %2348 = vmatpush1.bf16.msra.mxu0 0
        %2349 = vmatprep.subr.bf16.mxu0 0
        %2350 = vmatpush1.bf16.msra.mxu0 0
        %2351 = vmatprep.subr.bf16.mxu0 0
        %2352 = vmatpush1.bf16.msra.mxu0 0
        %2353 = vmatprep.subr.bf16.mxu0 0
        %2354 = vmatpush1.bf16.msra.mxu0 0
        %2355 = vmatprep.subr.bf16.mxu0 0
        %2356 = vmatpush1.bf16.msra.mxu0 0
        %2357 = vmatprep.subr.bf16.mxu0 0
        %2358 = vmatpush1.bf16.msra.mxu0 0
        %2359 = vmatprep.subr.bf16.mxu0 0
        %2360 = vmatpush1.bf16.msra.mxu0 0
        %2361 = vmatprep.subr.bf16.mxu0 0
        %2362 = vmatpush1.bf16.msra.mxu0 0
        %2363 = vmatprep.subr.bf16.mxu0 0
        %2364 = vmatpush1.bf16.msra.mxu0 0
        %2365 = vmatprep.subr.bf16.mxu0 0
        %2366 = vmatpush1.bf16.msra.mxu0 0
        %2367 = vmatprep.subr.bf16.mxu0 0
        %2368 = vmatpush1.bf16.msra.mxu0 0
        %2369 = vmatprep.subr.bf16.mxu0 0
        %2370 = vmatpush1.bf16.msra.mxu0 0
        %2371 = vmatprep.mubr.bf16.mxu0 0
        %2372 = vmatmul.mubr.bf16.gmra.mrb[0].mxu0 %v2334
        %v2373 = vpop.f32.mrb[0].mxu0
        %v2374 = vadd.f32 0.0, %v2373
        %v2375 = vpop.f32.mrb[0].mxu0
        %v2376 = vpop.f32.mrb[0].mxu0
        %v2377 = vpop.f32.mrb[0].mxu0
        %2378 = vdwg.mxu0
        %v2379 = vrcp.pop %v2176
        %v2380 = vrcp.pop %v2179
        %v2381 = vrcp.pop %v2182
        %v2382 = vrcp.pop %v2185
        %v2383 = vmul.f32 %v2236, %v2379
        %v2384 = vmul.f32 %v2282, %v2380
        %v2385 = vmul.f32 %v2328, %v2381
        %v2386 = vmul.f32 %v2374, %v2382
        %v2387 = vpack.c.bf16 %v2383, %v2383
        %v2388 = vpack.c.bf16 %v2384, %v2384
        %v2389 = vpack.c.bf16 %v2385, %v2385
        %v2390 = vpack.c.bf16 %v2386, %v2386
        %v2391 = vld [vmem:[%s23] sm:$0xf]
        %v2392 = vld [vmem:[%s23 + $0x4] sm:$0xf]
        %v2393 = vld [vmem:[%s23 + $0x8] sm:$0xf]
        %v2394 = vld [vmem:[%s23 + $0xc] sm:$0xf]
        %v2396 = vsel %vm1965, %v2387, 0
        %v2399 = vsel %vm2197, %v2391, 0
        %2401 = vmatprep.subr.bf16.mxu0 0
        %2402 = vmatpush1.bf16.msra.mxu0 %v2399
        %2403 = vmatprep.subr.bf16.mxu0 0
        %2404 = vmatpush1.bf16.msra.mxu0 0
        %2405 = vmatprep.subr.bf16.mxu0 0
        %2406 = vmatpush1.bf16.msra.mxu0 0
        %2407 = vmatprep.subr.bf16.mxu0 0
        %2408 = vmatpush1.bf16.msra.mxu0 0
        %2409 = vmatprep.subr.bf16.mxu0 0
        %2410 = vmatpush1.bf16.msra.mxu0 0
        %2411 = vmatprep.subr.bf16.mxu0 0
        %2412 = vmatpush1.bf16.msra.mxu0 0
        %2413 = vmatprep.subr.bf16.mxu0 0
        %2414 = vmatpush1.bf16.msra.mxu0 0
        %2415 = vmatprep.subr.bf16.mxu0 0
        %2416 = vmatpush1.bf16.msra.mxu0 0
        %2417 = vmatprep.subr.bf16.mxu0 0
        %2418 = vmatpush1.bf16.msra.mxu0 0
        %2419 = vmatprep.subr.bf16.mxu0 0
        %2420 = vmatpush1.bf16.msra.mxu0 0
        %2421 = vmatprep.subr.bf16.mxu0 0
        %2422 = vmatpush1.bf16.msra.mxu0 0
        %2423 = vmatprep.subr.bf16.mxu0 0
        %2424 = vmatpush1.bf16.msra.mxu0 0
        %2425 = vmatprep.subr.bf16.mxu0 0
        %2426 = vmatpush1.bf16.msra.mxu0 0
        %2427 = vmatprep.subr.bf16.mxu0 0
        %2428 = vmatpush1.bf16.msra.mxu0 0
        %2429 = vmatprep.subr.bf16.mxu0 0
        %2430 = vmatpush1.bf16.msra.mxu0 0
        %2431 = vmatprep.subr.bf16.mxu0 0
        %2432 = vmatpush1.bf16.msra.mxu0 0
        %2433 = vmatprep.mubr.bf16.mxu0 0
        %2434 = vmatmul.mubr.bf16.gmra.mrb[0].mxu0 %v2396
        %v2435 = vpop.f32.mrb[0].mxu0
        %v2436 = vadd.f32 0.0, %v2435
        %v2437 = vpop.f32.mrb[0].mxu0
        %v2438 = vpop.f32.mrb[0].mxu0
        %v2439 = vpop.f32.mrb[0].mxu0
        %2440 = vdwg.mxu0
        %v2442 = vsel %vm1965, %v2388, 0
        %v2445 = vsel %vm2197, %v2392, 0
        %2447 = vmatprep.subr.bf16.mxu0 0
        %2448 = vmatpush1.bf16.msra.mxu0 %v2445
        %2449 = vmatprep.subr.bf16.mxu0 0
        %2450 = vmatpush1.bf16.msra.mxu0 0
        %2451 = vmatprep.subr.bf16.mxu0 0
        %2452 = vmatpush1.bf16.msra.mxu0 0
        %2453 = vmatprep.subr.bf16.mxu0 0
        %2454 = vmatpush1.bf16.msra.mxu0 0
        %2455 = vmatprep.subr.bf16.mxu0 0
        %2456 = vmatpush1.bf16.msra.mxu0 0
        %2457 = vmatprep.subr.bf16.mxu0 0
        %2458 = vmatpush1.bf16.msra.mxu0 0
        %2459 = vmatprep.subr.bf16.mxu0 0
        %2460 = vmatpush1.bf16.msra.mxu0 0
        %2461 = vmatprep.subr.bf16.mxu0 0
        %2462 = vmatpush1.bf16.msra.mxu0 0
        %2463 = vmatprep.subr.bf16.mxu0 0
        %2464 = vmatpush1.bf16.msra.mxu0 0
        %2465 = vmatprep.subr.bf16.mxu0 0
        %2466 = vmatpush1.bf16.msra.mxu0 0
        %2467 = vmatprep.subr.bf16.mxu0 0
        %2468 = vmatpush1.bf16.msra.mxu0 0
        %2469 = vmatprep.subr.bf16.mxu0 0
        %2470 = vmatpush1.bf16.msra.mxu0 0
        %2471 = vmatprep.subr.bf16.mxu0 0
        %2472 = vmatpush1.bf16.msra.mxu0 0
        %2473 = vmatprep.subr.bf16.mxu0 0
        %2474 = vmatpush1.bf16.msra.mxu0 0
        %2475 = vmatprep.subr.bf16.mxu0 0
        %2476 = vmatpush1.bf16.msra.mxu0 0
        %2477 = vmatprep.subr.bf16.mxu0 0
        %2478 = vmatpush1.bf16.msra.mxu0 0
        %2479 = vmatprep.mubr.bf16.mxu0 0
        %2480 = vmatmul.mubr.bf16.gmra.mrb[0].mxu0 %v2442
        %v2481 = vpop.f32.mrb[0].mxu0
        %v2482 = vadd.f32 0.0, %v2481
        %v2483 = vpop.f32.mrb[0].mxu0
        %v2484 = vpop.f32.mrb[0].mxu0
        %v2485 = vpop.f32.mrb[0].mxu0
        %2486 = vdwg.mxu0
        %v2488 = vsel %vm1965, %v2389, 0
        %v2491 = vsel %vm2197, %v2393, 0
        %2493 = vmatprep.subr.bf16.mxu0 0
        %2494 = vmatpush1.bf16.msra.mxu0 %v2491
        %2495 = vmatprep.subr.bf16.mxu0 0
        %2496 = vmatpush1.bf16.msra.mxu0 0
        %2497 = vmatprep.subr.bf16.mxu0 0
        %2498 = vmatpush1.bf16.msra.mxu0 0
        %2499 = vmatprep.subr.bf16.mxu0 0
        %2500 = vmatpush1.bf16.msra.mxu0 0
        %2501 = vmatprep.subr.bf16.mxu0 0
        %2502 = vmatpush1.bf16.msra.mxu0 0
        %2503 = vmatprep.subr.bf16.mxu0 0
        %2504 = vmatpush1.bf16.msra.mxu0 0
        %2505 = vmatprep.subr.bf16.mxu0 0
        %2506 = vmatpush1.bf16.msra.mxu0 0
        %2507 = vmatprep.subr.bf16.mxu0 0
        %2508 = vmatpush1.bf16.msra.mxu0 0
        %2509 = vmatprep.subr.bf16.mxu0 0
        %2510 = vmatpush1.bf16.msra.mxu0 0
        %2511 = vmatprep.subr.bf16.mxu0 0
        %2512 = vmatpush1.bf16.msra.mxu0 0
        %2513 = vmatprep.subr.bf16.mxu0 0
        %2514 = vmatpush1.bf16.msra.mxu0 0
        %2515 = vmatprep.subr.bf16.mxu0 0
        %2516 = vmatpush1.bf16.msra.mxu0 0
        %2517 = vmatprep.subr.bf16.mxu0 0
        %2518 = vmatpush1.bf16.msra.mxu0 0
        %2519 = vmatprep.subr.bf16.mxu0 0
        %2520 = vmatpush1.bf16.msra.mxu0 0
        %2521 = vmatprep.subr.bf16.mxu0 0
        %2522 = vmatpush1.bf16.msra.mxu0 0
        %2523 = vmatprep.subr.bf16.mxu0 0
        %2524 = vmatpush1.bf16.msra.mxu0 0
        %2525 = vmatprep.mubr.bf16.mxu0 0
        %2526 = vmatmul.mubr.bf16.gmra.mrb[0].mxu0 %v2488
        %v2527 = vpop.f32.mrb[0].mxu0
        %v2528 = vadd.f32 0.0, %v2527
        %v2529 = vpop.f32.mrb[0].mxu0
        %v2530 = vpop.f32.mrb[0].mxu0
        %v2531 = vpop.f32.mrb[0].mxu0
        %2532 = vdwg.mxu0
        %v2534 = vsel %vm1965, %v2390, 0
        %v2537 = vsel %vm2197, %v2394, 0
        %2539 = vmatprep.subr.bf16.mxu0 0
        %2540 = vmatpush1.bf16.msra.mxu0 %v2537
        %2541 = vmatprep.subr.bf16.mxu0 0
        %2542 = vmatpush1.bf16.msra.mxu0 0
        %2543 = vmatprep.subr.bf16.mxu0 0
        %2544 = vmatpush1.bf16.msra.mxu0 0
        %2545 = vmatprep.subr.bf16.mxu0 0
        %2546 = vmatpush1.bf16.msra.mxu0 0
        %2547 = vmatprep.subr.bf16.mxu0 0
        %2548 = vmatpush1.bf16.msra.mxu0 0
        %2549 = vmatprep.subr.bf16.mxu0 0
        %2550 = vmatpush1.bf16.msra.mxu0 0
        %2551 = vmatprep.subr.bf16.mxu0 0
        %2552 = vmatpush1.bf16.msra.mxu0 0
        %2553 = vmatprep.subr.bf16.mxu0 0
        %2554 = vmatpush1.bf16.msra.mxu0 0
        %2555 = vmatprep.subr.bf16.mxu0 0
        %2556 = vmatpush1.bf16.msra.mxu0 0
        %2557 = vmatprep.subr.bf16.mxu0 0
        %2558 = vmatpush1.bf16.msra.mxu0 0
        %2559 = vmatprep.subr.bf16.mxu0 0
        %2560 = vmatpush1.bf16.msra.mxu0 0
        %2561 = vmatprep.subr.bf16.mxu0 0
        %2562 = vmatpush1.bf16.msra.mxu0 0
        %2563 = vmatprep.subr.bf16.mxu0 0
        %2564 = vmatpush1.bf16.msra.mxu0 0
        %2565 = vmatprep.subr.bf16.mxu0 0
        %2566 = vmatpush1.bf16.msra.mxu0 0
        %2567 = vmatprep.subr.bf16.mxu0 0
        %2568 = vmatpush1.bf16.msra.mxu0 0
        %2569 = vmatprep.subr.bf16.mxu0 0
        %2570 = vmatpush1.bf16.msra.mxu0 0
        %2571 = vmatprep.mubr.bf16.mxu0 0
        %2572 = vmatmul.mubr.bf16.gmra.mrb[0].mxu0 %v2534
        %v2573 = vpop.f32.mrb[0].mxu0
        %v2574 = vadd.f32 0.0, %v2573
        %v2575 = vpop.f32.mrb[0].mxu0
        %v2576 = vpop.f32.mrb[0].mxu0
        %v2577 = vpop.f32.mrb[0].mxu0
        %2578 = vdwg.mxu0
        %v2579 = vadd.f32 %v2436, %v2482
        %v2580 = vadd.f32 %v2579, %v2528
        %v2581 = vadd.f32 %v2580, %v2574
        %v2582 = vld [vmem:[%s25] sm:$0x1]
        %v2584 = vlaneseq
        %v2585 = vshrl.u32 %v2584, 7
        %v2586 = vsub.s32 0, %v2585
        %v2587 = vrot.slane %v2582, %v2586
        %v2589 = vadd.f32 %v2581, %v2587
        %v2590 = vadd.f32 %v1185, %v2589
        %v2591 = vld [vmem:[%s27] sm:$0x1]
        %v2592 = vld [vmem:[%s29] sm:$0x1]
        %v2593 = vsel %vm1157, %v2590, 0.0
        %2594 = vadd.xlane.f32.xlu0 %v2593
        %v2595 = vpop.xlane.xlu0 %2594
        %v2596 = vmul.f32 %v2595, %v1161
        %v2597 = vsub.f32 %v2590, %v2596
        %v2598 = vmul.f32 %v2597, %v2597
        %v2599 = vsel %vm1157, %v2598, 0.0
        %2600 = vadd.xlane.f32.xlu0 %v2599
        %v2601 = vpop.xlane.xlu0 %2600
        %v2602 = vmul.f32 %v2601, %v1161
        %v2603 = vadd.f32 %v2602, 1e-12
        %v2604 = vrsqrt.pop %v2603
        %v2605 = vmul.f32 %v2597, %v2604
        %v2607 = vlaneseq
        %v2608 = vshrl.u32 %v2607, 7
        %v2609 = vsub.s32 0, %v2608
        %v2610 = vrot.slane %v2591, %v2609
        %v2612 = vmul.f32 %v2605, %v2610
        %v2614 = vlaneseq
        %v2615 = vshrl.u32 %v2614, 7
        %v2616 = vsub.s32 0, %v2615
        %v2617 = vrot.slane %v2592, %v2616
        %v2619 = vadd.f32 %v2612, %v2617
        %v2620 = vpack.c.bf16 %v2619, %v2619
        %v2621 = vld [vmem:[%s31] sm:$0xf]
        %v2622 = vld [vmem:[%s31 + $0x4] sm:$0xf]
        %v2623 = vld [vmem:[%s31 + $0x8] sm:$0xf]
        %v2624 = vld [vmem:[%s31 + $0xc] sm:$0xf]
        %v2625 = vld [vmem:[%s33] sm:$0x1]
        %v2627 = vlaneseq
        %v2628 = vshrl.u32 %v2627, 7
        %v2629 = vsub.s32 0, %v2628
        %v2630 = vrot.slane %v2625, %v2629
        %v2636 = vunpack.c.l.b16 %v2621
        %v2637 = vunpack.c.l.b16 %v2622
        %v2638 = vunpack.c.l.b16 %v2623
        %v2639 = vunpack.c.l.b16 %v2624
        %v2640 = vpack.c.b16 %v2637, %v2636
        %v2641 = vpack.c.b16 %v2639, %v2638
        %v2645 = vsel %vm1157, %v2620, 0
        %2647 = vmatprep.subr.bf16.mxu0 0
        %2648 = vmatpush1.bf16.msra.mxu0 %v2640
        %2649 = vmatprep.subr.bf16.mxu0 0
        %2650 = vmatpush1.bf16.msra.mxu0 %v2641
        %2651 = vmatprep.subr.bf16.mxu0 0
        %2652 = vmatpush1.bf16.msra.mxu0 0
        %2653 = vmatprep.subr.bf16.mxu0 0
        %2654 = vmatpush1.bf16.msra.mxu0 0
        %2655 = vmatprep.subr.bf16.mxu0 0
        %2656 = vmatpush1.bf16.msra.mxu0 0
        %2657 = vmatprep.subr.bf16.mxu0 0
        %2658 = vmatpush1.bf16.msra.mxu0 0
        %2659 = vmatprep.subr.bf16.mxu0 0
        %2660 = vmatpush1.bf16.msra.mxu0 0
        %2661 = vmatprep.subr.bf16.mxu0 0
        %2662 = vmatpush1.bf16.msra.mxu0 0
        %2663 = vmatprep.subr.bf16.mxu0 0
        %2664 = vmatpush1.bf16.msra.mxu0 0
        %2665 = vmatprep.subr.bf16.mxu0 0
        %2666 = vmatpush1.bf16.msra.mxu0 0
        %2667 = vmatprep.subr.bf16.mxu0 0
        %2668 = vmatpush1.bf16.msra.mxu0 0
        %2669 = vmatprep.subr.bf16.mxu0 0
        %2670 = vmatpush1.bf16.msra.mxu0 0
        %2671 = vmatprep.subr.bf16.mxu0 0
        %2672 = vmatpush1.bf16.msra.mxu0 0
        %2673 = vmatprep.subr.bf16.mxu0 0
        %2674 = vmatpush1.bf16.msra.mxu0 0
        %2675 = vmatprep.subr.bf16.mxu0 0
        %2676 = vmatpush1.bf16.msra.mxu0 0
        %2677 = vmatprep.subr.bf16.mxu0 0
        %2678 = vmatpush1.bf16.msra.mxu0 0
        %2679 = vmatprep.mubr.bf16.mxu0 0
        %2680 = vmatmul.mubr.bf16.gmra.mrb[0].mxu0 %v2645
        %v2681 = vpop.f32.mrb[0].mxu0
        %v2682 = vadd.f32 %v2630, %v2681
        %v2683 = vpop.f32.mrb[0].mxu0
        %v2684 = vpop.f32.mrb[0].mxu0
        %v2685 = vpop.f32.mrb[0].mxu0
        %2686 = vdwg.mxu0
        %v2687 = vmul.f32 %v2682, 0.5
        %v2688 = vmul.f32 %v2682, 0.044715
        %v2689 = vmul.f32 %v2688, %v2682
        %v2690 = vmul.f32 %v2689, %v2682
        %v2691 = vadd.f32 %v2682, %v2690
        %v2692 = vmul.f32 %v2691, 0.7978846
        %v2693 = vtanh.pop %v2692
        %v2694 = vadd.f32 %v2693, 1.0
        %v2695 = vmul.f32 %v2687, %v2694
        %v2696 = vpack.c.bf16 %v2695, %v2695
        %v2697 = vld [vmem:[%s35] sm:$0xf]
        %v2698 = vld [vmem:[%s35 + $0x4] sm:$0xf]
        %v2699 = vld [vmem:[%s35 + $0x8] sm:$0xf]
        %v2700 = vld [vmem:[%s35 + $0xc] sm:$0xf]
        %v2701 = vld [vmem:[%s35 + $0x10] sm:$0xf]
        %v2702 = vld [vmem:[%s35 + $0x14] sm:$0xf]
        %v2703 = vld [vmem:[%s35 + $0x18] sm:$0xf]
        %v2704 = vld [vmem:[%s35 + $0x1c] sm:$0xf]
        %v2705 = vld [vmem:[%s37] sm:$0x1]
        %v2707 = vlaneseq
        %v2708 = vshrl.u32 %v2707, 7
        %v2709 = vsub.s32 0, %v2708
        %v2710 = vrot.slane %v2705, %v2709
        %v2720 = vunpack.c.l.b16 %v2697
        %v2721 = vunpack.c.l.b16 %v2698
        %v2722 = vunpack.c.l.b16 %v2699
        %v2723 = vunpack.c.l.b16 %v2700
        %v2724 = vunpack.c.l.b16 %v2701
        %v2725 = vunpack.c.l.b16 %v2702
        %v2726 = vunpack.c.l.b16 %v2703
        %v2727 = vunpack.c.l.b16 %v2704
        %v2728 = vpack.c.b16 %v2721, %v2720
        %v2729 = vpack.c.b16 %v2723, %v2722
        %v2730 = vpack.c.b16 %v2725, %v2724
        %v2731 = vpack.c.b16 %v2727, %v2726
        %vm2736 = vcmask 523264
        %v2738 = vsel %vm2736, %v2696, 0
        %2740 = vmatprep.subr.bf16.mxu0 0
        %2741 = vmatpush1.bf16.msra.mxu0 %v2728
        %2742 = vmatprep.subr.bf16.mxu0 0
        %2743 = vmatpush1.bf16.msra.mxu0 %v2729
        %2744 = vmatprep.subr.bf16.mxu0 0
        %2745 = vmatpush1.bf16.msra.mxu0 %v2730
        %2746 = vmatprep.subr.bf16.mxu0 0
        %2747 = vmatpush1.bf16.msra.mxu0 %v2731
        %2748 = vmatprep.subr.bf16.mxu0 0
        %2749 = vmatpush1.bf16.msra.mxu0 0
        %2750 = vmatprep.subr.bf16.mxu0 0
        %2751 = vmatpush1.bf16.msra.mxu0 0
        %2752 = vmatprep.subr.bf16.mxu0 0
        %2753 = vmatpush1.bf16.msra.mxu0 0
        %2754 = vmatprep.subr.bf16.mxu0 0
        %2755 = vmatpush1.bf16.msra.mxu0 0
        %2756 = vmatprep.subr.bf16.mxu0 0
        %2757 = vmatpush1.bf16.msra.mxu0 0
        %2758 = vmatprep.subr.bf16.mxu0 0
        %2759 = vmatpush1.bf16.msra.mxu0 0
        %2760 = vmatprep.subr.bf16.mxu0 0
        %2761 = vmatpush1.bf16.msra.mxu0 0
        %2762 = vmatprep.subr.bf16.mxu0 0
        %2763 = vmatpush1.bf16.msra.mxu0 0
        %2764 = vmatprep.subr.bf16.mxu0 0
        %2765 = vmatpush1.bf16.msra.mxu0 0
        %2766 = vmatprep.subr.bf16.mxu0 0
        %2767 = vmatpush1.bf16.msra.mxu0 0
        %2768 = vmatprep.subr.bf16.mxu0 0
        %2769 = vmatpush1.bf16.msra.mxu0 0
        %2770 = vmatprep.subr.bf16.mxu0 0
        %2771 = vmatpush1.bf16.msra.mxu0 0
        %2772 = vmatprep.mubr.bf16.mxu0 0
        %2773 = vmatmul.mubr.bf16.gmra.mrb[0].mxu0 %v2738
        %v2774 = vpop.f32.mrb[0].mxu0
        %v2775 = vadd.f32 %v2710, %v2774
        %v2776 = vpop.f32.mrb[0].mxu0
        %v2777 = vpop.f32.mrb[0].mxu0
        %v2778 = vpop.f32.mrb[0].mxu0
        %2779 = vdwg.mxu0
        %v2780 = vadd.f32 %v2619, %v2775
        %v2781 = vld [vmem:[%s39] sm:$0x1]
        %v2782 = vld [vmem:[%s41] sm:$0x1]
        %v2783 = vsel %vm1157, %v2780, 0.0
        %2784 = vadd.xlane.f32.xlu0 %v2783
        %v2785 = vpop.xlane.xlu0 %2784
        %v2786 = vmul.f32 %v2785, %v1161
        %v2787 = vsub.f32 %v2780, %v2786
        %v2788 = vmul.f32 %v2787, %v2787
        %v2789 = vsel %vm1157, %v2788, 0.0
        %2790 = vadd.xlane.f32.xlu0 %v2789
        %v2791 = vpop.xlane.xlu0 %2790
        %v2792 = vmul.f32 %v2791, %v1161
        %v2793 = vadd.f32 %v2792, 1e-12
        %v2794 = vrsqrt.pop %v2793
        %v2795 = vmul.f32 %v2787, %v2794
        %v2797 = vlaneseq
        %v2798 = vshrl.u32 %v2797, 7
        %v2799 = vsub.s32 0, %v2798
        %v2800 = vrot.slane %v2781, %v2799
        %v2802 = vmul.f32 %v2795, %v2800
        %v2804 = vlaneseq
        %v2805 = vshrl.u32 %v2804, 7
        %v2806 = vsub.s32 0, %v2805
        %v2807 = vrot.slane %v2782, %v2806
        %v2809 = vadd.f32 %v2802, %v2807
        %v2810 = vpack.c.bf16 %v2809, %v2809
        %v2811 = vld [vmem:[%s43] sm:$0xf]
        %v2812 = vld [vmem:[%s43 + $0x4] sm:$0xf]
        %v2813 = vld [vmem:[%s43 + $0x8] sm:$0xf]
        %v2814 = vld [vmem:[%s43 + $0xc] sm:$0xf]
        %v2815 = vld [vmem:[%s43 + $0x10] sm:$0xf]
        %v2816 = vld [vmem:[%s43 + $0x14] sm:$0xf]
        %v2817 = vld [vmem:[%s43 + $0x18] sm:$0xf]
        %v2818 = vld [vmem:[%s43 + $0x1c] sm:$0xf]
        %v2819 = vld [vmem:[%s43 + $0x20] sm:$0xf]
        %v2820 = vld [vmem:[%s43 + $0x24] sm:$0xf]
        %v2821 = vld [vmem:[%s43 + $0x28] sm:$0xf]
        %v2822 = vld [vmem:[%s43 + $0x2c] sm:$0xf]
        %v2823 = vld [vmem:[%s43 + $0x30] sm:$0xf]
        %v2824 = vld [vmem:[%s43 + $0x34] sm:$0xf]
        %v2825 = vld [vmem:[%s43 + $0x38] sm:$0xf]
        %v2826 = vld [vmem:[%s43 + $0x3c] sm:$0xf]
        %v2827 = vld [vmem:[%s45] sm:$0x1]
        %v2828 = vld [vmem:[%s45 + $0x1] sm:$0x1]
        %v2829 = vld [vmem:[%s45 + $0x2] sm:$0x1]
        %v2830 = vld [vmem:[%s45 + $0x3] sm:$0x1]
        %v2835 = vlaneseq
        %v2836 = vshrl.u32 %v2835, 7
        %v2837 = vsub.s32 0, %v2836
        %v2838 = vrot.slane %v2827, %v2837
        %v2839 = vlaneseq
        %v2840 = vshrl.u32 %v2839, 7
        %v2841 = vsub.s32 0, %v2840
        %v2842 = vrot.slane %v2828, %v2841
        %v2843 = vlaneseq
        %v2844 = vshrl.u32 %v2843, 7
        %v2845 = vsub.s32 0, %v2844
        %v2846 = vrot.slane %v2829, %v2845
        %v2847 = vlaneseq
        %v2848 = vshrl.u32 %v2847, 7
        %v2849 = vsub.s32 0, %v2848
        %v2850 = vrot.slane %v2830, %v2849
        %v2859 = vunpack.c.l.b16 %v2811
        %v2860 = vunpack.c.l.b16 %v2812
        %v2861 = vunpack.c.l.b16 %v2813
        %v2862 = vunpack.c.l.b16 %v2814
        %v2863 = vpack.c.b16 %v2860, %v2859
        %v2864 = vpack.c.b16 %v2862, %v2861
        %v2868 = vsel %vm1157, %v2810, 0
        %2870 = vmatprep.subr.bf16.mxu0 0
        %2871 = vmatpush1.bf16.msra.mxu0 %v2863
        %2872 = vmatprep.subr.bf16.mxu0 0
        %2873 = vmatpush1.bf16.msra.mxu0 %v2864
        %2874 = vmatprep.subr.bf16.mxu0 0
        %2875 = vmatpush1.bf16.msra.mxu0 0
        %2876 = vmatprep.subr.bf16.mxu0 0
        %2877 = vmatpush1.bf16.msra.mxu0 0
        %2878 = vmatprep.subr.bf16.mxu0 0
        %2879 = vmatpush1.bf16.msra.mxu0 0
        %2880 = vmatprep.subr.bf16.mxu0 0
        %2881 = vmatpush1.bf16.msra.mxu0 0
        %2882 = vmatprep.subr.bf16.mxu0 0
        %2883 = vmatpush1.bf16.msra.mxu0 0
        %2884 = vmatprep.subr.bf16.mxu0 0
        %2885 = vmatpush1.bf16.msra.mxu0 0
        %2886 = vmatprep.subr.bf16.mxu0 0
        %2887 = vmatpush1.bf16.msra.mxu0 0
        %2888 = vmatprep.subr.bf16.mxu0 0
        %2889 = vmatpush1.bf16.msra.mxu0 0
        %2890 = vmatprep.subr.bf16.mxu0 0
        %2891 = vmatpush1.bf16.msra.mxu0 0
        %2892 = vmatprep.subr.bf16.mxu0 0
        %2893 = vmatpush1.bf16.msra.mxu0 0
        %2894 = vmatprep.subr.bf16.mxu0 0
        %2895 = vmatpush1.bf16.msra.mxu0 0
        %2896 = vmatprep.subr.bf16.mxu0 0
        %2897 = vmatpush1.bf16.msra.mxu0 0
        %2898 = vmatprep.subr.bf16.mxu0 0
        %2899 = vmatpush1.bf16.msra.mxu0 0
        %2900 = vmatprep.subr.bf16.mxu0 0
        %2901 = vmatpush1.bf16.msra.mxu0 0
        %2902 = vmatprep.mubr.bf16.mxu0 0
        %2903 = vmatmul.mubr.bf16.gmra.mrb[0].mxu0 %v2868
        %v2904 = vpop.f32.mrb[0].mxu0
        %v2905 = vadd.f32 %v2838, %v2904
        %v2906 = vpop.f32.mrb[0].mxu0
        %v2907 = vpop.f32.mrb[0].mxu0
        %v2908 = vpop.f32.mrb[0].mxu0
        %2909 = vdwg.mxu0
        %v2914 = vunpack.c.l.b16 %v2815
        %v2915 = vunpack.c.l.b16 %v2816
        %v2916 = vunpack.c.l.b16 %v2817
        %v2917 = vunpack.c.l.b16 %v2818
        %v2918 = vpack.c.b16 %v2915, %v2914
        %v2919 = vpack.c.b16 %v2917, %v2916
        %2922 = vmatprep.subr.bf16.mxu0 0
        %2923 = vmatpush1.bf16.msra.mxu0 %v2918
        %2924 = vmatprep.subr.bf16.mxu0 0
        %2925 = vmatpush1.bf16.msra.mxu0 %v2919
        %2926 = vmatprep.subr.bf16.mxu0 0
        %2927 = vmatpush1.bf16.msra.mxu0 0
        %2928 = vmatprep.subr.bf16.mxu0 0
        %2929 = vmatpush1.bf16.msra.mxu0 0
        %2930 = vmatprep.subr.bf16.mxu0 0
        %2931 = vmatpush1.bf16.msra.mxu0 0
        %2932 = vmatprep.subr.bf16.mxu0 0
        %2933 = vmatpush1.bf16.msra.mxu0 0
        %2934 = vmatprep.subr.bf16.mxu0 0
        %2935 = vmatpush1.bf16.msra.mxu0 0
        %2936 = vmatprep.subr.bf16.mxu0 0
        %2937 = vmatpush1.bf16.msra.mxu0 0
        %2938 = vmatprep.subr.bf16.mxu0 0
        %2939 = vmatpush1.bf16.msra.mxu0 0
        %2940 = vmatprep.subr.bf16.mxu0 0
        %2941 = vmatpush1.bf16.msra.mxu0 0
        %2942 = vmatprep.subr.bf16.mxu0 0
        %2943 = vmatpush1.bf16.msra.mxu0 0
        %2944 = vmatprep.subr.bf16.mxu0 0
        %2945 = vmatpush1.bf16.msra.mxu0 0
        %2946 = vmatprep.subr.bf16.mxu0 0
        %2947 = vmatpush1.bf16.msra.mxu0 0
        %2948 = vmatprep.subr.bf16.mxu0 0
        %2949 = vmatpush1.bf16.msra.mxu0 0
        %2950 = vmatprep.subr.bf16.mxu0 0
        %2951 = vmatpush1.bf16.msra.mxu0 0
        %2952 = vmatprep.subr.bf16.mxu0 0
        %2953 = vmatpush1.bf16.msra.mxu0 0
        %2954 = vmatprep.mubr.bf16.mxu0 0
        %2955 = vmatmul.mubr.bf16.gmra.mrb[0].mxu0 %v2868
        %v2956 = vpop.f32.mrb[0].mxu0
        %v2957 = vadd.f32 %v2842, %v2956
        %v2958 = vpop.f32.mrb[0].mxu0
        %v2959 = vpop.f32.mrb[0].mxu0
        %v2960 = vpop.f32.mrb[0].mxu0
        %2961 = vdwg.mxu0
        %v2966 = vunpack.c.l.b16 %v2819
        %v2967 = vunpack.c.l.b16 %v2820
        %v2968 = vunpack.c.l.b16 %v2821
        %v2969 = vunpack.c.l.b16 %v2822
        %v2970 = vpack.c.b16 %v2967, %v2966
        %v2971 = vpack.c.b16 %v2969, %v2968
        %2974 = vmatprep.subr.bf16.mxu0 0
        %2975 = vmatpush1.bf16.msra.mxu0 %v2970
        %2976 = vmatprep.subr.bf16.mxu0 0
        %2977 = vmatpush1.bf16.msra.mxu0 %v2971
        %2978 = vmatprep.subr.bf16.mxu0 0
        %2979 = vmatpush1.bf16.msra.mxu0 0
        %2980 = vmatprep.subr.bf16.mxu0 0
        %2981 = vmatpush1.bf16.msra.mxu0 0
        %2982 = vmatprep.subr.bf16.mxu0 0
        %2983 = vmatpush1.bf16.msra.mxu0 0
        %2984 = vmatprep.subr.bf16.mxu0 0
        %2985 = vmatpush1.bf16.msra.mxu0 0
        %2986 = vmatprep.subr.bf16.mxu0 0
        %2987 = vmatpush1.bf16.msra.mxu0 0
        %2988 = vmatprep.subr.bf16.mxu0 0
        %2989 = vmatpush1.bf16.msra.mxu0 0
        %2990 = vmatprep.subr.bf16.mxu0 0
        %2991 = vmatpush1.bf16.msra.mxu0 0
        %2992 = vmatprep.subr.bf16.mxu0 0
        %2993 = vmatpush1.bf16.msra.mxu0 0
        %2994 = vmatprep.subr.bf16.mxu0 0
        %2995 = vmatpush1.bf16.msra.mxu0 0
        %2996 = vmatprep.subr.bf16.mxu0 0
        %2997 = vmatpush1.bf16.msra.mxu0 0
        %2998 = vmatprep.subr.bf16.mxu0 0
        %2999 = vmatpush1.bf16.msra.mxu0 0
        %3000 = vmatprep.subr.bf16.mxu0 0
        %3001 = vmatpush1.bf16.msra.mxu0 0
        %3002 = vmatprep.subr.bf16.mxu0 0
        %3003 = vmatpush1.bf16.msra.mxu0 0
        %3004 = vmatprep.subr.bf16.mxu0 0
        %3005 = vmatpush1.bf16.msra.mxu0 0
        %3006 = vmatprep.mubr.bf16.mxu0 0
        %3007 = vmatmul.mubr.bf16.gmra.mrb[0].mxu0 %v2868
        %v3008 = vpop.f32.mrb[0].mxu0
        %v3009 = vadd.f32 %v2846, %v3008
        %v3010 = vpop.f32.mrb[0].mxu0
        %v3011 = vpop.f32.mrb[0].mxu0
        %v3012 = vpop.f32.mrb[0].mxu0
        %3013 = vdwg.mxu0
        %v3018 = vunpack.c.l.b16 %v2823
        %v3019 = vunpack.c.l.b16 %v2824
        %v3020 = vunpack.c.l.b16 %v2825
        %v3021 = vunpack.c.l.b16 %v2826
        %v3022 = vpack.c.b16 %v3019, %v3018
        %v3023 = vpack.c.b16 %v3021, %v3020
        %3026 = vmatprep.subr.bf16.mxu0 0
        %3027 = vmatpush1.bf16.msra.mxu0 %v3022
        %3028 = vmatprep.subr.bf16.mxu0 0
        %3029 = vmatpush1.bf16.msra.mxu0 %v3023
        %3030 = vmatprep.subr.bf16.mxu0 0
        %3031 = vmatpush1.bf16.msra.mxu0 0
        %3032 = vmatprep.subr.bf16.mxu0 0
        %3033 = vmatpush1.bf16.msra.mxu0 0
        %3034 = vmatprep.subr.bf16.mxu0 0
        %3035 = vmatpush1.bf16.msra.mxu0 0
        %3036 = vmatprep.subr.bf16.mxu0 0
        %3037 = vmatpush1.bf16.msra.mxu0 0
        %3038 = vmatprep.subr.bf16.mxu0 0
        %3039 = vmatpush1.bf16.msra.mxu0 0
        %3040 = vmatprep.subr.bf16.mxu0 0
        %3041 = vmatpush1.bf16.msra.mxu0 0
        %3042 = vmatprep.subr.bf16.mxu0 0
        %3043 = vmatpush1.bf16.msra.mxu0 0
        %3044 = vmatprep.subr.bf16.mxu0 0
        %3045 = vmatpush1.bf16.msra.mxu0 0
        %3046 = vmatprep.subr.bf16.mxu0 0
        %3047 = vmatpush1.bf16.msra.mxu0 0
        %3048 = vmatprep.subr.bf16.mxu0 0
        %3049 = vmatpush1.bf16.msra.mxu0 0
        %3050 = vmatprep.subr.bf16.mxu0 0
        %3051 = vmatpush1.bf16.msra.mxu0 0
        %3052 = vmatprep.subr.bf16.mxu0 0
        %3053 = vmatpush1.bf16.msra.mxu0 0
        %3054 = vmatprep.subr.bf16.mxu0 0
        %3055 = vmatpush1.bf16.msra.mxu0 0
        %3056 = vmatprep.subr.bf16.mxu0 0
        %3057 = vmatpush1.bf16.msra.mxu0 0
        %3058 = vmatprep.mubr.bf16.mxu0 0
        %3059 = vmatmul.mubr.bf16.gmra.mrb[0].mxu0 %v2868
        %v3060 = vpop.f32.mrb[0].mxu0
        %v3061 = vadd.f32 %v2850, %v3060
        %v3062 = vpop.f32.mrb[0].mxu0
        %v3063 = vpop.f32.mrb[0].mxu0
        %v3064 = vpop.f32.mrb[0].mxu0
        %3065 = vdwg.mxu0
        %v3066 = vld [vmem:[%s47] sm:$0xf]
        %v3067 = vld [vmem:[%s47 + $0x4] sm:$0xf]
        %v3068 = vld [vmem:[%s47 + $0x8] sm:$0xf]
        %v3069 = vld [vmem:[%s47 + $0xc] sm:$0xf]
        %v3070 = vld [vmem:[%s47 + $0x10] sm:$0xf]
        %v3071 = vld [vmem:[%s47 + $0x14] sm:$0xf]
        %v3072 = vld [vmem:[%s47 + $0x18] sm:$0xf]
        %v3073 = vld [vmem:[%s47 + $0x1c] sm:$0xf]
        %v3074 = vld [vmem:[%s47 + $0x20] sm:$0xf]
        %v3075 = vld [vmem:[%s47 + $0x24] sm:$0xf]
        %v3076 = vld [vmem:[%s47 + $0x28] sm:$0xf]
        %v3077 = vld [vmem:[%s47 + $0x2c] sm:$0xf]
        %v3078 = vld [vmem:[%s47 + $0x30] sm:$0xf]
        %v3079 = vld [vmem:[%s47 + $0x34] sm:$0xf]
        %v3080 = vld [vmem:[%s47 + $0x38] sm:$0xf]
        %v3081 = vld [vmem:[%s47 + $0x3c] sm:$0xf]
        %v3082 = vld [vmem:[%s49] sm:$0x1]
        %v3083 = vld [vmem:[%s49 + $0x1] sm:$0x1]
        %v3084 = vld [vmem:[%s49 + $0x2] sm:$0x1]
        %v3085 = vld [vmem:[%s49 + $0x3] sm:$0x1]
        %v3090 = vlaneseq
        %v3091 = vshrl.u32 %v3090, 7
        %v3092 = vsub.s32 0, %v3091
        %v3093 = vrot.slane %v3082, %v3092
        %v3094 = vlaneseq
        %v3095 = vshrl.u32 %v3094, 7
        %v3096 = vsub.s32 0, %v3095
        %v3097 = vrot.slane %v3083, %v3096
        %v3098 = vlaneseq
        %v3099 = vshrl.u32 %v3098, 7
        %v3100 = vsub.s32 0, %v3099
        %v3101 = vrot.slane %v3084, %v3100
        %v3102 = vlaneseq
        %v3103 = vshrl.u32 %v3102, 7
        %v3104 = vsub.s32 0, %v3103
        %v3105 = vrot.slane %v3085, %v3104
        %v3114 = vunpack.c.l.b16 %v3066
        %v3115 = vunpack.c.l.b16 %v3067
        %v3116 = vunpack.c.l.b16 %v3068
        %v3117 = vunpack.c.l.b16 %v3069
        %v3118 = vpack.c.b16 %v3115, %v3114
        %v3119 = vpack.c.b16 %v3117, %v3116
        %3122 = vmatprep.subr.bf16.mxu0 0
        %3123 = vmatpush1.bf16.msra.mxu0 %v3118
        %3124 = vmatprep.subr.bf16.mxu0 0
        %3125 = vmatpush1.bf16.msra.mxu0 %v3119
        %3126 = vmatprep.subr.bf16.mxu0 0
        %3127 = vmatpush1.bf16.msra.mxu0 0
        %3128 = vmatprep.subr.bf16.mxu0 0
        %3129 = vmatpush1.bf16.msra.mxu0 0
        %3130 = vmatprep.subr.bf16.mxu0 0
        %3131 = vmatpush1.bf16.msra.mxu0 0
        %3132 = vmatprep.subr.bf16.mxu0 0
        %3133 = vmatpush1.bf16.msra.mxu0 0
        %3134 = vmatprep.subr.bf16.mxu0 0
        %3135 = vmatpush1.bf16.msra.mxu0 0
        %3136 = vmatprep.subr.bf16.mxu0 0
        %3137 = vmatpush1.bf16.msra.mxu0 0
        %3138 = vmatprep.subr.bf16.mxu0 0
        %3139 = vmatpush1.bf16.msra.mxu0 0
        %3140 = vmatprep.subr.bf16.mxu0 0
        %3141 = vmatpush1.bf16.msra.mxu0 0
        %3142 = vmatprep.subr.bf16.mxu0 0
        %3143 = vmatpush1.bf16.msra.mxu0 0
        %3144 = vmatprep.subr.bf16.mxu0 0
        %3145 = vmatpush1.bf16.msra.mxu0 0
        %3146 = vmatprep.subr.bf16.mxu0 0
        %3147 = vmatpush1.bf16.msra.mxu0 0
        %3148 = vmatprep.subr.bf16.mxu0 0
        %3149 = vmatpush1.bf16.msra.mxu0 0
        %3150 = vmatprep.subr.bf16.mxu0 0
        %3151 = vmatpush1.bf16.msra.mxu0 0
        %3152 = vmatprep.subr.bf16.mxu0 0
        %3153 = vmatpush1.bf16.msra.mxu0 0
        %3154 = vmatprep.mubr.bf16.mxu0 0
        %3155 = vmatmul.mubr.bf16.gmra.mrb[0].mxu0 %v2868
        %v3156 = vpop.f32.mrb[0].mxu0
        %v3157 = vadd.f32 %v3093, %v3156
        %v3158 = vpop.f32.mrb[0].mxu0
        %v3159 = vpop.f32.mrb[0].mxu0
        %v3160 = vpop.f32.mrb[0].mxu0
        %3161 = vdwg.mxu0
        %v3166 = vunpack.c.l.b16 %v3070
        %v3167 = vunpack.c.l.b16 %v3071
        %v3168 = vunpack.c.l.b16 %v3072
        %v3169 = vunpack.c.l.b16 %v3073
        %v3170 = vpack.c.b16 %v3167, %v3166
        %v3171 = vpack.c.b16 %v3169, %v3168
        %3174 = vmatprep.subr.bf16.mxu0 0
        %3175 = vmatpush1.bf16.msra.mxu0 %v3170
        %3176 = vmatprep.subr.bf16.mxu0 0
        %3177 = vmatpush1.bf16.msra.mxu0 %v3171
        %3178 = vmatprep.subr.bf16.mxu0 0
        %3179 = vmatpush1.bf16.msra.mxu0 0
        %3180 = vmatprep.subr.bf16.mxu0 0
        %3181 = vmatpush1.bf16.msra.mxu0 0
        %3182 = vmatprep.subr.bf16.mxu0 0
        %3183 = vmatpush1.bf16.msra.mxu0 0
        %3184 = vmatprep.subr.bf16.mxu0 0
        %3185 = vmatpush1.bf16.msra.mxu0 0
        %3186 = vmatprep.subr.bf16.mxu0 0
        %3187 = vmatpush1.bf16.msra.mxu0 0
        %3188 = vmatprep.subr.bf16.mxu0 0
        %3189 = vmatpush1.bf16.msra.mxu0 0
        %3190 = vmatprep.subr.bf16.mxu0 0
        %3191 = vmatpush1.bf16.msra.mxu0 0
        %3192 = vmatprep.subr.bf16.mxu0 0
        %3193 = vmatpush1.bf16.msra.mxu0 0
        %3194 = vmatprep.subr.bf16.mxu0 0
        %3195 = vmatpush1.bf16.msra.mxu0 0
        %3196 = vmatprep.subr.bf16.mxu0 0
        %3197 = vmatpush1.bf16.msra.mxu0 0
        %3198 = vmatprep.subr.bf16.mxu0 0
        %3199 = vmatpush1.bf16.msra.mxu0 0
        %3200 = vmatprep.subr.bf16.mxu0 0
        %3201 = vmatpush1.bf16.msra.mxu0 0
        %3202 = vmatprep.subr.bf16.mxu0 0
        %3203 = vmatpush1.bf16.msra.mxu0 0
        %3204 = vmatprep.subr.bf16.mxu0 0
        %3205 = vmatpush1.bf16.msra.mxu0 0
        %3206 = vmatprep.mubr.bf16.mxu0 0
        %3207 = vmatmul.mubr.bf16.gmra.mrb[0].mxu0 %v2868
        %v3208 = vpop.f32.mrb[0].mxu0
        %v3209 = vadd.f32 %v3097, %v3208
        %v3210 = vpop.f32.mrb[0].mxu0
        %v3211 = vpop.f32.mrb[0].mxu0
        %v3212 = vpop.f32.mrb[0].mxu0
        %3213 = vdwg.mxu0
        %v3218 = vunpack.c.l.b16 %v3074
        %v3219 = vunpack.c.l.b16 %v3075
        %v3220 = vunpack.c.l.b16 %v3076
        %v3221 = vunpack.c.l.b16 %v3077
        %v3222 = vpack.c.b16 %v3219, %v3218
        %v3223 = vpack.c.b16 %v3221, %v3220
        %3226 = vmatprep.subr.bf16.mxu0 0
        %3227 = vmatpush1.bf16.msra.mxu0 %v3222
        %3228 = vmatprep.subr.bf16.mxu0 0
        %3229 = vmatpush1.bf16.msra.mxu0 %v3223
        %3230 = vmatprep.subr.bf16.mxu0 0
        %3231 = vmatpush1.bf16.msra.mxu0 0
        %3232 = vmatprep.subr.bf16.mxu0 0
        %3233 = vmatpush1.bf16.msra.mxu0 0
        %3234 = vmatprep.subr.bf16.mxu0 0
        %3235 = vmatpush1.bf16.msra.mxu0 0
        %3236 = vmatprep.subr.bf16.mxu0 0
        %3237 = vmatpush1.bf16.msra.mxu0 0
        %3238 = vmatprep.subr.bf16.mxu0 0
        %3239 = vmatpush1.bf16.msra.mxu0 0
        %3240 = vmatprep.subr.bf16.mxu0 0
        %3241 = vmatpush1.bf16.msra.mxu0 0
        %3242 = vmatprep.subr.bf16.mxu0 0
        %3243 = vmatpush1.bf16.msra.mxu0 0
        %3244 = vmatprep.subr.bf16.mxu0 0
        %3245 = vmatpush1.bf16.msra.mxu0 0
        %3246 = vmatprep.subr.bf16.mxu0 0
        %3247 = vmatpush1.bf16.msra.mxu0 0
        %3248 = vmatprep.subr.bf16.mxu0 0
        %3249 = vmatpush1.bf16.msra.mxu0 0
        %3250 = vmatprep.subr.bf16.mxu0 0
        %3251 = vmatpush1.bf16.msra.mxu0 0
        %3252 = vmatprep.subr.bf16.mxu0 0
        %3253 = vmatpush1.bf16.msra.mxu0 0
        %3254 = vmatprep.subr.bf16.mxu0 0
        %3255 = vmatpush1.bf16.msra.mxu0 0
        %3256 = vmatprep.subr.bf16.mxu0 0
        %3257 = vmatpush1.bf16.msra.mxu0 0
        %3258 = vmatprep.mubr.bf16.mxu0 0
        %3259 = vmatmul.mubr.bf16.gmra.mrb[0].mxu0 %v2868
        %v3260 = vpop.f32.mrb[0].mxu0
        %v3261 = vadd.f32 %v3101, %v3260
        %v3262 = vpop.f32.mrb[0].mxu0
        %v3263 = vpop.f32.mrb[0].mxu0
        %v3264 = vpop.f32.mrb[0].mxu0
        %3265 = vdwg.mxu0
        %v3270 = vunpack.c.l.b16 %v3078
        %v3271 = vunpack.c.l.b16 %v3079
        %v3272 = vunpack.c.l.b16 %v3080
        %v3273 = vunpack.c.l.b16 %v3081
        %v3274 = vpack.c.b16 %v3271, %v3270
        %v3275 = vpack.c.b16 %v3273, %v3272
        %3278 = vmatprep.subr.bf16.mxu0 0
        %3279 = vmatpush1.bf16.msra.mxu0 %v3274
        %3280 = vmatprep.subr.bf16.mxu0 0
        %3281 = vmatpush1.bf16.msra.mxu0 %v3275
        %3282 = vmatprep.subr.bf16.mxu0 0
        %3283 = vmatpush1.bf16.msra.mxu0 0
        %3284 = vmatprep.subr.bf16.mxu0 0
        %3285 = vmatpush1.bf16.msra.mxu0 0
        %3286 = vmatprep.subr.bf16.mxu0 0
        %3287 = vmatpush1.bf16.msra.mxu0 0
        %3288 = vmatprep.subr.bf16.mxu0 0
        %3289 = vmatpush1.bf16.msra.mxu0 0
        %3290 = vmatprep.subr.bf16.mxu0 0
        %3291 = vmatpush1.bf16.msra.mxu0 0
        %3292 = vmatprep.subr.bf16.mxu0 0
        %3293 = vmatpush1.bf16.msra.mxu0 0
        %3294 = vmatprep.subr.bf16.mxu0 0
        %3295 = vmatpush1.bf16.msra.mxu0 0
        %3296 = vmatprep.subr.bf16.mxu0 0
        %3297 = vmatpush1.bf16.msra.mxu0 0
        %3298 = vmatprep.subr.bf16.mxu0 0
        %3299 = vmatpush1.bf16.msra.mxu0 0
        %3300 = vmatprep.subr.bf16.mxu0 0
        %3301 = vmatpush1.bf16.msra.mxu0 0
        %3302 = vmatprep.subr.bf16.mxu0 0
        %3303 = vmatpush1.bf16.msra.mxu0 0
        %3304 = vmatprep.subr.bf16.mxu0 0
        %3305 = vmatpush1.bf16.msra.mxu0 0
        %3306 = vmatprep.subr.bf16.mxu0 0
        %3307 = vmatpush1.bf16.msra.mxu0 0
        %3308 = vmatprep.subr.bf16.mxu0 0
        %3309 = vmatpush1.bf16.msra.mxu0 0
        %3310 = vmatprep.mubr.bf16.mxu0 0
        %3311 = vmatmul.mubr.bf16.gmra.mrb[0].mxu0 %v2868
        %v3312 = vpop.f32.mrb[0].mxu0
        %v3313 = vadd.f32 %v3105, %v3312
        %v3314 = vpop.f32.mrb[0].mxu0
        %v3315 = vpop.f32.mrb[0].mxu0
        %v3316 = vpop.f32.mrb[0].mxu0
        %3317 = vdwg.mxu0
        %v3318 = vld [vmem:[%s51] sm:$0xf]
        %v3319 = vld [vmem:[%s51 + $0x4] sm:$0xf]
        %v3320 = vld [vmem:[%s51 + $0x8] sm:$0xf]
        %v3321 = vld [vmem:[%s51 + $0xc] sm:$0xf]
        %v3322 = vld [vmem:[%s51 + $0x10] sm:$0xf]
        %v3323 = vld [vmem:[%s51 + $0x14] sm:$0xf]
        %v3324 = vld [vmem:[%s51 + $0x18] sm:$0xf]
        %v3325 = vld [vmem:[%s51 + $0x1c] sm:$0xf]
        %v3326 = vld [vmem:[%s51 + $0x20] sm:$0xf]
        %v3327 = vld [vmem:[%s51 + $0x24] sm:$0xf]
        %v3328 = vld [vmem:[%s51 + $0x28] sm:$0xf]
        %v3329 = vld [vmem:[%s51 + $0x2c] sm:$0xf]
        %v3330 = vld [vmem:[%s51 + $0x30] sm:$0xf]
        %v3331 = vld [vmem:[%s51 + $0x34] sm:$0xf]
        %v3332 = vld [vmem:[%s51 + $0x38] sm:$0xf]
        %v3333 = vld [vmem:[%s51 + $0x3c] sm:$0xf]
        %v3334 = vld [vmem:[%s53] sm:$0x1]
        %v3335 = vld [vmem:[%s53 + $0x1] sm:$0x1]
        %v3336 = vld [vmem:[%s53 + $0x2] sm:$0x1]
        %v3337 = vld [vmem:[%s53 + $0x3] sm:$0x1]
        %v3342 = vlaneseq
        %v3343 = vshrl.u32 %v3342, 7
        %v3344 = vsub.s32 0, %v3343
        %v3345 = vrot.slane %v3334, %v3344
        %v3346 = vlaneseq
        %v3347 = vshrl.u32 %v3346, 7
        %v3348 = vsub.s32 0, %v3347
        %v3349 = vrot.slane %v3335, %v3348
        %v3350 = vlaneseq
        %v3351 = vshrl.u32 %v3350, 7
        %v3352 = vsub.s32 0, %v3351
        %v3353 = vrot.slane %v3336, %v3352
        %v3354 = vlaneseq
        %v3355 = vshrl.u32 %v3354, 7
        %v3356 = vsub.s32 0, %v3355
        %v3357 = vrot.slane %v3337, %v3356
        %v3366 = vunpack.c.l.b16 %v3318
        %v3367 = vunpack.c.l.b16 %v3319
        %v3368 = vunpack.c.l.b16 %v3320
        %v3369 = vunpack.c.l.b16 %v3321
        %v3370 = vpack.c.b16 %v3367, %v3366
        %v3371 = vpack.c.b16 %v3369, %v3368
        %3374 = vmatprep.subr.bf16.mxu0 0
        %3375 = vmatpush1.bf16.msra.mxu0 %v3370
        %3376 = vmatprep.subr.bf16.mxu0 0
        %3377 = vmatpush1.bf16.msra.mxu0 %v3371
        %3378 = vmatprep.subr.bf16.mxu0 0
        %3379 = vmatpush1.bf16.msra.mxu0 0
        %3380 = vmatprep.subr.bf16.mxu0 0
        %3381 = vmatpush1.bf16.msra.mxu0 0
        %3382 = vmatprep.subr.bf16.mxu0 0
        %3383 = vmatpush1.bf16.msra.mxu0 0
        %3384 = vmatprep.subr.bf16.mxu0 0
        %3385 = vmatpush1.bf16.msra.mxu0 0
        %3386 = vmatprep.subr.bf16.mxu0 0
        %3387 = vmatpush1.bf16.msra.mxu0 0
        %3388 = vmatprep.subr.bf16.mxu0 0
        %3389 = vmatpush1.bf16.msra.mxu0 0
        %3390 = vmatprep.subr.bf16.mxu0 0
        %3391 = vmatpush1.bf16.msra.mxu0 0
        %3392 = vmatprep.subr.bf16.mxu0 0
        %3393 = vmatpush1.bf16.msra.mxu0 0
        %3394 = vmatprep.subr.bf16.mxu0 0
        %3395 = vmatpush1.bf16.msra.mxu0 0
        %3396 = vmatprep.subr.bf16.mxu0 0
        %3397 = vmatpush1.bf16.msra.mxu0 0
        %3398 = vmatprep.subr.bf16.mxu0 0
        %3399 = vmatpush1.bf16.msra.mxu0 0
        %3400 = vmatprep.subr.bf16.mxu0 0
        %3401 = vmatpush1.bf16.msra.mxu0 0
        %3402 = vmatprep.subr.bf16.mxu0 0
        %3403 = vmatpush1.bf16.msra.mxu0 0
        %3404 = vmatprep.subr.bf16.mxu0 0
        %3405 = vmatpush1.bf16.msra.mxu0 0
        %3406 = vmatprep.mubr.bf16.mxu0 0
        %3407 = vmatmul.mubr.bf16.gmra.mrb[0].mxu0 %v2868
        %v3408 = vpop.f32.mrb[0].mxu0
        %v3409 = vadd.f32 %v3345, %v3408
        %v3410 = vpop.f32.mrb[0].mxu0
        %v3411 = vpop.f32.mrb[0].mxu0
        %v3412 = vpop.f32.mrb[0].mxu0
        %3413 = vdwg.mxu0
        %v3418 = vunpack.c.l.b16 %v3322
        %v3419 = vunpack.c.l.b16 %v3323
        %v3420 = vunpack.c.l.b16 %v3324
        %v3421 = vunpack.c.l.b16 %v3325
        %v3422 = vpack.c.b16 %v3419, %v3418
        %v3423 = vpack.c.b16 %v3421, %v3420
        %3426 = vmatprep.subr.bf16.mxu0 0
        %3427 = vmatpush1.bf16.msra.mxu0 %v3422
        %3428 = vmatprep.subr.bf16.mxu0 0
        %3429 = vmatpush1.bf16.msra.mxu0 %v3423
        %3430 = vmatprep.subr.bf16.mxu0 0
        %3431 = vmatpush1.bf16.msra.mxu0 0
        %3432 = vmatprep.subr.bf16.mxu0 0
        %3433 = vmatpush1.bf16.msra.mxu0 0
        %3434 = vmatprep.subr.bf16.mxu0 0
        %3435 = vmatpush1.bf16.msra.mxu0 0
        %3436 = vmatprep.subr.bf16.mxu0 0
        %3437 = vmatpush1.bf16.msra.mxu0 0
        %3438 = vmatprep.subr.bf16.mxu0 0
        %3439 = vmatpush1.bf16.msra.mxu0 0
        %3440 = vmatprep.subr.bf16.mxu0 0
        %3441 = vmatpush1.bf16.msra.mxu0 0
        %3442 = vmatprep.subr.bf16.mxu0 0
        %3443 = vmatpush1.bf16.msra.mxu0 0
        %3444 = vmatprep.subr.bf16.mxu0 0
        %3445 = vmatpush1.bf16.msra.mxu0 0
        %3446 = vmatprep.subr.bf16.mxu0 0
        %3447 = vmatpush1.bf16.msra.mxu0 0
        %3448 = vmatprep.subr.bf16.mxu0 0
        %3449 = vmatpush1.bf16.msra.mxu0 0
        %3450 = vmatprep.subr.bf16.mxu0 0
        %3451 = vmatpush1.bf16.msra.mxu0 0
        %3452 = vmatprep.subr.bf16.mxu0 0
        %3453 = vmatpush1.bf16.msra.mxu0 0
        %3454 = vmatprep.subr.bf16.mxu0 0
        %3455 = vmatpush1.bf16.msra.mxu0 0
        %3456 = vmatprep.subr.bf16.mxu0 0
        %3457 = vmatpush1.bf16.msra.mxu0 0
        %3458 = vmatprep.mubr.bf16.mxu0 0
        %3459 = vmatmul.mubr.bf16.gmra.mrb[0].mxu0 %v2868
        %v3460 = vpop.f32.mrb[0].mxu0
        %v3461 = vadd.f32 %v3349, %v3460
        %v3462 = vpop.f32.mrb[0].mxu0
        %v3463 = vpop.f32.mrb[0].mxu0
        %v3464 = vpop.f32.mrb[0].mxu0
        %3465 = vdwg.mxu0
        %v3470 = vunpack.c.l.b16 %v3326
        %v3471 = vunpack.c.l.b16 %v3327
        %v3472 = vunpack.c.l.b16 %v3328
        %v3473 = vunpack.c.l.b16 %v3329
        %v3474 = vpack.c.b16 %v3471, %v3470
        %v3475 = vpack.c.b16 %v3473, %v3472
        %3478 = vmatprep.subr.bf16.mxu0 0
        %3479 = vmatpush1.bf16.msra.mxu0 %v3474
        %3480 = vmatprep.subr.bf16.mxu0 0
        %3481 = vmatpush1.bf16.msra.mxu0 %v3475
        %3482 = vmatprep.subr.bf16.mxu0 0
        %3483 = vmatpush1.bf16.msra.mxu0 0
        %3484 = vmatprep.subr.bf16.mxu0 0
        %3485 = vmatpush1.bf16.msra.mxu0 0
        %3486 = vmatprep.subr.bf16.mxu0 0
        %3487 = vmatpush1.bf16.msra.mxu0 0
        %3488 = vmatprep.subr.bf16.mxu0 0
        %3489 = vmatpush1.bf16.msra.mxu0 0
        %3490 = vmatprep.subr.bf16.mxu0 0
        %3491 = vmatpush1.bf16.msra.mxu0 0
        %3492 = vmatprep.subr.bf16.mxu0 0
        %3493 = vmatpush1.bf16.msra.mxu0 0
        %3494 = vmatprep.subr.bf16.mxu0 0
        %3495 = vmatpush1.bf16.msra.mxu0 0
        %3496 = vmatprep.subr.bf16.mxu0 0
        %3497 = vmatpush1.bf16.msra.mxu0 0
        %3498 = vmatprep.subr.bf16.mxu0 0
        %3499 = vmatpush1.bf16.msra.mxu0 0
        %3500 = vmatprep.subr.bf16.mxu0 0
        %3501 = vmatpush1.bf16.msra.mxu0 0
        %3502 = vmatprep.subr.bf16.mxu0 0
        %3503 = vmatpush1.bf16.msra.mxu0 0
        %3504 = vmatprep.subr.bf16.mxu0 0
        %3505 = vmatpush1.bf16.msra.mxu0 0
        %3506 = vmatprep.subr.bf16.mxu0 0
        %3507 = vmatpush1.bf16.msra.mxu0 0
        %3508 = vmatprep.subr.bf16.mxu0 0
        %3509 = vmatpush1.bf16.msra.mxu0 0
        %3510 = vmatprep.mubr.bf16.mxu0 0
        %3511 = vmatmul.mubr.bf16.gmra.mrb[0].mxu0 %v2868
        %v3512 = vpop.f32.mrb[0].mxu0
        %v3513 = vadd.f32 %v3353, %v3512
        %v3514 = vpop.f32.mrb[0].mxu0
        %v3515 = vpop.f32.mrb[0].mxu0
        %v3516 = vpop.f32.mrb[0].mxu0
        %3517 = vdwg.mxu0
        %v3522 = vunpack.c.l.b16 %v3330
        %v3523 = vunpack.c.l.b16 %v3331
        %v3524 = vunpack.c.l.b16 %v3332
        %v3525 = vunpack.c.l.b16 %v3333
        %v3526 = vpack.c.b16 %v3523, %v3522
        %v3527 = vpack.c.b16 %v3525, %v3524
        %3530 = vmatprep.subr.bf16.mxu0 0
        %3531 = vmatpush1.bf16.msra.mxu0 %v3526
        %3532 = vmatprep.subr.bf16.mxu0 0
        %3533 = vmatpush1.bf16.msra.mxu0 %v3527
        %3534 = vmatprep.subr.bf16.mxu0 0
        %3535 = vmatpush1.bf16.msra.mxu0 0
        %3536 = vmatprep.subr.bf16.mxu0 0
        %3537 = vmatpush1.bf16.msra.mxu0 0
        %3538 = vmatprep.subr.bf16.mxu0 0
        %3539 = vmatpush1.bf16.msra.mxu0 0
        %3540 = vmatprep.subr.bf16.mxu0 0
        %3541 = vmatpush1.bf16.msra.mxu0 0
        %3542 = vmatprep.subr.bf16.mxu0 0
        %3543 = vmatpush1.bf16.msra.mxu0 0
        %3544 = vmatprep.subr.bf16.mxu0 0
        %3545 = vmatpush1.bf16.msra.mxu0 0
        %3546 = vmatprep.subr.bf16.mxu0 0
        %3547 = vmatpush1.bf16.msra.mxu0 0
        %3548 = vmatprep.subr.bf16.mxu0 0
        %3549 = vmatpush1.bf16.msra.mxu0 0
        %3550 = vmatprep.subr.bf16.mxu0 0
        %3551 = vmatpush1.bf16.msra.mxu0 0
        %3552 = vmatprep.subr.bf16.mxu0 0
        %3553 = vmatpush1.bf16.msra.mxu0 0
        %3554 = vmatprep.subr.bf16.mxu0 0
        %3555 = vmatpush1.bf16.msra.mxu0 0
        %3556 = vmatprep.subr.bf16.mxu0 0
        %3557 = vmatpush1.bf16.msra.mxu0 0
        %3558 = vmatprep.subr.bf16.mxu0 0
        %3559 = vmatpush1.bf16.msra.mxu0 0
        %3560 = vmatprep.subr.bf16.mxu0 0
        %3561 = vmatpush1.bf16.msra.mxu0 0
        %3562 = vmatprep.mubr.bf16.mxu0 0
        %3563 = vmatmul.mubr.bf16.gmra.mrb[0].mxu0 %v2868
        %v3564 = vpop.f32.mrb[0].mxu0
        %v3565 = vadd.f32 %v3357, %v3564
        %v3566 = vpop.f32.mrb[0].mxu0
        %v3567 = vpop.f32.mrb[0].mxu0
        %v3568 = vpop.f32.mrb[0].mxu0
        %3569 = vdwg.mxu0
        %v3570 = vmul.f32 %v2905, 0.35355338
        %v3571 = vmul.f32 %v2957, 0.35355338
        %v3572 = vmul.f32 %v3009, 0.35355338
        %v3573 = vmul.f32 %v3061, 0.35355338
        %v3574 = vpack.c.bf16 %v3570, %v3570
        %v3575 = vpack.c.bf16 %v3571, %v3571
        %v3576 = vpack.c.bf16 %v3572, %v3572
        %v3577 = vpack.c.bf16 %v3573, %v3573
        %v3578 = vpack.c.bf16 %v3157, %v3157
        %v3579 = vpack.c.bf16 %v3209, %v3209
        %v3580 = vpack.c.bf16 %v3261, %v3261
        %v3581 = vpack.c.bf16 %v3313, %v3313
        %v3583 = vsel %vm1965, %v3574, 0
        %v3586 = vsel %vm1965, %v3578, 0
        %3588 = vmatprep.subr.bf16.mxu0 0
        %3589 = vmatpush1.bf16.xpose.msra.mxu0 %v3586
        %3590 = vmatprep.subr.bf16.mxu0 0
        %3591 = vmatpush1.bf16.xpose.msra.mxu0 0
        %3592 = vmatprep.subr.bf16.mxu0 0
        %3593 = vmatpush1.bf16.xpose.msra.mxu0 0
        %3594 = vmatprep.subr.bf16.mxu0 0
        %3595 = vmatpush1.bf16.xpose.msra.mxu0 0
        %3596 = vmatprep.subr.bf16.mxu0 0
        %3597 = vmatpush1.bf16.xpose.msra.mxu0 0
        %3598 = vmatprep.subr.bf16.mxu0 0
        %3599 = vmatpush1.bf16.xpose.msra.mxu0 0
        %3600 = vmatprep.subr.bf16.mxu0 0
        %3601 = vmatpush1.bf16.xpose.msra.mxu0 0
        %3602 = vmatprep.subr.bf16.mxu0 0
        %3603 = vmatpush1.bf16.xpose.msra.mxu0 0
        %3604 = vmatprep.subr.bf16.mxu0 0
        %3605 = vmatpush1.bf16.xpose.msra.mxu0 0
        %3606 = vmatprep.subr.bf16.mxu0 0
        %3607 = vmatpush1.bf16.xpose.msra.mxu0 0
        %3608 = vmatprep.subr.bf16.mxu0 0
        %3609 = vmatpush1.bf16.xpose.msra.mxu0 0
        %3610 = vmatprep.subr.bf16.mxu0 0
        %3611 = vmatpush1.bf16.xpose.msra.mxu0 0
        %3612 = vmatprep.subr.bf16.mxu0 0
        %3613 = vmatpush1.bf16.xpose.msra.mxu0 0
        %3614 = vmatprep.subr.bf16.mxu0 0
        %3615 = vmatpush1.bf16.xpose.msra.mxu0 0
        %3616 = vmatprep.subr.bf16.mxu0 0
        %3617 = vmatpush1.bf16.xpose.msra.mxu0 0
        %3618 = vmatprep.subr.bf16.mxu0 0
        %3619 = vmatpush1.bf16.xpose.msra.mxu0 0
        %3620 = vmatprep.mubr.bf16.mxu0 0
        %3621 = vmatmul.mubr.bf16.gmra.mrb[0].mxu0 %v3583
        %v3622 = vpop.f32.mrb[0].mxu0
        %v3623 = vadd.f32 %v1963, %v3622
        %v3624 = vpop.f32.mrb[0].mxu0
        %v3625 = vpop.f32.mrb[0].mxu0
        %v3626 = vpop.f32.mrb[0].mxu0
        %3627 = vdwg.mxu0
        %v3629 = vsel %vm1965, %v3575, 0
        %v3632 = vsel %vm1965, %v3579, 0
        %3634 = vmatprep.subr.bf16.mxu0 0
        %3635 = vmatpush1.bf16.xpose.msra.mxu0 %v3632
        %3636 = vmatprep.subr.bf16.mxu0 0
        %3637 = vmatpush1.bf16.xpose.msra.mxu0 0
        %3638 = vmatprep.subr.bf16.mxu0 0
        %3639 = vmatpush1.bf16.xpose.msra.mxu0 0
        %3640 = vmatprep.subr.bf16.mxu0 0
        %3641 = vmatpush1.bf16.xpose.msra.mxu0 0
        %3642 = vmatprep.subr.bf16.mxu0 0
        %3643 = vmatpush1.bf16.xpose.msra.mxu0 0
        %3644 = vmatprep.subr.bf16.mxu0 0
        %3645 = vmatpush1.bf16.xpose.msra.mxu0 0
        %3646 = vmatprep.subr.bf16.mxu0 0
        %3647 = vmatpush1.bf16.xpose.msra.mxu0 0
        %3648 = vmatprep.subr.bf16.mxu0 0
        %3649 = vmatpush1.bf16.xpose.msra.mxu0 0
        %3650 = vmatprep.subr.bf16.mxu0 0
        %3651 = vmatpush1.bf16.xpose.msra.mxu0 0
        %3652 = vmatprep.subr.bf16.mxu0 0
        %3653 = vmatpush1.bf16.xpose.msra.mxu0 0
        %3654 = vmatprep.subr.bf16.mxu0 0
        %3655 = vmatpush1.bf16.xpose.msra.mxu0 0
        %3656 = vmatprep.subr.bf16.mxu0 0
        %3657 = vmatpush1.bf16.xpose.msra.mxu0 0
        %3658 = vmatprep.subr.bf16.mxu0 0
        %3659 = vmatpush1.bf16.xpose.msra.mxu0 0
        %3660 = vmatprep.subr.bf16.mxu0 0
        %3661 = vmatpush1.bf16.xpose.msra.mxu0 0
        %3662 = vmatprep.subr.bf16.mxu0 0
        %3663 = vmatpush1.bf16.xpose.msra.mxu0 0
        %3664 = vmatprep.subr.bf16.mxu0 0
        %3665 = vmatpush1.bf16.xpose.msra.mxu0 0
        %3666 = vmatprep.mubr.bf16.mxu0 0
        %3667 = vmatmul.mubr.bf16.gmra.mrb[0].mxu0 %v3629
        %v3668 = vpop.f32.mrb[0].mxu0
        %v3669 = vadd.f32 %v1963, %v3668
        %v3670 = vpop.f32.mrb[0].mxu0
        %v3671 = vpop.f32.mrb[0].mxu0
        %v3672 = vpop.f32.mrb[0].mxu0
        %3673 = vdwg.mxu0
        %v3675 = vsel %vm1965, %v3576, 0
        %v3678 = vsel %vm1965, %v3580, 0
        %3680 = vmatprep.subr.bf16.mxu0 0
        %3681 = vmatpush1.bf16.xpose.msra.mxu0 %v3678
        %3682 = vmatprep.subr.bf16.mxu0 0
        %3683 = vmatpush1.bf16.xpose.msra.mxu0 0
        %3684 = vmatprep.subr.bf16.mxu0 0
        %3685 = vmatpush1.bf16.xpose.msra.mxu0 0
        %3686 = vmatprep.subr.bf16.mxu0 0
        %3687 = vmatpush1.bf16.xpose.msra.mxu0 0
        %3688 = vmatprep.subr.bf16.mxu0 0
        %3689 = vmatpush1.bf16.xpose.msra.mxu0 0
        %3690 = vmatprep.subr.bf16.mxu0 0
        %3691 = vmatpush1.bf16.xpose.msra.mxu0 0
        %3692 = vmatprep.subr.bf16.mxu0 0
        %3693 = vmatpush1.bf16.xpose.msra.mxu0 0
        %3694 = vmatprep.subr.bf16.mxu0 0
        %3695 = vmatpush1.bf16.xpose.msra.mxu0 0
        %3696 = vmatprep.subr.bf16.mxu0 0
        %3697 = vmatpush1.bf16.xpose.msra.mxu0 0
        %3698 = vmatprep.subr.bf16.mxu0 0
        %3699 = vmatpush1.bf16.xpose.msra.mxu0 0
        %3700 = vmatprep.subr.bf16.mxu0 0
        %3701 = vmatpush1.bf16.xpose.msra.mxu0 0
        %3702 = vmatprep.subr.bf16.mxu0 0
        %3703 = vmatpush1.bf16.xpose.msra.mxu0 0
        %3704 = vmatprep.subr.bf16.mxu0 0
        %3705 = vmatpush1.bf16.xpose.msra.mxu0 0
        %3706 = vmatprep.subr.bf16.mxu0 0
        %3707 = vmatpush1.bf16.xpose.msra.mxu0 0
        %3708 = vmatprep.subr.bf16.mxu0 0
        %3709 = vmatpush1.bf16.xpose.msra.mxu0 0
        %3710 = vmatprep.subr.bf16.mxu0 0
        %3711 = vmatpush1.bf16.xpose.msra.mxu0 0
        %3712 = vmatprep.mubr.bf16.mxu0 0
        %3713 = vmatmul.mubr.bf16.gmra.mrb[0].mxu0 %v3675
        %v3714 = vpop.f32.mrb[0].mxu0
        %v3715 = vadd.f32 %v1963, %v3714
        %v3716 = vpop.f32.mrb[0].mxu0
        %v3717 = vpop.f32.mrb[0].mxu0
        %v3718 = vpop.f32.mrb[0].mxu0
        %3719 = vdwg.mxu0
        %v3721 = vsel %vm1965, %v3577, 0
        %v3724 = vsel %vm1965, %v3581, 0
        %3726 = vmatprep.subr.bf16.mxu0 0
        %3727 = vmatpush1.bf16.xpose.msra.mxu0 %v3724
        %3728 = vmatprep.subr.bf16.mxu0 0
        %3729 = vmatpush1.bf16.xpose.msra.mxu0 0
        %3730 = vmatprep.subr.bf16.mxu0 0
        %3731 = vmatpush1.bf16.xpose.msra.mxu0 0
        %3732 = vmatprep.subr.bf16.mxu0 0
        %3733 = vmatpush1.bf16.xpose.msra.mxu0 0
        %3734 = vmatprep.subr.bf16.mxu0 0
        %3735 = vmatpush1.bf16.xpose.msra.mxu0 0
        %3736 = vmatprep.subr.bf16.mxu0 0
        %3737 = vmatpush1.bf16.xpose.msra.mxu0 0
        %3738 = vmatprep.subr.bf16.mxu0 0
        %3739 = vmatpush1.bf16.xpose.msra.mxu0 0
        %3740 = vmatprep.subr.bf16.mxu0 0
        %3741 = vmatpush1.bf16.xpose.msra.mxu0 0
        %3742 = vmatprep.subr.bf16.mxu0 0
        %3743 = vmatpush1.bf16.xpose.msra.mxu0 0
        %3744 = vmatprep.subr.bf16.mxu0 0
        %3745 = vmatpush1.bf16.xpose.msra.mxu0 0
        %3746 = vmatprep.subr.bf16.mxu0 0
        %3747 = vmatpush1.bf16.xpose.msra.mxu0 0
        %3748 = vmatprep.subr.bf16.mxu0 0
        %3749 = vmatpush1.bf16.xpose.msra.mxu0 0
        %3750 = vmatprep.subr.bf16.mxu0 0
        %3751 = vmatpush1.bf16.xpose.msra.mxu0 0
        %3752 = vmatprep.subr.bf16.mxu0 0
        %3753 = vmatpush1.bf16.xpose.msra.mxu0 0
        %3754 = vmatprep.subr.bf16.mxu0 0
        %3755 = vmatpush1.bf16.xpose.msra.mxu0 0
        %3756 = vmatprep.subr.bf16.mxu0 0
        %3757 = vmatpush1.bf16.xpose.msra.mxu0 0
        %3758 = vmatprep.mubr.bf16.mxu0 0
        %3759 = vmatmul.mubr.bf16.gmra.mrb[0].mxu0 %v3721
        %v3760 = vpop.f32.mrb[0].mxu0
        %v3761 = vadd.f32 %v1963, %v3760
        %v3762 = vpop.f32.mrb[0].mxu0
        %v3763 = vpop.f32.mrb[0].mxu0
        %v3764 = vpop.f32.mrb[0].mxu0
        %3765 = vdwg.mxu0
        %v3766 = vsel %vm1965, %v3623, -inf
        %3767 = vmax.xlane.f32.xlu0 %v3766
        %v3768 = vpop.xlane.xlu0 %3767
        %v3769 = vsel %vm1965, %v3669, -inf
        %3770 = vmax.xlane.f32.xlu0 %v3769
        %v3771 = vpop.xlane.xlu0 %3770
        %v3772 = vsel %vm1965, %v3715, -inf
        %3773 = vmax.xlane.f32.xlu0 %v3772
        %v3774 = vpop.xlane.xlu0 %3773
        %v3775 = vsel %vm1965, %v3761, -inf
        %3776 = vmax.xlane.f32.xlu0 %v3775
        %v3777 = vpop.xlane.xlu0 %3776
        %v3778 = vsub.f32 %v3623, %v3768
        %v3779 = vsub.f32 %v3669, %v3771
        %v3780 = vsub.f32 %v3715, %v3774
        %v3781 = vsub.f32 %v3761, %v3777
        %v3782 = vmul.f32 %v3778, 1.442695
        %v3783 = vpow.pop %v3782
        %v3784 = vmul.f32 %v3779, 1.442695
        %v3785 = vpow.pop %v3784
        %v3786 = vmul.f32 %v3780, 1.442695
        %v3787 = vpow.pop %v3786
        %v3788 = vmul.f32 %v3781, 1.442695
        %v3789 = vpow.pop %v3788
        %v3790 = vsel %vm1965, %v3783, 0.0
        %3791 = vadd.xlane.f32.xlu0 %v3790
        %v3792 = vpop.xlane.xlu0 %3791
        %v3793 = vsel %vm1965, %v3785, 0.0
        %3794 = vadd.xlane.f32.xlu0 %v3793
        %v3795 = vpop.xlane.xlu0 %3794
        %v3796 = vsel %vm1965, %v3787, 0.0
        %3797 = vadd.xlane.f32.xlu0 %v3796
        %v3798 = vpop.xlane.xlu0 %3797
        %v3799 = vsel %vm1965, %v3789, 0.0
        %3800 = vadd.xlane.f32.xlu0 %v3799
        %v3801 = vpop.xlane.xlu0 %3800
        %v3802 = vpack.c.bf16 %v3783, %v3783
        %v3803 = vpack.c.bf16 %v3785, %v3785
        %v3804 = vpack.c.bf16 %v3787, %v3787
        %v3805 = vpack.c.bf16 %v3789, %v3789
        %v3806 = vpack.c.bf16 %v3409, %v3409
        %v3807 = vpack.c.bf16 %v3461, %v3461
        %v3808 = vpack.c.bf16 %v3513, %v3513
        %v3809 = vpack.c.bf16 %v3565, %v3565
        %v3811 = vsel %vm1965, %v3802, 0
        %v3814 = vsel %vm2197, %v3806, 0
        %3816 = vmatprep.subr.bf16.mxu0 0
        %3817 = vmatpush1.bf16.msra.mxu0 %v3814
        %3818 = vmatprep.subr.bf16.mxu0 0
        %3819 = vmatpush1.bf16.msra.mxu0 0
        %3820 = vmatprep.subr.bf16.mxu0 0
        %3821 = vmatpush1.bf16.msra.mxu0 0
        %3822 = vmatprep.subr.bf16.mxu0 0
        %3823 = vmatpush1.bf16.msra.mxu0 0
        %3824 = vmatprep.subr.bf16.mxu0 0
        %3825 = vmatpush1.bf16.msra.mxu0 0
        %3826 = vmatprep.subr.bf16.mxu0 0
        %3827 = vmatpush1.bf16.msra.mxu0 0
        %3828 = vmatprep.subr.bf16.mxu0 0
        %3829 = vmatpush1.bf16.msra.mxu0 0
        %3830 = vmatprep.subr.bf16.mxu0 0
        %3831 = vmatpush1.bf16.msra.mxu0 0
        %3832 = vmatprep.subr.bf16.mxu0 0
        %3833 = vmatpush1.bf16.msra.mxu0 0
        %3834 = vmatprep.subr.bf16.mxu0 0
        %3835 = vmatpush1.bf16.msra.mxu0 0
        %3836 = vmatprep.subr.bf16.mxu0 0
        %3837 = vmatpush1.bf16.msra.mxu0 0
        %3838 = vmatprep.subr.bf16.mxu0 0
        %3839 = vmatpush1.bf16.msra.mxu0 0
        %3840 = vmatprep.subr.bf16.mxu0 0
        %3841 = vmatpush1.bf16.msra.mxu0 0
        %3842 = vmatprep.subr.bf16.mxu0 0
        %3843 = vmatpush1.bf16.msra.mxu0 0
        %3844 = vmatprep.subr.bf16.mxu0 0
        %3845 = vmatpush1.bf16.msra.mxu0 0
        %3846 = vmatprep.subr.bf16.mxu0 0
        %3847 = vmatpush1.bf16.msra.mxu0 0
        %3848 = vmatprep.mubr.bf16.mxu0 0
        %3849 = vmatmul.mubr.bf16.gmra.mrb[0].mxu0 %v3811
        %v3850 = vpop.f32.mrb[0].mxu0
        %v3851 = vadd.f32 0.0, %v3850
        %v3852 = vpop.f32.mrb[0].mxu0
        %v3853 = vpop.f32.mrb[0].mxu0
        %v3854 = vpop.f32.mrb[0].mxu0
        %3855 = vdwg.mxu0
        %v3857 = vsel %vm1965, %v3803, 0
        %v3860 = vsel %vm2197, %v3807, 0
        %3862 = vmatprep.subr.bf16.mxu0 0
        %3863 = vmatpush1.bf16.msra.mxu0 %v3860
        %3864 = vmatprep.subr.bf16.mxu0 0
        %3865 = vmatpush1.bf16.msra.mxu0 0
        %3866 = vmatprep.subr.bf16.mxu0 0
        %3867 = vmatpush1.bf16.msra.mxu0 0
        %3868 = vmatprep.subr.bf16.mxu0 0
        %3869 = vmatpush1.bf16.msra.mxu0 0
        %3870 = vmatprep.subr.bf16.mxu0 0
        %3871 = vmatpush1.bf16.msra.mxu0 0
        %3872 = vmatprep.subr.bf16.mxu0 0
        %3873 = vmatpush1.bf16.msra.mxu0 0
        %3874 = vmatprep.subr.bf16.mxu0 0
        %3875 = vmatpush1.bf16.msra.mxu0 0
        %3876 = vmatprep.subr.bf16.mxu0 0
        %3877 = vmatpush1.bf16.msra.mxu0 0
        %3878 = vmatprep.subr.bf16.mxu0 0
        %3879 = vmatpush1.bf16.msra.mxu0 0
        %3880 = vmatprep.subr.bf16.mxu0 0
        %3881 = vmatpush1.bf16.msra.mxu0 0
        %3882 = vmatprep.subr.bf16.mxu0 0
        %3883 = vmatpush1.bf16.msra.mxu0 0
        %3884 = vmatprep.subr.bf16.mxu0 0
        %3885 = vmatpush1.bf16.msra.mxu0 0
        %3886 = vmatprep.subr.bf16.mxu0 0
        %3887 = vmatpush1.bf16.msra.mxu0 0
        %3888 = vmatprep.subr.bf16.mxu0 0
        %3889 = vmatpush1.bf16.msra.mxu0 0
        %3890 = vmatprep.subr.bf16.mxu0 0
        %3891 = vmatpush1.bf16.msra.mxu0 0
        %3892 = vmatprep.subr.bf16.mxu0 0
        %3893 = vmatpush1.bf16.msra.mxu0 0
        %3894 = vmatprep.mubr.bf16.mxu0 0
        %3895 = vmatmul.mubr.bf16.gmra.mrb[0].mxu0 %v3857
        %v3896 = vpop.f32.mrb[0].mxu0
        %v3897 = vadd.f32 0.0, %v3896
        %v3898 = vpop.f32.mrb[0].mxu0
        %v3899 = vpop.f32.mrb[0].mxu0
        %v3900 = vpop.f32.mrb[0].mxu0
        %3901 = vdwg.mxu0
        %v3903 = vsel %vm1965, %v3804, 0
        %v3906 = vsel %vm2197, %v3808, 0
        %3908 = vmatprep.subr.bf16.mxu0 0
        %3909 = vmatpush1.bf16.msra.mxu0 %v3906
        %3910 = vmatprep.subr.bf16.mxu0 0
        %3911 = vmatpush1.bf16.msra.mxu0 0
        %3912 = vmatprep.subr.bf16.mxu0 0
        %3913 = vmatpush1.bf16.msra.mxu0 0
        %3914 = vmatprep.subr.bf16.mxu0 0
        %3915 = vmatpush1.bf16.msra.mxu0 0
        %3916 = vmatprep.subr.bf16.mxu0 0
        %3917 = vmatpush1.bf16.msra.mxu0 0
        %3918 = vmatprep.subr.bf16.mxu0 0
        %3919 = vmatpush1.bf16.msra.mxu0 0
        %3920 = vmatprep.subr.bf16.mxu0 0
        %3921 = vmatpush1.bf16.msra.mxu0 0
        %3922 = vmatprep.subr.bf16.mxu0 0
        %3923 = vmatpush1.bf16.msra.mxu0 0
        %3924 = vmatprep.subr.bf16.mxu0 0
        %3925 = vmatpush1.bf16.msra.mxu0 0
        %3926 = vmatprep.subr.bf16.mxu0 0
        %3927 = vmatpush1.bf16.msra.mxu0 0
        %3928 = vmatprep.subr.bf16.mxu0 0
        %3929 = vmatpush1.bf16.msra.mxu0 0
        %3930 = vmatprep.subr.bf16.mxu0 0
        %3931 = vmatpush1.bf16.msra.mxu0 0
        %3932 = vmatprep.subr.bf16.mxu0 0
        %3933 = vmatpush1.bf16.msra.mxu0 0
        %3934 = vmatprep.subr.bf16.mxu0 0
        %3935 = vmatpush1.bf16.msra.mxu0 0
        %3936 = vmatprep.subr.bf16.mxu0 0
        %3937 = vmatpush1.bf16.msra.mxu0 0
        %3938 = vmatprep.subr.bf16.mxu0 0
        %3939 = vmatpush1.bf16.msra.mxu0 0
        %3940 = vmatprep.mubr.bf16.mxu0 0
        %3941 = vmatmul.mubr.bf16.gmra.mrb[0].mxu0 %v3903
        %v3942 = vpop.f32.mrb[0].mxu0
        %v3943 = vadd.f32 0.0, %v3942
        %v3944 = vpop.f32.mrb[0].mxu0
        %v3945 = vpop.f32.mrb[0].mxu0
        %v3946 = vpop.f32.mrb[0].mxu0
        %3947 = vdwg.mxu0
        %v3949 = vsel %vm1965, %v3805, 0
        %v3952 = vsel %vm2197, %v3809, 0
        %3954 = vmatprep.subr.bf16.mxu0 0
        %3955 = vmatpush1.bf16.msra.mxu0 %v3952
        %3956 = vmatprep.subr.bf16.mxu0 0
        %3957 = vmatpush1.bf16.msra.mxu0 0
        %3958 = vmatprep.subr.bf16.mxu0 0
        %3959 = vmatpush1.bf16.msra.mxu0 0
        %3960 = vmatprep.subr.bf16.mxu0 0
        %3961 = vmatpush1.bf16.msra.mxu0 0
        %3962 = vmatprep.subr.bf16.mxu0 0
        %3963 = vmatpush1.bf16.msra.mxu0 0
        %3964 = vmatprep.subr.bf16.mxu0 0
        %3965 = vmatpush1.bf16.msra.mxu0 0
        %3966 = vmatprep.subr.bf16.mxu0 0
        %3967 = vmatpush1.bf16.msra.mxu0 0
        %3968 = vmatprep.subr.bf16.mxu0 0
        %3969 = vmatpush1.bf16.msra.mxu0 0
        %3970 = vmatprep.subr.bf16.mxu0 0
        %3971 = vmatpush1.bf16.msra.mxu0 0
        %3972 = vmatprep.subr.bf16.mxu0 0
        %3973 = vmatpush1.bf16.msra.mxu0 0
        %3974 = vmatprep.subr.bf16.mxu0 0
        %3975 = vmatpush1.bf16.msra.mxu0 0
        %3976 = vmatprep.subr.bf16.mxu0 0
        %3977 = vmatpush1.bf16.msra.mxu0 0
        %3978 = vmatprep.subr.bf16.mxu0 0
        %3979 = vmatpush1.bf16.msra.mxu0 0
        %3980 = vmatprep.subr.bf16.mxu0 0
        %3981 = vmatpush1.bf16.msra.mxu0 0
        %3982 = vmatprep.subr.bf16.mxu0 0
        %3983 = vmatpush1.bf16.msra.mxu0 0
        %3984 = vmatprep.subr.bf16.mxu0 0
        %3985 = vmatpush1.bf16.msra.mxu0 0
        %3986 = vmatprep.mubr.bf16.mxu0 0
        %3987 = vmatmul.mubr.bf16.gmra.mrb[0].mxu0 %v3949
        %v3988 = vpop.f32.mrb[0].mxu0
        %v3989 = vadd.f32 0.0, %v3988
        %v3990 = vpop.f32.mrb[0].mxu0
        %v3991 = vpop.f32.mrb[0].mxu0
        %v3992 = vpop.f32.mrb[0].mxu0
        %3993 = vdwg.mxu0
        %v3994 = vrcp.pop %v3792
        %v3995 = vrcp.pop %v3795
        %v3996 = vrcp.pop %v3798
        %v3997 = vrcp.pop %v3801
        %v3998 = vmul.f32 %v3851, %v3994
        %v3999 = vmul.f32 %v3897, %v3995
        %v4000 = vmul.f32 %v3943, %v3996
        %v4001 = vmul.f32 %v3989, %v3997
        %v4002 = vpack.c.bf16 %v3998, %v3998
        %v4003 = vpack.c.bf16 %v3999, %v3999
        %v4004 = vpack.c.bf16 %v4000, %v4000
        %v4005 = vpack.c.bf16 %v4001, %v4001
        %v4006 = vld [vmem:[%s55] sm:$0xf]
        %v4007 = vld [vmem:[%s55 + $0x4] sm:$0xf]
        %v4008 = vld [vmem:[%s55 + $0x8] sm:$0xf]
        %v4009 = vld [vmem:[%s55 + $0xc] sm:$0xf]
        %v4011 = vsel %vm1965, %v4002, 0
        %v4014 = vsel %vm2197, %v4006, 0
        %4016 = vmatprep.subr.bf16.mxu0 0
        %4017 = vmatpush1.bf16.msra.mxu0 %v4014
        %4018 = vmatprep.subr.bf16.mxu0 0
        %4019 = vmatpush1.bf16.msra.mxu0 0
        %4020 = vmatprep.subr.bf16.mxu0 0
        %4021 = vmatpush1.bf16.msra.mxu0 0
        %4022 = vmatprep.subr.bf16.mxu0 0
        %4023 = vmatpush1.bf16.msra.mxu0 0
        %4024 = vmatprep.subr.bf16.mxu0 0
        %4025 = vmatpush1.bf16.msra.mxu0 0
        %4026 = vmatprep.subr.bf16.mxu0 0
        %4027 = vmatpush1.bf16.msra.mxu0 0
        %4028 = vmatprep.subr.bf16.mxu0 0
        %4029 = vmatpush1.bf16.msra.mxu0 0
        %4030 = vmatprep.subr.bf16.mxu0 0
        %4031 = vmatpush1.bf16.msra.mxu0 0
        %4032 = vmatprep.subr.bf16.mxu0 0
        %4033 = vmatpush1.bf16.msra.mxu0 0
        %4034 = vmatprep.subr.bf16.mxu0 0
        %4035 = vmatpush1.bf16.msra.mxu0 0
        %4036 = vmatprep.subr.bf16.mxu0 0
        %4037 = vmatpush1.bf16.msra.mxu0 0
        %4038 = vmatprep.subr.bf16.mxu0 0
        %4039 = vmatpush1.bf16.msra.mxu0 0
        %4040 = vmatprep.subr.bf16.mxu0 0
        %4041 = vmatpush1.bf16.msra.mxu0 0
        %4042 = vmatprep.subr.bf16.mxu0 0
        %4043 = vmatpush1.bf16.msra.mxu0 0
        %4044 = vmatprep.subr.bf16.mxu0 0
        %4045 = vmatpush1.bf16.msra.mxu0 0
        %4046 = vmatprep.subr.bf16.mxu0 0
        %4047 = vmatpush1.bf16.msra.mxu0 0
        %4048 = vmatprep.mubr.bf16.mxu0 0
        %4049 = vmatmul.mubr.bf16.gmra.mrb[0].mxu0 %v4011
        %v4050 = vpop.f32.mrb[0].mxu0
        %v4051 = vadd.f32 0.0, %v4050
        %v4052 = vpop.f32.mrb[0].mxu0
        %v4053 = vpop.f32.mrb[0].mxu0
        %v4054 = vpop.f32.mrb[0].mxu0
        %4055 = vdwg.mxu0
        %v4057 = vsel %vm1965, %v4003, 0
        %v4060 = vsel %vm2197, %v4007, 0
        %4062 = vmatprep.subr.bf16.mxu0 0
        %4063 = vmatpush1.bf16.msra.mxu0 %v4060
        %4064 = vmatprep.subr.bf16.mxu0 0
        %4065 = vmatpush1.bf16.msra.mxu0 0
        %4066 = vmatprep.subr.bf16.mxu0 0
        %4067 = vmatpush1.bf16.msra.mxu0 0
        %4068 = vmatprep.subr.bf16.mxu0 0
        %4069 = vmatpush1.bf16.msra.mxu0 0
        %4070 = vmatprep.subr.bf16.mxu0 0
        %4071 = vmatpush1.bf16.msra.mxu0 0
        %4072 = vmatprep.subr.bf16.mxu0 0
        %4073 = vmatpush1.bf16.msra.mxu0 0
        %4074 = vmatprep.subr.bf16.mxu0 0
        %4075 = vmatpush1.bf16.msra.mxu0 0
        %4076 = vmatprep.subr.bf16.mxu0 0
        %4077 = vmatpush1.bf16.msra.mxu0 0
        %4078 = vmatprep.subr.bf16.mxu0 0
        %4079 = vmatpush1.bf16.msra.mxu0 0
        %4080 = vmatprep.subr.bf16.mxu0 0
        %4081 = vmatpush1.bf16.msra.mxu0 0
        %4082 = vmatprep.subr.bf16.mxu0 0
        %4083 = vmatpush1.bf16.msra.mxu0 0
        %4084 = vmatprep.subr.bf16.mxu0 0
        %4085 = vmatpush1.bf16.msra.mxu0 0
        %4086 = vmatprep.subr.bf16.mxu0 0
        %4087 = vmatpush1.bf16.msra.mxu0 0
        %4088 = vmatprep.subr.bf16.mxu0 0
        %4089 = vmatpush1.bf16.msra.mxu0 0
        %4090 = vmatprep.subr.bf16.mxu0 0
        %4091 = vmatpush1.bf16.msra.mxu0 0
        %4092 = vmatprep.subr.bf16.mxu0 0
        %4093 = vmatpush1.bf16.msra.mxu0 0
        %4094 = vmatprep.mubr.bf16.mxu0 0
        %4095 = vmatmul.mubr.bf16.gmra.mrb[0].mxu0 %v4057
        %v4096 = vpop.f32.mrb[0].mxu0
        %v4097 = vadd.f32 0.0, %v4096
        %v4098 = vpop.f32.mrb[0].mxu0
        %v4099 = vpop.f32.mrb[0].mxu0
        %v4100 = vpop.f32.mrb[0].mxu0
        %4101 = vdwg.mxu0
        %v4103 = vsel %vm1965, %v4004, 0
        %v4106 = vsel %vm2197, %v4008, 0
        %4108 = vmatprep.subr.bf16.mxu0 0
        %4109 = vmatpush1.bf16.msra.mxu0 %v4106
        %4110 = vmatprep.subr.bf16.mxu0 0
        %4111 = vmatpush1.bf16.msra.mxu0 0
        %4112 = vmatprep.subr.bf16.mxu0 0
        %4113 = vmatpush1.bf16.msra.mxu0 0
        %4114 = vmatprep.subr.bf16.mxu0 0
        %4115 = vmatpush1.bf16.msra.mxu0 0
        %4116 = vmatprep.subr.bf16.mxu0 0
        %4117 = vmatpush1.bf16.msra.mxu0 0
        %4118 = vmatprep.subr.bf16.mxu0 0
        %4119 = vmatpush1.bf16.msra.mxu0 0
        %4120 = vmatprep.subr.bf16.mxu0 0
        %4121 = vmatpush1.bf16.msra.mxu0 0
        %4122 = vmatprep.subr.bf16.mxu0 0
        %4123 = vmatpush1.bf16.msra.mxu0 0
        %4124 = vmatprep.subr.bf16.mxu0 0
        %4125 = vmatpush1.bf16.msra.mxu0 0
        %4126 = vmatprep.subr.bf16.mxu0 0
        %4127 = vmatpush1.bf16.msra.mxu0 0
        %4128 = vmatprep.subr.bf16.mxu0 0
        %4129 = vmatpush1.bf16.msra.mxu0 0
        %4130 = vmatprep.subr.bf16.mxu0 0
        %4131 = vmatpush1.bf16.msra.mxu0 0
        %4132 = vmatprep.subr.bf16.mxu0 0
        %4133 = vmatpush1.bf16.msra.mxu0 0
        %4134 = vmatprep.subr.bf16.mxu0 0
        %4135 = vmatpush1.bf16.msra.mxu0 0
        %4136 = vmatprep.subr.bf16.mxu0 0
        %4137 = vmatpush1.bf16.msra.mxu0 0
        %4138 = vmatprep.subr.bf16.mxu0 0
        %4139 = vmatpush1.bf16.msra.mxu0 0
        %4140 = vmatprep.mubr.bf16.mxu0 0
        %4141 = vmatmul.mubr.bf16.gmra.mrb[0].mxu0 %v4103
        %v4142 = vpop.f32.mrb[0].mxu0
        %v4143 = vadd.f32 0.0, %v4142
        %v4144 = vpop.f32.mrb[0].mxu0
        %v4145 = vpop.f32.mrb[0].mxu0
        %v4146 = vpop.f32.mrb[0].mxu0
        %4147 = vdwg.mxu0
        %v4149 = vsel %vm1965, %v4005, 0
        %v4152 = vsel %vm2197, %v4009, 0
        %4154 = vmatprep.subr.bf16.mxu0 0
        %4155 = vmatpush1.bf16.msra.mxu0 %v4152
        %4156 = vmatprep.subr.bf16.mxu0 0
        %4157 = vmatpush1.bf16.msra.mxu0 0
        %4158 = vmatprep.subr.bf16.mxu0 0
        %4159 = vmatpush1.bf16.msra.mxu0 0
        %4160 = vmatprep.subr.bf16.mxu0 0
        %4161 = vmatpush1.bf16.msra.mxu0 0
        %4162 = vmatprep.subr.bf16.mxu0 0
        %4163 = vmatpush1.bf16.msra.mxu0 0
        %4164 = vmatprep.subr.bf16.mxu0 0
        %4165 = vmatpush1.bf16.msra.mxu0 0
        %4166 = vmatprep.subr.bf16.mxu0 0
        %4167 = vmatpush1.bf16.msra.mxu0 0
        %4168 = vmatprep.subr.bf16.mxu0 0
        %4169 = vmatpush1.bf16.msra.mxu0 0
        %4170 = vmatprep.subr.bf16.mxu0 0
        %4171 = vmatpush1.bf16.msra.mxu0 0
        %4172 = vmatprep.subr.bf16.mxu0 0
        %4173 = vmatpush1.bf16.msra.mxu0 0
        %4174 = vmatprep.subr.bf16.mxu0 0
        %4175 = vmatpush1.bf16.msra.mxu0 0
        %4176 = vmatprep.subr.bf16.mxu0 0
        %4177 = vmatpush1.bf16.msra.mxu0 0
        %4178 = vmatprep.subr.bf16.mxu0 0
        %4179 = vmatpush1.bf16.msra.mxu0 0
        %4180 = vmatprep.subr.bf16.mxu0 0
        %4181 = vmatpush1.bf16.msra.mxu0 0
        %4182 = vmatprep.subr.bf16.mxu0 0
        %4183 = vmatpush1.bf16.msra.mxu0 0
        %4184 = vmatprep.subr.bf16.mxu0 0
        %4185 = vmatpush1.bf16.msra.mxu0 0
        %4186 = vmatprep.mubr.bf16.mxu0 0
        %4187 = vmatmul.mubr.bf16.gmra.mrb[0].mxu0 %v4149
        %v4188 = vpop.f32.mrb[0].mxu0
        %v4189 = vadd.f32 0.0, %v4188
        %v4190 = vpop.f32.mrb[0].mxu0
        %v4191 = vpop.f32.mrb[0].mxu0
        %v4192 = vpop.f32.mrb[0].mxu0
        %4193 = vdwg.mxu0
        %v4194 = vadd.f32 %v4051, %v4097
        %v4195 = vadd.f32 %v4194, %v4143
        %v4196 = vadd.f32 %v4195, %v4189
        %v4197 = vld [vmem:[%s57] sm:$0x1]
        %v4199 = vlaneseq
        %v4200 = vshrl.u32 %v4199, 7
        %v4201 = vsub.s32 0, %v4200
        %v4202 = vrot.slane %v4197, %v4201
        %v4204 = vadd.f32 %v4196, %v4202
        %v4205 = vadd.f32 %v2809, %v4204
        %v4206 = vld [vmem:[%s59] sm:$0x1]
        %v4207 = vld [vmem:[%s61] sm:$0x1]
        %v4208 = vsel %vm1157, %v4205, 0.0
        %4209 = vadd.xlane.f32.xlu0 %v4208
        %v4210 = vpop.xlane.xlu0 %4209
        %v4211 = vmul.f32 %v4210, %v1161
        %v4212 = vsub.f32 %v4205, %v4211
        %v4213 = vmul.f32 %v4212, %v4212
        %v4214 = vsel %vm1157, %v4213, 0.0
        %4215 = vadd.xlane.f32.xlu0 %v4214
        %v4216 = vpop.xlane.xlu0 %4215
        %v4217 = vmul.f32 %v4216, %v1161
        %v4218 = vadd.f32 %v4217, 1e-12
        %v4219 = vrsqrt.pop %v4218
        %v4220 = vmul.f32 %v4212, %v4219
        %v4222 = vlaneseq
        %v4223 = vshrl.u32 %v4222, 7
        %v4224 = vsub.s32 0, %v4223
        %v4225 = vrot.slane %v4206, %v4224
        %v4227 = vmul.f32 %v4220, %v4225
        %v4229 = vlaneseq
        %v4230 = vshrl.u32 %v4229, 7
        %v4231 = vsub.s32 0, %v4230
        %v4232 = vrot.slane %v4207, %v4231
        %v4234 = vadd.f32 %v4227, %v4232
        %v4235 = vpack.c.bf16 %v4234, %v4234
        %v4236 = vld [vmem:[%s63] sm:$0xf]
        %v4237 = vld [vmem:[%s63 + $0x4] sm:$0xf]
        %v4238 = vld [vmem:[%s63 + $0x8] sm:$0xf]
        %v4239 = vld [vmem:[%s63 + $0xc] sm:$0xf]
        %v4240 = vld [vmem:[%s65] sm:$0x1]
        %v4242 = vlaneseq
        %v4243 = vshrl.u32 %v4242, 7
        %v4244 = vsub.s32 0, %v4243
        %v4245 = vrot.slane %v4240, %v4244
        %v4251 = vunpack.c.l.b16 %v4236
        %v4252 = vunpack.c.l.b16 %v4237
        %v4253 = vunpack.c.l.b16 %v4238
        %v4254 = vunpack.c.l.b16 %v4239
        %v4255 = vpack.c.b16 %v4252, %v4251
        %v4256 = vpack.c.b16 %v4254, %v4253
        %v4260 = vsel %vm1157, %v4235, 0
        %4262 = vmatprep.subr.bf16.mxu0 0
        %4263 = vmatpush1.bf16.msra.mxu0 %v4255
        %4264 = vmatprep.subr.bf16.mxu0 0
        %4265 = vmatpush1.bf16.msra.mxu0 %v4256
        %4266 = vmatprep.subr.bf16.mxu0 0
        %4267 = vmatpush1.bf16.msra.mxu0 0
        %4268 = vmatprep.subr.bf16.mxu0 0
        %4269 = vmatpush1.bf16.msra.mxu0 0
        %4270 = vmatprep.subr.bf16.mxu0 0
        %4271 = vmatpush1.bf16.msra.mxu0 0
        %4272 = vmatprep.subr.bf16.mxu0 0
        %4273 = vmatpush1.bf16.msra.mxu0 0
        %4274 = vmatprep.subr.bf16.mxu0 0
        %4275 = vmatpush1.bf16.msra.mxu0 0
        %4276 = vmatprep.subr.bf16.mxu0 0
        %4277 = vmatpush1.bf16.msra.mxu0 0
        %4278 = vmatprep.subr.bf16.mxu0 0
        %4279 = vmatpush1.bf16.msra.mxu0 0
        %4280 = vmatprep.subr.bf16.mxu0 0
        %4281 = vmatpush1.bf16.msra.mxu0 0
        %4282 = vmatprep.subr.bf16.mxu0 0
        %4283 = vmatpush1.bf16.msra.mxu0 0
        %4284 = vmatprep.subr.bf16.mxu0 0
        %4285 = vmatpush1.bf16.msra.mxu0 0
        %4286 = vmatprep.subr.bf16.mxu0 0
        %4287 = vmatpush1.bf16.msra.mxu0 0
        %4288 = vmatprep.subr.bf16.mxu0 0
        %4289 = vmatpush1.bf16.msra.mxu0 0
        %4290 = vmatprep.subr.bf16.mxu0 0
        %4291 = vmatpush1.bf16.msra.mxu0 0
        %4292 = vmatprep.subr.bf16.mxu0 0
        %4293 = vmatpush1.bf16.msra.mxu0 0
        %4294 = vmatprep.mubr.bf16.mxu0 0
        %4295 = vmatmul.mubr.bf16.gmra.mrb[0].mxu0 %v4260
        %v4296 = vpop.f32.mrb[0].mxu0
        %v4297 = vadd.f32 %v4245, %v4296
        %v4298 = vpop.f32.mrb[0].mxu0
        %v4299 = vpop.f32.mrb[0].mxu0
        %v4300 = vpop.f32.mrb[0].mxu0
        %4301 = vdwg.mxu0
        %v4302 = vmul.f32 %v4297, 0.5
        %v4303 = vmul.f32 %v4297, 0.044715
        %v4304 = vmul.f32 %v4303, %v4297
        %v4305 = vmul.f32 %v4304, %v4297
        %v4306 = vadd.f32 %v4297, %v4305
        %v4307 = vmul.f32 %v4306, 0.7978846
        %v4308 = vtanh.pop %v4307
        %v4309 = vadd.f32 %v4308, 1.0
        %v4310 = vmul.f32 %v4302, %v4309
        %v4311 = vpack.c.bf16 %v4310, %v4310
        %v4312 = vld [vmem:[%s67] sm:$0xf]
        %v4313 = vld [vmem:[%s67 + $0x4] sm:$0xf]
        %v4314 = vld [vmem:[%s67 + $0x8] sm:$0xf]
        %v4315 = vld [vmem:[%s67 + $0xc] sm:$0xf]
        %v4316 = vld [vmem:[%s67 + $0x10] sm:$0xf]
        %v4317 = vld [vmem:[%s67 + $0x14] sm:$0xf]
        %v4318 = vld [vmem:[%s67 + $0x18] sm:$0xf]
        %v4319 = vld [vmem:[%s67 + $0x1c] sm:$0xf]
        %v4320 = vld [vmem:[%s69] sm:$0x1]
        %v4322 = vlaneseq
        %v4323 = vshrl.u32 %v4322, 7
        %v4324 = vsub.s32 0, %v4323
        %v4325 = vrot.slane %v4320, %v4324
        %v4335 = vunpack.c.l.b16 %v4312
        %v4336 = vunpack.c.l.b16 %v4313
        %v4337 = vunpack.c.l.b16 %v4314
        %v4338 = vunpack.c.l.b16 %v4315
        %v4339 = vunpack.c.l.b16 %v4316
        %v4340 = vunpack.c.l.b16 %v4317
        %v4341 = vunpack.c.l.b16 %v4318
        %v4342 = vunpack.c.l.b16 %v4319
        %v4343 = vpack.c.b16 %v4336, %v4335
        %v4344 = vpack.c.b16 %v4338, %v4337
        %v4345 = vpack.c.b16 %v4340, %v4339
        %v4346 = vpack.c.b16 %v4342, %v4341
        %v4352 = vsel %vm2736, %v4311, 0
        %4354 = vmatprep.subr.bf16.mxu0 0
        %4355 = vmatpush1.bf16.msra.mxu0 %v4343
        %4356 = vmatprep.subr.bf16.mxu0 0
        %4357 = vmatpush1.bf16.msra.mxu0 %v4344
        %4358 = vmatprep.subr.bf16.mxu0 0
        %4359 = vmatpush1.bf16.msra.mxu0 %v4345
        %4360 = vmatprep.subr.bf16.mxu0 0
        %4361 = vmatpush1.bf16.msra.mxu0 %v4346
        %4362 = vmatprep.subr.bf16.mxu0 0
        %4363 = vmatpush1.bf16.msra.mxu0 0
        %4364 = vmatprep.subr.bf16.mxu0 0
        %4365 = vmatpush1.bf16.msra.mxu0 0
        %4366 = vmatprep.subr.bf16.mxu0 0
        %4367 = vmatpush1.bf16.msra.mxu0 0
        %4368 = vmatprep.subr.bf16.mxu0 0
        %4369 = vmatpush1.bf16.msra.mxu0 0
        %4370 = vmatprep.subr.bf16.mxu0 0
        %4371 = vmatpush1.bf16.msra.mxu0 0
        %4372 = vmatprep.subr.bf16.mxu0 0
        %4373 = vmatpush1.bf16.msra.mxu0 0
        %4374 = vmatprep.subr.bf16.mxu0 0
        %4375 = vmatpush1.bf16.msra.mxu0 0
        %4376 = vmatprep.subr.bf16.mxu0 0
        %4377 = vmatpush1.bf16.msra.mxu0 0
        %4378 = vmatprep.subr.bf16.mxu0 0
        %4379 = vmatpush1.bf16.msra.mxu0 0
        %4380 = vmatprep.subr.bf16.mxu0 0
        %4381 = vmatpush1.bf16.msra.mxu0 0
        %4382 = vmatprep.subr.bf16.mxu0 0
        %4383 = vmatpush1.bf16.msra.mxu0 0
        %4384 = vmatprep.subr.bf16.mxu0 0
        %4385 = vmatpush1.bf16.msra.mxu0 0
        %4386 = vmatprep.mubr.bf16.mxu0 0
        %4387 = vmatmul.mubr.bf16.gmra.mrb[0].mxu0 %v4352
        %v4388 = vpop.f32.mrb[0].mxu0
        %v4389 = vadd.f32 %v4325, %v4388
        %v4390 = vpop.f32.mrb[0].mxu0
        %v4391 = vpop.f32.mrb[0].mxu0
        %v4392 = vpop.f32.mrb[0].mxu0
        %4393 = vdwg.mxu0
        %v4394 = vadd.f32 %v4234, %v4389
        %v4395 = vld [vmem:[%s71] sm:$0x1]
        %v4396 = vld [vmem:[%s73] sm:$0x1]
        %v4397 = vsel %vm1157, %v4394, 0.0
        %4398 = vadd.xlane.f32.xlu0 %v4397
        %v4399 = vpop.xlane.xlu0 %4398
        %v4400 = vmul.f32 %v4399, %v1161
        %v4401 = vsub.f32 %v4394, %v4400
        %v4402 = vmul.f32 %v4401, %v4401
        %v4403 = vsel %vm1157, %v4402, 0.0
        %4404 = vadd.xlane.f32.xlu0 %v4403
        %v4405 = vpop.xlane.xlu0 %4404
        %v4406 = vmul.f32 %v4405, %v1161
        %v4407 = vadd.f32 %v4406, 1e-12
        %v4408 = vrsqrt.pop %v4407
        %v4409 = vmul.f32 %v4401, %v4408
        %v4411 = vlaneseq
        %v4412 = vshrl.u32 %v4411, 7
        %v4413 = vsub.s32 0, %v4412
        %v4414 = vrot.slane %v4395, %v4413
        %v4416 = vmul.f32 %v4409, %v4414
        %v4418 = vlaneseq
        %v4419 = vshrl.u32 %v4418, 7
        %v4420 = vsub.s32 0, %v4419
        %v4421 = vrot.slane %v4396, %v4420
        %v4423 = vadd.f32 %v4416, %v4421
        %v4424 = vld [vmem:[%s1151] sm:$0xff]
        %4426 = vset.pattern.permute.xlu0 0
        %4427 = vperm.xlu0 %4426, %v4424
        %v4428 = vpop.permute.xlu0 %4427
        %v4430 = vmul.f32 %v4423, %v4428
        %v4431 = vsel %vm1157, %v4430, -inf
        %v4432 = vrot.slane %v4431, 4
        %v4433 = vmax.f32 %v4431, %v4432
        %v4434 = vrot.slane %v4433, 2
        %v4435 = vmax.f32 %v4433, %v4434
        %v4436 = vrot.slane %v4435, 1
        %v4437 = vmax.f32 %v4435, %v4436
        %vm4438 = vcmask 253952
        %4439 = vst.msk [vmem:[%s1140] sm:$0x1] %vm4438, %v4437
        %s4440 = sand.u32 %s889, 1
        %s4441 = scalar_lea.sflag [#allocation3], %s4440
        %s4442 = sand.u32 %s889, 1
        %s4443 = scalar_lea.vmem [#allocation2], %s4442
        // Predicated region
        $region169: #{tpu_custom_call.1} parent=167 // pred_check
          %p4444 = pneg %p899
        $region170: #{tpu_custom_call.1} parent=167 // pred_check_branch
          %4446 = sbr.rel (%p4444) target = $region172
        $region171: #{tpu_custom_call.1} parent=167 // pred_region
          %s4448 = ssub.s32 16, 16
          %4449 = vsyncadd %s4441, %s4448
          %s4450 = smul.addr %s89, 16
          %s4451 = scalar_lea.hbm %s75, %s4450
          %s4453 = sshll.u32 %s4443, 4
          %s4454 = int_to_ptr.vmem [resolvable:$true] %s4453
          %4456 = dma.vmem_to_hbm [thread:$0]  %s4454, 16, %s4451, %s4441
        $region172: #{tpu_custom_call.1} parent=167 // pred_fallthru
          _
      $region168: #{tpu_custom_call.1} parent=5 // pred_fallthru
        _
      %p4457 = scmp.le.s32.totalorder 2, %s84
      // Predicated region
      $region173: #{tpu_custom_call.1} parent=5 // pred_check
        %p4458 = pneg %p4457
      $region174: #{tpu_custom_call.1} parent=5 // pred_check_branch
        %4460 = sbr.rel (%p4458) target = $region176
      $region175: #{tpu_custom_call.1} parent=5 // pred_region
        %s4461 = ssub.s32 %s84, 2
        // Predicated region
        $region177: #{tpu_custom_call.1} parent=175 // pred_check
          %p4462 = pneg %p905
        $region178: #{tpu_custom_call.1} parent=175 // pred_check_branch
          %4464 = sbr.rel (%p4462) target = $region180
        $region179: #{tpu_custom_call.1} parent=175 // pred_region
          %s4465 = sand.u32 %s890, 1
          %s4466 = scalar_lea.sflag [#allocation3], %s4465
          %s4467 = sand.u32 %s890, 1
          %s4468 = scalar_lea.vmem [#allocation2], %s4467
          %4469 = dma.done %s4466, 16
        $region180: #{tpu_custom_call.1} parent=175 // pred_fallthru
          _
      $region176: #{tpu_custom_call.1} parent=5 // pred_fallthru
        _
    $region6: #{tpu_custom_call.1} parent=1 // loop_footer
      %s88 = sadd.s32 1, %s84
    $region7: #{tpu_custom_call.1} parent=1 // loop_footer_branch
      %83 = sbr.rel target = $region3
    $region8: #{tpu_custom_call.1} parent=1 // loop_exit
      _
    %4470 = vsyncpa [#allocation3], 1
    %s4471 = scalar_lea.sflag [#allocation3], 1
    %4472 = vsyncpa %s4471, 1

// kernel: tpu_custom_call.1
$region0: #{tpu_custom_call.1}
  #allocation0 [shape = 'u32[]', space=smem, size = 0x4, offset = 0x4, fixed_abs, tag = 'smem constant byte address 0x4 - core index']
  #allocation1 [shape = 'u32[144,128]{1,0:T(1,128)}', space=vmem, size = 0x12000, scoped, tag = 'internal scratch']
  %s0 = inlined_call_operand.smem [shape: u32[38], index: -1, kind: input, shape index: {}]
  %s1 = sld [smem:[%s0]]
  %s2 = scalar_lea.smem %s0, 1
  %s3 = sld [smem:[%s2]]
  %s4 = scalar_lea.smem %s0, 2
  %s5 = sld [smem:[%s4]]
  %s6 = scalar_lea.smem %s0, 3
  %s7 = sld [smem:[%s6]]
  %s8 = scalar_lea.smem %s0, 4
  %s9 = sld [smem:[%s8]]
  %s10 = scalar_lea.smem %s0, 5
  %s11 = sld [smem:[%s10]]
  %s12 = scalar_lea.smem %s0, 6
  %s13 = sld [smem:[%s12]]
  %s14 = scalar_lea.smem %s0, 7
  %s15 = sld [smem:[%s14]]
  %s16 = scalar_lea.smem %s0, 8
  %s17 = sld [smem:[%s16]]
  %s18 = scalar_lea.smem %s0, 9
  %s19 = sld [smem:[%s18]]
  %s20 = scalar_lea.smem %s0, 10
  %s21 = sld [smem:[%s20]]
  %s22 = scalar_lea.smem %s0, 11
  %s23 = sld [smem:[%s22]]
  %s24 = scalar_lea.smem %s0, 12
  %s25 = sld [smem:[%s24]]
  %s26 = scalar_lea.smem %s0, 13
  %s27 = sld [smem:[%s26]]
  %s28 = scalar_lea.smem %s0, 14
  %s29 = sld [smem:[%s28]]
  %s30 = scalar_lea.smem %s0, 15
  %s31 = sld [smem:[%s30]]
  %s32 = scalar_lea.smem %s0, 16
  %s33 = sld [smem:[%s32]]
  %s34 = scalar_lea.smem %s0, 17
  %s35 = sld [smem:[%s34]]
  %s36 = scalar_lea.smem %s0, 18
  %s37 = sld [smem:[%s36]]
  %s38 = scalar_lea.smem %s0, 19
  %s39 = sld [smem:[%s38]]
  %s40 = scalar_lea.smem %s0, 20
  %s41 = sld [smem:[%s40]]
  %s42 = scalar_lea.smem %s0, 21
  %s43 = sld [smem:[%s42]]
  %s44 = scalar_lea.smem %s0, 22
  %s45 = sld [smem:[%s44]]
  %s46 = scalar_lea.smem %s0, 23
  %s47 = sld [smem:[%s46]]
  %s48 = scalar_lea.smem %s0, 24
  %s49 = sld [smem:[%s48]]
  %s50 = scalar_lea.smem %s0, 25
  %s51 = sld [smem:[%s50]]
  %s52 = scalar_lea.smem %s0, 26
  %s53 = sld [smem:[%s52]]
  %s54 = scalar_lea.smem %s0, 27
  %s55 = sld [smem:[%s54]]
  %s56 = scalar_lea.smem %s0, 28
  %s57 = sld [smem:[%s56]]
  %s58 = scalar_lea.smem %s0, 29
  %s59 = sld [smem:[%s58]]
  %s60 = scalar_lea.smem %s0, 30
  %s61 = sld [smem:[%s60]]
  %s62 = scalar_lea.smem %s0, 31
  %s63 = sld [smem:[%s62]]
  %s64 = scalar_lea.smem %s0, 32
  %s65 = sld [smem:[%s64]]
  %s66 = scalar_lea.smem %s0, 33
  %s67 = sld [smem:[%s66]]
  %s68 = scalar_lea.smem %s0, 34
  %s69 = sld [smem:[%s68]]
  %s70 = scalar_lea.smem %s0, 35
  %s71 = sld [smem:[%s70]]
  %s72 = scalar_lea.smem %s0, 36
  %s73 = sld [smem:[%s72]]
  %s74 = scalar_lea.smem %s0, 37
  %s75 = sld [smem:[%s74]]
  %s76 = sld [smem:[#allocation0]]
  $region181: #{tpu_custom_call.1} parent=0
    _
  %s78 = ssub.s32 1, %s76
  %s79 = scalar_select 0, %s78, %s76
  $region1: #{tpu_custom_call.1} parent=0
    #allocation2 [shape = 'u8[1024]{0}', space=vmem, size = 0x400, scoped, tag = 'output window, operand 0']
    #allocation3 [shape = 's32[2]{0}', space=sflag, size = 0x8, scoped, tag = 'scoped memory for tpu_custom_call.1']
    %80 = vsyncpa [#allocation3], 0
    %s81 = scalar_lea.sflag [#allocation3], 1
    %82 = vsyncpa %s81, 0
    loop: start=0, step=1, limit=4
    $region2: #{tpu_custom_call.1} parent=1 // loop_pre_header
      _
    $region3: #{tpu_custom_call.1} parent=1 // loop_header
      %s84 = sphi 0, %s88
      %p85 = scmp.ge.s32.totalorder %s84, 4
      %s94 = sphi 0, %s96
      %s97 = sphi 0, %s94
      %s98 = sphi 0, %s97
      %s114 = sphi 0, %s98
      %s120 = sphi 0, %s122
      %s123 = sphi 0, %s120
      %s124 = sphi 0, %s123
      %s140 = sphi 0, %s124
      %s146 = sphi 0, %s148
      %s149 = sphi 0, %s146
      %s150 = sphi 0, %s149
      %s166 = sphi 0, %s150
      %s170 = sphi 0, %s170
      %s172 = sphi 0, %s170
      %s173 = sphi 0, %s172
      %s187 = sphi 0, %s173
      %s191 = sphi 0, %s191
      %s193 = sphi 0, %s191
      %s194 = sphi 0, %s193
      %s208 = sphi 0, %s194
      %s212 = sphi 0, %s212
      %s214 = sphi 0, %s212
      %s215 = sphi 0, %s214
      %s229 = sphi 0, %s215
      %s233 = sphi 0, %s233
      %s235 = sphi 0, %s233
      %s236 = sphi 0, %s235
      %s250 = sphi 0, %s236
      %s254 = sphi 0, %s254
      %s256 = sphi 0, %s254
      %s257 = sphi 0, %s256
      %s271 = sphi 0, %s257
      %s275 = sphi 0, %s275
      %s277 = sphi 0, %s275
      %s278 = sphi 0, %s277
      %s292 = sphi 0, %s278
      %s296 = sphi 0, %s296
      %s298 = sphi 0, %s296
      %s299 = sphi 0, %s298
      %s313 = sphi 0, %s299
      %s317 = sphi 0, %s317
      %s319 = sphi 0, %s317
      %s320 = sphi 0, %s319
      %s334 = sphi 0, %s320
      %s338 = sphi 0, %s338
      %s340 = sphi 0, %s338
      %s341 = sphi 0, %s340
      %s355 = sphi 0, %s341
      %s359 = sphi 0, %s359
      %s361 = sphi 0, %s359
      %s362 = sphi 0, %s361
      %s376 = sphi 0, %s362
      %s380 = sphi 0, %s380
      %s382 = sphi 0, %s380
      %s383 = sphi 0, %s382
      %s397 = sphi 0, %s383
      %s401 = sphi 0, %s401
      %s403 = sphi 0, %s401
      %s404 = sphi 0, %s403
      %s418 = sphi 0, %s404
      %s422 = sphi 0, %s422
      %s424 = sphi 0, %s422
      %s425 = sphi 0, %s424
      %s439 = sphi 0, %s425
      %s443 = sphi 0, %s443
      %s445 = sphi 0, %s443
      %s446 = sphi 0, %s445
      %s460 = sphi 0, %s446
      %s464 = sphi 0, %s464
      %s466 = sphi 0, %s464
      %s467 = sphi 0, %s466
      %s481 = sphi 0, %s467
      %s485 = sphi 0, %s485
      %s487 = sphi 0, %s485
      %s488 = sphi 0, %s487
      %s502 = sphi 0, %s488
      %s506 = sphi 0, %s506
      %s508 = sphi 0, %s506
      %s509 = sphi 0, %s508
      %s523 = sphi 0, %s509
      %s527 = sphi 0, %s527
      %s529 = sphi 0, %s527
      %s530 = sphi 0, %s529
      %s544 = sphi 0, %s530
      %s548 = sphi 0, %s548
      %s550 = sphi 0, %s548
      %s551 = sphi 0, %s550
      %s565 = sphi 0, %s551
      %s569 = sphi 0, %s569
      %s571 = sphi 0, %s569
      %s572 = sphi 0, %s571
      %s586 = sphi 0, %s572
      %s590 = sphi 0, %s590
      %s592 = sphi 0, %s590
      %s593 = sphi 0, %s592
      %s607 = sphi 0, %s593
      %s611 = sphi 0, %s611
      %s613 = sphi 0, %s611
      %s614 = sphi 0, %s613
      %s628 = sphi 0, %s614
      %s632 = sphi 0, %s632
      %s634 = sphi 0, %s632
      %s635 = sphi 0, %s634
      %s649 = sphi 0, %s635
      %s653 = sphi 0, %s653
      %s655 = sphi 0, %s653
      %s656 = sphi 0, %s655
      %s670 = sphi 0, %s656
      %s674 = sphi 0, %s674
      %s676 = sphi 0, %s674
      %s677 = sphi 0, %s676
      %s691 = sphi 0, %s677
      %s695 = sphi 0, %s695
      %s697 = sphi 0, %s695
      %s698 = sphi 0, %s697
      %s712 = sphi 0, %s698
      %s716 = sphi 0, %s716
      %s718 = sphi 0, %s716
      %s719 = sphi 0, %s718
      %s733 = sphi 0, %s719
      %s737 = sphi 0, %s737
      %s739 = sphi 0, %s737
      %s740 = sphi 0, %s739
      %s754 = sphi 0, %s740
      %s758 = sphi 0, %s758
      %s760 = sphi 0, %s758
      %s761 = sphi 0, %s760
      %s775 = sphi 0, %s761
      %s779 = sphi 0, %s779
      %s781 = sphi 0, %s779
      %s782 = sphi 0, %s781
      %s796 = sphi 0, %s782
      %s800 = sphi 0, %s800
      %s802 = sphi 0, %s800
      %s803 = sphi 0, %s802
      %s817 = sphi 0, %s803
      %s821 = sphi 0, %s821
      %s823 = sphi 0, %s821
      %s824 = sphi 0, %s823
      %s838 = sphi 0, %s824
      %s842 = sphi 0, %s842
      %s844 = sphi 0, %s842
      %s845 = sphi 0, %s844
      %s859 = sphi 0, %s845
      %s863 = sphi 0, %s863
      %s865 = sphi 0, %s863
      %s866 = sphi 0, %s865
      %s880 = sphi 0, %s866
      %s886 = sphi 0, %s888
      %s889 = sphi 0, %s886
      %s890 = sphi 0, %s889
      %s906 = sphi 0, %s890
    $region4: #{tpu_custom_call.1} parent=1 // loop_header_branch
      %87 = sbr.rel (%p85) target = $region8
    $region5: #{tpu_custom_call.1} parent=1 // loop_body
      %s89 = ssub.s32 %s84, 1
      %s90 = ssub.s32 %s84, 2
      %s91 = sadd.s32 %s84, 1
      %s92 = ssub.s32 %s84, %s91
      %p93 = scmp.eq.s32.totalorder %s92, 0
      %s95 = sadd.s32 %s94, 1
      %s96 = scalar_select %p93, %s94, %s95
      %p99 = pneg %p93
      %p100 = scmp.eq.s32.totalorder %s84, 1
      %p101 = por %p99, %p100
      %p102 = scmp.ne.s32.totalorder %s94, %s97
      %p103 = scmp.eq.s32.totalorder %s84, 0
      %p104 = por %p102, %p103
      %p105 = scmp.ne.s32.totalorder %s94, %s97
      %p106 = scmp.eq.s32.totalorder %s89, 1
      %p107 = por %p105, %p106
      %p108 = scmp.ne.s32.totalorder %s97, %s98
      %p109 = scmp.eq.s32.totalorder %s89, 0
      %p110 = por %p108, %p109
      %p111 = scmp.ne.s32.totalorder %s97, %s98
      %p112 = scmp.eq.s32.totalorder %s90, 1
      %p113 = por %p111, %p112
      %p115 = scmp.ne.s32.totalorder %s98, %s114
      %p116 = scmp.eq.s32.totalorder %s90, 0
      %p117 = por %p115, %p116
      %s118 = ssub.s32 %s84, %s91
      %p119 = scmp.eq.s32.totalorder %s118, 0
      %s121 = sadd.s32 %s120, 1
      %s122 = scalar_select %p119, %s120, %s121
      %p125 = pneg %p119
      %p126 = scmp.eq.s32.totalorder %s84, 1
      %p127 = por %p125, %p126
      %p128 = scmp.ne.s32.totalorder %s120, %s123
      %p129 = scmp.eq.s32.totalorder %s84, 0
      %p130 = por %p128, %p129
      %p131 = scmp.ne.s32.totalorder %s120, %s123
      %p132 = scmp.eq.s32.totalorder %s89, 1
      %p133 = por %p131, %p132
      %p134 = scmp.ne.s32.totalorder %s123, %s124
      %p135 = scmp.eq.s32.totalorder %s89, 0
      %p136 = por %p134, %p135
      %p137 = scmp.ne.s32.totalorder %s123, %s124
      %p138 = scmp.eq.s32.totalorder %s90, 1
      %p139 = por %p137, %p138
      %p141 = scmp.ne.s32.totalorder %s124, %s140
      %p142 = scmp.eq.s32.totalorder %s90, 0
      %p143 = por %p141, %p142
      %s144 = ssub.s32 %s84, %s91
      %p145 = scmp.eq.s32.totalorder %s144, 0
      %s147 = sadd.s32 %s146, 1
      %s148 = scalar_select %p145, %s146, %s147
      %p151 = pneg %p145
      %p152 = scmp.eq.s32.totalorder %s84, 1
      %p153 = por %p151, %p152
      %p154 = scmp.ne.s32.totalorder %s146, %s149
      %p155 = scmp.eq.s32.totalorder %s84, 0
      %p156 = por %p154, %p155
      %p157 = scmp.ne.s32.totalorder %s146, %s149
      %p158 = scmp.eq.s32.totalorder %s89, 1
      %p159 = por %p157, %p158
      %p160 = scmp.ne.s32.totalorder %s149, %s150
      %p161 = scmp.eq.s32.totalorder %s89, 0
      %p162 = por %p160, %p161
      %p163 = scmp.ne.s32.totalorder %s149, %s150
      %p164 = scmp.eq.s32.totalorder %s90, 1
      %p165 = por %p163, %p164
      %p167 = scmp.ne.s32.totalorder %s150, %s166
      %p168 = scmp.eq.s32.totalorder %s90, 0
      %p169 = por %p167, %p168
      %s171 = sadd.s32 %s170, 1
      %p174 = scmp.eq.s32.totalorder %s84, 1
      %p175 = scmp.ne.s32.totalorder %s170, %s172
      %p176 = scmp.eq.s32.totalorder %s84, 0
      %p177 = por %p175, %p176
      %p178 = scmp.ne.s32.totalorder %s170, %s172
      %p179 = scmp.eq.s32.totalorder %s89, 1
      %p180 = por %p178, %p179
      %p181 = scmp.ne.s32.totalorder %s172, %s173
      %p182 = scmp.eq.s32.totalorder %s89, 0
      %p183 = por %p181, %p182
      %p184 = scmp.ne.s32.totalorder %s172, %s173
      %p185 = scmp.eq.s32.totalorder %s90, 1
      %p186 = por %p184, %p185
      %p188 = scmp.ne.s32.totalorder %s173, %s187
      %p189 = scmp.eq.s32.totalorder %s90, 0
      %p190 = por %p188, %p189
      %s192 = sadd.s32 %s191, 1
      %p195 = scmp.eq.s32.totalorder %s84, 1
      %p196 = scmp.ne.s32.totalorder %s191, %s193
      %p197 = scmp.eq.s32.totalorder %s84, 0
      %p198 = por %p196, %p197
      %p199 = scmp.ne.s32.totalorder %s191, %s193
      %p200 = scmp.eq.s32.totalorder %s89, 1
      %p201 = por %p199, %p200
      %p202 = scmp.ne.s32.totalorder %s193, %s194
      %p203 = scmp.eq.s32.totalorder %s89, 0
      %p204 = por %p202, %p203
      %p205 = scmp.ne.s32.totalorder %s193, %s194
      %p206 = scmp.eq.s32.totalorder %s90, 1
      %p207 = por %p205, %p206
      %p209 = scmp.ne.s32.totalorder %s194, %s208
      %p210 = scmp.eq.s32.totalorder %s90, 0
      %p211 = por %p209, %p210
      %s213 = sadd.s32 %s212, 1
      %p216 = scmp.eq.s32.totalorder %s84, 1
      %p217 = scmp.ne.s32.totalorder %s212, %s214
      %p218 = scmp.eq.s32.totalorder %s84, 0
      %p219 = por %p217, %p218
      %p220 = scmp.ne.s32.totalorder %s212, %s214
      %p221 = scmp.eq.s32.totalorder %s89, 1
      %p222 = por %p220, %p221
      %p223 = scmp.ne.s32.totalorder %s214, %s215
      %p224 = scmp.eq.s32.totalorder %s89, 0
      %p225 = por %p223, %p224
      %p226 = scmp.ne.s32.totalorder %s214, %s215
      %p227 = scmp.eq.s32.totalorder %s90, 1
      %p228 = por %p226, %p227
      %p230 = scmp.ne.s32.totalorder %s215, %s229
      %p231 = scmp.eq.s32.totalorder %s90, 0
      %p232 = por %p230, %p231
      %s234 = sadd.s32 %s233, 1
      %p237 = scmp.eq.s32.totalorder %s84, 1
      %p238 = scmp.ne.s32.totalorder %s233, %s235
      %p239 = scmp.eq.s32.totalorder %s84, 0
      %p240 = por %p238, %p239
      %p241 = scmp.ne.s32.totalorder %s233, %s235
      %p242 = scmp.eq.s32.totalorder %s89, 1
      %p243 = por %p241, %p242
      %p244 = scmp.ne.s32.totalorder %s235, %s236
      %p245 = scmp.eq.s32.totalorder %s89, 0
      %p246 = por %p244, %p245
      %p247 = scmp.ne.s32.totalorder %s235, %s236
      %p248 = scmp.eq.s32.totalorder %s90, 1
      %p249 = por %p247, %p248
      %p251 = scmp.ne.s32.totalorder %s236, %s250
      %p252 = scmp.eq.s32.totalorder %s90, 0
      %p253 = por %p251, %p252
      %s255 = sadd.s32 %s254, 1
      %p258 = scmp.eq.s32.totalorder %s84, 1
      %p259 = scmp.ne.s32.totalorder %s254, %s256
      %p260 = scmp.eq.s32.totalorder %s84, 0
      %p261 = por %p259, %p260
      %p262 = scmp.ne.s32.totalorder %s254, %s256
      %p263 = scmp.eq.s32.totalorder %s89, 1
      %p264 = por %p262, %p263
      %p265 = scmp.ne.s32.totalorder %s256, %s257
      %p266 = scmp.eq.s32.totalorder %s89, 0
      %p267 = por %p265, %p266
      %p268 = scmp.ne.s32.totalorder %s256, %s257
      %p269 = scmp.eq.s32.totalorder %s90, 1
      %p270 = por %p268, %p269
      %p272 = scmp.ne.s32.totalorder %s257, %s271
      %p273 = scmp.eq.s32.totalorder %s90, 0
      %p274 = por %p272, %p273
      %s276 = sadd.s32 %s275, 1
      %p279 = scmp.eq.s32.totalorder %s84, 1
      %p280 = scmp.ne.s32.totalorder %s275, %s277
      %p281 = scmp.eq.s32.totalorder %s84, 0
      %p282 = por %p280, %p281
      %p283 = scmp.ne.s32.totalorder %s275, %s277
      %p284 = scmp.eq.s32.totalorder %s89, 1
      %p285 = por %p283, %p284
      %p286 = scmp.ne.s32.totalorder %s277, %s278
      %p287 = scmp.eq.s32.totalorder %s89, 0
      %p288 = por %p286, %p287
      %p289 = scmp.ne.s32.totalorder %s277, %s278
      %p290 = scmp.eq.s32.totalorder %s90, 1
      %p291 = por %p289, %p290
      %p293 = scmp.ne.s32.totalorder %s278, %s292
      %p294 = scmp.eq.s32.totalorder %s90, 0
      %p295 = por %p293, %p294
      %s297 = sadd.s32 %s296, 1
      %p300 = scmp.eq.s32.totalorder %s84, 1
      %p301 = scmp.ne.s32.totalorder %s296, %s298
      %p302 = scmp.eq.s32.totalorder %s84, 0
      %p303 = por %p301, %p302
      %p304 = scmp.ne.s32.totalorder %s296, %s298
      %p305 = scmp.eq.s32.totalorder %s89, 1
      %p306 = por %p304, %p305
      %p307 = scmp.ne.s32.totalorder %s298, %s299
      %p308 = scmp.eq.s32.totalorder %s89, 0
      %p309 = por %p307, %p308
      %p310 = scmp.ne.s32.totalorder %s298, %s299
      %p311 = scmp.eq.s32.totalorder %s90, 1
      %p312 = por %p310, %p311
      %p314 = scmp.ne.s32.totalorder %s299, %s313
      %p315 = scmp.eq.s32.totalorder %s90, 0
      %p316 = por %p314, %p315
      %s318 = sadd.s32 %s317, 1
      %p321 = scmp.eq.s32.totalorder %s84, 1
      %p322 = scmp.ne.s32.totalorder %s317, %s319
      %p323 = scmp.eq.s32.totalorder %s84, 0
      %p324 = por %p322, %p323
      %p325 = scmp.ne.s32.totalorder %s317, %s319
      %p326 = scmp.eq.s32.totalorder %s89, 1
      %p327 = por %p325, %p326
      %p328 = scmp.ne.s32.totalorder %s319, %s320
      %p329 = scmp.eq.s32.totalorder %s89, 0
      %p330 = por %p328, %p329
      %p331 = scmp.ne.s32.totalorder %s319, %s320
      %p332 = scmp.eq.s32.totalorder %s90, 1
      %p333 = por %p331, %p332
      %p335 = scmp.ne.s32.totalorder %s320, %s334
      %p336 = scmp.eq.s32.totalorder %s90, 0
      %p337 = por %p335, %p336
      %s339 = sadd.s32 %s338, 1
      %p342 = scmp.eq.s32.totalorder %s84, 1
      %p343 = scmp.ne.s32.totalorder %s338, %s340
      %p344 = scmp.eq.s32.totalorder %s84, 0
      %p345 = por %p343, %p344
      %p346 = scmp.ne.s32.totalorder %s338, %s340
      %p347 = scmp.eq.s32.totalorder %s89, 1
      %p348 = por %p346, %p347
      %p349 = scmp.ne.s32.totalorder %s340, %s341
      %p350 = scmp.eq.s32.totalorder %s89, 0
      %p351 = por %p349, %p350
      %p352 = scmp.ne.s32.totalorder %s340, %s341
      %p353 = scmp.eq.s32.totalorder %s90, 1
      %p354 = por %p352, %p353
      %p356 = scmp.ne.s32.totalorder %s341, %s355
      %p357 = scmp.eq.s32.totalorder %s90, 0
      %p358 = por %p356, %p357
      %s360 = sadd.s32 %s359, 1
      %p363 = scmp.eq.s32.totalorder %s84, 1
      %p364 = scmp.ne.s32.totalorder %s359, %s361
      %p365 = scmp.eq.s32.totalorder %s84, 0
      %p366 = por %p364, %p365
      %p367 = scmp.ne.s32.totalorder %s359, %s361
      %p368 = scmp.eq.s32.totalorder %s89, 1
      %p369 = por %p367, %p368
      %p370 = scmp.ne.s32.totalorder %s361, %s362
      %p371 = scmp.eq.s32.totalorder %s89, 0
      %p372 = por %p370, %p371
      %p373 = scmp.ne.s32.totalorder %s361, %s362
      %p374 = scmp.eq.s32.totalorder %s90, 1
      %p375 = por %p373, %p374
      %p377 = scmp.ne.s32.totalorder %s362, %s376
      %p378 = scmp.eq.s32.totalorder %s90, 0
      %p379 = por %p377, %p378
      %s381 = sadd.s32 %s380, 1
      %p384 = scmp.eq.s32.totalorder %s84, 1
      %p385 = scmp.ne.s32.totalorder %s380, %s382
      %p386 = scmp.eq.s32.totalorder %s84, 0
      %p387 = por %p385, %p386
      %p388 = scmp.ne.s32.totalorder %s380, %s382
      %p389 = scmp.eq.s32.totalorder %s89, 1
      %p390 = por %p388, %p389
      %p391 = scmp.ne.s32.totalorder %s382, %s383
      %p392 = scmp.eq.s32.totalorder %s89, 0
      %p393 = por %p391, %p392
      %p394 = scmp.ne.s32.totalorder %s382, %s383
      %p395 = scmp.eq.s32.totalorder %s90, 1
      %p396 = por %p394, %p395
      %p398 = scmp.ne.s32.totalorder %s383, %s397
      %p399 = scmp.eq.s32.totalorder %s90, 0
      %p400 = por %p398, %p399
      %s402 = sadd.s32 %s401, 1
      %p405 = scmp.eq.s32.totalorder %s84, 1
      %p406 = scmp.ne.s32.totalorder %s401, %s403
      %p407 = scmp.eq.s32.totalorder %s84, 0
      %p408 = por %p406, %p407
      %p409 = scmp.ne.s32.totalorder %s401, %s403
      %p410 = scmp.eq.s32.totalorder %s89, 1
      %p411 = por %p409, %p410
      %p412 = scmp.ne.s32.totalorder %s403, %s404
      %p413 = scmp.eq.s32.totalorder %s89, 0
      %p414 = por %p412, %p413
      %p415 = scmp.ne.s32.totalorder %s403, %s404
      %p416 = scmp.eq.s32.totalorder %s90, 1
      %p417 = por %p415, %p416
      %p419 = scmp.ne.s32.totalorder %s404, %s418
      %p420 = scmp.eq.s32.totalorder %s90, 0
      %p421 = por %p419, %p420
      %s423 = sadd.s32 %s422, 1
      %p426 = scmp.eq.s32.totalorder %s84, 1
      %p427 = scmp.ne.s32.totalorder %s422, %s424
      %p428 = scmp.eq.s32.totalorder %s84, 0
      %p429 = por %p427, %p428
      %p430 = scmp.ne.s32.totalorder %s422, %s424
      %p431 = scmp.eq.s32.totalorder %s89, 1
      %p432 = por %p430, %p431
      %p433 = scmp.ne.s32.totalorder %s424, %s425
      %p434 = scmp.eq.s32.totalorder %s89, 0
      %p435 = por %p433, %p434
      %p436 = scmp.ne.s32.totalorder %s424, %s425
      %p437 = scmp.eq.s32.totalorder %s90, 1
      %p438 = por %p436, %p437
      %p440 = scmp.ne.s32.totalorder %s425, %s439
      %p441 = scmp.eq.s32.totalorder %s90, 0
      %p442 = por %p440, %p441
      %s444 = sadd.s32 %s443, 1
      %p447 = scmp.eq.s32.totalorder %s84, 1
      %p448 = scmp.ne.s32.totalorder %s443, %s445
      %p449 = scmp.eq.s32.totalorder %s84, 0
      %p450 = por %p448, %p449
      %p451 = scmp.ne.s32.totalorder %s443, %s445
      %p452 = scmp.eq.s32.totalorder %s89, 1
      %p453 = por %p451, %p452
      %p454 = scmp.ne.s32.totalorder %s445, %s446
      %p455 = scmp.eq.s32.totalorder %s89, 0
      %p456 = por %p454, %p455
      %p457 = scmp.ne.s32.totalorder %s445, %s446
      %p458 = scmp.eq.s32.totalorder %s90, 1
      %p459 = por %p457, %p458
      %p461 = scmp.ne.s32.totalorder %s446, %s460
      %p462 = scmp.eq.s32.totalorder %s90, 0
      %p463 = por %p461, %p462
      %s465 = sadd.s32 %s464, 1
      %p468 = scmp.eq.s32.totalorder %s84, 1
      %p469 = scmp.ne.s32.totalorder %s464, %s466
      %p470 = scmp.eq.s32.totalorder %s84, 0
      %p471 = por %p469, %p470
      %p472 = scmp.ne.s32.totalorder %s464, %s466
      %p473 = scmp.eq.s32.totalorder %s89, 1
      %p474 = por %p472, %p473
      %p475 = scmp.ne.s32.totalorder %s466, %s467
      %p476 = scmp.eq.s32.totalorder %s89, 0
      %p477 = por %p475, %p476
      %p478 = scmp.ne.s32.totalorder %s466, %s467
      %p479 = scmp.eq.s32.totalorder %s90, 1
      %p480 = por %p478, %p479
      %p482 = scmp.ne.s32.totalorder %s467, %s481
      %p483 = scmp.eq.s32.totalorder %s90, 0
      %p484 = por %p482, %p483
      %s486 = sadd.s32 %s485, 1
      %p489 = scmp.eq.s32.totalorder %s84, 1
      %p490 = scmp.ne.s32.totalorder %s485, %s487
      %p491 = scmp.eq.s32.totalorder %s84, 0
      %p492 = por %p490, %p491
      %p493 = scmp.ne.s32.totalorder %s485, %s487
      %p494 = scmp.eq.s32.totalorder %s89, 1
      %p495 = por %p493, %p494
      %p496 = scmp.ne.s32.totalorder %s487, %s488
      %p497 = scmp.eq.s32.totalorder %s89, 0
      %p498 = por %p496, %p497
      %p499 = scmp.ne.s32.totalorder %s487, %s488
      %p500 = scmp.eq.s32.totalorder %s90, 1
      %p501 = por %p499, %p500
      %p503 = scmp.ne.s32.totalorder %s488, %s502
      %p504 = scmp.eq.s32.totalorder %s90, 0
      %p505 = por %p503, %p504
      %s507 = sadd.s32 %s506, 1
      %p510 = scmp.eq.s32.totalorder %s84, 1
      %p511 = scmp.ne.s32.totalorder %s506, %s508
      %p512 = scmp.eq.s32.totalorder %s84, 0
      %p513 = por %p511, %p512
      %p514 = scmp.ne.s32.totalorder %s506, %s508
      %p515 = scmp.eq.s32.totalorder %s89, 1
      %p516 = por %p514, %p515
      %p517 = scmp.ne.s32.totalorder %s508, %s509
      %p518 = scmp.eq.s32.totalorder %s89, 0
      %p519 = por %p517, %p518
      %p520 = scmp.ne.s32.totalorder %s508, %s509
      %p521 = scmp.eq.s32.totalorder %s90, 1
      %p522 = por %p520, %p521
      %p524 = scmp.ne.s32.totalorder %s509, %s523
      %p525 = scmp.eq.s32.totalorder %s90, 0
      %p526 = por %p524, %p525
      %s528 = sadd.s32 %s527, 1
      %p531 = scmp.eq.s32.totalorder %s84, 1
      %p532 = scmp.ne.s32.totalorder %s527, %s529
      %p533 = scmp.eq.s32.totalorder %s84, 0
      %p534 = por %p532, %p533
      %p535 = scmp.ne.s32.totalorder %s527, %s529
      %p536 = scmp.eq.s32.totalorder %s89, 1
      %p537 = por %p535, %p536
      %p538 = scmp.ne.s32.totalorder %s529, %s530
      %p539 = scmp.eq.s32.totalorder %s89, 0
      %p540 = por %p538, %p539
      %p541 = scmp.ne.s32.totalorder %s529, %s530
      %p542 = scmp.eq.s32.totalorder %s90, 1
      %p543 = por %p541, %p542
      %p545 = scmp.ne.s32.totalorder %s530, %s544
      %p546 = scmp.eq.s32.totalorder %s90, 0
      %p547 = por %p545, %p546
      %s549 = sadd.s32 %s548, 1
      %p552 = scmp.eq.s32.totalorder %s84, 1
      %p553 = scmp.ne.s32.totalorder %s548, %s550
      %p554 = scmp.eq.s32.totalorder %s84, 0
      %p555 = por %p553, %p554
      %p556 = scmp.ne.s32.totalorder %s548, %s550
      %p557 = scmp.eq.s32.totalorder %s89, 1
      %p558 = por %p556, %p557
      %p559 = scmp.ne.s32.totalorder %s550, %s551
      %p560 = scmp.eq.s32.totalorder %s89, 0
      %p561 = por %p559, %p560
      %p562 = scmp.ne.s32.totalorder %s550, %s551
      %p563 = scmp.eq.s32.totalorder %s90, 1
      %p564 = por %p562, %p563
      %p566 = scmp.ne.s32.totalorder %s551, %s565
      %p567 = scmp.eq.s32.totalorder %s90, 0
      %p568 = por %p566, %p567
      %s570 = sadd.s32 %s569, 1
      %p573 = scmp.eq.s32.totalorder %s84, 1
      %p574 = scmp.ne.s32.totalorder %s569, %s571
      %p575 = scmp.eq.s32.totalorder %s84, 0
      %p576 = por %p574, %p575
      %p577 = scmp.ne.s32.totalorder %s569, %s571
      %p578 = scmp.eq.s32.totalorder %s89, 1
      %p579 = por %p577, %p578
      %p580 = scmp.ne.s32.totalorder %s571, %s572
      %p581 = scmp.eq.s32.totalorder %s89, 0
      %p582 = por %p580, %p581
      %p583 = scmp.ne.s32.totalorder %s571, %s572
      %p584 = scmp.eq.s32.totalorder %s90, 1
      %p585 = por %p583, %p584
      %p587 = scmp.ne.s32.totalorder %s572, %s586
      %p588 = scmp.eq.s32.totalorder %s90, 0
      %p589 = por %p587, %p588
      %s591 = sadd.s32 %s590, 1
      %p594 = scmp.eq.s32.totalorder %s84, 1
      %p595 = scmp.ne.s32.totalorder %s590, %s592
      %p596 = scmp.eq.s32.totalorder %s84, 0
      %p597 = por %p595, %p596
      %p598 = scmp.ne.s32.totalorder %s590, %s592
      %p599 = scmp.eq.s32.totalorder %s89, 1
      %p600 = por %p598, %p599
      %p601 = scmp.ne.s32.totalorder %s592, %s593
      %p602 = scmp.eq.s32.totalorder %s89, 0
      %p603 = por %p601, %p602
      %p604 = scmp.ne.s32.totalorder %s592, %s593
      %p605 = scmp.eq.s32.totalorder %s90, 1
      %p606 = por %p604, %p605
      %p608 = scmp.ne.s32.totalorder %s593, %s607
      %p609 = scmp.eq.s32.totalorder %s90, 0
      %p610 = por %p608, %p609
      %s612 = sadd.s32 %s611, 1
      %p615 = scmp.eq.s32.totalorder %s84, 1
      %p616 = scmp.ne.s32.totalorder %s611, %s613
      %p617 = scmp.eq.s32.totalorder %s84, 0
      %p618 = por %p616, %p617
      %p619 = scmp.ne.s32.totalorder %s611, %s613
      %p620 = scmp.eq.s32.totalorder %s89, 1
      %p621 = por %p619, %p620
      %p622 = scmp.ne.s32.totalorder %s613, %s614
      %p623 = scmp.eq.s32.totalorder %s89, 0
      %p624 = por %p622, %p623
      %p625 = scmp.ne.s32.totalorder %s613, %s614
      %p626 = scmp.eq.s32.totalorder %s90, 1
      %p627 = por %p625, %p626
      %p629 = scmp.ne.s32.totalorder %s614, %s628
      %p630 = scmp.eq.s32.totalorder %s90, 0
      %p631 = por %p629, %p630
      %s633 = sadd.s32 %s632, 1
      %p636 = scmp.eq.s32.totalorder %s84, 1
      %p637 = scmp.ne.s32.totalorder %s632, %s634
      %p638 = scmp.eq.s32.totalorder %s84, 0
      %p639 = por %p637, %p638
      %p640 = scmp.ne.s32.totalorder %s632, %s634
      %p641 = scmp.eq.s32.totalorder %s89, 1
      %p642 = por %p640, %p641
      %p643 = scmp.ne.s32.totalorder %s634, %s635
      %p644 = scmp.eq.s32.totalorder %s89, 0
      %p645 = por %p643, %p644
      %p646 = scmp.ne.s32.totalorder %s634, %s635
      %p647 = scmp.eq.s32.totalorder %s90, 1
      %p648 = por %p646, %p647
      %p650 = scmp.ne.s32.totalorder %s635, %s649
      %p651 = scmp.eq.s32.totalorder %s90, 0
      %p652 = por %p650, %p651
      %s654 = sadd.s32 %s653, 1
      %p657 = scmp.eq.s32.totalorder %s84, 1
      %p658 = scmp.ne.s32.totalorder %s653, %s655
      %p659 = scmp.eq.s32.totalorder %s84, 0
      %p660 = por %p658, %p659
      %p661 = scmp.ne.s32.totalorder %s653, %s655
      %p662 = scmp.eq.s32.totalorder %s89, 1
      %p663 = por %p661, %p662
      %p664 = scmp.ne.s32.totalorder %s655, %s656
      %p665 = scmp.eq.s32.totalorder %s89, 0
      %p666 = por %p664, %p665
      %p667 = scmp.ne.s32.totalorder %s655, %s656
      %p668 = scmp.eq.s32.totalorder %s90, 1
      %p669 = por %p667, %p668
      %p671 = scmp.ne.s32.totalorder %s656, %s670
      %p672 = scmp.eq.s32.totalorder %s90, 0
      %p673 = por %p671, %p672
      %s675 = sadd.s32 %s674, 1
      %p678 = scmp.eq.s32.totalorder %s84, 1
      %p679 = scmp.ne.s32.totalorder %s674, %s676
      %p680 = scmp.eq.s32.totalorder %s84, 0
      %p681 = por %p679, %p680
      %p682 = scmp.ne.s32.totalorder %s674, %s676
      %p683 = scmp.eq.s32.totalorder %s89, 1
      %p684 = por %p682, %p683
      %p685 = scmp.ne.s32.totalorder %s676, %s677
      %p686 = scmp.eq.s32.totalorder %s89, 0
      %p687 = por %p685, %p686
      %p688 = scmp.ne.s32.totalorder %s676, %s677
      %p689 = scmp.eq.s32.totalorder %s90, 1
      %p690 = por %p688, %p689
      %p692 = scmp.ne.s32.totalorder %s677, %s691
      %p693 = scmp.eq.s32.totalorder %s90, 0
      %p694 = por %p692, %p693
      %s696 = sadd.s32 %s695, 1
      %p699 = scmp.eq.s32.totalorder %s84, 1
      %p700 = scmp.ne.s32.totalorder %s695, %s697
      %p701 = scmp.eq.s32.totalorder %s84, 0
      %p702 = por %p700, %p701
      %p703 = scmp.ne.s32.totalorder %s695, %s697
      %p704 = scmp.eq.s32.totalorder %s89, 1
      %p705 = por %p703, %p704
      %p706 = scmp.ne.s32.totalorder %s697, %s698
      %p707 = scmp.eq.s32.totalorder %s89, 0
      %p708 = por %p706, %p707
      %p709 = scmp.ne.s32.totalorder %s697, %s698
      %p710 = scmp.eq.s32.totalorder %s90, 1
      %p711 = por %p709, %p710
      %p713 = scmp.ne.s32.totalorder %s698, %s712
      %p714 = scmp.eq.s32.totalorder %s90, 0
      %p715 = por %p713, %p714
      %s717 = sadd.s32 %s716, 1
      %p720 = scmp.eq.s32.totalorder %s84, 1
      %p721 = scmp.ne.s32.totalorder %s716, %s718
      %p722 = scmp.eq.s32.totalorder %s84, 0
      %p723 = por %p721, %p722
      %p724 = scmp.ne.s32.totalorder %s716, %s718
      %p725 = scmp.eq.s32.totalorder %s89, 1
      %p726 = por %p724, %p725
      %p727 = scmp.ne.s32.totalorder %s718, %s719
      %p728 = scmp.eq.s32.totalorder %s89, 0
      %p729 = por %p727, %p728
      %p730 = scmp.ne.s32.totalorder %s718, %s719
      %p731 = scmp.eq.s32.totalorder %s90, 1
      %p732 = por %p730, %p731
      %p734 = scmp.ne.s32.totalorder %s719, %s733
      %p735 = scmp.eq.s32.totalorder %s90, 0
      %p736 = por %p734, %p735
      %s738 = sadd.s32 %s737, 1
      %p741 = scmp.eq.s32.totalorder %s84, 1
      %p742 = scmp.ne.s32.totalorder %s737, %s739
      %p743 = scmp.eq.s32.totalorder %s84, 0
      %p744 = por %p742, %p743
      %p745 = scmp.ne.s32.totalorder %s737, %s739
      %p746 = scmp.eq.s32.totalorder %s89, 1
      %p747 = por %p745, %p746
      %p748 = scmp.ne.s32.totalorder %s739, %s740
      %p749 = scmp.eq.s32.totalorder %s89, 0
      %p750 = por %p748, %p749
      %p751 = scmp.ne.s32.totalorder %s739, %s740
      %p752 = scmp.eq.s32.totalorder %s90, 1
      %p753 = por %p751, %p752
      %p755 = scmp.ne.s32.totalorder %s740, %s754
      %p756 = scmp.eq.s32.totalorder %s90, 0
      %p757 = por %p755, %p756
      %s759 = sadd.s32 %s758, 1
      %p762 = scmp.eq.s32.totalorder %s84, 1
      %p763 = scmp.ne.s32.totalorder %s758, %s760
      %p764 = scmp.eq.s32.totalorder %s84, 0
      %p765 = por %p763, %p764
      %p766 = scmp.ne.s32.totalorder %s758, %s760
      %p767 = scmp.eq.s32.totalorder %s89, 1
      %p768 = por %p766, %p767
      %p769 = scmp.ne.s32.totalorder %s760, %s761
      %p770 = scmp.eq.s32.totalorder %s89, 0
      %p771 = por %p769, %p770
      %p772 = scmp.ne.s32.totalorder %s760, %s761
      %p773 = scmp.eq.s32.totalorder %s90, 1
      %p774 = por %p772, %p773
      %p776 = scmp.ne.s32.totalorder %s761, %s775
      %p777 = scmp.eq.s32.totalorder %s90, 0
      %p778 = por %p776, %p777
      %s780 = sadd.s32 %s779, 1
      %p783 = scmp.eq.s32.totalorder %s84, 1
      %p784 = scmp.ne.s32.totalorder %s779, %s781
      %p785 = scmp.eq.s32.totalorder %s84, 0
      %p786 = por %p784, %p785
      %p787 = scmp.ne.s32.totalorder %s779, %s781
      %p788 = scmp.eq.s32.totalorder %s89, 1
      %p789 = por %p787, %p788
      %p790 = scmp.ne.s32.totalorder %s781, %s782
      %p791 = scmp.eq.s32.totalorder %s89, 0
      %p792 = por %p790, %p791
      %p793 = scmp.ne.s32.totalorder %s781, %s782
      %p794 = scmp.eq.s32.totalorder %s90, 1
      %p795 = por %p793, %p794
      %p797 = scmp.ne.s32.totalorder %s782, %s796
      %p798 = scmp.eq.s32.totalorder %s90, 0
      %p799 = por %p797, %p798
      %s801 = sadd.s32 %s800, 1
      %p804 = scmp.eq.s32.totalorder %s84, 1
      %p805 = scmp.ne.s32.totalorder %s800, %s802
      %p806 = scmp.eq.s32.totalorder %s84, 0
      %p807 = por %p805, %p806
      %p808 = scmp.ne.s32.totalorder %s800, %s802
      %p809 = scmp.eq.s32.totalorder %s89, 1
      %p810 = por %p808, %p809
      %p811 = scmp.ne.s32.totalorder %s802, %s803
      %p812 = scmp.eq.s32.totalorder %s89, 0
      %p813 = por %p811, %p812
      %p814 = scmp.ne.s32.totalorder %s802, %s803
      %p815 = scmp.eq.s32.totalorder %s90, 1
      %p816 = por %p814, %p815
      %p818 = scmp.ne.s32.totalorder %s803, %s817
      %p819 = scmp.eq.s32.totalorder %s90, 0
      %p820 = por %p818, %p819
      %s822 = sadd.s32 %s821, 1
      %p825 = scmp.eq.s32.totalorder %s84, 1
      %p826 = scmp.ne.s32.totalorder %s821, %s823
      %p827 = scmp.eq.s32.totalorder %s84, 0
      %p828 = por %p826, %p827
      %p829 = scmp.ne.s32.totalorder %s821, %s823
      %p830 = scmp.eq.s32.totalorder %s89, 1
      %p831 = por %p829, %p830
      %p832 = scmp.ne.s32.totalorder %s823, %s824
      %p833 = scmp.eq.s32.totalorder %s89, 0
      %p834 = por %p832, %p833
      %p835 = scmp.ne.s32.totalorder %s823, %s824
      %p836 = scmp.eq.s32.totalorder %s90, 1
      %p837 = por %p835, %p836
      %p839 = scmp.ne.s32.totalorder %s824, %s838
      %p840 = scmp.eq.s32.totalorder %s90, 0
      %p841 = por %p839, %p840
      %s843 = sadd.s32 %s842, 1
      %p846 = scmp.eq.s32.totalorder %s84, 1
      %p847 = scmp.ne.s32.totalorder %s842, %s844
      %p848 = scmp.eq.s32.totalorder %s84, 0
      %p849 = por %p847, %p848
      %p850 = scmp.ne.s32.totalorder %s842, %s844
      %p851 = scmp.eq.s32.totalorder %s89, 1
      %p852 = por %p850, %p851
      %p853 = scmp.ne.s32.totalorder %s844, %s845
      %p854 = scmp.eq.s32.totalorder %s89, 0
      %p855 = por %p853, %p854
      %p856 = scmp.ne.s32.totalorder %s844, %s845
      %p857 = scmp.eq.s32.totalorder %s90, 1
      %p858 = por %p856, %p857
      %p860 = scmp.ne.s32.totalorder %s845, %s859
      %p861 = scmp.eq.s32.totalorder %s90, 0
      %p862 = por %p860, %p861
      %s864 = sadd.s32 %s863, 1
      %p867 = scmp.eq.s32.totalorder %s84, 1
      %p868 = scmp.ne.s32.totalorder %s863, %s865
      %p869 = scmp.eq.s32.totalorder %s84, 0
      %p870 = por %p868, %p869
      %p871 = scmp.ne.s32.totalorder %s863, %s865
      %p872 = scmp.eq.s32.totalorder %s89, 1
      %p873 = por %p871, %p872
      %p874 = scmp.ne.s32.totalorder %s865, %s866
      %p875 = scmp.eq.s32.totalorder %s89, 0
      %p876 = por %p874, %p875
      %p877 = scmp.ne.s32.totalorder %s865, %s866
      %p878 = scmp.eq.s32.totalorder %s90, 1
      %p879 = por %p877, %p878
      %p881 = scmp.ne.s32.totalorder %s866, %s880
      %p882 = scmp.eq.s32.totalorder %s90, 0
      %p883 = por %p881, %p882
      %s884 = ssub.s32 %s84, %s91
      %p885 = scmp.eq.s32.totalorder %s884, 0
      %s887 = sadd.s32 %s886, 1
      %s888 = scalar_select %p885, %s886, %s887
      %p891 = pneg %p885
      %p892 = scmp.eq.s32.totalorder %s84, 1
      %p893 = por %p891, %p892
      %p894 = scmp.ne.s32.totalorder %s886, %s889
      %p895 = scmp.eq.s32.totalorder %s84, 0
      %p896 = por %p894, %p895
      %p897 = scmp.ne.s32.totalorder %s886, %s889
      %p898 = scmp.eq.s32.totalorder %s89, 1
      %p899 = por %p897, %p898
      %p900 = scmp.ne.s32.totalorder %s889, %s890
      %p901 = scmp.eq.s32.totalorder %s89, 0
      %p902 = por %p900, %p901
      %p903 = scmp.ne.s32.totalorder %s889, %s890
      %p904 = scmp.eq.s32.totalorder %s90, 1
      %p905 = por %p903, %p904
      %p907 = scmp.ne.s32.totalorder %s890, %s906
      %p908 = scmp.eq.s32.totalorder %s90, 0
      %p909 = por %p907, %p908
      %p910 = scmp.le.s32.totalorder 1, %s84
      %p911 = scmp.lt.s32.totalorder %s84, 3
      %p912 = pnand %p910, %p911
      %p913 = pneg %p912
      // Predicated region
      $region9: #{tpu_custom_call.1} parent=5 // pred_check
        _
      $region10: #{tpu_custom_call.1} parent=5 // pred_check_branch
        %915 = sbr.rel (%p912) target = $region12
      $region11: #{tpu_custom_call.1} parent=5 // pred_region
        %s916 = ssub.s32 %s84, 1
        // Predicated region
        $region13: #{tpu_custom_call.1} parent=11 // pred_check
          %p917 = pneg %p183
        $region14: #{tpu_custom_call.1} parent=11 // pred_check_branch
          %919 = sbr.rel (%p917) target = $region16
        $region15: #{tpu_custom_call.1} parent=11 // pred_region
          _
        $region16: #{tpu_custom_call.1} parent=11 // pred_fallthru
          _
        // Predicated region
        $region17: #{tpu_custom_call.1} parent=11 // pred_check
          %p920 = pneg %p204
        $region18: #{tpu_custom_call.1} parent=11 // pred_check_branch
          %922 = sbr.rel (%p920) target = $region20
        $region19: #{tpu_custom_call.1} parent=11 // pred_region
          _
        $region20: #{tpu_custom_call.1} parent=11 // pred_fallthru
          _
        // Predicated region
        $region21: #{tpu_custom_call.1} parent=11 // pred_check
          %p923 = pneg %p225
        $region22: #{tpu_custom_call.1} parent=11 // pred_check_branch
          %925 = sbr.rel (%p923) target = $region24
        $region23: #{tpu_custom_call.1} parent=11 // pred_region
          _
        $region24: #{tpu_custom_call.1} parent=11 // pred_fallthru
          _
        // Predicated region
        $region25: #{tpu_custom_call.1} parent=11 // pred_check
          %p926 = pneg %p246
        $region26: #{tpu_custom_call.1} parent=11 // pred_check_branch
          %928 = sbr.rel (%p926) target = $region28
        $region27: #{tpu_custom_call.1} parent=11 // pred_region
          _
        $region28: #{tpu_custom_call.1} parent=11 // pred_fallthru
          _
        // Predicated region
        $region29: #{tpu_custom_call.1} parent=11 // pred_check
          %p929 = pneg %p267
        $region30: #{tpu_custom_call.1} parent=11 // pred_check_branch
          %931 = sbr.rel (%p929) target = $region32
        $region31: #{tpu_custom_call.1} parent=11 // pred_region
          _
        $region32: #{tpu_custom_call.1} parent=11 // pred_fallthru
          _
        // Predicated region
        $region33: #{tpu_custom_call.1} parent=11 // pred_check
          %p932 = pneg %p288
        $region34: #{tpu_custom_call.1} parent=11 // pred_check_branch
          %934 = sbr.rel (%p932) target = $region36
        $region35: #{tpu_custom_call.1} parent=11 // pred_region
          _
        $region36: #{tpu_custom_call.1} parent=11 // pred_fallthru
          _
        // Predicated region
        $region37: #{tpu_custom_call.1} parent=11 // pred_check
          %p935 = pneg %p309
        $region38: #{tpu_custom_call.1} parent=11 // pred_check_branch
          %937 = sbr.rel (%p935) target = $region40
        $region39: #{tpu_custom_call.1} parent=11 // pred_region
          _
        $region40: #{tpu_custom_call.1} parent=11 // pred_fallthru
          _
        // Predicated region
        $region41: #{tpu_custom_call.1} parent=11 // pred_check
          %p938 = pneg %p330
        $region42: #{tpu_custom_call.1} parent=11 // pred_check_branch
          %940 = sbr.rel (%p938) target = $region44
        $region43: #{tpu_custom_call.1} parent=11 // pred_region
          _
        $region44: #{tpu_custom_call.1} parent=11 // pred_fallthru
          _
        // Predicated region
        $region45: #{tpu_custom_call.1} parent=11 // pred_check
          %p941 = pneg %p351
        $region46: #{tpu_custom_call.1} parent=11 // pred_check_branch
          %943 = sbr.rel (%p941) target = $region48
        $region47: #{tpu_custom_call.1} parent=11 // pred_region
          _
        $region48: #{tpu_custom_call.1} parent=11 // pred_fallthru
          _
        // Predicated region
        $region49: #{tpu_custom_call.1} parent=11 // pred_check
          %p944 = pneg %p372
        $region50: #{tpu_custom_call.1} parent=11 // pred_check_branch
          %946 = sbr.rel (%p944) target = $region52
        $region51: #{tpu_custom_call.1} parent=11 // pred_region
          _
        $region52: #{tpu_custom_call.1} parent=11 // pred_fallthru
          _
        // Predicated region
        $region53: #{tpu_custom_call.1} parent=11 // pred_check
          %p947 = pneg %p393
        $region54: #{tpu_custom_call.1} parent=11 // pred_check_branch
          %949 = sbr.rel (%p947) target = $region56
        $region55: #{tpu_custom_call.1} parent=11 // pred_region
          _
        $region56: #{tpu_custom_call.1} parent=11 // pred_fallthru
          _
        // Predicated region
        $region57: #{tpu_custom_call.1} parent=11 // pred_check
          %p950 = pneg %p414
        $region58: #{tpu_custom_call.1} parent=11 // pred_check_branch
          %952 = sbr.rel (%p950) target = $region60
        $region59: #{tpu_custom_call.1} parent=11 // pred_region
          _
        $region60: #{tpu_custom_call.1} parent=11 // pred_fallthru
          _
        // Predicated region
        $region61: #{tpu_custom_call.1} parent=11 // pred_check
          %p953 = pneg %p435
        $region62: #{tpu_custom_call.1} parent=11 // pred_check_branch
          %955 = sbr.rel (%p953) target = $region64
        $region63: #{tpu_custom_call.1} parent=11 // pred_region
          _
        $region64: #{tpu_custom_call.1} parent=11 // pred_fallthru
          _
        // Predicated region
        $region65: #{tpu_custom_call.1} parent=11 // pred_check
          %p956 = pneg %p456
        $region66: #{tpu_custom_call.1} parent=11 // pred_check_branch
          %958 = sbr.rel (%p956) target = $region68
        $region67: #{tpu_custom_call.1} parent=11 // pred_region
          _
        $region68: #{tpu_custom_call.1} parent=11 // pred_fallthru
          _
        // Predicated region
        $region69: #{tpu_custom_call.1} parent=11 // pred_check
          %p959 = pneg %p477
        $region70: #{tpu_custom_call.1} parent=11 // pred_check_branch
          %961 = sbr.rel (%p959) target = $region72
        $region71: #{tpu_custom_call.1} parent=11 // pred_region
          _
        $region72: #{tpu_custom_call.1} parent=11 // pred_fallthru
          _
        // Predicated region
        $region73: #{tpu_custom_call.1} parent=11 // pred_check
          %p962 = pneg %p498
        $region74: #{tpu_custom_call.1} parent=11 // pred_check_branch
          %964 = sbr.rel (%p962) target = $region76
        $region75: #{tpu_custom_call.1} parent=11 // pred_region
          _
        $region76: #{tpu_custom_call.1} parent=11 // pred_fallthru
          _
        // Predicated region
        $region77: #{tpu_custom_call.1} parent=11 // pred_check
          %p965 = pneg %p519
        $region78: #{tpu_custom_call.1} parent=11 // pred_check_branch
          %967 = sbr.rel (%p965) target = $region80
        $region79: #{tpu_custom_call.1} parent=11 // pred_region
          _
        $region80: #{tpu_custom_call.1} parent=11 // pred_fallthru
          _
        // Predicated region
        $region81: #{tpu_custom_call.1} parent=11 // pred_check
          %p968 = pneg %p540
        $region82: #{tpu_custom_call.1} parent=11 // pred_check_branch
          %970 = sbr.rel (%p968) target = $region84
        $region83: #{tpu_custom_call.1} parent=11 // pred_region
          _
        $region84: #{tpu_custom_call.1} parent=11 // pred_fallthru
          _
        // Predicated region
        $region85: #{tpu_custom_call.1} parent=11 // pred_check
          %p971 = pneg %p561
        $region86: #{tpu_custom_call.1} parent=11 // pred_check_branch
          %973 = sbr.rel (%p971) target = $region88
        $region87: #{tpu_custom_call.1} parent=11 // pred_region
          _
        $region88: #{tpu_custom_call.1} parent=11 // pred_fallthru
          _
        // Predicated region
        $region89: #{tpu_custom_call.1} parent=11 // pred_check
          %p974 = pneg %p582
        $region90: #{tpu_custom_call.1} parent=11 // pred_check_branch
          %976 = sbr.rel (%p974) target = $region92
        $region91: #{tpu_custom_call.1} parent=11 // pred_region
          _
        $region92: #{tpu_custom_call.1} parent=11 // pred_fallthru
          _
        // Predicated region
        $region93: #{tpu_custom_call.1} parent=11 // pred_check
          %p977 = pneg %p603
        $region94: #{tpu_custom_call.1} parent=11 // pred_check_branch
          %979 = sbr.rel (%p977) target = $region96
        $region95: #{tpu_custom_call.1} parent=11 // pred_region
          _
        $region96: #{tpu_custom_call.1} parent=11 // pred_fallthru
          _
        // Predicated region
        $region97: #{tpu_custom_call.1} parent=11 // pred_check
          %p980 = pneg %p624
        $region98: #{tpu_custom_call.1} parent=11 // pred_check_branch
          %982 = sbr.rel (%p980) target = $region100
        $region99: #{tpu_custom_call.1} parent=11 // pred_region
          _
        $region100: #{tpu_custom_call.1} parent=11 // pred_fallthru
          _
        // Predicated region
        $region101: #{tpu_custom_call.1} parent=11 // pred_check
          %p983 = pneg %p645
        $region102: #{tpu_custom_call.1} parent=11 // pred_check_branch
          %985 = sbr.rel (%p983) target = $region104
        $region103: #{tpu_custom_call.1} parent=11 // pred_region
          _
        $region104: #{tpu_custom_call.1} parent=11 // pred_fallthru
          _
        // Predicated region
        $region105: #{tpu_custom_call.1} parent=11 // pred_check
          %p986 = pneg %p666
        $region106: #{tpu_custom_call.1} parent=11 // pred_check_branch
          %988 = sbr.rel (%p986) target = $region108
        $region107: #{tpu_custom_call.1} parent=11 // pred_region
          _
        $region108: #{tpu_custom_call.1} parent=11 // pred_fallthru
          _
        // Predicated region
        $region109: #{tpu_custom_call.1} parent=11 // pred_check
          %p989 = pneg %p687
        $region110: #{tpu_custom_call.1} parent=11 // pred_check_branch
          %991 = sbr.rel (%p989) target = $region112
        $region111: #{tpu_custom_call.1} parent=11 // pred_region
          _
        $region112: #{tpu_custom_call.1} parent=11 // pred_fallthru
          _
        // Predicated region
        $region113: #{tpu_custom_call.1} parent=11 // pred_check
          %p992 = pneg %p708
        $region114: #{tpu_custom_call.1} parent=11 // pred_check_branch
          %994 = sbr.rel (%p992) target = $region116
        $region115: #{tpu_custom_call.1} parent=11 // pred_region
          _
        $region116: #{tpu_custom_call.1} parent=11 // pred_fallthru
          _
        // Predicated region
        $region117: #{tpu_custom_call.1} parent=11 // pred_check
          %p995 = pneg %p729
        $region118: #{tpu_custom_call.1} parent=11 // pred_check_branch
          %997 = sbr.rel (%p995) target = $region120
        $region119: #{tpu_custom_call.1} parent=11 // pred_region
          _
        $region120: #{tpu_custom_call.1} parent=11 // pred_fallthru
          _
        // Predicated region
        $region121: #{tpu_custom_call.1} parent=11 // pred_check
          %p998 = pneg %p750
        $region122: #{tpu_custom_call.1} parent=11 // pred_check_branch
          %1000 = sbr.rel (%p998) target = $region124
        $region123: #{tpu_custom_call.1} parent=11 // pred_region
          _
        $region124: #{tpu_custom_call.1} parent=11 // pred_fallthru
          _
        // Predicated region
        $region125: #{tpu_custom_call.1} parent=11 // pred_check
          %p1001 = pneg %p771
        $region126: #{tpu_custom_call.1} parent=11 // pred_check_branch
          %1003 = sbr.rel (%p1001) target = $region128
        $region127: #{tpu_custom_call.1} parent=11 // pred_region
          _
        $region128: #{tpu_custom_call.1} parent=11 // pred_fallthru
          _
        // Predicated region
        $region129: #{tpu_custom_call.1} parent=11 // pred_check
          %p1004 = pneg %p792
        $region130: #{tpu_custom_call.1} parent=11 // pred_check_branch
          %1006 = sbr.rel (%p1004) target = $region132
        $region131: #{tpu_custom_call.1} parent=11 // pred_region
          _
        $region132: #{tpu_custom_call.1} parent=11 // pred_fallthru
          _
        // Predicated region
        $region133: #{tpu_custom_call.1} parent=11 // pred_check
          %p1007 = pneg %p813
        $region134: #{tpu_custom_call.1} parent=11 // pred_check_branch
          %1009 = sbr.rel (%p1007) target = $region136
        $region135: #{tpu_custom_call.1} parent=11 // pred_region
          _
        $region136: #{tpu_custom_call.1} parent=11 // pred_fallthru
          _
        // Predicated region
        $region137: #{tpu_custom_call.1} parent=11 // pred_check
          %p1010 = pneg %p834
        $region138: #{tpu_custom_call.1} parent=11 // pred_check_branch
          %1012 = sbr.rel (%p1010) target = $region140
        $region139: #{tpu_custom_call.1} parent=11 // pred_region
          _
        $region140: #{tpu_custom_call.1} parent=11 // pred_fallthru
          _
        // Predicated region
        $region141: #{tpu_custom_call.1} parent=11 // pred_check
          %p1013 = pneg %p855
        $region142: #{tpu_custom_call.1} parent=11 // pred_check_branch
          %1015 = sbr.rel (%p1013) target = $region144
        $region143: #{tpu_custom_call.1} parent=11 // pred_region
          _
        $region144: #{tpu_custom_call.1} parent=11 // pred_fallthru
          _
        // Predicated region
        $region145: #{tpu_custom_call.1} parent=11 // pred_check
          %p1016 = pneg %p876
        $region146: #{tpu_custom_call.1} parent=11 // pred_check_branch
          %1018 = sbr.rel (%p1016) target = $region148
        $region147: #{tpu_custom_call.1} parent=11 // pred_region
          _
        $region148: #{tpu_custom_call.1} parent=11 // pred_fallthru
          _
      $region12: #{tpu_custom_call.1} parent=5 // pred_fallthru
        _
      %p1019 = scmp.lt.s32.totalorder %s84, 2
      // Predicated region
      $region149: #{tpu_custom_call.1} parent=5 // pred_check
        %p1020 = pneg %p1019
      $region150: #{tpu_custom_call.1} parent=5 // pred_check_branch
        %1022 = sbr.rel (%p1020) target = $region152
      $region151: #{tpu_custom_call.1} parent=5 // pred_region
        // Predicated region
        $region153: #{tpu_custom_call.1} parent=151 // pred_check
          %p1023 = pneg %p104
        $region154: #{tpu_custom_call.1} parent=151 // pred_check_branch
          %1025 = sbr.rel (%p1023) target = $region156
        $region155: #{tpu_custom_call.1} parent=151 // pred_region
          %p1026 = scmp.lt.s32.totalorder %s84, 1
          %s1027 = scalar_select %p1026, %s84, 1
          %s1028 = smul.addr %s1027, 4
          %s1029 = scalar_lea.vmem %s1, %s1028
        $region156: #{tpu_custom_call.1} parent=151 // pred_fallthru
          _
        // Predicated region
        $region157: #{tpu_custom_call.1} parent=151 // pred_check
          %p1030 = pneg %p130
        $region158: #{tpu_custom_call.1} parent=151 // pred_check_branch
          %1032 = sbr.rel (%p1030) target = $region160
        $region159: #{tpu_custom_call.1} parent=151 // pred_region
          %p1033 = scmp.lt.s32.totalorder %s84, 1
          %s1034 = scalar_select %p1033, %s84, 1
          %s1035 = scalar_lea.vmem %s3, %s1034
        $region160: #{tpu_custom_call.1} parent=151 // pred_fallthru
          _
        // Predicated region
        $region161: #{tpu_custom_call.1} parent=151 // pred_check
          %p1036 = pneg %p156
        $region162: #{tpu_custom_call.1} parent=151 // pred_check_branch
          %1038 = sbr.rel (%p1036) target = $region164
        $region163: #{tpu_custom_call.1} parent=151 // pred_region
          %p1039 = scmp.lt.s32.totalorder %s84, 1
          %s1040 = scalar_select %p1039, %s84, 1
          %s1041 = smul.addr %s1040, 8
          %s1042 = scalar_lea.vmem %s5, %s1041
        $region164: #{tpu_custom_call.1} parent=151 // pred_fallthru
          _
      $region152: #{tpu_custom_call.1} parent=5 // pred_fallthru
        _
      %p1043 = scmp.le.s32.totalorder 1, %s84
      %p1044 = scmp.lt.s32.totalorder %s84, 3
      %p1045 = pnand %p1043, %p1044
      %p1046 = pneg %p1045
      // Predicated region
      $region165: #{tpu_custom_call.1} parent=5 // pred_check
        _
      $region166: #{tpu_custom_call.1} parent=5 // pred_check_branch
        %1048 = sbr.rel (%p1045) target = $region168
      $region167: #{tpu_custom_call.1} parent=5 // pred_region
        %s1049 = ssub.s32 %s84, 1
        %p1050 = scmp.lt.s32.totalorder %s89, 1
        %s1051 = scalar_select %p1050, %s89, 1
        %s1052 = smul.addr %s1051, 4
        %s1053 = scalar_lea.vmem %s1, %s1052
        %p1054 = pneg %p110
        %p1055 = pneg %p107
        %p1056 = scmp.lt.s32.totalorder %s89, 1
        %s1057 = scalar_select %p1056, %s89, 1
        %s1058 = scalar_lea.vmem %s3, %s1057
        %p1059 = pneg %p136
        %p1060 = pneg %p133
        %p1061 = scmp.lt.s32.totalorder %s89, 1
        %s1062 = scalar_select %p1061, %s89, 1
        %s1063 = smul.addr %s1062, 8
        %s1064 = scalar_lea.vmem %s5, %s1063
        %p1065 = pneg %p162
        %p1066 = pneg %p159
        %p1067 = pneg %p183
        %p1068 = pneg %p180
        %p1069 = pneg %p204
        %p1070 = pneg %p201
        %p1071 = pneg %p225
        %p1072 = pneg %p222
        %p1073 = pneg %p246
        %p1074 = pneg %p243
        %p1075 = pneg %p267
        %p1076 = pneg %p264
        %p1077 = pneg %p288
        %p1078 = pneg %p285
        %p1079 = pneg %p309
        %p1080 = pneg %p306
        %p1081 = pneg %p330
        %p1082 = pneg %p327
        %p1083 = pneg %p351
        %p1084 = pneg %p348
        %p1085 = pneg %p372
        %p1086 = pneg %p369
        %p1087 = pneg %p393
        %p1088 = pneg %p390
        %p1089 = pneg %p414
        %p1090 = pneg %p411
        %p1091 = pneg %p435
        %p1092 = pneg %p432
        %p1093 = pneg %p456
        %p1094 = pneg %p453
        %p1095 = pneg %p477
        %p1096 = pneg %p474
        %p1097 = pneg %p498
        %p1098 = pneg %p495
        %p1099 = pneg %p519
        %p1100 = pneg %p516
        %p1101 = pneg %p540
        %p1102 = pneg %p537
        %p1103 = pneg %p561
        %p1104 = pneg %p558
        %p1105 = pneg %p582
        %p1106 = pneg %p579
        %p1107 = pneg %p603
        %p1108 = pneg %p600
        %p1109 = pneg %p624
        %p1110 = pneg %p621
        %p1111 = pneg %p645
        %p1112 = pneg %p642
        %p1113 = pneg %p666
        %p1114 = pneg %p663
        %p1115 = pneg %p687
        %p1116 = pneg %p684
        %p1117 = pneg %p708
        %p1118 = pneg %p705
        %p1119 = pneg %p729
        %p1120 = pneg %p726
        %p1121 = pneg %p750
        %p1122 = pneg %p747
        %p1123 = pneg %p771
        %p1124 = pneg %p768
        %p1125 = pneg %p792
        %p1126 = pneg %p789
        %p1127 = pneg %p813
        %p1128 = pneg %p810
        %p1129 = pneg %p834
        %p1130 = pneg %p831
        %p1131 = pneg %p855
        %p1132 = pneg %p852
        %p1133 = pneg %p876
        %p1134 = pneg %p873
        %p1135 = pneg %p902
        %p1136 = pneg %p899
        %s1137 = sand.u32 %s889, 1
        %s1138 = scalar_lea.sflag [#allocation3], %s1137
        %s1139 = sand.u32 %s889, 1
        %s1140 = scalar_lea.vmem [#allocation2], %s1139
        %p1141 = scmp.lt.s32.totalorder %s89, 1
        %s1142 = scalar_select %p1141, %s89, 1
        %s1143 = smul.addr %s1142, 4
        %s1144 = scalar_lea.vmem %s1, %s1143
        %p1145 = scmp.lt.s32.totalorder %s89, 1
        %s1146 = scalar_select %p1145, %s89, 1
        %s1147 = scalar_lea.vmem %s3, %s1146
        %p1148 = scmp.lt.s32.totalorder %s89, 1
        %s1149 = scalar_select %p1148, %s89, 1
        %s1150 = smul.addr %s1149, 8
        %s1151 = scalar_lea.vmem %s5, %s1150
        %v1153 = vld [vmem:[%s1144] sm:$0xf]
        %v1154 = vunpack.c.l.bf16 %v1153
        %v1155 = vld [vmem:[%s7] sm:$0x1]
        %v1156 = vld [vmem:[%s9] sm:$0x1]
        %vm1157 = vcmask 261120
        %v1158 = vsel %vm1157, %v1154, 0.0
        %1159 = vadd.xlane.f32.xlu0 %v1158
        %v1160 = vpop.xlane.xlu0 %1159
        %v1161 = vrcp.pop 32.0
        %v1162 = vmul.f32 %v1160, %v1161
        %v1163 = vsub.f32 %v1154, %v1162
        %v1164 = vmul.f32 %v1163, %v1163
        %v1165 = vsel %vm1157, %v1164, 0.0
        %1166 = vadd.xlane.f32.xlu0 %v1165
        %v1167 = vpop.xlane.xlu0 %1166
        %v1168 = vmul.f32 %v1167, %v1161
        %v1169 = vadd.f32 %v1168, 1e-12
        %v1170 = vrsqrt.pop %v1169
        %v1171 = vmul.f32 %v1163, %v1170
        %v1173 = vlaneseq
        %v1174 = vshrl.u32 %v1173, 7
        %v1175 = vsub.s32 0, %v1174
        %v1176 = vrot.slane %v1155, %v1175
        %v1178 = vmul.f32 %v1171, %v1176
        %v1180 = vlaneseq
        %v1181 = vshrl.u32 %v1180, 7
        %v1182 = vsub.s32 0, %v1181
        %v1183 = vrot.slane %v1156, %v1182
        %v1185 = vadd.f32 %v1178, %v1183
        %v1186 = vld [vmem:[%s1147] sm:$0x1]
        %v1187 = vpack.c.bf16 %v1185, %v1185
        %v1188 = vld [vmem:[%s11] sm:$0xf]
        %v1189 = vld [vmem:[%s11 + $0x4] sm:$0xf]
        %v1190 = vld [vmem:[%s11 + $0x8] sm:$0xf]
        %v1191 = vld [vmem:[%s11 + $0xc] sm:$0xf]
        %v1192 = vld [vmem:[%s11 + $0x10] sm:$0xf]
        %v1193 = vld [vmem:[%s11 + $0x14] sm:$0xf]
        %v1194 = vld [vmem:[%s11 + $0x18] sm:$0xf]
        %v1195 = vld [vmem:[%s11 + $0x1c] sm:$0xf]
        %v1196 = vld [vmem:[%s11 + $0x20] sm:$0xf]
        %v1197 = vld [vmem:[%s11 + $0x24] sm:$0xf]
        %v1198 = vld [vmem:[%s11 + $0x28] sm:$0xf]
        %v1199 = vld [vmem:[%s11 + $0x2c] sm:$0xf]
        %v1200 = vld [vmem:[%s11 + $0x30] sm:$0xf]
        %v1201 = vld [vmem:[%s11 + $0x34] sm:$0xf]
        %v1202 = vld [vmem:[%s11 + $0x38] sm:$0xf]
        %v1203 = vld [vmem:[%s11 + $0x3c] sm:$0xf]
        %v1204 = vld [vmem:[%s13] sm:$0x1]
        %v1205 = vld [vmem:[%s13 + $0x1] sm:$0x1]
        %v1206 = vld [vmem:[%s13 + $0x2] sm:$0x1]
        %v1207 = vld [vmem:[%s13 + $0x3] sm:$0x1]
        %v1212 = vlaneseq
        %v1213 = vshrl.u32 %v1212, 7
        %v1214 = vsub.s32 0, %v1213
        %v1215 = vrot.slane %v1204, %v1214
        %v1216 = vlaneseq
        %v1217 = vshrl.u32 %v1216, 7
        %v1218 = vsub.s32 0, %v1217
        %v1219 = vrot.slane %v1205, %v1218
        %v1220 = vlaneseq
        %v1221 = vshrl.u32 %v1220, 7
        %v1222 = vsub.s32 0, %v1221
        %v1223 = vrot.slane %v1206, %v1222
        %v1224 = vlaneseq
        %v1225 = vshrl.u32 %v1224, 7
        %v1226 = vsub.s32 0, %v1225
        %v1227 = vrot.slane %v1207, %v1226
        %v1236 = vunpack.c.l.b16 %v1188
        %v1237 = vunpack.c.l.b16 %v1189
        %v1238 = vunpack.c.l.b16 %v1190
        %v1239 = vunpack.c.l.b16 %v1191
        %v1240 = vpack.c.b16 %v1237, %v1236
        %v1241 = vpack.c.b16 %v1239, %v1238
        %v1245 = vsel %vm1157, %v1187, 0
        %1247 = vmatprep.subr.bf16.mxu0 0
        %1248 = vmatpush1.bf16.msra.mxu0 %v1240
        %1249 = vmatprep.subr.bf16.mxu0 0
        %1250 = vmatpush1.bf16.msra.mxu0 %v1241
        %1251 = vmatprep.subr.bf16.mxu0 0
        %1252 = vmatpush1.bf16.msra.mxu0 0
        %1253 = vmatprep.subr.bf16.mxu0 0
        %1254 = vmatpush1.bf16.msra.mxu0 0
        %1255 = vmatprep.subr.bf16.mxu0 0
        %1256 = vmatpush1.bf16.msra.mxu0 0
        %1257 = vmatprep.subr.bf16.mxu0 0
        %1258 = vmatpush1.bf16.msra.mxu0 0
        %1259 = vmatprep.subr.bf16.mxu0 0
        %1260 = vmatpush1.bf16.msra.mxu0 0
        %1261 = vmatprep.subr.bf16.mxu0 0
        %1262 = vmatpush1.bf16.msra.mxu0 0
        %1263 = vmatprep.subr.bf16.mxu0 0
        %1264 = vmatpush1.bf16.msra.mxu0 0
        %1265 = vmatprep.subr.bf16.mxu0 0
        %1266 = vmatpush1.bf16.msra.mxu0 0
        %1267 = vmatprep.subr.bf16.mxu0 0
        %1268 = vmatpush1.bf16.msra.mxu0 0
        %1269 = vmatprep.subr.bf16.mxu0 0
        %1270 = vmatpush1.bf16.msra.mxu0 0
        %1271 = vmatprep.subr.bf16.mxu0 0
        %1272 = vmatpush1.bf16.msra.mxu0 0
        %1273 = vmatprep.subr.bf16.mxu0 0
        %1274 = vmatpush1.bf16.msra.mxu0 0
        %1275 = vmatprep.subr.bf16.mxu0 0
        %1276 = vmatpush1.bf16.msra.mxu0 0
        %1277 = vmatprep.subr.bf16.mxu0 0
        %1278 = vmatpush1.bf16.msra.mxu0 0
        %1279 = vmatprep.mubr.bf16.mxu0 0
        %1280 = vmatmul.mubr.bf16.gmra.mrb[0].mxu0 %v1245
        %v1281 = vpop.f32.mrb[0].mxu0
        %v1282 = vadd.f32 %v1215, %v1281
        %v1283 = vpop.f32.mrb[0].mxu0
        %v1284 = vpop.f32.mrb[0].mxu0
        %v1285 = vpop.f32.mrb[0].mxu0
        %1286 = vdwg.mxu0
        %v1291 = vunpack.c.l.b16 %v1192
        %v1292 = vunpack.c.l.b16 %v1193
        %v1293 = vunpack.c.l.b16 %v1194
        %v1294 = vunpack.c.l.b16 %v1195
        %v1295 = vpack.c.b16 %v1292, %v1291
        %v1296 = vpack.c.b16 %v1294, %v1293
        %1299 = vmatprep.subr.bf16.mxu0 0
        %1300 = vmatpush1.bf16.msra.mxu0 %v1295
        %1301 = vmatprep.subr.bf16.mxu0 0
        %1302 = vmatpush1.bf16.msra.mxu0 %v1296
        %1303 = vmatprep.subr.bf16.mxu0 0
        %1304 = vmatpush1.bf16.msra.mxu0 0
        %1305 = vmatprep.subr.bf16.mxu0 0
        %1306 = vmatpush1.bf16.msra.mxu0 0
        %1307 = vmatprep.subr.bf16.mxu0 0
        %1308 = vmatpush1.bf16.msra.mxu0 0
        %1309 = vmatprep.subr.bf16.mxu0 0
        %1310 = vmatpush1.bf16.msra.mxu0 0
        %1311 = vmatprep.subr.bf16.mxu0 0
        %1312 = vmatpush1.bf16.msra.mxu0 0
        %1313 = vmatprep.subr.bf16.mxu0 0
        %1314 = vmatpush1.bf16.msra.mxu0 0
        %1315 = vmatprep.subr.bf16.mxu0 0
        %1316 = vmatpush1.bf16.msra.mxu0 0
        %1317 = vmatprep.subr.bf16.mxu0 0
        %1318 = vmatpush1.bf16.msra.mxu0 0
        %1319 = vmatprep.subr.bf16.mxu0 0
        %1320 = vmatpush1.bf16.msra.mxu0 0
        %1321 = vmatprep.subr.bf16.mxu0 0
        %1322 = vmatpush1.bf16.msra.mxu0 0
        %1323 = vmatprep.subr.bf16.mxu0 0
        %1324 = vmatpush1.bf16.msra.mxu0 0
        %1325 = vmatprep.subr.bf16.mxu0 0
        %1326 = vmatpush1.bf16.msra.mxu0 0
        %1327 = vmatprep.subr.bf16.mxu0 0
        %1328 = vmatpush1.bf16.msra.mxu0 0
        %1329 = vmatprep.subr.bf16.mxu0 0
        %1330 = vmatpush1.bf16.msra.mxu0 0
        %1331 = vmatprep.mubr.bf16.mxu0 0
        %1332 = vmatmul.mubr.bf16.gmra.mrb[0].mxu0 %v1245
        %v1333 = vpop.f32.mrb[0].mxu0
        %v1334 = vadd.f32 %v1219, %v1333
        %v1335 = vpop.f32.mrb[0].mxu0
        %v1336 = vpop.f32.mrb[0].mxu0
        %v1337 = vpop.f32.mrb[0].mxu0
        %1338 = vdwg.mxu0
        %v1343 = vunpack.c.l.b16 %v1196
        %v1344 = vunpack.c.l.b16 %v1197
        %v1345 = vunpack.c.l.b16 %v1198
        %v1346 = vunpack.c.l.b16 %v1199
        %v1347 = vpack.c.b16 %v1344, %v1343
        %v1348 = vpack.c.b16 %v1346, %v1345
        %1351 = vmatprep.subr.bf16.mxu0 0
        %1352 = vmatpush1.bf16.msra.mxu0 %v1347
        %1353 = vmatprep.subr.bf16.mxu0 0
        %1354 = vmatpush1.bf16.msra.mxu0 %v1348
        %1355 = vmatprep.subr.bf16.mxu0 0
        %1356 = vmatpush1.bf16.msra.mxu0 0
        %1357 = vmatprep.subr.bf16.mxu0 0
        %1358 = vmatpush1.bf16.msra.mxu0 0
        %1359 = vmatprep.subr.bf16.mxu0 0
        %1360 = vmatpush1.bf16.msra.mxu0 0
        %1361 = vmatprep.subr.bf16.mxu0 0
        %1362 = vmatpush1.bf16.msra.mxu0 0
        %1363 = vmatprep.subr.bf16.mxu0 0
        %1364 = vmatpush1.bf16.msra.mxu0 0
        %1365 = vmatprep.subr.bf16.mxu0 0
        %1366 = vmatpush1.bf16.msra.mxu0 0
        %1367 = vmatprep.subr.bf16.mxu0 0
        %1368 = vmatpush1.bf16.msra.mxu0 0
        %1369 = vmatprep.subr.bf16.mxu0 0
        %1370 = vmatpush1.bf16.msra.mxu0 0
        %1371 = vmatprep.subr.bf16.mxu0 0
        %1372 = vmatpush1.bf16.msra.mxu0 0
        %1373 = vmatprep.subr.bf16.mxu0 0
        %1374 = vmatpush1.bf16.msra.mxu0 0
        %1375 = vmatprep.subr.bf16.mxu0 0
        %1376 = vmatpush1.bf16.msra.mxu0 0
        %1377 = vmatprep.subr.bf16.mxu0 0
        %1378 = vmatpush1.bf16.msra.mxu0 0
        %1379 = vmatprep.subr.bf16.mxu0 0
        %1380 = vmatpush1.bf16.msra.mxu0 0
        %1381 = vmatprep.subr.bf16.mxu0 0
        %1382 = vmatpush1.bf16.msra.mxu0 0
        %1383 = vmatprep.mubr.bf16.mxu0 0
        %1384 = vmatmul.mubr.bf16.gmra.mrb[0].mxu0 %v1245
        %v1385 = vpop.f32.mrb[0].mxu0
        %v1386 = vadd.f32 %v1223, %v1385
        %v1387 = vpop.f32.mrb[0].mxu0
        %v1388 = vpop.f32.mrb[0].mxu0
        %v1389 = vpop.f32.mrb[0].mxu0
        %1390 = vdwg.mxu0
        %v1395 = vunpack.c.l.b16 %v1200
        %v1396 = vunpack.c.l.b16 %v1201
        %v1397 = vunpack.c.l.b16 %v1202
        %v1398 = vunpack.c.l.b16 %v1203
        %v1399 = vpack.c.b16 %v1396, %v1395
        %v1400 = vpack.c.b16 %v1398, %v1397
        %1403 = vmatprep.subr.bf16.mxu0 0
        %1404 = vmatpush1.bf16.msra.mxu0 %v1399
        %1405 = vmatprep.subr.bf16.mxu0 0
        %1406 = vmatpush1.bf16.msra.mxu0 %v1400
        %1407 = vmatprep.subr.bf16.mxu0 0
        %1408 = vmatpush1.bf16.msra.mxu0 0
        %1409 = vmatprep.subr.bf16.mxu0 0
        %1410 = vmatpush1.bf16.msra.mxu0 0
        %1411 = vmatprep.subr.bf16.mxu0 0
        %1412 = vmatpush1.bf16.msra.mxu0 0
        %1413 = vmatprep.subr.bf16.mxu0 0
        %1414 = vmatpush1.bf16.msra.mxu0 0
        %1415 = vmatprep.subr.bf16.mxu0 0
        %1416 = vmatpush1.bf16.msra.mxu0 0
        %1417 = vmatprep.subr.bf16.mxu0 0
        %1418 = vmatpush1.bf16.msra.mxu0 0
        %1419 = vmatprep.subr.bf16.mxu0 0
        %1420 = vmatpush1.bf16.msra.mxu0 0
        %1421 = vmatprep.subr.bf16.mxu0 0
        %1422 = vmatpush1.bf16.msra.mxu0 0
        %1423 = vmatprep.subr.bf16.mxu0 0
        %1424 = vmatpush1.bf16.msra.mxu0 0
        %1425 = vmatprep.subr.bf16.mxu0 0
        %1426 = vmatpush1.bf16.msra.mxu0 0
        %1427 = vmatprep.subr.bf16.mxu0 0
        %1428 = vmatpush1.bf16.msra.mxu0 0
        %1429 = vmatprep.subr.bf16.mxu0 0
        %1430 = vmatpush1.bf16.msra.mxu0 0
        %1431 = vmatprep.subr.bf16.mxu0 0
        %1432 = vmatpush1.bf16.msra.mxu0 0
        %1433 = vmatprep.subr.bf16.mxu0 0
        %1434 = vmatpush1.bf16.msra.mxu0 0
        %1435 = vmatprep.mubr.bf16.mxu0 0
        %1436 = vmatmul.mubr.bf16.gmra.mrb[0].mxu0 %v1245
        %v1437 = vpop.f32.mrb[0].mxu0
        %v1438 = vadd.f32 %v1227, %v1437
        %v1439 = vpop.f32.mrb[0].mxu0
        %v1440 = vpop.f32.mrb[0].mxu0
        %v1441 = vpop.f32.mrb[0].mxu0
        %1442 = vdwg.mxu0
        %v1443 = vld [vmem:[%s15] sm:$0xf]
        %v1444 = vld [vmem:[%s15 + $0x4] sm:$0xf]
        %v1445 = vld [vmem:[%s15 + $0x8] sm:$0xf]
        %v1446 = vld [vmem:[%s15 + $0xc] sm:$0xf]
        %v1447 = vld [vmem:[%s15 + $0x10] sm:$0xf]
        %v1448 = vld [vmem:[%s15 + $0x14] sm:$0xf]
        %v1449 = vld [vmem:[%s15 + $0x18] sm:$0xf]
        %v1450 = vld [vmem:[%s15 + $0x1c] sm:$0xf]
        %v1451 = vld [vmem:[%s15 + $0x20] sm:$0xf]
        %v1452 = vld [vmem:[%s15 + $0x24] sm:$0xf]
        %v1453 = vld [vmem:[%s15 + $0x28] sm:$0xf]
        %v1454 = vld [vmem:[%s15 + $0x2c] sm:$0xf]
        %v1455 = vld [vmem:[%s15 + $0x30] sm:$0xf]
        %v1456 = vld [vmem:[%s15 + $0x34] sm:$0xf]
        %v1457 = vld [vmem:[%s15 + $0x38] sm:$0xf]
        %v1458 = vld [vmem:[%s15 + $0x3c] sm:$0xf]
        %v1459 = vld [vmem:[%s17] sm:$0x1]
        %v1460 = vld [vmem:[%s17 + $0x1] sm:$0x1]
        %v1461 = vld [vmem:[%s17 + $0x2] sm:$0x1]
        %v1462 = vld [vmem:[%s17 + $0x3] sm:$0x1]
        %v1467 = vlaneseq
        %v1468 = vshrl.u32 %v1467, 7
        %v1469 = vsub.s32 0, %v1468
        %v1470 = vrot.slane %v1459, %v1469
        %v1471 = vlaneseq
        %v1472 = vshrl.u32 %v1471, 7
        %v1473 = vsub.s32 0, %v1472
        %v1474 = vrot.slane %v1460, %v1473
        %v1475 = vlaneseq
        %v1476 = vshrl.u32 %v1475, 7
        %v1477 = vsub.s32 0, %v1476
        %v1478 = vrot.slane %v1461, %v1477
        %v1479 = vlaneseq
        %v1480 = vshrl.u32 %v1479, 7
        %v1481 = vsub.s32 0, %v1480
        %v1482 = vrot.slane %v1462, %v1481
        %v1491 = vunpack.c.l.b16 %v1443
        %v1492 = vunpack.c.l.b16 %v1444
        %v1493 = vunpack.c.l.b16 %v1445
        %v1494 = vunpack.c.l.b16 %v1446
        %v1495 = vpack.c.b16 %v1492, %v1491
        %v1496 = vpack.c.b16 %v1494, %v1493
        %1499 = vmatprep.subr.bf16.mxu0 0
        %1500 = vmatpush1.bf16.msra.mxu0 %v1495
        %1501 = vmatprep.subr.bf16.mxu0 0
        %1502 = vmatpush1.bf16.msra.mxu0 %v1496
        %1503 = vmatprep.subr.bf16.mxu0 0
        %1504 = vmatpush1.bf16.msra.mxu0 0
        %1505 = vmatprep.subr.bf16.mxu0 0
        %1506 = vmatpush1.bf16.msra.mxu0 0
        %1507 = vmatprep.subr.bf16.mxu0 0
        %1508 = vmatpush1.bf16.msra.mxu0 0
        %1509 = vmatprep.subr.bf16.mxu0 0
        %1510 = vmatpush1.bf16.msra.mxu0 0
        %1511 = vmatprep.subr.bf16.mxu0 0
        %1512 = vmatpush1.bf16.msra.mxu0 0
        %1513 = vmatprep.subr.bf16.mxu0 0
        %1514 = vmatpush1.bf16.msra.mxu0 0
        %1515 = vmatprep.subr.bf16.mxu0 0
        %1516 = vmatpush1.bf16.msra.mxu0 0
        %1517 = vmatprep.subr.bf16.mxu0 0
        %1518 = vmatpush1.bf16.msra.mxu0 0
        %1519 = vmatprep.subr.bf16.mxu0 0
        %1520 = vmatpush1.bf16.msra.mxu0 0
        %1521 = vmatprep.subr.bf16.mxu0 0
        %1522 = vmatpush1.bf16.msra.mxu0 0
        %1523 = vmatprep.subr.bf16.mxu0 0
        %1524 = vmatpush1.bf16.msra.mxu0 0
        %1525 = vmatprep.subr.bf16.mxu0 0
        %1526 = vmatpush1.bf16.msra.mxu0 0
        %1527 = vmatprep.subr.bf16.mxu0 0
        %1528 = vmatpush1.bf16.msra.mxu0 0
        %1529 = vmatprep.subr.bf16.mxu0 0
        %1530 = vmatpush1.bf16.msra.mxu0 0
        %1531 = vmatprep.mubr.bf16.mxu0 0
        %1532 = vmatmul.mubr.bf16.gmra.mrb[0].mxu0 %v1245
        %v1533 = vpop.f32.mrb[0].mxu0
        %v1534 = vadd.f32 %v1470, %v1533
        %v1535 = vpop.f32.mrb[0].mxu0
        %v1536 = vpop.f32.mrb[0].mxu0
        %v1537 = vpop.f32.mrb[0].mxu0
        %1538 = vdwg.mxu0
        %v1543 = vunpack.c.l.b16 %v1447
        %v1544 = vunpack.c.l.b16 %v1448
        %v1545 = vunpack.c.l.b16 %v1449
        %v1546 = vunpack.c.l.b16 %v1450
        %v1547 = vpack.c.b16 %v1544, %v1543
        %v1548 = vpack.c.b16 %v1546, %v1545
        %1551 = vmatprep.subr.bf16.mxu0 0
        %1552 = vmatpush1.bf16.msra.mxu0 %v1547
        %1553 = vmatprep.subr.bf16.mxu0 0
        %1554 = vmatpush1.bf16.msra.mxu0 %v1548
        %1555 = vmatprep.subr.bf16.mxu0 0
        %1556 = vmatpush1.bf16.msra.mxu0 0
        %1557 = vmatprep.subr.bf16.mxu0 0
        %1558 = vmatpush1.bf16.msra.mxu0 0
        %1559 = vmatprep.subr.bf16.mxu0 0
        %1560 = vmatpush1.bf16.msra.mxu0 0
        %1561 = vmatprep.subr.bf16.mxu0 0
        %1562 = vmatpush1.bf16.msra.mxu0 0
        %1563 = vmatprep.subr.bf16.mxu0 0
        %1564 = vmatpush1.bf16.msra.mxu0 0
        %1565 = vmatprep.subr.bf16.mxu0 0
        %1566 = vmatpush1.bf16.msra.mxu0 0
        %1567 = vmatprep.subr.bf16.mxu0 0
        %1568 = vmatpush1.bf16.msra.mxu0 0
        %1569 = vmatprep.subr.bf16.mxu0 0
        %1570 = vmatpush1.bf16.msra.mxu0 0
        %1571 = vmatprep.subr.bf16.mxu0 0
        %1572 = vmatpush1.bf16.msra.mxu0 0
        %1573 = vmatprep.subr.bf16.mxu0 0
        %1574 = vmatpush1.bf16.msra.mxu0 0
        %1575 = vmatprep.subr.bf16.mxu0 0
        %1576 = vmatpush1.bf16.msra.mxu0 0
        %1577 = vmatprep.subr.bf16.mxu0 0
        %1578 = vmatpush1.bf16.msra.mxu0 0
        %1579 = vmatprep.subr.bf16.mxu0 0
        %1580 = vmatpush1.bf16.msra.mxu0 0
        %1581 = vmatprep.subr.bf16.mxu0 0
        %1582 = vmatpush1.bf16.msra.mxu0 0
        %1583 = vmatprep.mubr.bf16.mxu0 0
        %1584 = vmatmul.mubr.bf16.gmra.mrb[0].mxu0 %v1245
        %v1585 = vpop.f32.mrb[0].mxu0
        %v1586 = vadd.f32 %v1474, %v1585
        %v1587 = vpop.f32.mrb[0].mxu0
        %v1588 = vpop.f32.mrb[0].mxu0
        %v1589 = vpop.f32.mrb[0].mxu0
        %1590 = vdwg.mxu0
        %v1595 = vunpack.c.l.b16 %v1451
        %v1596 = vunpack.c.l.b16 %v1452
        %v1597 = vunpack.c.l.b16 %v1453
        %v1598 = vunpack.c.l.b16 %v1454
        %v1599 = vpack.c.b16 %v1596, %v1595
        %v1600 = vpack.c.b16 %v1598, %v1597
        %1603 = vmatprep.subr.bf16.mxu0 0
        %1604 = vmatpush1.bf16.msra.mxu0 %v1599
        %1605 = vmatprep.subr.bf16.mxu0 0
        %1606 = vmatpush1.bf16.msra.mxu0 %v1600
        %1607 = vmatprep.subr.bf16.mxu0 0
        %1608 = vmatpush1.bf16.msra.mxu0 0
        %1609 = vmatprep.subr.bf16.mxu0 0
        %1610 = vmatpush1.bf16.msra.mxu0 0
        %1611 = vmatprep.subr.bf16.mxu0 0
        %1612 = vmatpush1.bf16.msra.mxu0 0
        %1613 = vmatprep.subr.bf16.mxu0 0
        %1614 = vmatpush1.bf16.msra.mxu0 0
        %1615 = vmatprep.subr.bf16.mxu0 0
        %1616 = vmatpush1.bf16.msra.mxu0 0
        %1617 = vmatprep.subr.bf16.mxu0 0
        %1618 = vmatpush1.bf16.msra.mxu0 0
        %1619 = vmatprep.subr.bf16.mxu0 0
        %1620 = vmatpush1.bf16.msra.mxu0 0
        %1621 = vmatprep.subr.bf16.mxu0 0
        %1622 = vmatpush1.bf16.msra.mxu0 0
        %1623 = vmatprep.subr.bf16.mxu0 0
        %1624 = vmatpush1.bf16.msra.mxu0 0
        %1625 = vmatprep.subr.bf16.mxu0 0
        %1626 = vmatpush1.bf16.msra.mxu0 0
        %1627 = vmatprep.subr.bf16.mxu0 0
        %1628 = vmatpush1.bf16.msra.mxu0 0
        %1629 = vmatprep.subr.bf16.mxu0 0
        %1630 = vmatpush1.bf16.msra.mxu0 0
        %1631 = vmatprep.subr.bf16.mxu0 0
        %1632 = vmatpush1.bf16.msra.mxu0 0
        %1633 = vmatprep.subr.bf16.mxu0 0
        %1634 = vmatpush1.bf16.msra.mxu0 0
        %1635 = vmatprep.mubr.bf16.mxu0 0
        %1636 = vmatmul.mubr.bf16.gmra.mrb[0].mxu0 %v1245
        %v1637 = vpop.f32.mrb[0].mxu0
        %v1638 = vadd.f32 %v1478, %v1637
        %v1639 = vpop.f32.mrb[0].mxu0
        %v1640 = vpop.f32.mrb[0].mxu0
        %v1641 = vpop.f32.mrb[0].mxu0
        %1642 = vdwg.mxu0
        %v1647 = vunpack.c.l.b16 %v1455
        %v1648 = vunpack.c.l.b16 %v1456
        %v1649 = vunpack.c.l.b16 %v1457
        %v1650 = vunpack.c.l.b16 %v1458
        %v1651 = vpack.c.b16 %v1648, %v1647
        %v1652 = vpack.c.b16 %v1650, %v1649
        %1655 = vmatprep.subr.bf16.mxu0 0
        %1656 = vmatpush1.bf16.msra.mxu0 %v1651
        %1657 = vmatprep.subr.bf16.mxu0 0
        %1658 = vmatpush1.bf16.msra.mxu0 %v1652
        %1659 = vmatprep.subr.bf16.mxu0 0
        %1660 = vmatpush1.bf16.msra.mxu0 0
        %1661 = vmatprep.subr.bf16.mxu0 0
        %1662 = vmatpush1.bf16.msra.mxu0 0
        %1663 = vmatprep.subr.bf16.mxu0 0
        %1664 = vmatpush1.bf16.msra.mxu0 0
        %1665 = vmatprep.subr.bf16.mxu0 0
        %1666 = vmatpush1.bf16.msra.mxu0 0
        %1667 = vmatprep.subr.bf16.mxu0 0
        %1668 = vmatpush1.bf16.msra.mxu0 0
        %1669 = vmatprep.subr.bf16.mxu0 0
        %1670 = vmatpush1.bf16.msra.mxu0 0
        %1671 = vmatprep.subr.bf16.mxu0 0
        %1672 = vmatpush1.bf16.msra.mxu0 0
        %1673 = vmatprep.subr.bf16.mxu0 0
        %1674 = vmatpush1.bf16.msra.mxu0 0
        %1675 = vmatprep.subr.bf16.mxu0 0
        %1676 = vmatpush1.bf16.msra.mxu0 0
        %1677 = vmatprep.subr.bf16.mxu0 0
        %1678 = vmatpush1.bf16.msra.mxu0 0
        %1679 = vmatprep.subr.bf16.mxu0 0
        %1680 = vmatpush1.bf16.msra.mxu0 0
        %1681 = vmatprep.subr.bf16.mxu0 0
        %1682 = vmatpush1.bf16.msra.mxu0 0
        %1683 = vmatprep.subr.bf16.mxu0 0
        %1684 = vmatpush1.bf16.msra.mxu0 0
        %1685 = vmatprep.subr.bf16.mxu0 0
        %1686 = vmatpush1.bf16.msra.mxu0 0
        %1687 = vmatprep.mubr.bf16.mxu0 0
        %1688 = vmatmul.mubr.bf16.gmra.mrb[0].mxu0 %v1245
        %v1689 = vpop.f32.mrb[0].mxu0
        %v1690 = vadd.f32 %v1482, %v1689
        %v1691 = vpop.f32.mrb[0].mxu0
        %v1692 = vpop.f32.mrb[0].mxu0
        %v1693 = vpop.f32.mrb[0].mxu0
        %1694 = vdwg.mxu0
        %v1695 = vld [vmem:[%s19] sm:$0xf]
        %v1696 = vld [vmem:[%s19 + $0x4] sm:$0xf]
        %v1697 = vld [vmem:[%s19 + $0x8] sm:$0xf]
        %v1698 = vld [vmem:[%s19 + $0xc] sm:$0xf]
        %v1699 = vld [vmem:[%s19 + $0x10] sm:$0xf]
        %v1700 = vld [vmem:[%s19 + $0x14] sm:$0xf]
        %v1701 = vld [vmem:[%s19 + $0x18] sm:$0xf]
        %v1702 = vld [vmem:[%s19 + $0x1c] sm:$0xf]
        %v1703 = vld [vmem:[%s19 + $0x20] sm:$0xf]
        %v1704 = vld [vmem:[%s19 + $0x24] sm:$0xf]
        %v1705 = vld [vmem:[%s19 + $0x28] sm:$0xf]
        %v1706 = vld [vmem:[%s19 + $0x2c] sm:$0xf]
        %v1707 = vld [vmem:[%s19 + $0x30] sm:$0xf]
        %v1708 = vld [vmem:[%s19 + $0x34] sm:$0xf]
        %v1709 = vld [vmem:[%s19 + $0x38] sm:$0xf]
        %v1710 = vld [vmem:[%s19 + $0x3c] sm:$0xf]
        %v1711 = vld [vmem:[%s21] sm:$0x1]
        %v1712 = vld [vmem:[%s21 + $0x1] sm:$0x1]
        %v1713 = vld [vmem:[%s21 + $0x2] sm:$0x1]
        %v1714 = vld [vmem:[%s21 + $0x3] sm:$0x1]
        %v1719 = vlaneseq
        %v1720 = vshrl.u32 %v1719, 7
        %v1721 = vsub.s32 0, %v1720
        %v1722 = vrot.slane %v1711, %v1721
        %v1723 = vlaneseq
        %v1724 = vshrl.u32 %v1723, 7
        %v1725 = vsub.s32 0, %v1724
        %v1726 = vrot.slane %v1712, %v1725
        %v1727 = vlaneseq
        %v1728 = vshrl.u32 %v1727, 7
        %v1729 = vsub.s32 0, %v1728
        %v1730 = vrot.slane %v1713, %v1729
        %v1731 = vlaneseq
        %v1732 = vshrl.u32 %v1731, 7
        %v1733 = vsub.s32 0, %v1732
        %v1734 = vrot.slane %v1714, %v1733
        %v1743 = vunpack.c.l.b16 %v1695
        %v1744 = vunpack.c.l.b16 %v1696
        %v1745 = vunpack.c.l.b16 %v1697
        %v1746 = vunpack.c.l.b16 %v1698
        %v1747 = vpack.c.b16 %v1744, %v1743
        %v1748 = vpack.c.b16 %v1746, %v1745
        %1751 = vmatprep.subr.bf16.mxu0 0
        %1752 = vmatpush1.bf16.msra.mxu0 %v1747
        %1753 = vmatprep.subr.bf16.mxu0 0
        %1754 = vmatpush1.bf16.msra.mxu0 %v1748
        %1755 = vmatprep.subr.bf16.mxu0 0
        %1756 = vmatpush1.bf16.msra.mxu0 0
        %1757 = vmatprep.subr.bf16.mxu0 0
        %1758 = vmatpush1.bf16.msra.mxu0 0
        %1759 = vmatprep.subr.bf16.mxu0 0
        %1760 = vmatpush1.bf16.msra.mxu0 0
        %1761 = vmatprep.subr.bf16.mxu0 0
        %1762 = vmatpush1.bf16.msra.mxu0 0
        %1763 = vmatprep.subr.bf16.mxu0 0
        %1764 = vmatpush1.bf16.msra.mxu0 0
        %1765 = vmatprep.subr.bf16.mxu0 0
        %1766 = vmatpush1.bf16.msra.mxu0 0
        %1767 = vmatprep.subr.bf16.mxu0 0
        %1768 = vmatpush1.bf16.msra.mxu0 0
        %1769 = vmatprep.subr.bf16.mxu0 0
        %1770 = vmatpush1.bf16.msra.mxu0 0
        %1771 = vmatprep.subr.bf16.mxu0 0
        %1772 = vmatpush1.bf16.msra.mxu0 0
        %1773 = vmatprep.subr.bf16.mxu0 0
        %1774 = vmatpush1.bf16.msra.mxu0 0
        %1775 = vmatprep.subr.bf16.mxu0 0
        %1776 = vmatpush1.bf16.msra.mxu0 0
        %1777 = vmatprep.subr.bf16.mxu0 0
        %1778 = vmatpush1.bf16.msra.mxu0 0
        %1779 = vmatprep.subr.bf16.mxu0 0
        %1780 = vmatpush1.bf16.msra.mxu0 0
        %1781 = vmatprep.subr.bf16.mxu0 0
        %1782 = vmatpush1.bf16.msra.mxu0 0
        %1783 = vmatprep.mubr.bf16.mxu0 0
        %1784 = vmatmul.mubr.bf16.gmra.mrb[0].mxu0 %v1245
        %v1785 = vpop.f32.mrb[0].mxu0
        %v1786 = vadd.f32 %v1722, %v1785
        %v1787 = vpop.f32.mrb[0].mxu0
        %v1788 = vpop.f32.mrb[0].mxu0
        %v1789 = vpop.f32.mrb[0].mxu0
        %1790 = vdwg.mxu0
        %v1795 = vunpack.c.l.b16 %v1699
        %v1796 = vunpack.c.l.b16 %v1700
        %v1797 = vunpack.c.l.b16 %v1701
        %v1798 = vunpack.c.l.b16 %v1702
        %v1799 = vpack.c.b16 %v1796, %v1795
        %v1800 = vpack.c.b16 %v1798, %v1797
        %1803 = vmatprep.subr.bf16.mxu0 0
        %1804 = vmatpush1.bf16.msra.mxu0 %v1799
        %1805 = vmatprep.subr.bf16.mxu0 0
        %1806 = vmatpush1.bf16.msra.mxu0 %v1800
        %1807 = vmatprep.subr.bf16.mxu0 0
        %1808 = vmatpush1.bf16.msra.mxu0 0
        %1809 = vmatprep.subr.bf16.mxu0 0
        %1810 = vmatpush1.bf16.msra.mxu0 0
        %1811 = vmatprep.subr.bf16.mxu0 0
        %1812 = vmatpush1.bf16.msra.mxu0 0
        %1813 = vmatprep.subr.bf16.mxu0 0
        %1814 = vmatpush1.bf16.msra.mxu0 0
        %1815 = vmatprep.subr.bf16.mxu0 0
        %1816 = vmatpush1.bf16.msra.mxu0 0
        %1817 = vmatprep.subr.bf16.mxu0 0
        %1818 = vmatpush1.bf16.msra.mxu0 0
        %1819 = vmatprep.subr.bf16.mxu0 0
        %1820 = vmatpush1.bf16.msra.mxu0 0
        %1821 = vmatprep.subr.bf16.mxu0 0
        %1822 = vmatpush1.bf16.msra.mxu0 0
        %1823 = vmatprep.subr.bf16.mxu0 0
        %1824 = vmatpush1.bf16.msra.mxu0 0
        %1825 = vmatprep.subr.bf16.mxu0 0
        %1826 = vmatpush1.bf16.msra.mxu0 0
        %1827 = vmatprep.subr.bf16.mxu0 0
        %1828 = vmatpush1.bf16.msra.mxu0 0
        %1829 = vmatprep.subr.bf16.mxu0 0
        %1830 = vmatpush1.bf16.msra.mxu0 0
        %1831 = vmatprep.subr.bf16.mxu0 0
        %1832 = vmatpush1.bf16.msra.mxu0 0
        %1833 = vmatprep.subr.bf16.mxu0 0
        %1834 = vmatpush1.bf16.msra.mxu0 0
        %1835 = vmatprep.mubr.bf16.mxu0 0
        %1836 = vmatmul.mubr.bf16.gmra.mrb[0].mxu0 %v1245
        %v1837 = vpop.f32.mrb[0].mxu0
        %v1838 = vadd.f32 %v1726, %v1837
        %v1839 = vpop.f32.mrb[0].mxu0
        %v1840 = vpop.f32.mrb[0].mxu0
        %v1841 = vpop.f32.mrb[0].mxu0
        %1842 = vdwg.mxu0
        %v1847 = vunpack.c.l.b16 %v1703
        %v1848 = vunpack.c.l.b16 %v1704
        %v1849 = vunpack.c.l.b16 %v1705
        %v1850 = vunpack.c.l.b16 %v1706
        %v1851 = vpack.c.b16 %v1848, %v1847
        %v1852 = vpack.c.b16 %v1850, %v1849
        %1855 = vmatprep.subr.bf16.mxu0 0
        %1856 = vmatpush1.bf16.msra.mxu0 %v1851
        %1857 = vmatprep.subr.bf16.mxu0 0
        %1858 = vmatpush1.bf16.msra.mxu0 %v1852
        %1859 = vmatprep.subr.bf16.mxu0 0
        %1860 = vmatpush1.bf16.msra.mxu0 0
        %1861 = vmatprep.subr.bf16.mxu0 0
        %1862 = vmatpush1.bf16.msra.mxu0 0
        %1863 = vmatprep.subr.bf16.mxu0 0
        %1864 = vmatpush1.bf16.msra.mxu0 0
        %1865 = vmatprep.subr.bf16.mxu0 0
        %1866 = vmatpush1.bf16.msra.mxu0 0
        %1867 = vmatprep.subr.bf16.mxu0 0
        %1868 = vmatpush1.bf16.msra.mxu0 0
        %1869 = vmatprep.subr.bf16.mxu0 0
        %1870 = vmatpush1.bf16.msra.mxu0 0
        %1871 = vmatprep.subr.bf16.mxu0 0
        %1872 = vmatpush1.bf16.msra.mxu0 0
        %1873 = vmatprep.subr.bf16.mxu0 0
        %1874 = vmatpush1.bf16.msra.mxu0 0
        %1875 = vmatprep.subr.bf16.mxu0 0
        %1876 = vmatpush1.bf16.msra.mxu0 0
        %1877 = vmatprep.subr.bf16.mxu0 0
        %1878 = vmatpush1.bf16.msra.mxu0 0
        %1879 = vmatprep.subr.bf16.mxu0 0
        %1880 = vmatpush1.bf16.msra.mxu0 0
        %1881 = vmatprep.subr.bf16.mxu0 0
        %1882 = vmatpush1.bf16.msra.mxu0 0
        %1883 = vmatprep.subr.bf16.mxu0 0
        %1884 = vmatpush1.bf16.msra.mxu0 0
        %1885 = vmatprep.subr.bf16.mxu0 0
        %1886 = vmatpush1.bf16.msra.mxu0 0
        %1887 = vmatprep.mubr.bf16.mxu0 0
        %1888 = vmatmul.mubr.bf16.gmra.mrb[0].mxu0 %v1245
        %v1889 = vpop.f32.mrb[0].mxu0
        %v1890 = vadd.f32 %v1730, %v1889
        %v1891 = vpop.f32.mrb[0].mxu0
        %v1892 = vpop.f32.mrb[0].mxu0
        %v1893 = vpop.f32.mrb[0].mxu0
        %1894 = vdwg.mxu0
        %v1899 = vunpack.c.l.b16 %v1707
        %v1900 = vunpack.c.l.b16 %v1708
        %v1901 = vunpack.c.l.b16 %v1709
        %v1902 = vunpack.c.l.b16 %v1710
        %v1903 = vpack.c.b16 %v1900, %v1899
        %v1904 = vpack.c.b16 %v1902, %v1901
        %1907 = vmatprep.subr.bf16.mxu0 0
        %1908 = vmatpush1.bf16.msra.mxu0 %v1903
        %1909 = vmatprep.subr.bf16.mxu0 0
        %1910 = vmatpush1.bf16.msra.mxu0 %v1904
        %1911 = vmatprep.subr.bf16.mxu0 0
        %1912 = vmatpush1.bf16.msra.mxu0 0
        %1913 = vmatprep.subr.bf16.mxu0 0
        %1914 = vmatpush1.bf16.msra.mxu0 0
        %1915 = vmatprep.subr.bf16.mxu0 0
        %1916 = vmatpush1.bf16.msra.mxu0 0
        %1917 = vmatprep.subr.bf16.mxu0 0
        %1918 = vmatpush1.bf16.msra.mxu0 0
        %1919 = vmatprep.subr.bf16.mxu0 0
        %1920 = vmatpush1.bf16.msra.mxu0 0
        %1921 = vmatprep.subr.bf16.mxu0 0
        %1922 = vmatpush1.bf16.msra.mxu0 0
        %1923 = vmatprep.subr.bf16.mxu0 0
        %1924 = vmatpush1.bf16.msra.mxu0 0
        %1925 = vmatprep.subr.bf16.mxu0 0
        %1926 = vmatpush1.bf16.msra.mxu0 0
        %1927 = vmatprep.subr.bf16.mxu0 0
        %1928 = vmatpush1.bf16.msra.mxu0 0
        %1929 = vmatprep.subr.bf16.mxu0 0
        %1930 = vmatpush1.bf16.msra.mxu0 0
        %1931 = vmatprep.subr.bf16.mxu0 0
        %1932 = vmatpush1.bf16.msra.mxu0 0
        %1933 = vmatprep.subr.bf16.mxu0 0
        %1934 = vmatpush1.bf16.msra.mxu0 0
        %1935 = vmatprep.subr.bf16.mxu0 0
        %1936 = vmatpush1.bf16.msra.mxu0 0
        %1937 = vmatprep.subr.bf16.mxu0 0
        %1938 = vmatpush1.bf16.msra.mxu0 0
        %1939 = vmatprep.mubr.bf16.mxu0 0
        %1940 = vmatmul.mubr.bf16.gmra.mrb[0].mxu0 %v1245
        %v1941 = vpop.f32.mrb[0].mxu0
        %v1942 = vadd.f32 %v1734, %v1941
        %v1943 = vpop.f32.mrb[0].mxu0
        %v1944 = vpop.f32.mrb[0].mxu0
        %v1945 = vpop.f32.mrb[0].mxu0
        %1946 = vdwg.mxu0
        %v1947 = vmul.f32 %v1282, 0.35355338
        %v1948 = vmul.f32 %v1334, 0.35355338
        %v1949 = vmul.f32 %v1386, 0.35355338
        %v1950 = vmul.f32 %v1438, 0.35355338
        %v1951 = vpack.c.bf16 %v1947, %v1947
        %v1952 = vpack.c.bf16 %v1948, %v1948
        %v1953 = vpack.c.bf16 %v1949, %v1949
        %v1954 = vpack.c.bf16 %v1950, %v1950
        %v1955 = vpack.c.bf16 %v1534, %v1534
        %v1956 = vpack.c.bf16 %v1586, %v1586
        %v1957 = vpack.c.bf16 %v1638, %v1638
        %v1958 = vpack.c.bf16 %v1690, %v1690
        %v1960 = vlaneseq
        %v1961 = vshrl.u32 %v1960, 7
        %v1962 = vsub.s32 0, %v1961
        %v1963 = vrot.slane %v1186, %v1962
        %vm1965 = vcmask 64512
        %v1967 = vsel %vm1965, %v1951, 0
        %v1970 = vsel %vm1965, %v1955, 0
        %1972 = vmatprep.subr.bf16.mxu0 0
        %1973 = vmatpush1.bf16.xpose.msra.mxu0 %v1970
        %1974 = vmatprep.subr.bf16.mxu0 0
        %1975 = vmatpush1.bf16.xpose.msra.mxu0 0
        %1976 = vmatprep.subr.bf16.mxu0 0
        %1977 = vmatpush1.bf16.xpose.msra.mxu0 0
        %1978 = vmatprep.subr.bf16.mxu0 0
        %1979 = vmatpush1.bf16.xpose.msra.mxu0 0
        %1980 = vmatprep.subr.bf16.mxu0 0
        %1981 = vmatpush1.bf16.xpose.msra.mxu0 0
        %1982 = vmatprep.subr.bf16.mxu0 0
        %1983 = vmatpush1.bf16.xpose.msra.mxu0 0
        %1984 = vmatprep.subr.bf16.mxu0 0
        %1985 = vmatpush1.bf16.xpose.msra.mxu0 0
        %1986 = vmatprep.subr.bf16.mxu0 0
        %1987 = vmatpush1.bf16.xpose.msra.mxu0 0
        %1988 = vmatprep.subr.bf16.mxu0 0
        %1989 = vmatpush1.bf16.xpose.msra.mxu0 0
        %1990 = vmatprep.subr.bf16.mxu0 0
        %1991 = vmatpush1.bf16.xpose.msra.mxu0 0
        %1992 = vmatprep.subr.bf16.mxu0 0
        %1993 = vmatpush1.bf16.xpose.msra.mxu0 0
        %1994 = vmatprep.subr.bf16.mxu0 0
        %1995 = vmatpush1.bf16.xpose.msra.mxu0 0
        %1996 = vmatprep.subr.bf16.mxu0 0
        %1997 = vmatpush1.bf16.xpose.msra.mxu0 0
        %1998 = vmatprep.subr.bf16.mxu0 0
        %1999 = vmatpush1.bf16.xpose.msra.mxu0 0
        %2000 = vmatprep.subr.bf16.mxu0 0
        %2001 = vmatpush1.bf16.xpose.msra.mxu0 0
        %2002 = vmatprep.subr.bf16.mxu0 0
        %2003 = vmatpush1.bf16.xpose.msra.mxu0 0
        %2004 = vmatprep.mubr.bf16.mxu0 0
        %2005 = vmatmul.mubr.bf16.gmra.mrb[0].mxu0 %v1967
        %v2006 = vpop.f32.mrb[0].mxu0
        %v2007 = vadd.f32 %v1963, %v2006
        %v2008 = vpop.f32.mrb[0].mxu0
        %v2009 = vpop.f32.mrb[0].mxu0
        %v2010 = vpop.f32.mrb[0].mxu0
        %2011 = vdwg.mxu0
        %v2013 = vsel %vm1965, %v1952, 0
        %v2016 = vsel %vm1965, %v1956, 0
        %2018 = vmatprep.subr.bf16.mxu0 0
        %2019 = vmatpush1.bf16.xpose.msra.mxu0 %v2016
        %2020 = vmatprep.subr.bf16.mxu0 0
        %2021 = vmatpush1.bf16.xpose.msra.mxu0 0
        %2022 = vmatprep.subr.bf16.mxu0 0
        %2023 = vmatpush1.bf16.xpose.msra.mxu0 0
        %2024 = vmatprep.subr.bf16.mxu0 0
        %2025 = vmatpush1.bf16.xpose.msra.mxu0 0
        %2026 = vmatprep.subr.bf16.mxu0 0
        %2027 = vmatpush1.bf16.xpose.msra.mxu0 0
        %2028 = vmatprep.subr.bf16.mxu0 0
        %2029 = vmatpush1.bf16.xpose.msra.mxu0 0
        %2030 = vmatprep.subr.bf16.mxu0 0
        %2031 = vmatpush1.bf16.xpose.msra.mxu0 0
        %2032 = vmatprep.subr.bf16.mxu0 0
        %2033 = vmatpush1.bf16.xpose.msra.mxu0 0
        %2034 = vmatprep.subr.bf16.mxu0 0
        %2035 = vmatpush1.bf16.xpose.msra.mxu0 0
        %2036 = vmatprep.subr.bf16.mxu0 0
        %2037 = vmatpush1.bf16.xpose.msra.mxu0 0
        %2038 = vmatprep.subr.bf16.mxu0 0
        %2039 = vmatpush1.bf16.xpose.msra.mxu0 0
        %2040 = vmatprep.subr.bf16.mxu0 0
        %2041 = vmatpush1.bf16.xpose.msra.mxu0 0
        %2042 = vmatprep.subr.bf16.mxu0 0
        %2043 = vmatpush1.bf16.xpose.msra.mxu0 0
        %2044 = vmatprep.subr.bf16.mxu0 0
        %2045 = vmatpush1.bf16.xpose.msra.mxu0 0
        %2046 = vmatprep.subr.bf16.mxu0 0
        %2047 = vmatpush1.bf16.xpose.msra.mxu0 0
        %2048 = vmatprep.subr.bf16.mxu0 0
        %2049 = vmatpush1.bf16.xpose.msra.mxu0 0
        %2050 = vmatprep.mubr.bf16.mxu0 0
        %2051 = vmatmul.mubr.bf16.gmra.mrb[0].mxu0 %v2013
        %v2052 = vpop.f32.mrb[0].mxu0
        %v2053 = vadd.f32 %v1963, %v2052
        %v2054 = vpop.f32.mrb[0].mxu0
        %v2055 = vpop.f32.mrb[0].mxu0
        %v2056 = vpop.f32.mrb[0].mxu0
        %2057 = vdwg.mxu0
        %v2059 = vsel %vm1965, %v1953, 0
        %v2062 = vsel %vm1965, %v1957, 0
        %2064 = vmatprep.subr.bf16.mxu0 0
        %2065 = vmatpush1.bf16.xpose.msra.mxu0 %v2062
        %2066 = vmatprep.subr.bf16.mxu0 0
        %2067 = vmatpush1.bf16.xpose.msra.mxu0 0
        %2068 = vmatprep.subr.bf16.mxu0 0
        %2069 = vmatpush1.bf16.xpose.msra.mxu0 0
        %2070 = vmatprep.subr.bf16.mxu0 0
        %2071 = vmatpush1.bf16.xpose.msra.mxu0 0
        %2072 = vmatprep.subr.bf16.mxu0 0
        %2073 = vmatpush1.bf16.xpose.msra.mxu0 0
        %2074 = vmatprep.subr.bf16.mxu0 0
        %2075 = vmatpush1.bf16.xpose.msra.mxu0 0
        %2076 = vmatprep.subr.bf16.mxu0 0
        %2077 = vmatpush1.bf16.xpose.msra.mxu0 0
        %2078 = vmatprep.subr.bf16.mxu0 0
        %2079 = vmatpush1.bf16.xpose.msra.mxu0 0
        %2080 = vmatprep.subr.bf16.mxu0 0
        %2081 = vmatpush1.bf16.xpose.msra.mxu0 0
        %2082 = vmatprep.subr.bf16.mxu0 0
        %2083 = vmatpush1.bf16.xpose.msra.mxu0 0
        %2084 = vmatprep.subr.bf16.mxu0 0
        %2085 = vmatpush1.bf16.xpose.msra.mxu0 0
        %2086 = vmatprep.subr.bf16.mxu0 0
        %2087 = vmatpush1.bf16.xpose.msra.mxu0 0
        %2088 = vmatprep.subr.bf16.mxu0 0
        %2089 = vmatpush1.bf16.xpose.msra.mxu0 0
        %2090 = vmatprep.subr.bf16.mxu0 0
        %2091 = vmatpush1.bf16.xpose.msra.mxu0 0
        %2092 = vmatprep.subr.bf16.mxu0 0
        %2093 = vmatpush1.bf16.xpose.msra.mxu0 0
        %2094 = vmatprep.subr.bf16.mxu0 0
        %2095 = vmatpush1.bf16.xpose.msra.mxu0 0
        %2096 = vmatprep.mubr.bf16.mxu0 0
        %2097 = vmatmul.mubr.bf16.gmra.mrb[0].mxu0 %v2059
        %v2098 = vpop.f32.mrb[0].mxu0
        %v2099 = vadd.f32 %v1963, %v2098
        %v2100 = vpop.f32.mrb[0].mxu0
        %v2101 = vpop.f32.mrb[0].mxu0
        %v2102 = vpop.f32.mrb[0].mxu0
        %2103 = vdwg.mxu0
        %v2105 = vsel %vm1965, %v1954, 0
        %v2108 = vsel %vm1965, %v1958, 0
        %2110 = vmatprep.subr.bf16.mxu0 0
        %2111 = vmatpush1.bf16.xpose.msra.mxu0 %v2108
        %2112 = vmatprep.subr.bf16.mxu0 0
        %2113 = vmatpush1.bf16.xpose.msra.mxu0 0
        %2114 = vmatprep.subr.bf16.mxu0 0
        %2115 = vmatpush1.bf16.xpose.msra.mxu0 0
        %2116 = vmatprep.subr.bf16.mxu0 0
        %2117 = vmatpush1.bf16.xpose.msra.mxu0 0
        %2118 = vmatprep.subr.bf16.mxu0 0
        %2119 = vmatpush1.bf16.xpose.msra.mxu0 0
        %2120 = vmatprep.subr.bf16.mxu0 0
        %2121 = vmatpush1.bf16.xpose.msra.mxu0 0
        %2122 = vmatprep.subr.bf16.mxu0 0
        %2123 = vmatpush1.bf16.xpose.msra.mxu0 0
        %2124 = vmatprep.subr.bf16.mxu0 0
        %2125 = vmatpush1.bf16.xpose.msra.mxu0 0
        %2126 = vmatprep.subr.bf16.mxu0 0
        %2127 = vmatpush1.bf16.xpose.msra.mxu0 0
        %2128 = vmatprep.subr.bf16.mxu0 0
        %2129 = vmatpush1.bf16.xpose.msra.mxu0 0
        %2130 = vmatprep.subr.bf16.mxu0 0
        %2131 = vmatpush1.bf16.xpose.msra.mxu0 0
        %2132 = vmatprep.subr.bf16.mxu0 0
        %2133 = vmatpush1.bf16.xpose.msra.mxu0 0
        %2134 = vmatprep.subr.bf16.mxu0 0
        %2135 = vmatpush1.bf16.xpose.msra.mxu0 0
        %2136 = vmatprep.subr.bf16.mxu0 0
        %2137 = vmatpush1.bf16.xpose.msra.mxu0 0
        %2138 = vmatprep.subr.bf16.mxu0 0
        %2139 = vmatpush1.bf16.xpose.msra.mxu0 0
        %2140 = vmatprep.subr.bf16.mxu0 0
        %2141 = vmatpush1.bf16.xpose.msra.mxu0 0
        %2142 = vmatprep.mubr.bf16.mxu0 0
        %2143 = vmatmul.mubr.bf16.gmra.mrb[0].mxu0 %v2105
        %v2144 = vpop.f32.mrb[0].mxu0
        %v2145 = vadd.f32 %v1963, %v2144
        %v2146 = vpop.f32.mrb[0].mxu0
        %v2147 = vpop.f32.mrb[0].mxu0
        %v2148 = vpop.f32.mrb[0].mxu0
        %2149 = vdwg.mxu0
        %v2150 = vsel %vm1965, %v2007, -inf
        %2151 = vmax.xlane.f32.xlu0 %v2150
        %v2152 = vpop.xlane.xlu0 %2151
        %v2153 = vsel %vm1965, %v2053, -inf
        %2154 = vmax.xlane.f32.xlu0 %v2153
        %v2155 = vpop.xlane.xlu0 %2154
        %v2156 = vsel %vm1965, %v2099, -inf
        %2157 = vmax.xlane.f32.xlu0 %v2156
        %v2158 = vpop.xlane.xlu0 %2157
        %v2159 = vsel %vm1965, %v2145, -inf
        %2160 = vmax.xlane.f32.xlu0 %v2159
        %v2161 = vpop.xlane.xlu0 %2160
        %v2162 = vsub.f32 %v2007, %v2152
        %v2163 = vsub.f32 %v2053, %v2155
        %v2164 = vsub.f32 %v2099, %v2158
        %v2165 = vsub.f32 %v2145, %v2161
        %v2166 = vmul.f32 %v2162, 1.442695
        %v2167 = vpow.pop %v2166
        %v2168 = vmul.f32 %v2163, 1.442695
        %v2169 = vpow.pop %v2168
        %v2170 = vmul.f32 %v2164, 1.442695
        %v2171 = vpow.pop %v2170
        %v2172 = vmul.f32 %v2165, 1.442695
        %v2173 = vpow.pop %v2172
        %v2174 = vsel %vm1965, %v2167, 0.0
        %2175 = vadd.xlane.f32.xlu0 %v2174
        %v2176 = vpop.xlane.xlu0 %2175
        %v2177 = vsel %vm1965, %v2169, 0.0
        %2178 = vadd.xlane.f32.xlu0 %v2177
        %v2179 = vpop.xlane.xlu0 %2178
        %v2180 = vsel %vm1965, %v2171, 0.0
        %2181 = vadd.xlane.f32.xlu0 %v2180
        %v2182 = vpop.xlane.xlu0 %2181
        %v2183 = vsel %vm1965, %v2173, 0.0
        %2184 = vadd.xlane.f32.xlu0 %v2183
        %v2185 = vpop.xlane.xlu0 %2184
        %v2186 = vpack.c.bf16 %v2167, %v2167
        %v2187 = vpack.c.bf16 %v2169, %v2169
        %v2188 = vpack.c.bf16 %v2171, %v2171
        %v2189 = vpack.c.bf16 %v2173, %v2173
        %v2190 = vpack.c.bf16 %v1786, %v1786
        %v2191 = vpack.c.bf16 %v1838, %v1838
        %v2192 = vpack.c.bf16 %v1890, %v1890
        %v2193 = vpack.c.bf16 %v1942, %v1942
        %v2195 = vsel %vm1965, %v2186, 0
        %vm2197 = vcmask 1043456
        %v2199 = vsel %vm2197, %v2190, 0
        %2201 = vmatprep.subr.bf16.mxu0 0
        %2202 = vmatpush1.bf16.msra.mxu0 %v2199
        %2203 = vmatprep.subr.bf16.mxu0 0
        %2204 = vmatpush1.bf16.msra.mxu0 0
        %2205 = vmatprep.subr.bf16.mxu0 0
        %2206 = vmatpush1.bf16.msra.mxu0 0
        %2207 = vmatprep.subr.bf16.mxu0 0
        %2208 = vmatpush1.bf16.msra.mxu0 0
        %2209 = vmatprep.subr.bf16.mxu0 0
        %2210 = vmatpush1.bf16.msra.mxu0 0
        %2211 = vmatprep.subr.bf16.mxu0 0
        %2212 = vmatpush1.bf16.msra.mxu0 0
        %2213 = vmatprep.subr.bf16.mxu0 0
        %2214 = vmatpush1.bf16.msra.mxu0 0
        %2215 = vmatprep.subr.bf16.mxu0 0
        %2216 = vmatpush1.bf16.msra.mxu0 0
        %2217 = vmatprep.subr.bf16.mxu0 0
        %2218 = vmatpush1.bf16.msra.mxu0 0
        %2219 = vmatprep.subr.bf16.mxu0 0
        %2220 = vmatpush1.bf16.msra.mxu0 0
        %2221 = vmatprep.subr.bf16.mxu0 0
        %2222 = vmatpush1.bf16.msra.mxu0 0
        %2223 = vmatprep.subr.bf16.mxu0 0
        %2224 = vmatpush1.bf16.msra.mxu0 0
        %2225 = vmatprep.subr.bf16.mxu0 0
        %2226 = vmatpush1.bf16.msra.mxu0 0
        %2227 = vmatprep.subr.bf16.mxu0 0
        %2228 = vmatpush1.bf16.msra.mxu0 0
        %2229 = vmatprep.subr.bf16.mxu0 0
        %2230 = vmatpush1.bf16.msra.mxu0 0
        %2231 = vmatprep.subr.bf16.mxu0 0
        %2232 = vmatpush1.bf16.msra.mxu0 0
        %2233 = vmatprep.mubr.bf16.mxu0 0
        %2234 = vmatmul.mubr.bf16.gmra.mrb[0].mxu0 %v2195
        %v2235 = vpop.f32.mrb[0].mxu0
        %v2236 = vadd.f32 0.0, %v2235
        %v2237 = vpop.f32.mrb[0].mxu0
        %v2238 = vpop.f32.mrb[0].mxu0
        %v2239 = vpop.f32.mrb[0].mxu0
        %2240 = vdwg.mxu0
        %v2242 = vsel %vm1965, %v2187, 0
        %v2245 = vsel %vm2197, %v2191, 0
        %2247 = vmatprep.subr.bf16.mxu0 0
        %2248 = vmatpush1.bf16.msra.mxu0 %v2245
        %2249 = vmatprep.subr.bf16.mxu0 0
        %2250 = vmatpush1.bf16.msra.mxu0 0
        %2251 = vmatprep.subr.bf16.mxu0 0
        %2252 = vmatpush1.bf16.msra.mxu0 0
        %2253 = vmatprep.subr.bf16.mxu0 0
        %2254 = vmatpush1.bf16.msra.mxu0 0
        %2255 = vmatprep.subr.bf16.mxu0 0
        %2256 = vmatpush1.bf16.msra.mxu0 0
        %2257 = vmatprep.subr.bf16.mxu0 0
        %2258 = vmatpush1.bf16.msra.mxu0 0
        %2259 = vmatprep.subr.bf16.mxu0 0
        %2260 = vmatpush1.bf16.msra.mxu0 0
        %2261 = vmatprep.subr.bf16.mxu0 0
        %2262 = vmatpush1.bf16.msra.mxu0 0
        %2263 = vmatprep.subr.bf16.mxu0 0
        %2264 = vmatpush1.bf16.msra.mxu0 0
        %2265 = vmatprep.subr.bf16.mxu0 0
        %2266 = vmatpush1.bf16.msra.mxu0 0
        %2267 = vmatprep.subr.bf16.mxu0 0
        %2268 = vmatpush1.bf16.msra.mxu0 0
        %2269 = vmatprep.subr.bf16.mxu0 0
        %2270 = vmatpush1.bf16.msra.mxu0 0
        %2271 = vmatprep.subr.bf16.mxu0 0
        %2272 = vmatpush1.bf16.msra.mxu0 0
        %2273 = vmatprep.subr.bf16.mxu0 0
        %2274 = vmatpush1.bf16.msra.mxu0 0
        %2275 = vmatprep.subr.bf16.mxu0 0
        %2276 = vmatpush1.bf16.msra.mxu0 0
        %2277 = vmatprep.subr.bf16.mxu0 0
        %2278 = vmatpush1.bf16.msra.mxu0 0
        %2279 = vmatprep.mubr.bf16.mxu0 0
        %2280 = vmatmul.mubr.bf16.gmra.mrb[0].mxu0 %v2242
        %v2281 = vpop.f32.mrb[0].mxu0
        %v2282 = vadd.f32 0.0, %v2281
        %v2283 = vpop.f32.mrb[0].mxu0
        %v2284 = vpop.f32.mrb[0].mxu0
        %v2285 = vpop.f32.mrb[0].mxu0
        %2286 = vdwg.mxu0
        %v2288 = vsel %vm1965, %v2188, 0
        %v2291 = vsel %vm2197, %v2192, 0
        %2293 = vmatprep.subr.bf16.mxu0 0
        %2294 = vmatpush1.bf16.msra.mxu0 %v2291
        %2295 = vmatprep.subr.bf16.mxu0 0
        %2296 = vmatpush1.bf16.msra.mxu0 0
        %2297 = vmatprep.subr.bf16.mxu0 0
        %2298 = vmatpush1.bf16.msra.mxu0 0
        %2299 = vmatprep.subr.bf16.mxu0 0
        %2300 = vmatpush1.bf16.msra.mxu0 0
        %2301 = vmatprep.subr.bf16.mxu0 0
        %2302 = vmatpush1.bf16.msra.mxu0 0
        %2303 = vmatprep.subr.bf16.mxu0 0
        %2304 = vmatpush1.bf16.msra.mxu0 0
        %2305 = vmatprep.subr.bf16.mxu0 0
        %2306 = vmatpush1.bf16.msra.mxu0 0
        %2307 = vmatprep.subr.bf16.mxu0 0
        %2308 = vmatpush1.bf16.msra.mxu0 0
        %2309 = vmatprep.subr.bf16.mxu0 0
        %2310 = vmatpush1.bf16.msra.mxu0 0
        %2311 = vmatprep.subr.bf16.mxu0 0
        %2312 = vmatpush1.bf16.msra.mxu0 0
        %2313 = vmatprep.subr.bf16.mxu0 0
        %2314 = vmatpush1.bf16.msra.mxu0 0
        %2315 = vmatprep.subr.bf16.mxu0 0
        %2316 = vmatpush1.bf16.msra.mxu0 0
        %2317 = vmatprep.subr.bf16.mxu0 0
        %2318 = vmatpush1.bf16.msra.mxu0 0
        %2319 = vmatprep.subr.bf16.mxu0 0
        %2320 = vmatpush1.bf16.msra.mxu0 0
        %2321 = vmatprep.subr.bf16.mxu0 0
        %2322 = vmatpush1.bf16.msra.mxu0 0
        %2323 = vmatprep.subr.bf16.mxu0 0
        %2324 = vmatpush1.bf16.msra.mxu0 0
        %2325 = vmatprep.mubr.bf16.mxu0 0
        %2326 = vmatmul.mubr.bf16.gmra.mrb[0].mxu0 %v2288
        %v2327 = vpop.f32.mrb[0].mxu0
        %v2328 = vadd.f32 0.0, %v2327
        %v2329 = vpop.f32.mrb[0].mxu0
        %v2330 = vpop.f32.mrb[0].mxu0
        %v2331 = vpop.f32.mrb[0].mxu0
        %2332 = vdwg.mxu0
        %v2334 = vsel %vm1965, %v2189, 0
        %v2337 = vsel %vm2197, %v2193, 0
        %2339 = vmatprep.subr.bf16.mxu0 0
        %2340 = vmatpush1.bf16.msra.mxu0 %v2337
        %2341 = vmatprep.subr.bf16.mxu0 0
        %2342 = vmatpush1.bf16.msra.mxu0 0
        %2343 = vmatprep.subr.bf16.mxu0 0
        %2344 = vmatpush1.bf16.msra.mxu0 0
        %2345 = vmatprep.subr.bf16.mxu0 0
        %2346 = vmatpush1.bf16.msra.mxu0 0
        %2347 = vmatprep.subr.bf16.mxu0 0
        %2348 = vmatpush1.bf16.msra.mxu0 0
        %2349 = vmatprep.subr.bf16.mxu0 0
        %2350 = vmatpush1.bf16.msra.mxu0 0
        %2351 = vmatprep.subr.bf16.mxu0 0
        %2352 = vmatpush1.bf16.msra.mxu0 0
        %2353 = vmatprep.subr.bf16.mxu0 0
        %2354 = vmatpush1.bf16.msra.mxu0 0
        %2355 = vmatprep.subr.bf16.mxu0 0
        %2356 = vmatpush1.bf16.msra.mxu0 0
        %2357 = vmatprep.subr.bf16.mxu0 0
        %2358 = vmatpush1.bf16.msra.mxu0 0
        %2359 = vmatprep.subr.bf16.mxu0 0
        %2360 = vmatpush1.bf16.msra.mxu0 0
        %2361 = vmatprep.subr.bf16.mxu0 0
        %2362 = vmatpush1.bf16.msra.mxu0 0
        %2363 = vmatprep.subr.bf16.mxu0 0
        %2364 = vmatpush1.bf16.msra.mxu0 0
        %2365 = vmatprep.subr.bf16.mxu0 0
        %2366 = vmatpush1.bf16.msra.mxu0 0
        %2367 = vmatprep.subr.bf16.mxu0 0
        %2368 = vmatpush1.bf16.msra.mxu0 0
        %2369 = vmatprep.subr.bf16.mxu0 0
        %2370 = vmatpush1.bf16.msra.mxu0 0
        %2371 = vmatprep.mubr.bf16.mxu0 0
        %2372 = vmatmul.mubr.bf16.gmra.mrb[0].mxu0 %v2334
        %v2373 = vpop.f32.mrb[0].mxu0
        %v2374 = vadd.f32 0.0, %v2373
        %v2375 = vpop.f32.mrb[0].mxu0
        %v2376 = vpop.f32.mrb[0].mxu0
        %v2377 = vpop.f32.mrb[0].mxu0
        %2378 = vdwg.mxu0
        %v2379 = vrcp.pop %v2176
        %v2380 = vrcp.pop %v2179
        %v2381 = vrcp.pop %v2182
        %v2382 = vrcp.pop %v2185
        %v2383 = vmul.f32 %v2236, %v2379
        %v2384 = vmul.f32 %v2282, %v2380
        %v2385 = vmul.f32 %v2328, %v2381
        %v2386 = vmul.f32 %v2374, %v2382
        %v2387 = vpack.c.bf16 %v2383, %v2383
        %v2388 = vpack.c.bf16 %v2384, %v2384
        %v2389 = vpack.c.bf16 %v2385, %v2385
        %v2390 = vpack.c.bf16 %v2386, %v2386
        %v2391 = vld [vmem:[%s23] sm:$0xf]
        %v2392 = vld [vmem:[%s23 + $0x4] sm:$0xf]
        %v2393 = vld [vmem:[%s23 + $0x8] sm:$0xf]
        %v2394 = vld [vmem:[%s23 + $0xc] sm:$0xf]
        %v2396 = vsel %vm1965, %v2387, 0
        %v2399 = vsel %vm2197, %v2391, 0
        %2401 = vmatprep.subr.bf16.mxu0 0
        %2402 = vmatpush1.bf16.msra.mxu0 %v2399
        %2403 = vmatprep.subr.bf16.mxu0 0
        %2404 = vmatpush1.bf16.msra.mxu0 0
        %2405 = vmatprep.subr.bf16.mxu0 0
        %2406 = vmatpush1.bf16.msra.mxu0 0
        %2407 = vmatprep.subr.bf16.mxu0 0
        %2408 = vmatpush1.bf16.msra.mxu0 0
        %2409 = vmatprep.subr.bf16.mxu0 0
        %2410 = vmatpush1.bf16.msra.mxu0 0
        %2411 = vmatprep.subr.bf16.mxu0 0
        %2412 = vmatpush1.bf16.msra.mxu0 0
        %2413 = vmatprep.subr.bf16.mxu0 0
        %2414 = vmatpush1.bf16.msra.mxu0 0
        %2415 = vmatprep.subr.bf16.mxu0 0
        %2416 = vmatpush1.bf16.msra.mxu0 0
        %2417 = vmatprep.subr.bf16.mxu0 0
        %2418 = vmatpush1.bf16.msra.mxu0 0
        %2419 = vmatprep.subr.bf16.mxu0 0
        %2420 = vmatpush1.bf16.msra.mxu0 0
        %2421 = vmatprep.subr.bf16.mxu0 0
        %2422 = vmatpush1.bf16.msra.mxu0 0
        %2423 = vmatprep.subr.bf16.mxu0 0
        %2424 = vmatpush1.bf16.msra.mxu0 0
        %2425 = vmatprep.subr.bf16.mxu0 0
        %2426 = vmatpush1.bf16.msra.mxu0 0
        %2427 = vmatprep.subr.bf16.mxu0 0
        %2428 = vmatpush1.bf16.msra.mxu0 0
        %2429 = vmatprep.subr.bf16.mxu0 0
        %2430 = vmatpush1.bf16.msra.mxu0 0
        %2431 = vmatprep.subr.bf16.mxu0 0
        %2432 = vmatpush1.bf16.msra.mxu0 0
        %2433 = vmatprep.mubr.bf16.mxu0 0
        %2434 = vmatmul.mubr.bf16.gmra.mrb[0].mxu0 %v2396
        %v2435 = vpop.f32.mrb[0].mxu0
        %v2436 = vadd.f32 0.0, %v2435
        %v2437 = vpop.f32.mrb[0].mxu0
        %v2438 = vpop.f32.mrb[0].mxu0
        %v2439 = vpop.f32.mrb[0].mxu0
        %2440 = vdwg.mxu0
        %v2442 = vsel %vm1965, %v2388, 0
        %v2445 = vsel %vm2197, %v2392, 0
        %2447 = vmatprep.subr.bf16.mxu0 0
        %2448 = vmatpush1.bf16.msra.mxu0 %v2445
        %2449 = vmatprep.subr.bf16.mxu0 0
        %2450 = vmatpush1.bf16.msra.mxu0 0
        %2451 = vmatprep.subr.bf16.mxu0 0
        %2452 = vmatpush1.bf16.msra.mxu0 0
        %2453 = vmatprep.subr.bf16.mxu0 0
        %2454 = vmatpush1.bf16.msra.mxu0 0
        %2455 = vmatprep.subr.bf16.mxu0 0
        %2456 = vmatpush1.bf16.msra.mxu0 0
        %2457 = vmatprep.subr.bf16.mxu0 0
        %2458 = vmatpush1.bf16.msra.mxu0 0
        %2459 = vmatprep.subr.bf16.mxu0 0
        %2460 = vmatpush1.bf16.msra.mxu0 0
        %2461 = vmatprep.subr.bf16.mxu0 0
        %2462 = vmatpush1.bf16.msra.mxu0 0
        %2463 = vmatprep.subr.bf16.mxu0 0
        %2464 = vmatpush1.bf16.msra.mxu0 0
        %2465 = vmatprep.subr.bf16.mxu0 0
        %2466 = vmatpush1.bf16.msra.mxu0 0
        %2467 = vmatprep.subr.bf16.mxu0 0
        %2468 = vmatpush1.bf16.msra.mxu0 0
        %2469 = vmatprep.subr.bf16.mxu0 0
        %2470 = vmatpush1.bf16.msra.mxu0 0
        %2471 = vmatprep.subr.bf16.mxu0 0
        %2472 = vmatpush1.bf16.msra.mxu0 0
        %2473 = vmatprep.subr.bf16.mxu0 0
        %2474 = vmatpush1.bf16.msra.mxu0 0
        %2475 = vmatprep.subr.bf16.mxu0 0
        %2476 = vmatpush1.bf16.msra.mxu0 0
        %2477 = vmatprep.subr.bf16.mxu0 0
        %2478 = vmatpush1.bf16.msra.mxu0 0
        %2479 = vmatprep.mubr.bf16.mxu0 0
        %2480 = vmatmul.mubr.bf16.gmra.mrb[0].mxu0 %v2442
        %v2481 = vpop.f32.mrb[0].mxu0
        %v2482 = vadd.f32 0.0, %v2481
        %v2483 = vpop.f32.mrb[0].mxu0
        %v2484 = vpop.f32.mrb[0].mxu0
        %v2485 = vpop.f32.mrb[0].mxu0
        %2486 = vdwg.mxu0
        %v2488 = vsel %vm1965, %v2389, 0
        %v2491 = vsel %vm2197, %v2393, 0
        %2493 = vmatprep.subr.bf16.mxu0 0
        %2494 = vmatpush1.bf16.msra.mxu0 %v2491
        %2495 = vmatprep.subr.bf16.mxu0 0
        %2496 = vmatpush1.bf16.msra.mxu0 0
        %2497 = vmatprep.subr.bf16.mxu0 0
        %2498 = vmatpush1.bf16.msra.mxu0 0
        %2499 = vmatprep.subr.bf16.mxu0 0
        %2500 = vmatpush1.bf16.msra.mxu0 0
        %2501 = vmatprep.subr.bf16.mxu0 0
        %2502 = vmatpush1.bf16.msra.mxu0 0
        %2503 = vmatprep.subr.bf16.mxu0 0
        %2504 = vmatpush1.bf16.msra.mxu0 0
        %2505 = vmatprep.subr.bf16.mxu0 0
        %2506 = vmatpush1.bf16.msra.mxu0 0
        %2507 = vmatprep.subr.bf16.mxu0 0
        %2508 = vmatpush1.bf16.msra.mxu0 0
        %2509 = vmatprep.subr.bf16.mxu0 0
        %2510 = vmatpush1.bf16.msra.mxu0 0
        %2511 = vmatprep.subr.bf16.mxu0 0
        %2512 = vmatpush1.bf16.msra.mxu0 0
        %2513 = vmatprep.subr.bf16.mxu0 0
        %2514 = vmatpush1.bf16.msra.mxu0 0
        %2515 = vmatprep.subr.bf16.mxu0 0
        %2516 = vmatpush1.bf16.msra.mxu0 0
        %2517 = vmatprep.subr.bf16.mxu0 0
        %2518 = vmatpush1.bf16.msra.mxu0 0
        %2519 = vmatprep.subr.bf16.mxu0 0
        %2520 = vmatpush1.bf16.msra.mxu0 0
        %2521 = vmatprep.subr.bf16.mxu0 0
        %2522 = vmatpush1.bf16.msra.mxu0 0
        %2523 = vmatprep.subr.bf16.mxu0 0
        %2524 = vmatpush1.bf16.msra.mxu0 0
        %2525 = vmatprep.mubr.bf16.mxu0 0
        %2526 = vmatmul.mubr.bf16.gmra.mrb[0].mxu0 %v2488
        %v2527 = vpop.f32.mrb[0].mxu0
        %v2528 = vadd.f32 0.0, %v2527
        %v2529 = vpop.f32.mrb[0].mxu0
        %v2530 = vpop.f32.mrb[0].mxu0
        %v2531 = vpop.f32.mrb[0].mxu0
        %2532 = vdwg.mxu0
        %v2534 = vsel %vm1965, %v2390, 0
        %v2537 = vsel %vm2197, %v2394, 0
        %2539 = vmatprep.subr.bf16.mxu0 0
        %2540 = vmatpush1.bf16.msra.mxu0 %v2537
        %2541 = vmatprep.subr.bf16.mxu0 0
        %2542 = vmatpush1.bf16.msra.mxu0 0
        %2543 = vmatprep.subr.bf16.mxu0 0
        %2544 = vmatpush1.bf16.msra.mxu0 0
        %2545 = vmatprep.subr.bf16.mxu0 0
        %2546 = vmatpush1.bf16.msra.mxu0 0
        %2547 = vmatprep.subr.bf16.mxu0 0
        %2548 = vmatpush1.bf16.msra.mxu0 0
        %2549 = vmatprep.subr.bf16.mxu0 0
        %2550 = vmatpush1.bf16.msra.mxu0 0
        %2551 = vmatprep.subr.bf16.mxu0 0
        %2552 = vmatpush1.bf16.msra.mxu0 0
        %2553 = vmatprep.subr.bf16.mxu0 0
        %2554 = vmatpush1.bf16.msra.mxu0 0
        %2555 = vmatprep.subr.bf16.mxu0 0
        %2556 = vmatpush1.bf16.msra.mxu0 0
        %2557 = vmatprep.subr.bf16.mxu0 0
        %2558 = vmatpush1.bf16.msra.mxu0 0
        %2559 = vmatprep.subr.bf16.mxu0 0
        %2560 = vmatpush1.bf16.msra.mxu0 0
        %2561 = vmatprep.subr.bf16.mxu0 0
        %2562 = vmatpush1.bf16.msra.mxu0 0
        %2563 = vmatprep.subr.bf16.mxu0 0
        %2564 = vmatpush1.bf16.msra.mxu0 0
        %2565 = vmatprep.subr.bf16.mxu0 0
        %2566 = vmatpush1.bf16.msra.mxu0 0
        %2567 = vmatprep.subr.bf16.mxu0 0
        %2568 = vmatpush1.bf16.msra.mxu0 0
        %2569 = vmatprep.subr.bf16.mxu0 0
        %2570 = vmatpush1.bf16.msra.mxu0 0
        %2571 = vmatprep.mubr.bf16.mxu0 0
        %2572 = vmatmul.mubr.bf16.gmra.mrb[0].mxu0 %v2534
        %v2573 = vpop.f32.mrb[0].mxu0
        %v2574 = vadd.f32 0.0, %v2573
        %v2575 = vpop.f32.mrb[0].mxu0
        %v2576 = vpop.f32.mrb[0].mxu0
        %v2577 = vpop.f32.mrb[0].mxu0
        %2578 = vdwg.mxu0
        %v2579 = vadd.f32 %v2436, %v2482
        %v2580 = vadd.f32 %v2579, %v2528
        %v2581 = vadd.f32 %v2580, %v2574
        %v2582 = vld [vmem:[%s25] sm:$0x1]
        %v2584 = vlaneseq
        %v2585 = vshrl.u32 %v2584, 7
        %v2586 = vsub.s32 0, %v2585
        %v2587 = vrot.slane %v2582, %v2586
        %v2589 = vadd.f32 %v2581, %v2587
        %v2590 = vadd.f32 %v1185, %v2589
        %v2591 = vld [vmem:[%s27] sm:$0x1]
        %v2592 = vld [vmem:[%s29] sm:$0x1]
        %v2593 = vsel %vm1157, %v2590, 0.0
        %2594 = vadd.xlane.f32.xlu0 %v2593
        %v2595 = vpop.xlane.xlu0 %2594
        %v2596 = vmul.f32 %v2595, %v1161
        %v2597 = vsub.f32 %v2590, %v2596
        %v2598 = vmul.f32 %v2597, %v2597
        %v2599 = vsel %vm1157, %v2598, 0.0
        %2600 = vadd.xlane.f32.xlu0 %v2599
        %v2601 = vpop.xlane.xlu0 %2600
        %v2602 = vmul.f32 %v2601, %v1161
        %v2603 = vadd.f32 %v2602, 1e-12
        %v2604 = vrsqrt.pop %v2603
        %v2605 = vmul.f32 %v2597, %v2604
        %v2607 = vlaneseq
        %v2608 = vshrl.u32 %v2607, 7
        %v2609 = vsub.s32 0, %v2608
        %v2610 = vrot.slane %v2591, %v2609
        %v2612 = vmul.f32 %v2605, %v2610
        %v2614 = vlaneseq
        %v2615 = vshrl.u32 %v2614, 7
        %v2616 = vsub.s32 0, %v2615
        %v2617 = vrot.slane %v2592, %v2616
        %v2619 = vadd.f32 %v2612, %v2617
        %v2620 = vpack.c.bf16 %v2619, %v2619
        %v2621 = vld [vmem:[%s31] sm:$0xf]
        %v2622 = vld [vmem:[%s31 + $0x4] sm:$0xf]
        %v2623 = vld [vmem:[%s31 + $0x8] sm:$0xf]
        %v2624 = vld [vmem:[%s31 + $0xc] sm:$0xf]
        %v2625 = vld [vmem:[%s33] sm:$0x1]
        %v2627 = vlaneseq
        %v2628 = vshrl.u32 %v2627, 7
        %v2629 = vsub.s32 0, %v2628
        %v2630 = vrot.slane %v2625, %v2629
        %v2636 = vunpack.c.l.b16 %v2621
        %v2637 = vunpack.c.l.b16 %v2622
        %v2638 = vunpack.c.l.b16 %v2623
        %v2639 = vunpack.c.l.b16 %v2624
        %v2640 = vpack.c.b16 %v2637, %v2636
        %v2641 = vpack.c.b16 %v2639, %v2638
        %v2645 = vsel %vm1157, %v2620, 0
        %2647 = vmatprep.subr.bf16.mxu0 0
        %2648 = vmatpush1.bf16.msra.mxu0 %v2640
        %2649 = vmatprep.subr.bf16.mxu0 0
        %2650 = vmatpush1.bf16.msra.mxu0 %v2641
        %2651 = vmatprep.subr.bf16.mxu0 0
        %2652 = vmatpush1.bf16.msra.mxu0 0
        %2653 = vmatprep.subr.bf16.mxu0 0
        %2654 = vmatpush1.bf16.msra.mxu0 0
        %2655 = vmatprep.subr.bf16.mxu0 0
        %2656 = vmatpush1.bf16.msra.mxu0 0
        %2657 = vmatprep.subr.bf16.mxu0 0
        %2658 = vmatpush1.bf16.msra.mxu0 0
        %2659 = vmatprep.subr.bf16.mxu0 0
        %2660 = vmatpush1.bf16.msra.mxu0 0
        %2661 = vmatprep.subr.bf16.mxu0 0
        %2662 = vmatpush1.bf16.msra.mxu0 0
        %2663 = vmatprep.subr.bf16.mxu0 0
        %2664 = vmatpush1.bf16.msra.mxu0 0
        %2665 = vmatprep.subr.bf16.mxu0 0
        %2666 = vmatpush1.bf16.msra.mxu0 0
        %2667 = vmatprep.subr.bf16.mxu0 0
        %2668 = vmatpush1.bf16.msra.mxu0 0
        %2669 = vmatprep.subr.bf16.mxu0 0
        %2670 = vmatpush1.bf16.msra.mxu0 0
        %2671 = vmatprep.subr.bf16.mxu0 0
        %2672 = vmatpush1.bf16.msra.mxu0 0
        %2673 = vmatprep.subr.bf16.mxu0 0
        %2674 = vmatpush1.bf16.msra.mxu0 0
        %2675 = vmatprep.subr.bf16.mxu0 0
        %2676 = vmatpush1.bf16.msra.mxu0 0
        %2677 = vmatprep.subr.bf16.mxu0 0
        %2678 = vmatpush1.bf16.msra.mxu0 0
        %2679 = vmatprep.mubr.bf16.mxu0 0
        %2680 = vmatmul.mubr.bf16.gmra.mrb[0].mxu0 %v2645
        %v2681 = vpop.f32.mrb[0].mxu0
        %v2682 = vadd.f32 %v2630, %v2681
        %v2683 = vpop.f32.mrb[0].mxu0
        %v2684 = vpop.f32.mrb[0].mxu0
        %v2685 = vpop.f32.mrb[0].mxu0
        %2686 = vdwg.mxu0
        %v2687 = vmul.f32 %v2682, 0.5
        %v2688 = vmul.f32 %v2682, 0.044715
        %v2689 = vmul.f32 %v2688, %v2682
        %v2690 = vmul.f32 %v2689, %v2682
        %v2691 = vadd.f32 %v2682, %v2690
        %v2692 = vmul.f32 %v2691, 0.7978846
        %v2693 = vtanh.pop %v2692
        %v2694 = vadd.f32 %v2693, 1.0
        %v2695 = vmul.f32 %v2687, %v2694
        %v2696 = vpack.c.bf16 %v2695, %v2695
        %v2697 = vld [vmem:[%s35] sm:$0xf]
        %v2698 = vld [vmem:[%s35 + $0x4] sm:$0xf]
        %v2699 = vld [vmem:[%s35 + $0x8] sm:$0xf]
        %v2700 = vld [vmem:[%s35 + $0xc] sm:$0xf]
        %v2701 = vld [vmem:[%s35 + $0x10] sm:$0xf]
        %v2702 = vld [vmem:[%s35 + $0x14] sm:$0xf]
        %v2703 = vld [vmem:[%s35 + $0x18] sm:$0xf]
        %v2704 = vld [vmem:[%s35 + $0x1c] sm:$0xf]
        %v2705 = vld [vmem:[%s37] sm:$0x1]
        %v2707 = vlaneseq
        %v2708 = vshrl.u32 %v2707, 7
        %v2709 = vsub.s32 0, %v2708
        %v2710 = vrot.slane %v2705, %v2709
        %v2720 = vunpack.c.l.b16 %v2697
        %v2721 = vunpack.c.l.b16 %v2698
        %v2722 = vunpack.c.l.b16 %v2699
        %v2723 = vunpack.c.l.b16 %v2700
        %v2724 = vunpack.c.l.b16 %v2701
        %v2725 = vunpack.c.l.b16 %v2702
        %v2726 = vunpack.c.l.b16 %v2703
        %v2727 = vunpack.c.l.b16 %v2704
        %v2728 = vpack.c.b16 %v2721, %v2720
        %v2729 = vpack.c.b16 %v2723, %v2722
        %v2730 = vpack.c.b16 %v2725, %v2724
        %v2731 = vpack.c.b16 %v2727, %v2726
        %vm2736 = vcmask 523264
        %v2738 = vsel %vm2736, %v2696, 0
        %2740 = vmatprep.subr.bf16.mxu0 0
        %2741 = vmatpush1.bf16.msra.mxu0 %v2728
        %2742 = vmatprep.subr.bf16.mxu0 0
        %2743 = vmatpush1.bf16.msra.mxu0 %v2729
        %2744 = vmatprep.subr.bf16.mxu0 0
        %2745 = vmatpush1.bf16.msra.mxu0 %v2730
        %2746 = vmatprep.subr.bf16.mxu0 0
        %2747 = vmatpush1.bf16.msra.mxu0 %v2731
        %2748 = vmatprep.subr.bf16.mxu0 0
        %2749 = vmatpush1.bf16.msra.mxu0 0
        %2750 = vmatprep.subr.bf16.mxu0 0
        %2751 = vmatpush1.bf16.msra.mxu0 0
        %2752 = vmatprep.subr.bf16.mxu0 0
        %2753 = vmatpush1.bf16.msra.mxu0 0
        %2754 = vmatprep.subr.bf16.mxu0 0
        %2755 = vmatpush1.bf16.msra.mxu0 0
        %2756 = vmatprep.subr.bf16.mxu0 0
        %2757 = vmatpush1.bf16.msra.mxu0 0
        %2758 = vmatprep.subr.bf16.mxu0 0
        %2759 = vmatpush1.bf16.msra.mxu0 0
        %2760 = vmatprep.subr.bf16.mxu0 0
        %2761 = vmatpush1.bf16.msra.mxu0 0
        %2762 = vmatprep.subr.bf16.mxu0 0
        %2763 = vmatpush1.bf16.msra.mxu0 0
        %2764 = vmatprep.subr.bf16.mxu0 0
        %2765 = vmatpush1.bf16.msra.mxu0 0
        %2766 = vmatprep.subr.bf16.mxu0 0
        %2767 = vmatpush1.bf16.msra.mxu0 0
        %2768 = vmatprep.subr.bf16.mxu0 0
        %2769 = vmatpush1.bf16.msra.mxu0 0
        %2770 = vmatprep.subr.bf16.mxu0 0
        %2771 = vmatpush1.bf16.msra.mxu0 0
        %2772 = vmatprep.mubr.bf16.mxu0 0
        %2773 = vmatmul.mubr.bf16.gmra.mrb[0].mxu0 %v2738
        %v2774 = vpop.f32.mrb[0].mxu0
        %v2775 = vadd.f32 %v2710, %v2774
        %v2776 = vpop.f32.mrb[0].mxu0
        %v2777 = vpop.f32.mrb[0].mxu0
        %v2778 = vpop.f32.mrb[0].mxu0
        %2779 = vdwg.mxu0
        %v2780 = vadd.f32 %v2619, %v2775
        %v2781 = vld [vmem:[%s39] sm:$0x1]
        %v2782 = vld [vmem:[%s41] sm:$0x1]
        %v2783 = vsel %vm1157, %v2780, 0.0
        %2784 = vadd.xlane.f32.xlu0 %v2783
        %v2785 = vpop.xlane.xlu0 %2784
        %v2786 = vmul.f32 %v2785, %v1161
        %v2787 = vsub.f32 %v2780, %v2786
        %v2788 = vmul.f32 %v2787, %v2787
        %v2789 = vsel %vm1157, %v2788, 0.0
        %2790 = vadd.xlane.f32.xlu0 %v2789
        %v2791 = vpop.xlane.xlu0 %2790
        %v2792 = vmul.f32 %v2791, %v1161
        %v2793 = vadd.f32 %v2792, 1e-12
        %v2794 = vrsqrt.pop %v2793
        %v2795 = vmul.f32 %v2787, %v2794
        %v2797 = vlaneseq
        %v2798 = vshrl.u32 %v2797, 7
        %v2799 = vsub.s32 0, %v2798
        %v2800 = vrot.slane %v2781, %v2799
        %v2802 = vmul.f32 %v2795, %v2800
        %v2804 = vlaneseq
        %v2805 = vshrl.u32 %v2804, 7
        %v2806 = vsub.s32 0, %v2805
        %v2807 = vrot.slane %v2782, %v2806
        %v2809 = vadd.f32 %v2802, %v2807
        %v2810 = vpack.c.bf16 %v2809, %v2809
        %v2811 = vld [vmem:[%s43] sm:$0xf]
        %v2812 = vld [vmem:[%s43 + $0x4] sm:$0xf]
        %v2813 = vld [vmem:[%s43 + $0x8] sm:$0xf]
        %v2814 = vld [vmem:[%s43 + $0xc] sm:$0xf]
        %v2815 = vld [vmem:[%s43 + $0x10] sm:$0xf]
        %v2816 = vld [vmem:[%s43 + $0x14] sm:$0xf]
        %v2817 = vld [vmem:[%s43 + $0x18] sm:$0xf]
        %v2818 = vld [vmem:[%s43 + $0x1c] sm:$0xf]
        %v2819 = vld [vmem:[%s43 + $0x20] sm:$0xf]
        %v2820 = vld [vmem:[%s43 + $0x24] sm:$0xf]
        %v2821 = vld [vmem:[%s43 + $0x28] sm:$0xf]
        %v2822 = vld [vmem:[%s43 + $0x2c] sm:$0xf]
        %v2823 = vld [vmem:[%s43 + $0x30] sm:$0xf]
        %v2824 = vld [vmem:[%s43 + $0x34] sm:$0xf]
        %v2825 = vld [vmem:[%s43 + $0x38] sm:$0xf]
        %v2826 = vld [vmem:[%s43 + $0x3c] sm:$0xf]
        %v2827 = vld [vmem:[%s45] sm:$0x1]
        %v2828 = vld [vmem:[%s45 + $0x1] sm:$0x1]
        %v2829 = vld [vmem:[%s45 + $0x2] sm:$0x1]
        %v2830 = vld [vmem:[%s45 + $0x3] sm:$0x1]
        %v2835 = vlaneseq
        %v2836 = vshrl.u32 %v2835, 7
        %v2837 = vsub.s32 0, %v2836
        %v2838 = vrot.slane %v2827, %v2837
        %v2839 = vlaneseq
        %v2840 = vshrl.u32 %v2839, 7
        %v2841 = vsub.s32 0, %v2840
        %v2842 = vrot.slane %v2828, %v2841
        %v2843 = vlaneseq
        %v2844 = vshrl.u32 %v2843, 7
        %v2845 = vsub.s32 0, %v2844
        %v2846 = vrot.slane %v2829, %v2845
        %v2847 = vlaneseq
        %v2848 = vshrl.u32 %v2847, 7
        %v2849 = vsub.s32 0, %v2848
        %v2850 = vrot.slane %v2830, %v2849
        %v2859 = vunpack.c.l.b16 %v2811
        %v2860 = vunpack.c.l.b16 %v2812
        %v2861 = vunpack.c.l.b16 %v2813
        %v2862 = vunpack.c.l.b16 %v2814
        %v2863 = vpack.c.b16 %v2860, %v2859
        %v2864 = vpack.c.b16 %v2862, %v2861
        %v2868 = vsel %vm1157, %v2810, 0
        %2870 = vmatprep.subr.bf16.mxu0 0
        %2871 = vmatpush1.bf16.msra.mxu0 %v2863
        %2872 = vmatprep.subr.bf16.mxu0 0
        %2873 = vmatpush1.bf16.msra.mxu0 %v2864
        %2874 = vmatprep.subr.bf16.mxu0 0
        %2875 = vmatpush1.bf16.msra.mxu0 0
        %2876 = vmatprep.subr.bf16.mxu0 0
        %2877 = vmatpush1.bf16.msra.mxu0 0
        %2878 = vmatprep.subr.bf16.mxu0 0
        %2879 = vmatpush1.bf16.msra.mxu0 0
        %2880 = vmatprep.subr.bf16.mxu0 0
        %2881 = vmatpush1.bf16.msra.mxu0 0
        %2882 = vmatprep.subr.bf16.mxu0 0
        %2883 = vmatpush1.bf16.msra.mxu0 0
        %2884 = vmatprep.subr.bf16.mxu0 0
        %2885 = vmatpush1.bf16.msra.mxu0 0
        %2886 = vmatprep.subr.bf16.mxu0 0
        %2887 = vmatpush1.bf16.msra.mxu0 0
        %2888 = vmatprep.subr.bf16.mxu0 0
        %2889 = vmatpush1.bf16.msra.mxu0 0
        %2890 = vmatprep.subr.bf16.mxu0 0
        %2891 = vmatpush1.bf16.msra.mxu0 0
        %2892 = vmatprep.subr.bf16.mxu0 0
        %2893 = vmatpush1.bf16.msra.mxu0 0
        %2894 = vmatprep.subr.bf16.mxu0 0
        %2895 = vmatpush1.bf16.msra.mxu0 0
        %2896 = vmatprep.subr.bf16.mxu0 0
        %2897 = vmatpush1.bf16.msra.mxu0 0
        %2898 = vmatprep.subr.bf16.mxu0 0
        %2899 = vmatpush1.bf16.msra.mxu0 0
        %2900 = vmatprep.subr.bf16.mxu0 0
        %2901 = vmatpush1.bf16.msra.mxu0 0
        %2902 = vmatprep.mubr.bf16.mxu0 0
        %2903 = vmatmul.mubr.bf16.gmra.mrb[0].mxu0 %v2868
        %v2904 = vpop.f32.mrb[0].mxu0
        %v2905 = vadd.f32 %v2838, %v2904
        %v2906 = vpop.f32.mrb[0].mxu0
        %v2907 = vpop.f32.mrb[0].mxu0
        %v2908 = vpop.f32.mrb[0].mxu0
        %2909 = vdwg.mxu0
        %v2914 = vunpack.c.l.b16 %v2815
        %v2915 = vunpack.c.l.b16 %v2816
        %v2916 = vunpack.c.l.b16 %v2817
        %v2917 = vunpack.c.l.b16 %v2818
        %v2918 = vpack.c.b16 %v2915, %v2914
        %v2919 = vpack.c.b16 %v2917, %v2916
        %2922 = vmatprep.subr.bf16.mxu0 0
        %2923 = vmatpush1.bf16.msra.mxu0 %v2918
        %2924 = vmatprep.subr.bf16.mxu0 0
        %2925 = vmatpush1.bf16.msra.mxu0 %v2919
        %2926 = vmatprep.subr.bf16.mxu0 0
        %2927 = vmatpush1.bf16.msra.mxu0 0
        %2928 = vmatprep.subr.bf16.mxu0 0
        %2929 = vmatpush1.bf16.msra.mxu0 0
        %2930 = vmatprep.subr.bf16.mxu0 0
        %2931 = vmatpush1.bf16.msra.mxu0 0
        %2932 = vmatprep.subr.bf16.mxu0 0
        %2933 = vmatpush1.bf16.msra.mxu0 0
        %2934 = vmatprep.subr.bf16.mxu0 0
        %2935 = vmatpush1.bf16.msra.mxu0 0
        %2936 = vmatprep.subr.bf16.mxu0 0
        %2937 = vmatpush1.bf16.msra.mxu0 0
        %2938 = vmatprep.subr.bf16.mxu0 0
        %2939 = vmatpush1.bf16.msra.mxu0 0
        %2940 = vmatprep.subr.bf16.mxu0 0
        %2941 = vmatpush1.bf16.msra.mxu0 0
        %2942 = vmatprep.subr.bf16.mxu0 0
        %2943 = vmatpush1.bf16.msra.mxu0 0
        %2944 = vmatprep.subr.bf16.mxu0 0
        %2945 = vmatpush1.bf16.msra.mxu0 0
        %2946 = vmatprep.subr.bf16.mxu0 0
        %2947 = vmatpush1.bf16.msra.mxu0 0
        %2948 = vmatprep.subr.bf16.mxu0 0
        %2949 = vmatpush1.bf16.msra.mxu0 0
        %2950 = vmatprep.subr.bf16.mxu0 0
        %2951 = vmatpush1.bf16.msra.mxu0 0
        %2952 = vmatprep.subr.bf16.mxu0 0
        %2953 = vmatpush1.bf16.msra.mxu0 0
        %2954 = vmatprep.mubr.bf16.mxu0 0
        %2955 = vmatmul.mubr.bf16.gmra.mrb[0].mxu0 %v2868
        %v2956 = vpop.f32.mrb[0].mxu0
        %v2957 = vadd.f32 %v2842, %v2956
        %v2958 = vpop.f32.mrb[0].mxu0
        %v2959 = vpop.f32.mrb[0].mxu0
        %v2960 = vpop.f32.mrb[0].mxu0
        %2961 = vdwg.mxu0
        %v2966 = vunpack.c.l.b16 %v2819
        %v2967 = vunpack.c.l.b16 %v2820
        %v2968 = vunpack.c.l.b16 %v2821
        %v2969 = vunpack.c.l.b16 %v2822
        %v2970 = vpack.c.b16 %v2967, %v2966
        %v2971 = vpack.c.b16 %v2969, %v2968
        %2974 = vmatprep.subr.bf16.mxu0 0
        %2975 = vmatpush1.bf16.msra.mxu0 %v2970
        %2976 = vmatprep.subr.bf16.mxu0 0
        %2977 = vmatpush1.bf16.msra.mxu0 %v2971
        %2978 = vmatprep.subr.bf16.mxu0 0
        %2979 = vmatpush1.bf16.msra.mxu0 0
        %2980 = vmatprep.subr.bf16.mxu0 0
        %2981 = vmatpush1.bf16.msra.mxu0 0
        %2982 = vmatprep.subr.bf16.mxu0 0
        %2983 = vmatpush1.bf16.msra.mxu0 0
        %2984 = vmatprep.subr.bf16.mxu0 0
        %2985 = vmatpush1.bf16.msra.mxu0 0
        %2986 = vmatprep.subr.bf16.mxu0 0
        %2987 = vmatpush1.bf16.msra.mxu0 0
        %2988 = vmatprep.subr.bf16.mxu0 0
        %2989 = vmatpush1.bf16.msra.mxu0 0
        %2990 = vmatprep.subr.bf16.mxu0 0
        %2991 = vmatpush1.bf16.msra.mxu0 0
        %2992 = vmatprep.subr.bf16.mxu0 0
        %2993 = vmatpush1.bf16.msra.mxu0 0
        %2994 = vmatprep.subr.bf16.mxu0 0
        %2995 = vmatpush1.bf16.msra.mxu0 0
        %2996 = vmatprep.subr.bf16.mxu0 0
        %2997 = vmatpush1.bf16.msra.mxu0 0
        %2998 = vmatprep.subr.bf16.mxu0 0
        %2999 = vmatpush1.bf16.msra.mxu0 0
        %3000 = vmatprep.subr.bf16.mxu0 0
        %3001 = vmatpush1.bf16.msra.mxu0 0
        %3002 = vmatprep.subr.bf16.mxu0 0
        %3003 = vmatpush1.bf16.msra.mxu0 0
        %3004 = vmatprep.subr.bf16.mxu0 0
        %3005 = vmatpush1.bf16.msra.mxu0 0
        %3006 = vmatprep.mubr.bf16.mxu0 0
        %3007 = vmatmul.mubr.bf16.gmra.mrb[0].mxu0 %v2868
        %v3008 = vpop.f32.mrb[0].mxu0
        %v3009 = vadd.f32 %v2846, %v3008
        %v3010 = vpop.f32.mrb[0].mxu0
        %v3011 = vpop.f32.mrb[0].mxu0
        %v3012 = vpop.f32.mrb[0].mxu0
        %3013 = vdwg.mxu0
        %v3018 = vunpack.c.l.b16 %v2823
        %v3019 = vunpack.c.l.b16 %v2824
        %v3020 = vunpack.c.l.b16 %v2825
        %v3021 = vunpack.c.l.b16 %v2826
        %v3022 = vpack.c.b16 %v3019, %v3018
        %v3023 = vpack.c.b16 %v3021, %v3020
        %3026 = vmatprep.subr.bf16.mxu0 0
        %3027 = vmatpush1.bf16.msra.mxu0 %v3022
        %3028 = vmatprep.subr.bf16.mxu0 0
        %3029 = vmatpush1.bf16.msra.mxu0 %v3023
        %3030 = vmatprep.subr.bf16.mxu0 0
        %3031 = vmatpush1.bf16.msra.mxu0 0
        %3032 = vmatprep.subr.bf16.mxu0 0
        %3033 = vmatpush1.bf16.msra.mxu0 0
        %3034 = vmatprep.subr.bf16.mxu0 0
        %3035 = vmatpush1.bf16.msra.mxu0 0
        %3036 = vmatprep.subr.bf16.mxu0 0
        %3037 = vmatpush1.bf16.msra.mxu0 0
        %3038 = vmatprep.subr.bf16.mxu0 0
        %3039 = vmatpush1.bf16.msra.mxu0 0
        %3040 = vmatprep.subr.bf16.mxu0 0
        %3041 = vmatpush1.bf16.msra.mxu0 0
        %3042 = vmatprep.subr.bf16.mxu0 0
        %3043 = vmatpush1.bf16.msra.mxu0 0
        %3044 = vmatprep.subr.bf16.mxu0 0
        %3045 = vmatpush1.bf16.msra.mxu0 0
        %3046 = vmatprep.subr.bf16.mxu0 0
        %3047 = vmatpush1.bf16.msra.mxu0 0
        %3048 = vmatprep.subr.bf16.mxu0 0
        %3049 = vmatpush1.bf16.msra.mxu0 0
        %3050 = vmatprep.subr.bf16.mxu0 0
        %3051 = vmatpush1.bf16.msra.mxu0 0
        %3052 = vmatprep.subr.bf16.mxu0 0
        %3053 = vmatpush1.bf16.msra.mxu0 0
        %3054 = vmatprep.subr.bf16.mxu0 0
        %3055 = vmatpush1.bf16.msra.mxu0 0
        %3056 = vmatprep.subr.bf16.mxu0 0
        %3057 = vmatpush1.bf16.msra.mxu0 0
        %3058 = vmatprep.mubr.bf16.mxu0 0
        %3059 = vmatmul.mubr.bf16.gmra.mrb[0].mxu0 %v2868
        %v3060 = vpop.f32.mrb[0].mxu0
        %v3061 = vadd.f32 %v2850, %v3060
        %v3062 = vpop.f32.mrb[0].mxu0
        %v3063 = vpop.f32.mrb[0].mxu0
        %v3064 = vpop.f32.mrb[0].mxu0
        %3065 = vdwg.mxu0
        %v3066 = vld [vmem:[%s47] sm:$0xf]
        %v3067 = vld [vmem:[%s47 + $0x4] sm:$0xf]
        %v3068 = vld [vmem:[%s47 + $0x8] sm:$0xf]
        %v3069 = vld [vmem:[%s47 + $0xc] sm:$0xf]
        %v3070 = vld [vmem:[%s47 + $0x10] sm:$0xf]
        %v3071 = vld [vmem:[%s47 + $0x14] sm:$0xf]
        %v3072 = vld [vmem:[%s47 + $0x18] sm:$0xf]
        %v3073 = vld [vmem:[%s47 + $0x1c] sm:$0xf]
        %v3074 = vld [vmem:[%s47 + $0x20] sm:$0xf]
        %v3075 = vld [vmem:[%s47 + $0x24] sm:$0xf]
        %v3076 = vld [vmem:[%s47 + $0x28] sm:$0xf]
        %v3077 = vld [vmem:[%s47 + $0x2c] sm:$0xf]
        %v3078 = vld [vmem:[%s47 + $0x30] sm:$0xf]
        %v3079 = vld [vmem:[%s47 + $0x34] sm:$0xf]
        %v3080 = vld [vmem:[%s47 + $0x38] sm:$0xf]
        %v3081 = vld [vmem:[%s47 + $0x3c] sm:$0xf]
        %v3082 = vld [vmem:[%s49] sm:$0x1]
        %v3083 = vld [vmem:[%s49 + $0x1] sm:$0x1]
        %v3084 = vld [vmem:[%s49 + $0x2] sm:$0x1]
        %v3085 = vld [vmem:[%s49 + $0x3] sm:$0x1]
        %v3090 = vlaneseq
        %v3091 = vshrl.u32 %v3090, 7
        %v3092 = vsub.s32 0, %v3091
        %v3093 = vrot.slane %v3082, %v3092
        %v3094 = vlaneseq
        %v3095 = vshrl.u32 %v3094, 7
        %v3096 = vsub.s32 0, %v3095
        %v3097 = vrot.slane %v3083, %v3096
        %v3098 = vlaneseq
        %v3099 = vshrl.u32 %v3098, 7
        %v3100 = vsub.s32 0, %v3099
        %v3101 = vrot.slane %v3084, %v3100
        %v3102 = vlaneseq
        %v3103 = vshrl.u32 %v3102, 7
        %v3104 = vsub.s32 0, %v3103
        %v3105 = vrot.slane %v3085, %v3104
        %v3114 = vunpack.c.l.b16 %v3066
        %v3115 = vunpack.c.l.b16 %v3067
        %v3116 = vunpack.c.l.b16 %v3068
        %v3117 = vunpack.c.l.b16 %v3069
        %v3118 = vpack.c.b16 %v3115, %v3114
        %v3119 = vpack.c.b16 %v3117, %v3116
        %3122 = vmatprep.subr.bf16.mxu0 0
        %3123 = vmatpush1.bf16.msra.mxu0 %v3118
        %3124 = vmatprep.subr.bf16.mxu0 0
        %3125 = vmatpush1.bf16.msra.mxu0 %v3119
        %3126 = vmatprep.subr.bf16.mxu0 0
        %3127 = vmatpush1.bf16.msra.mxu0 0
        %3128 = vmatprep.subr.bf16.mxu0 0
        %3129 = vmatpush1.bf16.msra.mxu0 0
        %3130 = vmatprep.subr.bf16.mxu0 0
        %3131 = vmatpush1.bf16.msra.mxu0 0
        %3132 = vmatprep.subr.bf16.mxu0 0
        %3133 = vmatpush1.bf16.msra.mxu0 0
        %3134 = vmatprep.subr.bf16.mxu0 0
        %3135 = vmatpush1.bf16.msra.mxu0 0
        %3136 = vmatprep.subr.bf16.mxu0 0
        %3137 = vmatpush1.bf16.msra.mxu0 0
        %3138 = vmatprep.subr.bf16.mxu0 0
        %3139 = vmatpush1.bf16.msra.mxu0 0
        %3140 = vmatprep.subr.bf16.mxu0 0
        %3141 = vmatpush1.bf16.msra.mxu0 0
        %3142 = vmatprep.subr.bf16.mxu0 0
        %3143 = vmatpush1.bf16.msra.mxu0 0
        %3144 = vmatprep.subr.bf16.mxu0 0
        %3145 = vmatpush1.bf16.msra.mxu0 0
        %3146 = vmatprep.subr.bf16.mxu0 0
        %3147 = vmatpush1.bf16.msra.mxu0 0
        %3148 = vmatprep.subr.bf16.mxu0 0
        %3149 = vmatpush1.bf16.msra.mxu0 0
        %3150 = vmatprep.subr.bf16.mxu0 0
        %3151 = vmatpush1.bf16.msra.mxu0 0
        %3152 = vmatprep.subr.bf16.mxu0 0
        %3153 = vmatpush1.bf16.msra.mxu0 0
        %3154 = vmatprep.mubr.bf16.mxu0 0
        %3155 = vmatmul.mubr.bf16.gmra.mrb[0].mxu0 %v2868
        %v3156 = vpop.f32.mrb[0].mxu0
        %v3157 = vadd.f32 %v3093, %v3156
        %v3158 = vpop.f32.mrb[0].mxu0
        %v3159 = vpop.f32.mrb[0].mxu0
        %v3160 = vpop.f32.mrb[0].mxu0
        %3161 = vdwg.mxu0
        %v3166 = vunpack.c.l.b16 %v3070
        %v3167 = vunpack.c.l.b16 %v3071
        %v3168 = vunpack.c.l.b16 %v3072
        %v3169 = vunpack.c.l.b16 %v3073
        %v3170 = vpack.c.b16 %v3167, %v3166
        %v3171 = vpack.c.b16 %v3169, %v3168
        %3174 = vmatprep.subr.bf16.mxu0 0
        %3175 = vmatpush1.bf16.msra.mxu0 %v3170
        %3176 = vmatprep.subr.bf16.mxu0 0
        %3177 = vmatpush1.bf16.msra.mxu0 %v3171
        %3178 = vmatprep.subr.bf16.mxu0 0
        %3179 = vmatpush1.bf16.msra.mxu0 0
        %3180 = vmatprep.subr.bf16.mxu0 0
        %3181 = vmatpush1.bf16.msra.mxu0 0
        %3182 = vmatprep.subr.bf16.mxu0 0
        %3183 = vmatpush1.bf16.msra.mxu0 0
        %3184 = vmatprep.subr.bf16.mxu0 0
        %3185 = vmatpush1.bf16.msra.mxu0 0
        %3186 = vmatprep.subr.bf16.mxu0 0
        %3187 = vmatpush1.bf16.msra.mxu0 0
        %3188 = vmatprep.subr.bf16.mxu0 0
        %3189 = vmatpush1.bf16.msra.mxu0 0
        %3190 = vmatprep.subr.bf16.mxu0 0
        %3191 = vmatpush1.bf16.msra.mxu0 0
        %3192 = vmatprep.subr.bf16.mxu0 0
        %3193 = vmatpush1.bf16.msra.mxu0 0
        %3194 = vmatprep.subr.bf16.mxu0 0
        %3195 = vmatpush1.bf16.msra.mxu0 0
        %3196 = vmatprep.subr.bf16.mxu0 0
        %3197 = vmatpush1.bf16.msra.mxu0 0
        %3198 = vmatprep.subr.bf16.mxu0 0
        %3199 = vmatpush1.bf16.msra.mxu0 0
        %3200 = vmatprep.subr.bf16.mxu0 0
        %3201 = vmatpush1.bf16.msra.mxu0 0
        %3202 = vmatprep.subr.bf16.mxu0 0
        %3203 = vmatpush1.bf16.msra.mxu0 0
        %3204 = vmatprep.subr.bf16.mxu0 0
        %3205 = vmatpush1.bf16.msra.mxu0 0
        %3206 = vmatprep.mubr.bf16.mxu0 0
        %3207 = vmatmul.mubr.bf16.gmra.mrb[0].mxu0 %v2868
        %v3208 = vpop.f32.mrb[0].mxu0
        %v3209 = vadd.f32 %v3097, %v3208
        %v3210 = vpop.f32.mrb[0].mxu0
        %v3211 = vpop.f32.mrb[0].mxu0
        %v3212 = vpop.f32.mrb[0].mxu0
        %3213 = vdwg.mxu0
        %v3218 = vunpack.c.l.b16 %v3074
        %v3219 = vunpack.c.l.b16 %v3075
        %v3220 = vunpack.c.l.b16 %v3076
        %v3221 = vunpack.c.l.b16 %v3077
        %v3222 = vpack.c.b16 %v3219, %v3218
        %v3223 = vpack.c.b16 %v3221, %v3220
        %3226 = vmatprep.subr.bf16.mxu0 0
        %3227 = vmatpush1.bf16.msra.mxu0 %v3222
        %3228 = vmatprep.subr.bf16.mxu0 0
        %3229 = vmatpush1.bf16.msra.mxu0 %v3223
        %3230 = vmatprep.subr.bf16.mxu0 0
        %3231 = vmatpush1.bf16.msra.mxu0 0
        %3232 = vmatprep.subr.bf16.mxu0 0
        %3233 = vmatpush1.bf16.msra.mxu0 0
        %3234 = vmatprep.subr.bf16.mxu0 0
        %3235 = vmatpush1.bf16.msra.mxu0 0
        %3236 = vmatprep.subr.bf16.mxu0 0
        %3237 = vmatpush1.bf16.msra.mxu0 0
        %3238 = vmatprep.subr.bf16.mxu0 0
        %3239 = vmatpush1.bf16.msra.mxu0 0
        %3240 = vmatprep.subr.bf16.mxu0 0
        %3241 = vmatpush1.bf16.msra.mxu0 0
        %3242 = vmatprep.subr.bf16.mxu0 0
        %3243 = vmatpush1.bf16.msra.mxu0 0
        %3244 = vmatprep.subr.bf16.mxu0 0
        %3245 = vmatpush1.bf16.msra.mxu0 0
        %3246 = vmatprep.subr.bf16.mxu0 0
        %3247 = vmatpush1.bf16.msra.mxu0 0
        %3248 = vmatprep.subr.bf16.mxu0 0
        %3249 = vmatpush1.bf16.msra.mxu0 0
        %3250 = vmatprep.subr.bf16.mxu0 0
        %3251 = vmatpush1.bf16.msra.mxu0 0
        %3252 = vmatprep.subr.bf16.mxu0 0
        %3253 = vmatpush1.bf16.msra.mxu0 0
        %3254 = vmatprep.subr.bf16.mxu0 0
        %3255 = vmatpush1.bf16.msra.mxu0 0
        %3256 = vmatprep.subr.bf16.mxu0 0
        %3257 = vmatpush1.bf16.msra.mxu0 0
        %3258 = vmatprep.mubr.bf16.mxu0 0
        %3259 = vmatmul.mubr.bf16.gmra.mrb[0].mxu0 %v2868
        %v3260 = vpop.f32.mrb[0].mxu0
        %v3261 = vadd.f32 %v3101, %v3260
        %v3262 = vpop.f32.mrb[0].mxu0
        %v3263 = vpop.f32.mrb[0].mxu0
        %v3264 = vpop.f32.mrb[0].mxu0
        %3265 = vdwg.mxu0
        %v3270 = vunpack.c.l.b16 %v3078
        %v3271 = vunpack.c.l.b16 %v3079
        %v3272 = vunpack.c.l.b16 %v3080
        %v3273 = vunpack.c.l.b16 %v3081
        %v3274 = vpack.c.b16 %v3271, %v3270
        %v3275 = vpack.c.b16 %v3273, %v3272
        %3278 = vmatprep.subr.bf16.mxu0 0
        %3279 = vmatpush1.bf16.msra.mxu0 %v3274
        %3280 = vmatprep.subr.bf16.mxu0 0
        %3281 = vmatpush1.bf16.msra.mxu0 %v3275
        %3282 = vmatprep.subr.bf16.mxu0 0
        %3283 = vmatpush1.bf16.msra.mxu0 0
        %3284 = vmatprep.subr.bf16.mxu0 0
        %3285 = vmatpush1.bf16.msra.mxu0 0
        %3286 = vmatprep.subr.bf16.mxu0 0
        %3287 = vmatpush1.bf16.msra.mxu0 0
        %3288 = vmatprep.subr.bf16.mxu0 0
        %3289 = vmatpush1.bf16.msra.mxu0 0
        %3290 = vmatprep.subr.bf16.mxu0 0
        %3291 = vmatpush1.bf16.msra.mxu0 0
        %3292 = vmatprep.subr.bf16.mxu0 0
        %3293 = vmatpush1.bf16.msra.mxu0 0
        %3294 = vmatprep.subr.bf16.mxu0 0
        %3295 = vmatpush1.bf16.msra.mxu0 0
        %3296 = vmatprep.subr.bf16.mxu0 0
        %3297 = vmatpush1.bf16.msra.mxu0 0
        %3298 = vmatprep.subr.bf16.mxu0 0
        %3299 = vmatpush1.bf16.msra.mxu0 0
        %3300 = vmatprep.subr.bf16.mxu0 0
        %3301 = vmatpush1.bf16.msra.mxu0 0
        %3302 = vmatprep.subr.bf16.mxu0 0
        %3303 = vmatpush1.bf16.msra.mxu0 0
        %3304 = vmatprep.subr.bf16.mxu0 0
        %3305 = vmatpush1.bf16.msra.mxu0 0
        %3306 = vmatprep.subr.bf16.mxu0 0
        %3307 = vmatpush1.bf16.msra.mxu0 0
        %3308 = vmatprep.subr.bf16.mxu0 0
        %3309 = vmatpush1.bf16.msra.mxu0 0
        %3310 = vmatprep.mubr.bf16.mxu0 0
        %3311 = vmatmul.mubr.bf16.gmra.mrb[0].mxu0 %v2868
        %v3312 = vpop.f32.mrb[0].mxu0
        %v3313 = vadd.f32 %v3105, %v3312
        %v3314 = vpop.f32.mrb[0].mxu0
        %v3315 = vpop.f32.mrb[0].mxu0
        %v3316 = vpop.f32.mrb[0].mxu0
        %3317 = vdwg.mxu0
        %v3318 = vld [vmem:[%s51] sm:$0xf]
        %v3319 = vld [vmem:[%s51 + $0x4] sm:$0xf]
        %v3320 = vld [vmem:[%s51 + $0x8] sm:$0xf]
        %v3321 = vld [vmem:[%s51 + $0xc] sm:$0xf]
        %v3322 = vld [vmem:[%s51 + $0x10] sm:$0xf]
        %v3323 = vld [vmem:[%s51 + $0x14] sm:$0xf]
        %v3324 = vld [vmem:[%s51 + $0x18] sm:$0xf]
        %v3325 = vld [vmem:[%s51 + $0x1c] sm:$0xf]
        %v3326 = vld [vmem:[%s51 + $0x20] sm:$0xf]
        %v3327 = vld [vmem:[%s51 + $0x24] sm:$0xf]
        %v3328 = vld [vmem:[%s51 + $0x28] sm:$0xf]
        %v3329 = vld [vmem:[%s51 + $0x2c] sm:$0xf]
        %v3330 = vld [vmem:[%s51 + $0x30] sm:$0xf]
        %v3331 = vld [vmem:[%s51 + $0x34] sm:$0xf]
        %v3332 = vld [vmem:[%s51 + $0x38] sm:$0xf]
        %v3333 = vld [vmem:[%s51 + $0x3c] sm:$0xf]
        %v3334 = vld [vmem:[%s53] sm:$0x1]
        %v3335 = vld [vmem:[%s53 + $0x1] sm:$0x1]
        %v3336 = vld [vmem:[%s53 + $0x2] sm:$0x1]
        %v3337 = vld [vmem:[%s53 + $0x3] sm:$0x1]
        %v3342 = vlaneseq
        %v3343 = vshrl.u32 %v3342, 7
        %v3344 = vsub.s32 0, %v3343
        %v3345 = vrot.slane %v3334, %v3344
        %v3346 = vlaneseq
        %v3347 = vshrl.u32 %v3346, 7
        %v3348 = vsub.s32 0, %v3347
        %v3349 = vrot.slane %v3335, %v3348
        %v3350 = vlaneseq
        %v3351 = vshrl.u32 %v3350, 7
        %v3352 = vsub.s32 0, %v3351
        %v3353 = vrot.slane %v3336, %v3352
        %v3354 = vlaneseq
        %v3355 = vshrl.u32 %v3354, 7
        %v3356 = vsub.s32 0, %v3355
        %v3357 = vrot.slane %v3337, %v3356
        %v3366 = vunpack.c.l.b16 %v3318
        %v3367 = vunpack.c.l.b16 %v3319
        %v3368 = vunpack.c.l.b16 %v3320
        %v3369 = vunpack.c.l.b16 %v3321
        %v3370 = vpack.c.b16 %v3367, %v3366
        %v3371 = vpack.c.b16 %v3369, %v3368
        %3374 = vmatprep.subr.bf16.mxu0 0
        %3375 = vmatpush1.bf16.msra.mxu0 %v3370
        %3376 = vmatprep.subr.bf16.mxu0 0
        %3377 = vmatpush1.bf16.msra.mxu0 %v3371
        %3378 = vmatprep.subr.bf16.mxu0 0
        %3379 = vmatpush1.bf16.msra.mxu0 0
        %3380 = vmatprep.subr.bf16.mxu0 0
        %3381 = vmatpush1.bf16.msra.mxu0 0
        %3382 = vmatprep.subr.bf16.mxu0 0
        %3383 = vmatpush1.bf16.msra.mxu0 0
        %3384 = vmatprep.subr.bf16.mxu0 0
        %3385 = vmatpush1.bf16.msra.mxu0 0
        %3386 = vmatprep.subr.bf16.mxu0 0
        %3387 = vmatpush1.bf16.msra.mxu0 0
        %3388 = vmatprep.subr.bf16.mxu0 0
        %3389 = vmatpush1.bf16.msra.mxu0 0
        %3390 = vmatprep.subr.bf16.mxu0 0
        %3391 = vmatpush1.bf16.msra.mxu0 0
        %3392 = vmatprep.subr.bf16.mxu0 0
        %3393 = vmatpush1.bf16.msra.mxu0 0
        %3394 = vmatprep.subr.bf16.mxu0 0
        %3395 = vmatpush1.bf16.msra.mxu0 0
        %3396 = vmatprep.subr.bf16.mxu0 0
        %3397 = vmatpush1.bf16.msra.mxu0 0
        %3398 = vmatprep.subr.bf16.mxu0 0
        %3399 = vmatpush1.bf16.msra.mxu0 0
        %3400 = vmatprep.subr.bf16.mxu0 0
        %3401 = vmatpush1.bf16.msra.mxu0 0
        %3402 = vmatprep.subr.bf16.mxu0 0
        %3403 = vmatpush1.bf16.msra.mxu0 0
        %3404 = vmatprep.subr.bf16.mxu0 0
        %3405 = vmatpush1.bf16.msra.mxu0 0
        %3406 = vmatprep.mubr.bf16.mxu0 0
        %3407 = vmatmul.mubr.bf16.gmra.mrb[0].mxu0 %v2868
        %v3408 = vpop.f32.mrb[0].mxu0
        %v3409 = vadd.f32 %v3345, %v3408
        %v3410 = vpop.f32.mrb[0].mxu0
        %v3411 = vpop.f32.mrb[0].mxu0
        %v3412 = vpop.f32.mrb[0].mxu0
        %3413 = vdwg.mxu0
        %v3418 = vunpack.c.l.b16 %v3322
        %v3419 = vunpack.c.l.b16 %v3323
        %v3420 = vunpack.c.l.b16 %v3324
        %v3421 = vunpack.c.l.b16 %v3325
        %v3422 = vpack.c.b16 %v3419, %v3418
        %v3423 = vpack.c.b16 %v3421, %v3420
        %3426 = vmatprep.subr.bf16.mxu0 0
        %3427 = vmatpush1.bf16.msra.mxu0 %v3422
        %3428 = vmatprep.subr.bf16.mxu0 0
        %3429 = vmatpush1.bf16.msra.mxu0 %v3423
        %3430 = vmatprep.subr.bf16.mxu0 0
        %3431 = vmatpush1.bf16.msra.mxu0 0
        %3432 = vmatprep.subr.bf16.mxu0 0
        %3433 = vmatpush1.bf16.msra.mxu0 0
        %3434 = vmatprep.subr.bf16.mxu0 0
        %3435 = vmatpush1.bf16.msra.mxu0 0
        %3436 = vmatprep.subr.bf16.mxu0 0
        %3437 = vmatpush1.bf16.msra.mxu0 0
        %3438 = vmatprep.subr.bf16.mxu0 0
        %3439 = vmatpush1.bf16.msra.mxu0 0
        %3440 = vmatprep.subr.bf16.mxu0 0
        %3441 = vmatpush1.bf16.msra.mxu0 0
        %3442 = vmatprep.subr.bf16.mxu0 0
        %3443 = vmatpush1.bf16.msra.mxu0 0
        %3444 = vmatprep.subr.bf16.mxu0 0
        %3445 = vmatpush1.bf16.msra.mxu0 0
        %3446 = vmatprep.subr.bf16.mxu0 0
        %3447 = vmatpush1.bf16.msra.mxu0 0
        %3448 = vmatprep.subr.bf16.mxu0 0
        %3449 = vmatpush1.bf16.msra.mxu0 0
        %3450 = vmatprep.subr.bf16.mxu0 0
        %3451 = vmatpush1.bf16.msra.mxu0 0
        %3452 = vmatprep.subr.bf16.mxu0 0
        %3453 = vmatpush1.bf16.msra.mxu0 0
        %3454 = vmatprep.subr.bf16.mxu0 0
        %3455 = vmatpush1.bf16.msra.mxu0 0
        %3456 = vmatprep.subr.bf16.mxu0 0
        %3457 = vmatpush1.bf16.msra.mxu0 0
        %3458 = vmatprep.mubr.bf16.mxu0 0
        %3459 = vmatmul.mubr.bf16.gmra.mrb[0].mxu0 %v2868
        %v3460 = vpop.f32.mrb[0].mxu0
        %v3461 = vadd.f32 %v3349, %v3460
        %v3462 = vpop.f32.mrb[0].mxu0
        %v3463 = vpop.f32.mrb[0].mxu0
        %v3464 = vpop.f32.mrb[0].mxu0
        %3465 = vdwg.mxu0
        %v3470 = vunpack.c.l.b16 %v3326
        %v3471 = vunpack.c.l.b16 %v3327
        %v3472 = vunpack.c.l.b16 %v3328
        %v3473 = vunpack.c.l.b16 %v3329
        %v3474 = vpack.c.b16 %v3471, %v3470
        %v3475 = vpack.c.b16 %v3473, %v3472
        %3478 = vmatprep.subr.bf16.mxu0 0
        %3479 = vmatpush1.bf16.msra.mxu0 %v3474
        %3480 = vmatprep.subr.bf16.mxu0 0
        %3481 = vmatpush1.bf16.msra.mxu0 %v3475
        %3482 = vmatprep.subr.bf16.mxu0 0
        %3483 = vmatpush1.bf16.msra.mxu0 0
        %3484 = vmatprep.subr.bf16.mxu0 0
        %3485 = vmatpush1.bf16.msra.mxu0 0
        %3486 = vmatprep.subr.bf16.mxu0 0
        %3487 = vmatpush1.bf16.msra.mxu0 0
        %3488 = vmatprep.subr.bf16.mxu0 0
        %3489 = vmatpush1.bf16.msra.mxu0 0
        %3490 = vmatprep.subr.bf16.mxu0 0
        %3491 = vmatpush1.bf16.msra.mxu0 0
        %3492 = vmatprep.subr.bf16.mxu0 0
        %3493 = vmatpush1.bf16.msra.mxu0 0
        %3494 = vmatprep.subr.bf16.mxu0 0
        %3495 = vmatpush1.bf16.msra.mxu0 0
        %3496 = vmatprep.subr.bf16.mxu0 0
        %3497 = vmatpush1.bf16.msra.mxu0 0
        %3498 = vmatprep.subr.bf16.mxu0 0
        %3499 = vmatpush1.bf16.msra.mxu0 0
        %3500 = vmatprep.subr.bf16.mxu0 0
        %3501 = vmatpush1.bf16.msra.mxu0 0
        %3502 = vmatprep.subr.bf16.mxu0 0
        %3503 = vmatpush1.bf16.msra.mxu0 0
        %3504 = vmatprep.subr.bf16.mxu0 0
        %3505 = vmatpush1.bf16.msra.mxu0 0
        %3506 = vmatprep.subr.bf16.mxu0 0
        %3507 = vmatpush1.bf16.msra.mxu0 0
        %3508 = vmatprep.subr.bf16.mxu0 0
        %3509 = vmatpush1.bf16.msra.mxu0 0
        %3510 = vmatprep.mubr.bf16.mxu0 0
        %3511 = vmatmul.mubr.bf16.gmra.mrb[0].mxu0 %v2868
        %v3512 = vpop.f32.mrb[0].mxu0
        %v3513 = vadd.f32 %v3353, %v3512
        %v3514 = vpop.f32.mrb[0].mxu0
        %v3515 = vpop.f32.mrb[0].mxu0
        %v3516 = vpop.f32.mrb[0].mxu0
        %3517 = vdwg.mxu0
        %v3522 = vunpack.c.l.b16 %v3330
        %v3523 = vunpack.c.l.b16 %v3331
        %v3524 = vunpack.c.l.b16 %v3332
        %v3525 = vunpack.c.l.b16 %v3333
        %v3526 = vpack.c.b16 %v3523, %v3522
        %v3527 = vpack.c.b16 %v3525, %v3524
        %3530 = vmatprep.subr.bf16.mxu0 0
        %3531 = vmatpush1.bf16.msra.mxu0 %v3526
        %3532 = vmatprep.subr.bf16.mxu0 0
        %3533 = vmatpush1.bf16.msra.mxu0 %v3527
        %3534 = vmatprep.subr.bf16.mxu0 0
        %3535 = vmatpush1.bf16.msra.mxu0 0
        %3536 = vmatprep.subr.bf16.mxu0 0
        %3537 = vmatpush1.bf16.msra.mxu0 0
        %3538 = vmatprep.subr.bf16.mxu0 0
        %3539 = vmatpush1.bf16.msra.mxu0 0
        %3540 = vmatprep.subr.bf16.mxu0 0
        %3541 = vmatpush1.bf16.msra.mxu0 0
        %3542 = vmatprep.subr.bf16.mxu0 0
        %3543 = vmatpush1.bf16.msra.mxu0 0
        %3544 = vmatprep.subr.bf16.mxu0 0
        %3545 = vmatpush1.bf16.msra.mxu0 0
        %3546 = vmatprep.subr.bf16.mxu0 0
        %3547 = vmatpush1.bf16.msra.mxu0 0
        %3548 = vmatprep.subr.bf16.mxu0 0
        %3549 = vmatpush1.bf16.msra.mxu0 0
        %3550 = vmatprep.subr.bf16.mxu0 0
        %3551 = vmatpush1.bf16.msra.mxu0 0
        %3552 = vmatprep.subr.bf16.mxu0 0
        %3553 = vmatpush1.bf16.msra.mxu0 0
        %3554 = vmatprep.subr.bf16.mxu0 0
        %3555 = vmatpush1.bf16.msra.mxu0 0
        %3556 = vmatprep.subr.bf16.mxu0 0
        %3557 = vmatpush1.bf16.msra.mxu0 0
        %3558 = vmatprep.subr.bf16.mxu0 0
        %3559 = vmatpush1.bf16.msra.mxu0 0
        %3560 = vmatprep.subr.bf16.mxu0 0
        %3561 = vmatpush1.bf16.msra.mxu0 0
        %3562 = vmatprep.mubr.bf16.mxu0 0
        %3563 = vmatmul.mubr.bf16.gmra.mrb[0].mxu0 %v2868
        %v3564 = vpop.f32.mrb[0].mxu0
        %v3565 = vadd.f32 %v3357, %v3564
        %v3566 = vpop.f32.mrb[0].mxu0
        %v3567 = vpop.f32.mrb[0].mxu0
        %v3568 = vpop.f32.mrb[0].mxu0
        %3569 = vdwg.mxu0
        %v3570 = vmul.f32 %v2905, 0.35355338
        %v3571 = vmul.f32 %v2957, 0.35355338
        %v3572 = vmul.f32 %v3009, 0.35355338
        %v3573 = vmul.f32 %v3061, 0.35355338
        %v3574 = vpack.c.bf16 %v3570, %v3570
        %v3575 = vpack.c.bf16 %v3571, %v3571
        %v3576 = vpack.c.bf16 %v3572, %v3572
        %v3577 = vpack.c.bf16 %v3573, %v3573
        %v3578 = vpack.c.bf16 %v3157, %v3157
        %v3579 = vpack.c.bf16 %v3209, %v3209
        %v3580 = vpack.c.bf16 %v3261, %v3261
        %v3581 = vpack.c.bf16 %v3313, %v3313
        %v3583 = vsel %vm1965, %v3574, 0
        %v3586 = vsel %vm1965, %v3578, 0
        %3588 = vmatprep.subr.bf16.mxu0 0
        %3589 = vmatpush1.bf16.xpose.msra.mxu0 %v3586
        %3590 = vmatprep.subr.bf16.mxu0 0
        %3591 = vmatpush1.bf16.xpose.msra.mxu0 0
        %3592 = vmatprep.subr.bf16.mxu0 0
        %3593 = vmatpush1.bf16.xpose.msra.mxu0 0
        %3594 = vmatprep.subr.bf16.mxu0 0
        %3595 = vmatpush1.bf16.xpose.msra.mxu0 0
        %3596 = vmatprep.subr.bf16.mxu0 0
        %3597 = vmatpush1.bf16.xpose.msra.mxu0 0
        %3598 = vmatprep.subr.bf16.mxu0 0
        %3599 = vmatpush1.bf16.xpose.msra.mxu0 0
        %3600 = vmatprep.subr.bf16.mxu0 0
        %3601 = vmatpush1.bf16.xpose.msra.mxu0 0
        %3602 = vmatprep.subr.bf16.mxu0 0
        %3603 = vmatpush1.bf16.xpose.msra.mxu0 0
        %3604 = vmatprep.subr.bf16.mxu0 0
        %3605 = vmatpush1.bf16.xpose.msra.mxu0 0
        %3606 = vmatprep.subr.bf16.mxu0 0
        %3607 = vmatpush1.bf16.xpose.msra.mxu0 0
        %3608 = vmatprep.subr.bf16.mxu0 0
        %3609 = vmatpush1.bf16.xpose.msra.mxu0 0
        %3610 = vmatprep.subr.bf16.mxu0 0
        %3611 = vmatpush1.bf16.xpose.msra.mxu0 0
        %3612 = vmatprep.subr.bf16.mxu0 0
        %3613 = vmatpush1.bf16.xpose.msra.mxu0 0
        %3614 = vmatprep.subr.bf16.mxu0 0
        %3615 = vmatpush1.bf16.xpose.msra.mxu0 0
        %3616 = vmatprep.subr.bf16.mxu0 0
        %3617 = vmatpush1.bf16.xpose.msra.mxu0 0
        %3618 = vmatprep.subr.bf16.mxu0 0
        %3619 = vmatpush1.bf16.xpose.msra.mxu0 0
        %3620 = vmatprep.mubr.bf16.mxu0 0
        %3621 = vmatmul.mubr.bf16.gmra.mrb[0].mxu0 %v3583
        %v3622 = vpop.f32.mrb[0].mxu0
        %v3623 = vadd.f32 %v1963, %v3622
        %v3624 = vpop.f32.mrb[0].mxu0
        %v3625 = vpop.f32.mrb[0].mxu0
        %v3626 = vpop.f32.mrb[0].mxu0
        %3627 = vdwg.mxu0
        %v3629 = vsel %vm1965, %v3575, 0
        %v3632 = vsel %vm1965, %v3579, 0
        %3634 = vmatprep.subr.bf16.mxu0 0
        %3635 = vmatpush1.bf16.xpose.msra.mxu0 %v3632
        %3636 = vmatprep.subr.bf16.mxu0 0
        %3637 = vmatpush1.bf16.xpose.msra.mxu0 0
        %3638 = vmatprep.subr.bf16.mxu0 0
        %3639 = vmatpush1.bf16.xpose.msra.mxu0 0
        %3640 = vmatprep.subr.bf16.mxu0 0
        %3641 = vmatpush1.bf16.xpose.msra.mxu0 0
        %3642 = vmatprep.subr.bf16.mxu0 0
        %3643 = vmatpush1.bf16.xpose.msra.mxu0 0
        %3644 = vmatprep.subr.bf16.mxu0 0
        %3645 = vmatpush1.bf16.xpose.msra.mxu0 0
        %3646 = vmatprep.subr.bf16.mxu0 0
        %3647 = vmatpush1.bf16.xpose.msra.mxu0 0
        %3648 = vmatprep.subr.bf16.mxu0 0
        %3649 = vmatpush1.bf16.xpose.msra.mxu0 0
        %3650 = vmatprep.subr.bf16.mxu0 0
        %3651 = vmatpush1.bf16.xpose.msra.mxu0 0
        %3652 = vmatprep.subr.bf16.mxu0 0
        %3653 = vmatpush1.bf16.xpose.msra.mxu0 0
        %3654 = vmatprep.subr.bf16.mxu0 0
        %3655 = vmatpush1.bf16.xpose.msra.mxu0 0
        %3656 = vmatprep.subr.bf16.mxu0 0
        %3657 = vmatpush1.bf16.xpose.msra.mxu0 0
        %3658 = vmatprep.subr.bf16.mxu0 0
        %3659 = vmatpush1.bf16.xpose.msra.mxu0 0
        %3660 = vmatprep.subr.bf16.mxu0 0
        %3661 = vmatpush1.bf16.xpose.msra.mxu0 0
        %3662 = vmatprep.subr.bf16.mxu0 0
        %3663 = vmatpush1.bf16.xpose.msra.mxu0 0
        %3664 = vmatprep.subr.bf16.mxu0 0
        %3665 = vmatpush1.bf16.xpose.msra.mxu0 0
        %3666 = vmatprep.mubr.bf16.mxu0 0
        %3667 = vmatmul.mubr.bf16.gmra.mrb[0].mxu0 %v3629
        %v3668 = vpop.f32.mrb[0].mxu0
        %v3669 = vadd.f32 %v1963, %v3668
        %v3670 = vpop.f32.mrb[0].mxu0
        %v3671 = vpop.f32.mrb[0].mxu0
        %v3672 = vpop.f32.mrb[0].mxu0
        %3673 = vdwg.mxu0
        %v3675 = vsel %vm1965, %v3576, 0
        %v3678 = vsel %vm1965, %v3580, 0
        %3680 = vmatprep.subr.bf16.mxu0 0
        %3681 = vmatpush1.bf16.xpose.msra.mxu0 %v3678
        %3682 = vmatprep.subr.bf16.mxu0 0
        %3683 = vmatpush1.bf16.xpose.msra.mxu0 0
        %3684 = vmatprep.subr.bf16.mxu0 0
        %3685 = vmatpush1.bf16.xpose.msra.mxu0 0
        %3686 = vmatprep.subr.bf16.mxu0 0
        %3687 = vmatpush1.bf16.xpose.msra.mxu0 0
        %3688 = vmatprep.subr.bf16.mxu0 0
        %3689 = vmatpush1.bf16.xpose.msra.mxu0 0
        %3690 = vmatprep.subr.bf16.mxu0 0
        %3691 = vmatpush1.bf16.xpose.msra.mxu0 0
        %3692 = vmatprep.subr.bf16.mxu0 0
        %3693 = vmatpush1.bf16.xpose.msra.mxu0 0
        %3694 = vmatprep.subr.bf16.mxu0 0
        %3695 = vmatpush1.bf16.xpose.msra.mxu0 0
        %3696 = vmatprep.subr.bf16.mxu0 0
        %3697 = vmatpush1.bf16.xpose.msra.mxu0 0
        %3698 = vmatprep.subr.bf16.mxu0 0
        %3699 = vmatpush1.bf16.xpose.msra.mxu0 0
        %3700 = vmatprep.subr.bf16.mxu0 0
        %3701 = vmatpush1.bf16.xpose.msra.mxu0 0
        %3702 = vmatprep.subr.bf16.mxu0 0
        %3703 = vmatpush1.bf16.xpose.msra.mxu0 0
        %3704 = vmatprep.subr.bf16.mxu0 0
        %3705 = vmatpush1.bf16.xpose.msra.mxu0 0
        %3706 = vmatprep.subr.bf16.mxu0 0
        %3707 = vmatpush1.bf16.xpose.msra.mxu0 0
        %3708 = vmatprep.subr.bf16.mxu0 0
        %3709 = vmatpush1.bf16.xpose.msra.mxu0 0
        %3710 = vmatprep.subr.bf16.mxu0 0
        %3711 = vmatpush1.bf16.xpose.msra.mxu0 0
        %3712 = vmatprep.mubr.bf16.mxu0 0
        %3713 = vmatmul.mubr.bf16.gmra.mrb[0].mxu0 %v3675
        %v3714 = vpop.f32.mrb[0].mxu0
        %v3715 = vadd.f32 %v1963, %v3714
        %v3716 = vpop.f32.mrb[0].mxu0
        %v3717 = vpop.f32.mrb[0].mxu0
        %v3718 = vpop.f32.mrb[0].mxu0
        %3719 = vdwg.mxu0
        %v3721 = vsel %vm1965, %v3577, 0
        %v3724 = vsel %vm1965, %v3581, 0
        %3726 = vmatprep.subr.bf16.mxu0 0
        %3727 = vmatpush1.bf16.xpose.msra.mxu0 %v3724
        %3728 = vmatprep.subr.bf16.mxu0 0
        %3729 = vmatpush1.bf16.xpose.msra.mxu0 0
        %3730 = vmatprep.subr.bf16.mxu0 0
        %3731 = vmatpush1.bf16.xpose.msra.mxu0 0
        %3732 = vmatprep.subr.bf16.mxu0 0
        %3733 = vmatpush1.bf16.xpose.msra.mxu0 0
        %3734 = vmatprep.subr.bf16.mxu0 0
        %3735 = vmatpush1.bf16.xpose.msra.mxu0 0
        %3736 = vmatprep.subr.bf16.mxu0 0
        %3737 = vmatpush1.bf16.xpose.msra.mxu0 0
        %3738 = vmatprep.subr.bf16.mxu0 0
        %3739 = vmatpush1.bf16.xpose.msra.mxu0 0
        %3740 = vmatprep.subr.bf16.mxu0 0
        %3741 = vmatpush1.bf16.xpose.msra.mxu0 0
        %3742 = vmatprep.subr.bf16.mxu0 0
        %3743 = vmatpush1.bf16.xpose.msra.mxu0 0
        %3744 = vmatprep.subr.bf16.mxu0 0
        %3745 = vmatpush1.bf16.xpose.msra.mxu0 0
        %3746 = vmatprep.subr.bf16.mxu0 0
        %3747 = vmatpush1.bf16.xpose.msra.mxu0 0
        %3748 = vmatprep.subr.bf16.mxu0 0
        %3749 = vmatpush1.bf16.xpose.msra.mxu0 0
        %3750 = vmatprep.subr.bf16.mxu0 0
        %3751 = vmatpush1.bf16.xpose.msra.mxu0 0
        %3752 = vmatprep.subr.bf16.mxu0 0
        %3753 = vmatpush1.bf16.xpose.msra.mxu0 0
        %3754 = vmatprep.subr.bf16.mxu0 0
        %3755 = vmatpush1.bf16.xpose.msra.mxu0 0
        %3756 = vmatprep.subr.bf16.mxu0 0
        %3757 = vmatpush1.bf16.xpose.msra.mxu0 0
        %3758 = vmatprep.mubr.bf16.mxu0 0
        %3759 = vmatmul.mubr.bf16.gmra.mrb[0].mxu0 %v3721
        %v3760 = vpop.f32.mrb[0].mxu0
        %v3761 = vadd.f32 %v1963, %v3760
        %v3762 = vpop.f32.mrb[0].mxu0
        %v3763 = vpop.f32.mrb[0].mxu0
        %v3764 = vpop.f32.mrb[0].mxu0
        %3765 = vdwg.mxu0
        %v3766 = vsel %vm1965, %v3623, -inf
        %3767 = vmax.xlane.f32.xlu0 %v3766
        %v3768 = vpop.xlane.xlu0 %3767
        %v3769 = vsel %vm1965, %v3669, -inf
        %3770 = vmax.xlane.f32.xlu0 %v3769
        %v3771 = vpop.xlane.xlu0 %3770
        %v3772 = vsel %vm1965, %v3715, -inf
        %3773 = vmax.xlane.f32.xlu0 %v3772
        %v3774 = vpop.xlane.xlu0 %3773
        %v3775 = vsel %vm1965, %v3761, -inf
        %3776 = vmax.xlane.f32.xlu0 %v3775
        %v3777 = vpop.xlane.xlu0 %3776
        %v3778 = vsub.f32 %v3623, %v3768
        %v3779 = vsub.f32 %v3669, %v3771
        %v3780 = vsub.f32 %v3715, %v3774
        %v3781 = vsub.f32 %v3761, %v3777
        %v3782 = vmul.f32 %v3778, 1.442695
        %v3783 = vpow.pop %v3782
        %v3784 = vmul.f32 %v3779, 1.442695
        %v3785 = vpow.pop %v3784
        %v3786 = vmul.f32 %v3780, 1.442695
        %v3787 = vpow.pop %v3786
        %v3788 = vmul.f32 %v3781, 1.442695
        %v3789 = vpow.pop %v3788
        %v3790 = vsel %vm1965, %v3783, 0.0
        %3791 = vadd.xlane.f32.xlu0 %v3790
        %v3792 = vpop.xlane.xlu0 %3791
        %v3793 = vsel %vm1965, %v3785, 0.0
        %3794 = vadd.xlane.f32.xlu0 %v3793
        %v3795 = vpop.xlane.xlu0 %3794
        %v3796 = vsel %vm1965, %v3787, 0.0
        %3797 = vadd.xlane.f32.xlu0 %v3796
        %v3798 = vpop.xlane.xlu0 %3797
        %v3799 = vsel %vm1965, %v3789, 0.0
        %3800 = vadd.xlane.f32.xlu0 %v3799
        %v3801 = vpop.xlane.xlu0 %3800
        %v3802 = vpack.c.bf16 %v3783, %v3783
        %v3803 = vpack.c.bf16 %v3785, %v3785
        %v3804 = vpack.c.bf16 %v3787, %v3787
        %v3805 = vpack.c.bf16 %v3789, %v3789
        %v3806 = vpack.c.bf16 %v3409, %v3409
        %v3807 = vpack.c.bf16 %v3461, %v3461
        %v3808 = vpack.c.bf16 %v3513, %v3513
        %v3809 = vpack.c.bf16 %v3565, %v3565
        %v3811 = vsel %vm1965, %v3802, 0
        %v3814 = vsel %vm2197, %v3806, 0
        %3816 = vmatprep.subr.bf16.mxu0 0
        %3817 = vmatpush1.bf16.msra.mxu0 %v3814
        %3818 = vmatprep.subr.bf16.mxu0 0
        %3819 = vmatpush1.bf16.msra.mxu0 0
        %3820 = vmatprep.subr.bf16.mxu0 0
        %3821 = vmatpush1.bf16.msra.mxu0 0
        %3822 = vmatprep.subr.bf16.mxu0 0
        %3823 = vmatpush1.bf16.msra.mxu0 0
        %3824 = vmatprep.subr.bf16.mxu0 0
        %3825 = vmatpush1.bf16.msra.mxu0 0
        %3826 = vmatprep.subr.bf16.mxu0 0
        %3827 = vmatpush1.bf16.msra.mxu0 0
        %3828 = vmatprep.subr.bf16.mxu0 0
        %3829 = vmatpush1.bf16.msra.mxu0 0
        %3830 = vmatprep.subr.bf16.mxu0 0
        %3831 = vmatpush1.bf16.msra.mxu0 0
        %3832 = vmatprep.subr.bf16.mxu0 0
        %3833 = vmatpush1.bf16.msra.mxu0 0
        %3834 = vmatprep.subr.bf16.mxu0 0
        %3835 = vmatpush1.bf16.msra.mxu0 0
        %3836 = vmatprep.subr.bf16.mxu0 0
        %3837 = vmatpush1.bf16.msra.mxu0 0
        %3838 = vmatprep.subr.bf16.mxu0 0
        %3839 = vmatpush1.bf16.msra.mxu0 0
        %3840 = vmatprep.subr.bf16.mxu0 0
        %3841 = vmatpush1.bf16.msra.mxu0 0
        %3842 = vmatprep.subr.bf16.mxu0 0
        %3843 = vmatpush1.bf16.msra.mxu0 0
        %3844 = vmatprep.subr.bf16.mxu0 0
        %3845 = vmatpush1.bf16.msra.mxu0 0
        %3846 = vmatprep.subr.bf16.mxu0 0
        %3847 = vmatpush1.bf16.msra.mxu0 0
        %3848 = vmatprep.mubr.bf16.mxu0 0
        %3849 = vmatmul.mubr.bf16.gmra.mrb[0].mxu0 %v3811
        %v3850 = vpop.f32.mrb[0].mxu0
        %v3851 = vadd.f32 0.0, %v3850
        %v3852 = vpop.f32.mrb[0].mxu0
        %v3853 = vpop.f32.mrb[0].mxu0
        %v3854 = vpop.f32.mrb[0].mxu0
        %3855 = vdwg.mxu0
        %v3857 = vsel %vm1965, %v3803, 0
        %v3860 = vsel %vm2197, %v3807, 0
        %3862 = vmatprep.subr.bf16.mxu0 0
        %3863 = vmatpush1.bf16.msra.mxu0 %v3860
        %3864 = vmatprep.subr.bf16.mxu0 0
        %3865 = vmatpush1.bf16.msra.mxu0 0
        %3866 = vmatprep.subr.bf16.mxu0 0
        %3867 = vmatpush1.bf16.msra.mxu0 0
        %3868 = vmatprep.subr.bf16.mxu0 0
        %3869 = vmatpush1.bf16.msra.mxu0 0
        %3870 = vmatprep.subr.bf16.mxu0 0
        %3871 = vmatpush1.bf16.msra.mxu0 0
        %3872 = vmatprep.subr.bf16.mxu0 0
        %3873 = vmatpush1.bf16.msra.mxu0 0
        %3874 = vmatprep.subr.bf16.mxu0 0
        %3875 = vmatpush1.bf16.msra.mxu0 0
        %3876 = vmatprep.subr.bf16.mxu0 0
        %3877 = vmatpush1.bf16.msra.mxu0 0
        %3878 = vmatprep.subr.bf16.mxu0 0
        %3879 = vmatpush1.bf16.msra.mxu0 0
        %3880 = vmatprep.subr.bf16.mxu0 0
        %3881 = vmatpush1.bf16.msra.mxu0 0
        %3882 = vmatprep.subr.bf16.mxu0 0
        %3883 = vmatpush1.bf16.msra.mxu0 0
        %3884 = vmatprep.subr.bf16.mxu0 0
        %3885 = vmatpush1.bf16.msra.mxu0 0
        %3886 = vmatprep.subr.bf16.mxu0 0
        %3887 = vmatpush1.bf16.msra.mxu0 0
        %3888 = vmatprep.subr.bf16.mxu0 0
        %3889 = vmatpush1.bf16.msra.mxu0 0
        %3890 = vmatprep.subr.bf16.mxu0 0
        %3891 = vmatpush1.bf16.msra.mxu0 0
        %3892 = vmatprep.subr.bf16.mxu0 0
        %3893 = vmatpush1.bf16.msra.mxu0 0
        %3894 = vmatprep.mubr.bf16.mxu0 0
        %3895 = vmatmul.mubr.bf16.gmra.mrb[0].mxu0 %v3857
        %v3896 = vpop.f32.mrb[0].mxu0
        %v3897 = vadd.f32 0.0, %v3896
        %v3898 = vpop.f32.mrb[0].mxu0
        %v3899 = vpop.f32.mrb[0].mxu0
        %v3900 = vpop.f32.mrb[0].mxu0
        %3901 = vdwg.mxu0
        %v3903 = vsel %vm1965, %v3804, 0
        %v3906 = vsel %vm2197, %v3808, 0
        %3908 = vmatprep.subr.bf16.mxu0 0
        %3909 = vmatpush1.bf16.msra.mxu0 %v3906
        %3910 = vmatprep.subr.bf16.mxu0 0
        %3911 = vmatpush1.bf16.msra.mxu0 0
        %3912 = vmatprep.subr.bf16.mxu0 0
        %3913 = vmatpush1.bf16.msra.mxu0 0
        %3914 = vmatprep.subr.bf16.mxu0 0
        %3915 = vmatpush1.bf16.msra.mxu0 0
        %3916 = vmatprep.subr.bf16.mxu0 0
        %3917 = vmatpush1.bf16.msra.mxu0 0
        %3918 = vmatprep.subr.bf16.mxu0 0
        %3919 = vmatpush1.bf16.msra.mxu0 0
        %3920 = vmatprep.subr.bf16.mxu0 0
        %3921 = vmatpush1.bf16.msra.mxu0 0
        %3922 = vmatprep.subr.bf16.mxu0 0
        %3923 = vmatpush1.bf16.msra.mxu0 0
        %3924 = vmatprep.subr.bf16.mxu0 0
        %3925 = vmatpush1.bf16.msra.mxu0 0
        %3926 = vmatprep.subr.bf16.mxu0 0
        %3927 = vmatpush1.bf16.msra.mxu0 0
        %3928 = vmatprep.subr.bf16.mxu0 0
        %3929 = vmatpush1.bf16.msra.mxu0 0
        %3930 = vmatprep.subr.bf16.mxu0 0
        %3931 = vmatpush1.bf16.msra.mxu0 0
        %3932 = vmatprep.subr.bf16.mxu0 0
        %3933 = vmatpush1.bf16.msra.mxu0 0
        %3934 = vmatprep.subr.bf16.mxu0 0
        %3935 = vmatpush1.bf16.msra.mxu0 0
        %3936 = vmatprep.subr.bf16.mxu0 0
        %3937 = vmatpush1.bf16.msra.mxu0 0
        %3938 = vmatprep.subr.bf16.mxu0 0
        %3939 = vmatpush1.bf16.msra.mxu0 0
        %3940 = vmatprep.mubr.bf16.mxu0 0
        %3941 = vmatmul.mubr.bf16.gmra.mrb[0].mxu0 %v3903
        %v3942 = vpop.f32.mrb[0].mxu0
        %v3943 = vadd.f32 0.0, %v3942
        %v3944 = vpop.f32.mrb[0].mxu0
        %v3945 = vpop.f32.mrb[0].mxu0
        %v3946 = vpop.f32.mrb[0].mxu0
        %3947 = vdwg.mxu0
        %v3949 = vsel %vm1965, %v3805, 0
        %v3952 = vsel %vm2197, %v3809, 0
        %3954 = vmatprep.subr.bf16.mxu0 0
        %3955 = vmatpush1.bf16.msra.mxu0 %v3952
        %3956 = vmatprep.subr.bf16.mxu0 0
        %3957 = vmatpush1.bf16.msra.mxu0 0
        %3958 = vmatprep.subr.bf16.mxu0 0
        %3959 = vmatpush1.bf16.msra.mxu0 0
        %3960 = vmatprep.subr.bf16.mxu0 0
        %3961 = vmatpush1.bf16.msra.mxu0 0
        %3962 = vmatprep.subr.bf16.mxu0 0
        %3963 = vmatpush1.bf16.msra.mxu0 0
        %3964 = vmatprep.subr.bf16.mxu0 0
        %3965 = vmatpush1.bf16.msra.mxu0 0
        %3966 = vmatprep.subr.bf16.mxu0 0
        %3967 = vmatpush1.bf16.msra.mxu0 0
        %3968 = vmatprep.subr.bf16.mxu0 0
        %3969 = vmatpush1.bf16.msra.mxu0 0
        %3970 = vmatprep.subr.bf16.mxu0 0
        %3971 = vmatpush1.bf16.msra.mxu0 0
        %3972 = vmatprep.subr.bf16.mxu0 0
        %3973 = vmatpush1.bf16.msra.mxu0 0
        %3974 = vmatprep.subr.bf16.mxu0 0
        %3975 = vmatpush1.bf16.msra.mxu0 0
        %3976 = vmatprep.subr.bf16.mxu0 0
        %3977 = vmatpush1.bf16.msra.mxu0 0
        %3978 = vmatprep.subr.bf16.mxu0 0
        %3979 = vmatpush1.bf16.msra.mxu0 0
        %3980 = vmatprep.subr.bf16.mxu0 0
        %3981 = vmatpush1.bf16.msra.mxu0 0
        %3982 = vmatprep.subr.bf16.mxu0 0
        %3983 = vmatpush1.bf16.msra.mxu0 0
        %3984 = vmatprep.subr.bf16.mxu0 0
        %3985 = vmatpush1.bf16.msra.mxu0 0
        %3986 = vmatprep.mubr.bf16.mxu0 0
        %3987 = vmatmul.mubr.bf16.gmra.mrb[0].mxu0 %v3949
        %v3988 = vpop.f32.mrb[0].mxu0
        %v3989 = vadd.f32 0.0, %v3988
        %v3990 = vpop.f32.mrb[0].mxu0
        %v3991 = vpop.f32.mrb[0].mxu0
        %v3992 = vpop.f32.mrb[0].mxu0
        %3993 = vdwg.mxu0
        %v3994 = vrcp.pop %v3792
        %v3995 = vrcp.pop %v3795
        %v3996 = vrcp.pop %v3798
        %v3997 = vrcp.pop %v3801
        %v3998 = vmul.f32 %v3851, %v3994
        %v3999 = vmul.f32 %v3897, %v3995
        %v4000 = vmul.f32 %v3943, %v3996
        %v4001 = vmul.f32 %v3989, %v3997
        %v4002 = vpack.c.bf16 %v3998, %v3998
        %v4003 = vpack.c.bf16 %v3999, %v3999
        %v4004 = vpack.c.bf16 %v4000, %v4000
        %v4005 = vpack.c.bf16 %v4001, %v4001
        %v4006 = vld [vmem:[%s55] sm:$0xf]
        %v4007 = vld [vmem:[%s55 + $0x4] sm:$0xf]
        %v4008 = vld [vmem:[%s55 + $0x8] sm:$0xf]
        %v4009 = vld [vmem:[%s55 + $0xc] sm:$0xf]
        %v4011 = vsel %vm1965, %v4002, 0
        %v4014 = vsel %vm2197, %v4006, 0
        %4016 = vmatprep.subr.bf16.mxu0 0
        %4017 = vmatpush1.bf16.msra.mxu0 %v4014
        %4018 = vmatprep.subr.bf16.mxu0 0
        %4019 = vmatpush1.bf16.msra.mxu0 0
        %4020 = vmatprep.subr.bf16.mxu0 0
        %4021 = vmatpush1.bf16.msra.mxu0 0
        %4022 = vmatprep.subr.bf16.mxu0 0
        %4023 = vmatpush1.bf16.msra.mxu0 0
        %4024 = vmatprep.subr.bf16.mxu0 0
        %4025 = vmatpush1.bf16.msra.mxu0 0
        %4026 = vmatprep.subr.bf16.mxu0 0
        %4027 = vmatpush1.bf16.msra.mxu0 0
        %4028 = vmatprep.subr.bf16.mxu0 0
        %4029 = vmatpush1.bf16.msra.mxu0 0
        %4030 = vmatprep.subr.bf16.mxu0 0
        %4031 = vmatpush1.bf16.msra.mxu0 0
        %4032 = vmatprep.subr.bf16.mxu0 0
        %4033 = vmatpush1.bf16.msra.mxu0 0
        %4034 = vmatprep.subr.bf16.mxu0 0
        %4035 = vmatpush1.bf16.msra.mxu0 0
        %4036 = vmatprep.subr.bf16.mxu0 0
        %4037 = vmatpush1.bf16.msra.mxu0 0
        %4038 = vmatprep.subr.bf16.mxu0 0
        %4039 = vmatpush1.bf16.msra.mxu0 0
        %4040 = vmatprep.subr.bf16.mxu0 0
        %4041 = vmatpush1.bf16.msra.mxu0 0
        %4042 = vmatprep.subr.bf16.mxu0 0
        %4043 = vmatpush1.bf16.msra.mxu0 0
        %4044 = vmatprep.subr.bf16.mxu0 0
        %4045 = vmatpush1.bf16.msra.mxu0 0
        %4046 = vmatprep.subr.bf16.mxu0 0
        %4047 = vmatpush1.bf16.msra.mxu0 0
        %4048 = vmatprep.mubr.bf16.mxu0 0
        %4049 = vmatmul.mubr.bf16.gmra.mrb[0].mxu0 %v4011
        %v4050 = vpop.f32.mrb[0].mxu0
        %v4051 = vadd.f32 0.0, %v4050
        %v4052 = vpop.f32.mrb[0].mxu0
        %v4053 = vpop.f32.mrb[0].mxu0
        %v4054 = vpop.f32.mrb[0].mxu0
        %4055 = vdwg.mxu0
        %v4057 = vsel %vm1965, %v4003, 0
        %v4060 = vsel %vm2197, %v4007, 0
        %4062 = vmatprep.subr.bf16.mxu0 0
        %4063 = vmatpush1.bf16.msra.mxu0 %v4060
        %4064 = vmatprep.subr.bf16.mxu0 0
        %4065 = vmatpush1.bf16.msra.mxu0 0
        %4066 = vmatprep.subr.bf16.mxu0 0
        %4067 = vmatpush1.bf16.msra.mxu0 0
        %4068 = vmatprep.subr.bf16.mxu0 0
        %4069 = vmatpush1.bf16.msra.mxu0 0
        %4070 = vmatprep.subr.bf16.mxu0 0
        %4071 = vmatpush1.bf16.msra.mxu0 0
        %4072 = vmatprep.subr.bf16.mxu0 0
        %4073 = vmatpush1.bf16.msra.mxu0 0
        %4074 = vmatprep.subr.bf16.mxu0 0
        %4075 = vmatpush1.bf16.msra.mxu0 0
        %4076 = vmatprep.subr.bf16.mxu0 0
        %4077 = vmatpush1.bf16.msra.mxu0 0
        %4078 = vmatprep.subr.bf16.mxu0 0
        %4079 = vmatpush1.bf16.msra.mxu0 0
        %4080 = vmatprep.subr.bf16.mxu0 0
        %4081 = vmatpush1.bf16.msra.mxu0 0
        %4082 = vmatprep.subr.bf16.mxu0 0
        %4083 = vmatpush1.bf16.msra.mxu0 0
        %4084 = vmatprep.subr.bf16.mxu0 0
        %4085 = vmatpush1.bf16.msra.mxu0 0
        %4086 = vmatprep.subr.bf16.mxu0 0
        %4087 = vmatpush1.bf16.msra.mxu0 0
        %4088 = vmatprep.subr.bf16.mxu0 0
        %4089 = vmatpush1.bf16.msra.mxu0 0
        %4090 = vmatprep.subr.bf16.mxu0 0
        %4091 = vmatpush1.bf16.msra.mxu0 0
        %4092 = vmatprep.subr.bf16.mxu0 0
        %4093 = vmatpush1.bf16.msra.mxu0 0
        %4094 = vmatprep.mubr.bf16.mxu0 0
        %4095 = vmatmul.mubr.bf16.gmra.mrb[0].mxu0 %v4057
        %v4096 = vpop.f32.mrb[0].mxu0
        %v4097 = vadd.f32 0.0, %v4096
        %v4098 = vpop.f32.mrb[0].mxu0
        %v4099 = vpop.f32.mrb[0].mxu0
        %v4100 = vpop.f32.mrb[0].mxu0
        %4101 = vdwg.mxu0
        %v4103 = vsel %vm1965, %v4004, 0
        %v4106 = vsel %vm2197, %v4008, 0
        %4108 = vmatprep.subr.bf16.mxu0 0
        %4109 = vmatpush1.bf16.msra.mxu0 %v4106
        %4110 = vmatprep.subr.bf16.mxu0 0
        %4111 = vmatpush1.bf16.msra.mxu0 0
        %4112 = vmatprep.subr.bf16.mxu0 0
        %4113 = vmatpush1.bf16.msra.mxu0 0
        %4114 = vmatprep.subr.bf16.mxu0 0
        %4115 = vmatpush1.bf16.msra.mxu0 0
        %4116 = vmatprep.subr.bf16.mxu0 0
        %4117 = vmatpush1.bf16.msra.mxu0 0
        %4118 = vmatprep.subr.bf16.mxu0 0
        %4119 = vmatpush1.bf16.msra.mxu0 0
        %4120 = vmatprep.subr.bf16.mxu0 0
        %4121 = vmatpush1.bf16.msra.mxu0 0
        %4122 = vmatprep.subr.bf16.mxu0 0
        %4123 = vmatpush1.bf16.msra.mxu0 0
        %4124 = vmatprep.subr.bf16.mxu0 0
        %4125 = vmatpush1.bf16.msra.mxu0 0
        %4126 = vmatprep.subr.bf16.mxu0 0
        %4127 = vmatpush1.bf16.msra.mxu0 0
        %4128 = vmatprep.subr.bf16.mxu0 0
        %4129 = vmatpush1.bf16.msra.mxu0 0
        %4130 = vmatprep.subr.bf16.mxu0 0
        %4131 = vmatpush1.bf16.msra.mxu0 0
        %4132 = vmatprep.subr.bf16.mxu0 0
        %4133 = vmatpush1.bf16.msra.mxu0 0
        %4134 = vmatprep.subr.bf16.mxu0 0
        %4135 = vmatpush1.bf16.msra.mxu0 0
        %4136 = vmatprep.subr.bf16.mxu0 0
        %4137 = vmatpush1.bf16.msra.mxu0 0
        %4138 = vmatprep.subr.bf16.mxu0 0
        %4139 = vmatpush1.bf16.msra.mxu0 0
        %4140 = vmatprep.mubr.bf16.mxu0 0
        %4141 = vmatmul.mubr.bf16.gmra.mrb[0].mxu0 %v4103
        %v4142 = vpop.f32.mrb[0].mxu0
        %v4143 = vadd.f32 0.0, %v4142
        %v4144 = vpop.f32.mrb[0].mxu0
        %v4145 = vpop.f32.mrb[0].mxu0
        %v4146 = vpop.f32.mrb[0].mxu0
        %4147 = vdwg.mxu0
        %v4149 = vsel %vm1965, %v4005, 0
        %v4152 = vsel %vm2197, %v4009, 0
        %4154 = vmatprep.subr.bf16.mxu0 0
        %4155 = vmatpush1.bf16.msra.mxu0 %v4152
        %4156 = vmatprep.subr.bf16.mxu0 0
        %4157 = vmatpush1.bf16.msra.mxu0 0
        %4158 = vmatprep.subr.bf16.mxu0 0
        %4159 = vmatpush1.bf16.msra.mxu0 0
        %4160 = vmatprep.subr.bf16.mxu0 0
        %4161 = vmatpush1.bf16.msra.mxu0 0
        %4162 = vmatprep.subr.bf16.mxu0 0
        %4163 = vmatpush1.bf16.msra.mxu0 0
        %4164 = vmatprep.subr.bf16.mxu0 0
        %4165 = vmatpush1.bf16.msra.mxu0 0
        %4166 = vmatprep.subr.bf16.mxu0 0
        %4167 = vmatpush1.bf16.msra.mxu0 0
        %4168 = vmatprep.subr.bf16.mxu0 0
        %4169 = vmatpush1.bf16.msra.mxu0 0
        %4170 = vmatprep.subr.bf16.mxu0 0
        %4171 = vmatpush1.bf16.msra.mxu0 0
        %4172 = vmatprep.subr.bf16.mxu0 0
        %4173 = vmatpush1.bf16.msra.mxu0 0
        %4174 = vmatprep.subr.bf16.mxu0 0
        %4175 = vmatpush1.bf16.msra.mxu0 0
        %4176 = vmatprep.subr.bf16.mxu0 0
        %4177 = vmatpush1.bf16.msra.mxu0 0
        %4178 = vmatprep.subr.bf16.mxu0 0
        %4179 = vmatpush1.bf16.msra.mxu0 0
        %4180 = vmatprep.subr.bf16.mxu0 0
        %4181 = vmatpush1.bf16.msra.mxu0 0
        %4182 = vmatprep.subr.bf16.mxu0 0
        %4183 = vmatpush1.bf16.msra.mxu0 0
        %4184 = vmatprep.subr.bf16.mxu0 0
        %4185 = vmatpush1.bf16.msra.mxu0 0
        %4186 = vmatprep.mubr.bf16.mxu0 0
        %4187 = vmatmul.mubr.bf16.gmra.mrb[0].mxu0 %v4149
        %v4188 = vpop.f32.mrb[0].mxu0
        %v4189 = vadd.f32 0.0, %v4188
        %v4190 = vpop.f32.mrb[0].mxu0
        %v4191 = vpop.f32.mrb[0].mxu0
        %v4192 = vpop.f32.mrb[0].mxu0
        %4193 = vdwg.mxu0
        %v4194 = vadd.f32 %v4051, %v4097
        %v4195 = vadd.f32 %v4194, %v4143
        %v4196 = vadd.f32 %v4195, %v4189
        %v4197 = vld [vmem:[%s57] sm:$0x1]
        %v4199 = vlaneseq
        %v4200 = vshrl.u32 %v4199, 7
        %v4201 = vsub.s32 0, %v4200
        %v4202 = vrot.slane %v4197, %v4201
        %v4204 = vadd.f32 %v4196, %v4202
        %v4205 = vadd.f32 %v2809, %v4204
        %v4206 = vld [vmem:[%s59] sm:$0x1]
        %v4207 = vld [vmem:[%s61] sm:$0x1]
        %v4208 = vsel %vm1157, %v4205, 0.0
        %4209 = vadd.xlane.f32.xlu0 %v4208
        %v4210 = vpop.xlane.xlu0 %4209
        %v4211 = vmul.f32 %v4210, %v1161
        %v4212 = vsub.f32 %v4205, %v4211
        %v4213 = vmul.f32 %v4212, %v4212
        %v4214 = vsel %vm1157, %v4213, 0.0
        %4215 = vadd.xlane.f32.xlu0 %v4214
        %v4216 = vpop.xlane.xlu0 %4215
        %v4217 = vmul.f32 %v4216, %v1161
        %v4218 = vadd.f32 %v4217, 1e-12
        %v4219 = vrsqrt.pop %v4218
        %v4220 = vmul.f32 %v4212, %v4219
        %v4222 = vlaneseq
        %v4223 = vshrl.u32 %v4222, 7
        %v4224 = vsub.s32 0, %v4223
        %v4225 = vrot.slane %v4206, %v4224
        %v4227 = vmul.f32 %v4220, %v4225
        %v4229 = vlaneseq
        %v4230 = vshrl.u32 %v4229, 7
        %v4231 = vsub.s32 0, %v4230
        %v4232 = vrot.slane %v4207, %v4231
        %v4234 = vadd.f32 %v4227, %v4232
        %v4235 = vpack.c.bf16 %v4234, %v4234
        %v4236 = vld [vmem:[%s63] sm:$0xf]
        %v4237 = vld [vmem:[%s63 + $0x4] sm:$0xf]
        %v4238 = vld [vmem:[%s63 + $0x8] sm:$0xf]
        %v4239 = vld [vmem:[%s63 + $0xc] sm:$0xf]
        %v4240 = vld [vmem:[%s65] sm:$0x1]
        %v4242 = vlaneseq
        %v4243 = vshrl.u32 %v4242, 7
        %v4244 = vsub.s32 0, %v4243
        %v4245 = vrot.slane %v4240, %v4244
        %v4251 = vunpack.c.l.b16 %v4236
        %v4252 = vunpack.c.l.b16 %v4237
        %v4253 = vunpack.c.l.b16 %v4238
        %v4254 = vunpack.c.l.b16 %v4239
        %v4255 = vpack.c.b16 %v4252, %v4251
        %v4256 = vpack.c.b16 %v4254, %v4253
        %v4260 = vsel %vm1157, %v4235, 0
        %4262 = vmatprep.subr.bf16.mxu0 0
        %4263 = vmatpush1.bf16.msra.mxu0 %v4255
        %4264 = vmatprep.subr.bf16.mxu0 0
        %4265 = vmatpush1.bf16.msra.mxu0 %v4256
        %4266 = vmatprep.subr.bf16.mxu0 0
        %4267 = vmatpush1.bf16.msra.mxu0 0
        %4268 = vmatprep.subr.bf16.mxu0 0
        %4269 = vmatpush1.bf16.msra.mxu0 0
        %4270 = vmatprep.subr.bf16.mxu0 0
        %4271 = vmatpush1.bf16.msra.mxu0 0
        %4272 = vmatprep.subr.bf16.mxu0 0
        %4273 = vmatpush1.bf16.msra.mxu0 0
        %4274 = vmatprep.subr.bf16.mxu0 0
        %4275 = vmatpush1.bf16.msra.mxu0 0
        %4276 = vmatprep.subr.bf16.mxu0 0
        %4277 = vmatpush1.bf16.msra.mxu0 0
        %4278 = vmatprep.subr.bf16.mxu0 0
        %4279 = vmatpush1.bf16.msra.mxu0 0
        %4280 = vmatprep.subr.bf16.mxu0 0
        %4281 = vmatpush1.bf16.msra.mxu0 0
        %4282 = vmatprep.subr.bf16.mxu0 0
        %4283 = vmatpush1.bf16.msra.mxu0 0
        %4284 = vmatprep.subr.bf16.mxu0 0
        %4285 = vmatpush1.bf16.msra.mxu0 0
        %4286 = vmatprep.subr.bf16.mxu0 0
        %4287 = vmatpush1.bf16.msra.mxu0 0
        %4288 = vmatprep.subr.bf16.mxu0 0
        %4289 = vmatpush1.bf16.msra.mxu0 0
        %4290 = vmatprep.subr.bf16.mxu0 0
        %4291 = vmatpush1.bf16.msra.mxu0 0
        %4292 = vmatprep.subr.bf16.mxu0 0
        %4293 = vmatpush1.bf16.msra.mxu0 0
        %4294 = vmatprep.mubr.bf16.mxu0 0
        %4295 = vmatmul.mubr.bf16.gmra.mrb[0].mxu0 %v4260
        %v4296 = vpop.f32.mrb[0].mxu0
        %v4297 = vadd.f32 %v4245, %v4296
        %v4298 = vpop.f32.mrb[0].mxu0
        %v4299 = vpop.f32.mrb[0].mxu0
        %v4300 = vpop.f32.mrb[0].mxu0
        %4301 = vdwg.mxu0
        %v4302 = vmul.f32 %v4297, 0.5
        %v4303 = vmul.f32 %v4297, 0.044715
        %v4304 = vmul.f32 %v4303, %v4297
        %v4305 = vmul.f32 %v4304, %v4297
        %v4306 = vadd.f32 %v4297, %v4305
        %v4307 = vmul.f32 %v4306, 0.7978846
        %v4308 = vtanh.pop %v4307
        %v4309 = vadd.f32 %v4308, 1.0
        %v4310 = vmul.f32 %v4302, %v4309
        %v4311 = vpack.c.bf16 %v4310, %v4310
        %v4312 = vld [vmem:[%s67] sm:$0xf]
        %v4313 = vld [vmem:[%s67 + $0x4] sm:$0xf]
        %v4314 = vld [vmem:[%s67 + $0x8] sm:$0xf]
        %v4315 = vld [vmem:[%s67 + $0xc] sm:$0xf]
        %v4316 = vld [vmem:[%s67 + $0x10] sm:$0xf]
        %v4317 = vld [vmem:[%s67 + $0x14] sm:$0xf]
        %v4318 = vld [vmem:[%s67 + $0x18] sm:$0xf]
        %v4319 = vld [vmem:[%s67 + $0x1c] sm:$0xf]
        %v4320 = vld [vmem:[%s69] sm:$0x1]
        %v4322 = vlaneseq
        %v4323 = vshrl.u32 %v4322, 7
        %v4324 = vsub.s32 0, %v4323
        %v4325 = vrot.slane %v4320, %v4324
        %v4335 = vunpack.c.l.b16 %v4312
        %v4336 = vunpack.c.l.b16 %v4313
        %v4337 = vunpack.c.l.b16 %v4314
        %v4338 = vunpack.c.l.b16 %v4315
        %v4339 = vunpack.c.l.b16 %v4316
        %v4340 = vunpack.c.l.b16 %v4317
        %v4341 = vunpack.c.l.b16 %v4318
        %v4342 = vunpack.c.l.b16 %v4319
        %v4343 = vpack.c.b16 %v4336, %v4335
        %v4344 = vpack.c.b16 %v4338, %v4337
        %v4345 = vpack.c.b16 %v4340, %v4339
        %v4346 = vpack.c.b16 %v4342, %v4341
        %v4352 = vsel %vm2736, %v4311, 0
        %4354 = vmatprep.subr.bf16.mxu0 0
        %4355 = vmatpush1.bf16.msra.mxu0 %v4343
        %4356 = vmatprep.subr.bf16.mxu0 0
        %4357 = vmatpush1.bf16.msra.mxu0 %v4344
        %4358 = vmatprep.subr.bf16.mxu0 0
        %4359 = vmatpush1.bf16.msra.mxu0 %v4345
        %4360 = vmatprep.subr.bf16.mxu0 0
        %4361 = vmatpush1.bf16.msra.mxu0 %v4346
        %4362 = vmatprep.subr.bf16.mxu0 0
        %4363 = vmatpush1.bf16.msra.mxu0 0
        %4364 = vmatprep.subr.bf16.mxu0 0
        %4365 = vmatpush1.bf16.msra.mxu0 0
        %4366 = vmatprep.subr.bf16.mxu0 0
        %4367 = vmatpush1.bf16.msra.mxu0 0
        %4368 = vmatprep.subr.bf16.mxu0 0
        %4369 = vmatpush1.bf16.msra.mxu0 0
        %4370 = vmatprep.subr.bf16.mxu0 0
        %4371 = vmatpush1.bf16.msra.mxu0 0
        %4372 = vmatprep.subr.bf16.mxu0 0
        %4373 = vmatpush1.bf16.msra.mxu0 0
        %4374 = vmatprep.subr.bf16.mxu0 0
        %4375 = vmatpush1.bf16.msra.mxu0 0
        %4376 = vmatprep.subr.bf16.mxu0 0
        %4377 = vmatpush1.bf16.msra.mxu0 0
        %4378 = vmatprep.subr.bf16.mxu0 0
        %4379 = vmatpush1.bf16.msra.mxu0 0
        %4380 = vmatprep.subr.bf16.mxu0 0
        %4381 = vmatpush1.bf16.msra.mxu0 0
        %4382 = vmatprep.subr.bf16.mxu0 0
        %4383 = vmatpush1.bf16.msra.mxu0 0
        %4384 = vmatprep.subr.bf16.mxu0 0
        %4385 = vmatpush1.bf16.msra.mxu0 0
        %4386 = vmatprep.mubr.bf16.mxu0 0
        %4387 = vmatmul.mubr.bf16.gmra.mrb[0].mxu0 %v4352
        %v4388 = vpop.f32.mrb[0].mxu0
        %v4389 = vadd.f32 %v4325, %v4388
        %v4390 = vpop.f32.mrb[0].mxu0
        %v4391 = vpop.f32.mrb[0].mxu0
        %v4392 = vpop.f32.mrb[0].mxu0
        %4393 = vdwg.mxu0
        %v4394 = vadd.f32 %v4234, %v4389
        %v4395 = vld [vmem:[%s71] sm:$0x1]
        %v4396 = vld [vmem:[%s73] sm:$0x1]
        %v4397 = vsel %vm1157, %v4394, 0.0
        %4398 = vadd.xlane.f32.xlu0 %v4397
        %v4399 = vpop.xlane.xlu0 %4398
        %v4400 = vmul.f32 %v4399, %v1161
        %v4401 = vsub.f32 %v4394, %v4400
        %v4402 = vmul.f32 %v4401, %v4401
        %v4403 = vsel %vm1157, %v4402, 0.0
        %4404 = vadd.xlane.f32.xlu0 %v4403
        %v4405 = vpop.xlane.xlu0 %4404
        %v4406 = vmul.f32 %v4405, %v1161
        %v4407 = vadd.f32 %v4406, 1e-12
        %v4408 = vrsqrt.pop %v4407
        %v4409 = vmul.f32 %v4401, %v4408
        %v4411 = vlaneseq
        %v4412 = vshrl.u32 %v4411, 7
        %v4413 = vsub.s32 0, %v4412
        %v4414 = vrot.slane %v4395, %v4413
        %v4416 = vmul.f32 %v4409, %v4414
        %v4418 = vlaneseq
        %v4419 = vshrl.u32 %v4418, 7
        %v4420 = vsub.s32 0, %v4419
        %v4421 = vrot.slane %v4396, %v4420
        %v4423 = vadd.f32 %v4416, %v4421
        %v4424 = vld [vmem:[%s1151] sm:$0xff]
        %4426 = vset.pattern.permute.xlu0 0
        %4427 = vperm.xlu0 %4426, %v4424
        %v4428 = vpop.permute.xlu0 %4427
        %v4430 = vmul.f32 %v4423, %v4428
        %v4431 = vsel %vm1157, %v4430, -inf
        %v4432 = vrot.slane %v4431, 4
        %v4433 = vmax.f32 %v4431, %v4432
        %v4434 = vrot.slane %v4433, 2
        %v4435 = vmax.f32 %v4433, %v4434
        %v4436 = vrot.slane %v4435, 1
        %v4437 = vmax.f32 %v4435, %v4436
        %vm4438 = vcmask 253952
        %4439 = vst.msk [vmem:[%s1140] sm:$0x1] %vm4438, %v4437
        %s4440 = sand.u32 %s889, 1
        %s4441 = scalar_lea.sflag [#allocation3], %s4440
        %s4442 = sand.u32 %s889, 1
        %s4443 = scalar_lea.vmem [#allocation2], %s4442
        // Predicated region
        $region169: #{tpu_custom_call.1} parent=167 // pred_check
          %p4444 = pneg %p899
        $region170: #{tpu_custom_call.1} parent=167 // pred_check_branch
          %4446 = sbr.rel (%p4444) target = $region172
        $region171: #{tpu_custom_call.1} parent=167 // pred_region
          %s4448 = ssub.s32 16, 16
          %4449 = vsyncadd %s4441, %s4448
          %s4450 = smul.addr %s89, 16
          %s4451 = scalar_lea.hbm %s75, %s4450
          %s4453 = sshll.u32 %s4443, 4
          %s4454 = int_to_ptr.vmem [resolvable:$true] %s4453
          %4456 = dma.vmem_to_hbm [thread:$0]  %s4454, 16, %s4451, %s4441
        $region172: #{tpu_custom_call.1} parent=167 // pred_fallthru
          _
      $region168: #{tpu_custom_call.1} parent=5 // pred_fallthru
        _
      %p4457 = scmp.le.s32.totalorder 2, %s84
      // Predicated region
      $region173: #{tpu_custom_call.1} parent=5 // pred_check
        %p4458 = pneg %p4457
      $region174: #{tpu_custom_call.1} parent=5 // pred_check_branch
        %4460 = sbr.rel (%p4458) target = $region176
      $region175: #{tpu_custom_call.1} parent=5 // pred_region
        %s4461 = ssub.s32 %s84, 2
        // Predicated region
        $region177: #{tpu_custom_call.1} parent=175 // pred_check
          %p4462 = pneg %p905
        $region178: #{tpu_custom_call.1} parent=175 // pred_check_branch
          %4464 = sbr.rel (%p4462) target = $region180
        $region179: #{tpu_custom_call.1} parent=175 // pred_region
          %s4465 = sand.u32 %s890, 1
          %s4466 = scalar_lea.sflag [#allocation3], %s4465
          %s4467 = sand.u32 %s890, 1
          %s4468 = scalar_lea.vmem [#allocation2], %s4467
          %4469 = dma.done %s4466, 16
        $region180: #{tpu_custom_call.1} parent=175 // pred_fallthru
          _
      $region176: #{tpu_custom_call.1} parent=5 // pred_fallthru
        _
    $region6: #{tpu_custom_call.1} parent=1 // loop_footer
      %s88 = sadd.s32 1, %s84
    $region7: #{tpu_custom_call.1} parent=1 // loop_footer_branch
      %83 = sbr.rel target = $region3
    $region8: #{tpu_custom_call.1} parent=1 // loop_exit
      _
    %4470 = vsyncpa [#allocation3], 1
    %s4471 = scalar_lea.sflag [#allocation3], 1
    %4472 = vsyncpa %s4471, 1

</llo_original>
